<compile_context>
chip_gen: v7x
topology: tpu7x:2x2x1
jax: 0.10.0
libtpu: 0.0.40
codegen_flags: <defaults>
</compile_context>

<pallas_src>
import numpy as np

import jax
import jax.numpy as jnp
from jax.experimental import pallas as pl
from jax.experimental.pallas import tpu as pltpu

LANE = 128  # channel padding target: lane-dense stores / full MXU columns


# ---------------------------------------------------------------------------
# Fused conv-stack kernel
# ---------------------------------------------------------------------------
def _make_kernel(n_layers, H, W, Cp, relu_flags, with_feature, add_skip):
    Hp, Wp, M = H + 2, W + 2, H * W

    def kernel(*refs):
        i = 0
        x_ref = refs[i]; i += 1              # (1, Hp, Wp, Cp) spatially padded input
        w_ref = refs[i]; i += 1              # (n_layers, 9, Cp, Cp) packed weights
        skip_ref = None
        if add_skip:
            skip_ref = refs[i]; i += 1       # (1, M, Cp) residual at natural lanes
        out_ref = refs[i]; i += 1            # (1, M, Cp)
        feat_ref = None
        if with_feature:
            feat_ref = refs[i]; i += 1       # (1, n_layers, M, Cp)
        scr = refs[i] if n_layers > 1 else None   # (Hp, Wp, Cp) VMEM scratch

        if n_layers > 1:
            # zero once per step -> the spatial halo of the inter-layer buffer is 0
            scr[...] = jnp.zeros((Hp, Wp, Cp), jnp.float32)

        # row with 1.0 at lane 0: re-inserts the all-ones const channel between layers
        const_row = (jax.lax.broadcasted_iota(jnp.int32, (1, Cp), 1) == 0).astype(
            jnp.float32)

        acc = jnp.zeros((M, Cp), jnp.float32)
        for l in range(n_layers):
            acc = jnp.zeros((M, Cp), jnp.float32)
            for dy in range(3):
                for dx in range(3):
                    if l == 0:
                        src = x_ref[0, dy:dy + H, dx:dx + W, :]
                    else:
                        src = scr[dy:dy + H, dx:dx + W, :]
                    acc = acc + jnp.dot(
                        src.reshape(M, Cp),
                        w_ref[l, 3 * dy + dx],
                        preferred_element_type=jnp.float32,
                    )
            if relu_flags[l]:
                acc = jnp.maximum(acc, 0.0)
            if with_feature:
                feat_ref[0, l] = acc
            if l < n_layers - 1:
                # intermediate weights place outputs at lanes 1..C, so adding the
                # const row directly yields the next layer's (const, act) input
                scr[1:1 + H, 1:1 + W, :] = (acc + const_row).reshape(H, W, Cp)

        if add_skip:
            acc = acc + skip_ref[0]
        out_ref[0] = acc

    return kernel


def _build_stack_runner(w_packed, n_layers, C, H, W, relu_flags, with_feature,
                        add_skip):
    assert n_layers >= 1
    Cp = w_packed.shape[-1]
    Hp, Wp, M = H + 2, W + 2, H * W
    kernel = _make_kernel(n_layers, H, W, Cp, relu_flags, with_feature, add_skip)

    def run(x_inner):                          # x_inner: (B, C, H, W), no const channel
        B = x_inner.shape[0]
        x_nhwc = jnp.transpose(x_inner, (0, 2, 3, 1)).astype(jnp.float32)  # (B,H,W,C)

        # lane-dense, spatially padded input: const 1 at lane 0 (interior only),
        # data at lanes 1..C, zeros elsewhere (halo rows/cols are all zero).
        x_pad = jnp.zeros((B, Hp, Wp, Cp), jnp.float32)
        x_pad = x_pad.at[:, 1:1 + H, 1:1 + W, 0].set(1.0)
        x_pad = x_pad.at[:, 1:1 + H, 1:1 + W, 1:1 + C].set(x_nhwc)

        in_specs = [
            pl.BlockSpec((1, Hp, Wp, Cp), lambda b: (b, 0, 0, 0)),
            pl.BlockSpec((n_layers, 9, Cp, Cp), lambda b: (0, 0, 0, 0)),
        ]
        args = [x_pad, w_packed]
        if add_skip:
            skip = jnp.zeros((B, M, Cp), jnp.float32)
            skip = skip.at[:, :, :C].set(x_nhwc.reshape(B, M, C))
            in_specs.append(pl.BlockSpec((1, M, Cp), lambda b: (b, 0, 0)))
            args.append(skip)

        out_shape = [jax.ShapeDtypeStruct((B, M, Cp), jnp.float32)]
        out_specs = [pl.BlockSpec((1, M, Cp), lambda b: (b, 0, 0))]
        if with_feature:
            out_shape.append(jax.ShapeDtypeStruct((B, n_layers, M, Cp), jnp.float32))
            out_specs.append(pl.BlockSpec((1, n_layers, M, Cp),
                                          lambda b: (b, 0, 0, 0)))

        scratch = [pltpu.VMEM((Hp, Wp, Cp), jnp.float32)] if n_layers > 1 else []

        res = pl.pallas_call(
            kernel,
            out_shape=tuple(out_shape),
            grid_spec=pltpu.PrefetchScalarGridSpec(
                num_scalar_prefetch=0,
                grid=(B,),
                in_specs=in_specs,
                out_specs=tuple(out_specs),
                scratch_shapes=scratch,
            ),
            # total VMEM footprint here is < 4 MiB, far under every generation's
            # default scoped limit, so no explicit vmem_limit_bytes is needed.
            compiler_params=pltpu.CompilerParams(
                dimension_semantics=("parallel",)),
        )(*args)

        out = res[0]
        ans = jnp.transpose(out[:, :, :C].reshape(B, H, W, C), (0, 3, 1, 2))
        feats = None
        if with_feature:
            f_raw = res[1]
            feats = []
            for l in range(n_layers):
                off = 1 if l < n_layers - 1 else 0   # intermediate layers are lane-shifted
                f = f_raw[:, l, :, off:off + C].reshape(B, H, W, C)
                feats.append(jnp.transpose(f, (0, 3, 1, 2)))
        return ans, feats

    return jax.jit(run)


# ---------------------------------------------------------------------------
# Model wrapper mirroring SkipConnectionSubModel.forward
# ---------------------------------------------------------------------------
class SkipConnectionSubModelPallas:
    """Stack of ConvLayer(3x3, const-channel bias, act) + residual skip, Pallas-backed."""

    def __init__(self, weights, relu_flags, n_feats, skip_connection_bias=0.0,
                 sum_output=True):
        assert len(weights) == len(relu_flags)
        self.weights = [np.asarray(w, np.float32) for w in weights]
        for w in self.weights:
            assert w.shape == (n_feats, n_feats + 1, 3, 3)
        self.relu_flags = tuple(bool(r) for r in relu_flags)
        self.n_feats = int(n_feats)
        self.bias = float(skip_connection_bias)
        self.sum_output = bool(sum_output)
        self._runners = {}

    def __len__(self):
        return len(self.weights)

    def _pack(self, start, stop):
        """Pack (Cout, Cin+1, 3, 3) weights into (L, 9, 128, 128) tap matrices.
        Rows = padded input lanes (const at 0, data at 1..C); columns = output lanes.
        Intermediate layers' output columns are shifted by +1 so their result can be
        used directly (plus the const row) as the next layer's padded input."""
        C, Cp = self.n_feats, LANE
        n = stop - start
        packed = np.zeros((n, 9, Cp, Cp), np.float32)
        for l in range(n):
            w = self.weights[start + l]                # (C, C+1, 3, 3)
            shift = 1 if l < n - 1 else 0
            for dy in range(3):
                for dx in range(3):
                    packed[l, 3 * dy + dx, :C + 1, shift:shift + C] = w[:, :, dy, dx].T
        return jnp.asarray(packed)

    def _get_runner(self, start, stop, with_feature, add_skip, H, W):
        key = (start, stop, with_feature, add_skip, H, W)
        if key not in self._runners:
            w_packed = self._pack(start, stop)
            self._runners[key] = _build_stack_runner(
                w_packed, stop - start, self.n_feats, H, W,
                self.relu_flags[start:stop], with_feature, add_skip)
        return self._runners[key]

    def forward(self, x, with_feature=False, start_forward_from=0, until=None):
        B, C1, H, W = x.shape
        C = self.n_feats
        assert C1 == C + 1, "input must carry the const-1 channel at channel 0"
        x_inner = x[:, 1:]
        L = len(self)

        # normalize indices like ConvertibleModel.forward
        start = 0 if start_forward_from is None else (
            L + start_forward_from if start_forward_from < 0 else start_forward_from)
        stop = L if until is None else (L + until if until < 0 else until)
        start, stop = max(0, start), min(L, stop)
        partial = (until is not None) and (until < L)
        assert stop > start, "empty layer range is not supported"

        if with_feature:
            runner = self._get_runner(start, stop, True, self.sum_output, H, W)
            out, feats = runner(x_inner)           # out already includes +x if sum_output
            skip_b = x_inner + self.bias
            if self.sum_output:
                # last layer is a 3x3 conv (never a mergeable 1x1); mirror the torch
                # in-place aliasing: f_list[-1] is the skip-added output.
                f_list = [jnp.concatenate([skip_b, f], axis=1) for f in feats[:-1]]
                f_list.append(out)
            else:
                f_list = [jnp.concatenate([skip_b, f], axis=1) for f in feats]
                out = jnp.concatenate([x_inner, out], axis=1)
            return f_list, out
        elif partial:
            runner = self._get_runner(start, stop, False, False, H, W)
            ans, _ = runner(x_inner)
            return jnp.concatenate([x_inner + self.bias, ans], axis=1)
        else:
            runner = self._get_runner(start, stop, False, self.sum_output, H, W)
            ans, _ = runner(x_inner)
            if self.sum_output:
                return ans                         # skip add fused into the kernel
            return jnp.concatenate([x_inner, ans], axis=1)

    __call__ = forward

    # TODO(synk): to_convertible_layers / init_student / generate_inference_model are
    # training-time graph-surgery utilities, not part of the forward pass.


# ---------------------------------------------------------------------------
# Plain-JAX reference (per-layer const-channel pad + 3x3 conv + act)
# ---------------------------------------------------------------------------
def _reference_stack(x_inner, weights, relu_flags):
    h = x_inner
    feats = []
    for w, relu in zip(weights, relu_flags):
        h_in = jnp.concatenate([jnp.ones_like(h[:, :1]), h], axis=1)
        h = jax.lax.conv_general_dilated(
            h_in, jnp.asarray(w), window_strides=(1, 1), padding=((1, 1), (1, 1)),
            dimension_numbers=("NCHW", "OIHW", "NCHW"),
            precision=jax.lax.Precision.HIGHEST)
        if relu:
            h = jnp.maximum(h, 0.0)
        feats.append(h)
    return feats, h


# ---------------------------------------------------------------------------
# Demo / self-test
# ---------------------------------------------------------------------------
if __name__ == "__main__":
    key = jax.random.PRNGKey(0)
    k_x, k0, k1, k2 = jax.random.split(key, 4)

    B, C, H, W = 2, 4, 16, 16
    L = 3
    x_inner = jax.random.normal(k_x, (B, C, H, W), jnp.float32)
    x = jnp.concatenate([jnp.ones((B, 1, H, W), jnp.float32), x_inner], axis=1)

    # three ConvLayers: (C -> C) 3x3, bias encoded via the const-channel weights
    weights = [jax.random.uniform(k, (C, C + 1, 3, 3), jnp.float32, -0.35, 0.35)
               for k in (k0, k1, k2)]
    relu_flags = (True, True, False)     # ReLU, ReLU, Identity (act(x)=x for x>=0)

    model = SkipConnectionSubModelPallas(
        weights, relu_flags, n_feats=C, skip_connection_bias=0.5, sum_output=True)

    # tolerance covers possible MXU reduced-precision f32 accumulation vs the
    # HIGHEST-precision XLA reference; structural errors would be O(0.1 - 1).
    TOL = dict(atol=1e-2, rtol=1e-2)

    # ---- full forward (skip add fused in-kernel) ---------------------------
    y = jax.block_until_ready(model(x))
    ref_feats, ref_final = _reference_stack(x_inner, weights, relu_flags)
    ref_out = x_inner + ref_final
    assert y.shape == (B, C, H, W)
    assert jnp.allclose(y, ref_out, **TOL), \
        f"full forward mismatch: {float(jnp.max(jnp.abs(y - ref_out)))}"

    # ---- with_feature forward ----------------------------------------------
    f_list, y2 = model(x, with_feature=True)
    y2 = jax.block_until_ready(y2)
    exp_feats = [jnp.concatenate([x_inner + 0.5, f], axis=1)
                 for f in ref_feats[:-1]] + [ref_out]
    assert len(f_list) == L
    for f, ef in zip(f_list, exp_feats):
        assert f.shape == ef.shape
        assert jnp.allclose(f, ef, **TOL)
    assert jnp.allclose(y2, ref_out, **TOL)

    # ---- partial forward (until < len): cat([x + bias, layers[0:2](x)]) ----
    y3 = jax.block_until_ready(model(x, until=2))
    _, ref_p_final = _reference_stack(x_inner, weights[:2], relu_flags[:2])
    ref_p = jnp.concatenate([x_inner + 0.5, ref_p_final], axis=1)
    assert y3.shape == (B, 2 * C, H, W)
    assert jnp.allclose(y3, ref_p, **TOL)

    print("KERNEL_OK")
</pallas_src>

<mosaic_0001>
module attributes {stable_mosaic.version = 11 : i64} {
  func.func @kernel(%arg0: i32, %arg1: memref<1x18x18x128xf32, #tpu.memory_space<vmem>>, %arg2: memref<3x9x128x128xf32, #tpu.memory_space<vmem>>, %arg3: memref<1x256x128xf32, #tpu.memory_space<vmem>>, %arg4: memref<1x256x128xf32, #tpu.memory_space<vmem>>, %arg5: memref<18x18x128xf32, #tpu.memory_space<vmem>>) attributes {dimension_semantics = [#tpu.dimension_semantics<parallel>], iteration_bounds = array<i64: 2>, scalar_prefetch = 0 : i64, scratch_operands = 1 : i64, tpu.core_type = #tpu.core_type<tc>, window_params = [{transform_indices = @transform_0, window_bounds = array<i64: 1, 18, 18, 128>}, {pipeline_mode = #tpu.pipeline_mode<synchronous>, transform_indices = @transform_1, window_bounds = array<i64: 3, 9, 128, 128>}, {transform_indices = @transform_2, window_bounds = array<i64: 1, 256, 128>}, {transform_indices = @transform_3, window_bounds = array<i64: 1, 256, 128>}]} {
    %cst = arith.constant 0.000000e+00 : f32
    %0 = vector.broadcast %cst : f32 to vector<18x18x128xf32>
    %c0 = arith.constant 0 : index
    %c0_0 = arith.constant 0 : index
    %c0_1 = arith.constant 0 : index
    %1 = vector.load %arg5[%c0, %c0_0, %c0_1] : memref<18x18x128xf32, #tpu.memory_space<vmem>>, vector<18x18x128xf32>
    tpu.vector_store %arg5[%c0, %c0_0, %c0_1], %0 {strides = array<i32>} : memref<18x18x128xf32, #tpu.memory_space<vmem>>, vector<18x18x128xf32>,
    %2 = tpu.iota {dimensions = array<i32: 1>} : vector<1x128xi32>
    %c0_i32 = arith.constant 0 : i32
    %3 = vector.broadcast %c0_i32 : i32 to vector<1x128xi32>
    %4 = arith.cmpi eq, %2, %3 : vector<1x128xi32>
    %5 = arith.extui %4 : vector<1x128xi1> to vector<1x128xi32>
    %6 = arith.sitofp %5 : vector<1x128xi32> to vector<1x128xf32>
    %cst_2 = arith.constant 0.000000e+00 : f32
    %7 = vector.broadcast %cst_2 : f32 to vector<256x128xf32>
    %c0_3 = arith.constant 0 : index
    %c0_4 = arith.constant 0 : index
    %c0_5 = arith.constant 0 : index
    %c0_6 = arith.constant 0 : index
    %8 = vector.load %arg1[%c0_3, %c0_4, %c0_5, %c0_6] : memref<1x18x18x128xf32, #tpu.memory_space<vmem>>, vector<1x16x16x128xf32>
    %9 = vector.shape_cast %8 : vector<1x16x16x128xf32> to vector<16x16x128xf32>
    %10 = vector.shape_cast %9 : vector<16x16x128xf32> to vector<256x128xf32>
    %c0_7 = arith.constant 0 : index
    %c0_8 = arith.constant 0 : index
    %c0_9 = arith.constant 0 : index
    %c0_10 = arith.constant 0 : index
    %11 = vector.load %arg2[%c0_7, %c0_8, %c0_9, %c0_10] : memref<3x9x128x128xf32, #tpu.memory_space<vmem>>, vector<1x1x128x128xf32>
    %12 = vector.shape_cast %11 : vector<1x1x128x128xf32> to vector<128x128xf32>
    %cst_11 = arith.constant dense<0.000000e+00> : vector<256x128xf32>
    %13 = tpu.matmul %10, %12, %cst_11 {dimension_numbers = #tpu.dot_dimension_numbers<[1], [0], [0], [1], [0, 0, 1, 1], [], []>} : vector<256x128xf32>, vector<128x128xf32>, vector<256x128xf32> -> vector<256x128xf32>
    %14 = arith.addf %7, %13 : vector<256x128xf32>
    %c0_12 = arith.constant 0 : index
    %c0_13 = arith.constant 0 : index
    %c1 = arith.constant 1 : index
    %c0_14 = arith.constant 0 : index
    %15 = vector.load %arg1[%c0_12, %c0_13, %c1, %c0_14] : memref<1x18x18x128xf32, #tpu.memory_space<vmem>>, vector<1x16x16x128xf32>
    %16 = vector.shape_cast %15 : vector<1x16x16x128xf32> to vector<16x16x128xf32>
    %17 = vector.shape_cast %16 : vector<16x16x128xf32> to vector<256x128xf32>
    %c0_15 = arith.constant 0 : index
    %c1_16 = arith.constant 1 : index
    %c0_17 = arith.constant 0 : index
    %c0_18 = arith.constant 0 : index
    %18 = vector.load %arg2[%c0_15, %c1_16, %c0_17, %c0_18] : memref<3x9x128x128xf32, #tpu.memory_space<vmem>>, vector<1x1x128x128xf32>
    %19 = vector.shape_cast %18 : vector<1x1x128x128xf32> to vector<128x128xf32>
    %cst_19 = arith.constant dense<0.000000e+00> : vector<256x128xf32>
    %20 = tpu.matmul %17, %19, %cst_19 {dimension_numbers = #tpu.dot_dimension_numbers<[1], [0], [0], [1], [0, 0, 1, 1], [], []>} : vector<256x128xf32>, vector<128x128xf32>, vector<256x128xf32> -> vector<256x128xf32>
    %21 = arith.addf %14, %20 : vector<256x128xf32>
    %c0_20 = arith.constant 0 : index
    %c0_21 = arith.constant 0 : index
    %c2 = arith.constant 2 : index
    %c0_22 = arith.constant 0 : index
    %22 = vector.load %arg1[%c0_20, %c0_21, %c2, %c0_22] : memref<1x18x18x128xf32, #tpu.memory_space<vmem>>, vector<1x16x16x128xf32>
    %23 = vector.shape_cast %22 : vector<1x16x16x128xf32> to vector<16x16x128xf32>
    %24 = vector.shape_cast %23 : vector<16x16x128xf32> to vector<256x128xf32>
    %c0_23 = arith.constant 0 : index
    %c2_24 = arith.constant 2 : index
    %c0_25 = arith.constant 0 : index
    %c0_26 = arith.constant 0 : index
    %25 = vector.load %arg2[%c0_23, %c2_24, %c0_25, %c0_26] : memref<3x9x128x128xf32, #tpu.memory_space<vmem>>, vector<1x1x128x128xf32>
    %26 = vector.shape_cast %25 : vector<1x1x128x128xf32> to vector<128x128xf32>
    %cst_27 = arith.constant dense<0.000000e+00> : vector<256x128xf32>
    %27 = tpu.matmul %24, %26, %cst_27 {dimension_numbers = #tpu.dot_dimension_numbers<[1], [0], [0], [1], [0, 0, 1, 1], [], []>} : vector<256x128xf32>, vector<128x128xf32>, vector<256x128xf32> -> vector<256x128xf32>
    %28 = arith.addf %21, %27 : vector<256x128xf32>
    %c0_28 = arith.constant 0 : index
    %c1_29 = arith.constant 1 : index
    %c0_30 = arith.constant 0 : index
    %c0_31 = arith.constant 0 : index
    %29 = vector.load %arg1[%c0_28, %c1_29, %c0_30, %c0_31] : memref<1x18x18x128xf32, #tpu.memory_space<vmem>>, vector<1x16x16x128xf32>
    %30 = vector.shape_cast %29 : vector<1x16x16x128xf32> to vector<16x16x128xf32>
    %31 = vector.shape_cast %30 : vector<16x16x128xf32> to vector<256x128xf32>
    %c0_32 = arith.constant 0 : index
    %c3 = arith.constant 3 : index
    %c0_33 = arith.constant 0 : index
    %c0_34 = arith.constant 0 : index
    %32 = vector.load %arg2[%c0_32, %c3, %c0_33, %c0_34] : memref<3x9x128x128xf32, #tpu.memory_space<vmem>>, vector<1x1x128x128xf32>
    %33 = vector.shape_cast %32 : vector<1x1x128x128xf32> to vector<128x128xf32>
    %cst_35 = arith.constant dense<0.000000e+00> : vector<256x128xf32>
    %34 = tpu.matmul %31, %33, %cst_35 {dimension_numbers = #tpu.dot_dimension_numbers<[1], [0], [0], [1], [0, 0, 1, 1], [], []>} : vector<256x128xf32>, vector<128x128xf32>, vector<256x128xf32> -> vector<256x128xf32>
    %35 = arith.addf %28, %34 : vector<256x128xf32>
    %c0_36 = arith.constant 0 : index
    %c1_37 = arith.constant 1 : index
    %c1_38 = arith.constant 1 : index
    %c0_39 = arith.constant 0 : index
    %36 = vector.load %arg1[%c0_36, %c1_37, %c1_38, %c0_39] : memref<1x18x18x128xf32, #tpu.memory_space<vmem>>, vector<1x16x16x128xf32>
    %37 = vector.shape_cast %36 : vector<1x16x16x128xf32> to vector<16x16x128xf32>
    %38 = vector.shape_cast %37 : vector<16x16x128xf32> to vector<256x128xf32>
    %c0_40 = arith.constant 0 : index
    %c4 = arith.constant 4 : index
    %c0_41 = arith.constant 0 : index
    %c0_42 = arith.constant 0 : index
    %39 = vector.load %arg2[%c0_40, %c4, %c0_41, %c0_42] : memref<3x9x128x128xf32, #tpu.memory_space<vmem>>, vector<1x1x128x128xf32>
    %40 = vector.shape_cast %39 : vector<1x1x128x128xf32> to vector<128x128xf32>
    %cst_43 = arith.constant dense<0.000000e+00> : vector<256x128xf32>
    %41 = tpu.matmul %38, %40, %cst_43 {dimension_numbers = #tpu.dot_dimension_numbers<[1], [0], [0], [1], [0, 0, 1, 1], [], []>} : vector<256x128xf32>, vector<128x128xf32>, vector<256x128xf32> -> vector<256x128xf32>
    %42 = arith.addf %35, %41 : vector<256x128xf32>
    %c0_44 = arith.constant 0 : index
    %c1_45 = arith.constant 1 : index
    %c2_46 = arith.constant 2 : index
    %c0_47 = arith.constant 0 : index
    %43 = vector.load %arg1[%c0_44, %c1_45, %c2_46, %c0_47] : memref<1x18x18x128xf32, #tpu.memory_space<vmem>>, vector<1x16x16x128xf32>
    %44 = vector.shape_cast %43 : vector<1x16x16x128xf32> to vector<16x16x128xf32>
    %45 = vector.shape_cast %44 : vector<16x16x128xf32> to vector<256x128xf32>
    %c0_48 = arith.constant 0 : index
    %c5 = arith.constant 5 : index
    %c0_49 = arith.constant 0 : index
    %c0_50 = arith.constant 0 : index
    %46 = vector.load %arg2[%c0_48, %c5, %c0_49, %c0_50] : memref<3x9x128x128xf32, #tpu.memory_space<vmem>>, vector<1x1x128x128xf32>
    %47 = vector.shape_cast %46 : vector<1x1x128x128xf32> to vector<128x128xf32>
    %cst_51 = arith.constant dense<0.000000e+00> : vector<256x128xf32>
    %48 = tpu.matmul %45, %47, %cst_51 {dimension_numbers = #tpu.dot_dimension_numbers<[1], [0], [0], [1], [0, 0, 1, 1], [], []>} : vector<256x128xf32>, vector<128x128xf32>, vector<256x128xf32> -> vector<256x128xf32>
    %49 = arith.addf %42, %48 : vector<256x128xf32>
    %c0_52 = arith.constant 0 : index
    %c2_53 = arith.constant 2 : index
    %c0_54 = arith.constant 0 : index
    %c0_55 = arith.constant 0 : index
    %50 = vector.load %arg1[%c0_52, %c2_53, %c0_54, %c0_55] : memref<1x18x18x128xf32, #tpu.memory_space<vmem>>, vector<1x16x16x128xf32>
    %51 = vector.shape_cast %50 : vector<1x16x16x128xf32> to vector<16x16x128xf32>
    %52 = vector.shape_cast %51 : vector<16x16x128xf32> to vector<256x128xf32>
    %c0_56 = arith.constant 0 : index
    %c6 = arith.constant 6 : index
    %c0_57 = arith.constant 0 : index
    %c0_58 = arith.constant 0 : index
    %53 = vector.load %arg2[%c0_56, %c6, %c0_57, %c0_58] : memref<3x9x128x128xf32, #tpu.memory_space<vmem>>, vector<1x1x128x128xf32>
    %54 = vector.shape_cast %53 : vector<1x1x128x128xf32> to vector<128x128xf32>
    %cst_59 = arith.constant dense<0.000000e+00> : vector<256x128xf32>
    %55 = tpu.matmul %52, %54, %cst_59 {dimension_numbers = #tpu.dot_dimension_numbers<[1], [0], [0], [1], [0, 0, 1, 1], [], []>} : vector<256x128xf32>, vector<128x128xf32>, vector<256x128xf32> -> vector<256x128xf32>
    %56 = arith.addf %49, %55 : vector<256x128xf32>
    %c0_60 = arith.constant 0 : index
    %c2_61 = arith.constant 2 : index
    %c1_62 = arith.constant 1 : index
    %c0_63 = arith.constant 0 : index
    %57 = vector.load %arg1[%c0_60, %c2_61, %c1_62, %c0_63] : memref<1x18x18x128xf32, #tpu.memory_space<vmem>>, vector<1x16x16x128xf32>
    %58 = vector.shape_cast %57 : vector<1x16x16x128xf32> to vector<16x16x128xf32>
    %59 = vector.shape_cast %58 : vector<16x16x128xf32> to vector<256x128xf32>
    %c0_64 = arith.constant 0 : index
    %c7 = arith.constant 7 : index
    %c0_65 = arith.constant 0 : index
    %c0_66 = arith.constant 0 : index
    %60 = vector.load %arg2[%c0_64, %c7, %c0_65, %c0_66] : memref<3x9x128x128xf32, #tpu.memory_space<vmem>>, vector<1x1x128x128xf32>
    %61 = vector.shape_cast %60 : vector<1x1x128x128xf32> to vector<128x128xf32>
    %cst_67 = arith.constant dense<0.000000e+00> : vector<256x128xf32>
    %62 = tpu.matmul %59, %61, %cst_67 {dimension_numbers = #tpu.dot_dimension_numbers<[1], [0], [0], [1], [0, 0, 1, 1], [], []>} : vector<256x128xf32>, vector<128x128xf32>, vector<256x128xf32> -> vector<256x128xf32>
    %63 = arith.addf %56, %62 : vector<256x128xf32>
    %c0_68 = arith.constant 0 : index
    %c2_69 = arith.constant 2 : index
    %c2_70 = arith.constant 2 : index
    %c0_71 = arith.constant 0 : index
    %64 = vector.load %arg1[%c0_68, %c2_69, %c2_70, %c0_71] : memref<1x18x18x128xf32, #tpu.memory_space<vmem>>, vector<1x16x16x128xf32>
    %65 = vector.shape_cast %64 : vector<1x16x16x128xf32> to vector<16x16x128xf32>
    %66 = vector.shape_cast %65 : vector<16x16x128xf32> to vector<256x128xf32>
    %c0_72 = arith.constant 0 : index
    %c8 = arith.constant 8 : index
    %c0_73 = arith.constant 0 : index
    %c0_74 = arith.constant 0 : index
    %67 = vector.load %arg2[%c0_72, %c8, %c0_73, %c0_74] : memref<3x9x128x128xf32, #tpu.memory_space<vmem>>, vector<1x1x128x128xf32>
    %68 = vector.shape_cast %67 : vector<1x1x128x128xf32> to vector<128x128xf32>
    %cst_75 = arith.constant dense<0.000000e+00> : vector<256x128xf32>
    %69 = tpu.matmul %66, %68, %cst_75 {dimension_numbers = #tpu.dot_dimension_numbers<[1], [0], [0], [1], [0, 0, 1, 1], [], []>} : vector<256x128xf32>, vector<128x128xf32>, vector<256x128xf32> -> vector<256x128xf32>
    %70 = arith.addf %63, %69 : vector<256x128xf32>
    %cst_76 = arith.constant 0.000000e+00 : f32
    %71 = vector.broadcast %cst_76 : f32 to vector<256x128xf32>
    %72 = arith.maximumf %70, %71 : vector<256x128xf32>
    %73 = vector.broadcast %6 : vector<1x128xf32> to vector<256x128xf32>
    %74 = arith.addf %72, %73 : vector<256x128xf32>
    %75 = vector.shape_cast %74 : vector<256x128xf32> to vector<16x16x128xf32>
    %c1_77 = arith.constant 1 : index
    %c1_78 = arith.constant 1 : index
    %c0_79 = arith.constant 0 : index
    %76 = vector.load %arg5[%c1_77, %c1_78, %c0_79] : memref<18x18x128xf32, #tpu.memory_space<vmem>>, vector<16x16x128xf32>
    tpu.vector_store %arg5[%c1_77, %c1_78, %c0_79], %75 {strides = array<i32>} : memref<18x18x128xf32, #tpu.memory_space<vmem>>, vector<16x16x128xf32>,
    %cst_80 = arith.constant 0.000000e+00 : f32
    %77 = vector.broadcast %cst_80 : f32 to vector<256x128xf32>
    %c0_81 = arith.constant 0 : index
    %c0_82 = arith.constant 0 : index
    %c0_83 = arith.constant 0 : index
    %78 = vector.load %arg5[%c0_81, %c0_82, %c0_83] : memref<18x18x128xf32, #tpu.memory_space<vmem>>, vector<16x16x128xf32>
    %79 = vector.shape_cast %78 : vector<16x16x128xf32> to vector<256x128xf32>
    %c1_84 = arith.constant 1 : index
    %c0_85 = arith.constant 0 : index
    %c0_86 = arith.constant 0 : index
    %c0_87 = arith.constant 0 : index
    %80 = vector.load %arg2[%c1_84, %c0_85, %c0_86, %c0_87] : memref<3x9x128x128xf32, #tpu.memory_space<vmem>>, vector<1x1x128x128xf32>
    %81 = vector.shape_cast %80 : vector<1x1x128x128xf32> to vector<128x128xf32>
    %cst_88 = arith.constant dense<0.000000e+00> : vector<256x128xf32>
    %82 = tpu.matmul %79, %81, %cst_88 {dimension_numbers = #tpu.dot_dimension_numbers<[1], [0], [0], [1], [0, 0, 1, 1], [], []>} : vector<256x128xf32>, vector<128x128xf32>, vector<256x128xf32> -> vector<256x128xf32>
    %83 = arith.addf %77, %82 : vector<256x128xf32>
    %c0_89 = arith.constant 0 : index
    %c1_90 = arith.constant 1 : index
    %c0_91 = arith.constant 0 : index
    %84 = vector.load %arg5[%c0_89, %c1_90, %c0_91] : memref<18x18x128xf32, #tpu.memory_space<vmem>>, vector<16x16x128xf32>
    %85 = vector.shape_cast %84 : vector<16x16x128xf32> to vector<256x128xf32>
    %c1_92 = arith.constant 1 : index
    %c1_93 = arith.constant 1 : index
    %c0_94 = arith.constant 0 : index
    %c0_95 = arith.constant 0 : index
    %86 = vector.load %arg2[%c1_92, %c1_93, %c0_94, %c0_95] : memref<3x9x128x128xf32, #tpu.memory_space<vmem>>, vector<1x1x128x128xf32>
    %87 = vector.shape_cast %86 : vector<1x1x128x128xf32> to vector<128x128xf32>
    %cst_96 = arith.constant dense<0.000000e+00> : vector<256x128xf32>
    %88 = tpu.matmul %85, %87, %cst_96 {dimension_numbers = #tpu.dot_dimension_numbers<[1], [0], [0], [1], [0, 0, 1, 1], [], []>} : vector<256x128xf32>, vector<128x128xf32>, vector<256x128xf32> -> vector<256x128xf32>
    %89 = arith.addf %83, %88 : vector<256x128xf32>
    %c0_97 = arith.constant 0 : index
    %c2_98 = arith.constant 2 : index
    %c0_99 = arith.constant 0 : index
    %90 = vector.load %arg5[%c0_97, %c2_98, %c0_99] : memref<18x18x128xf32, #tpu.memory_space<vmem>>, vector<16x16x128xf32>
    %91 = vector.shape_cast %90 : vector<16x16x128xf32> to vector<256x128xf32>
    %c1_100 = arith.constant 1 : index
    %c2_101 = arith.constant 2 : index
    %c0_102 = arith.constant 0 : index
    %c0_103 = arith.constant 0 : index
    %92 = vector.load %arg2[%c1_100, %c2_101, %c0_102, %c0_103] : memref<3x9x128x128xf32, #tpu.memory_space<vmem>>, vector<1x1x128x128xf32>
    %93 = vector.shape_cast %92 : vector<1x1x128x128xf32> to vector<128x128xf32>
    %cst_104 = arith.constant dense<0.000000e+00> : vector<256x128xf32>
    %94 = tpu.matmul %91, %93, %cst_104 {dimension_numbers = #tpu.dot_dimension_numbers<[1], [0], [0], [1], [0, 0, 1, 1], [], []>} : vector<256x128xf32>, vector<128x128xf32>, vector<256x128xf32> -> vector<256x128xf32>
    %95 = arith.addf %89, %94 : vector<256x128xf32>
    %c1_105 = arith.constant 1 : index
    %c0_106 = arith.constant 0 : index
    %c0_107 = arith.constant 0 : index
    %96 = vector.load %arg5[%c1_105, %c0_106, %c0_107] : memref<18x18x128xf32, #tpu.memory_space<vmem>>, vector<16x16x128xf32>
    %97 = vector.shape_cast %96 : vector<16x16x128xf32> to vector<256x128xf32>
    %c1_108 = arith.constant 1 : index
    %c3_109 = arith.constant 3 : index
    %c0_110 = arith.constant 0 : index
    %c0_111 = arith.constant 0 : index
    %98 = vector.load %arg2[%c1_108, %c3_109, %c0_110, %c0_111] : memref<3x9x128x128xf32, #tpu.memory_space<vmem>>, vector<1x1x128x128xf32>
    %99 = vector.shape_cast %98 : vector<1x1x128x128xf32> to vector<128x128xf32>
    %cst_112 = arith.constant dense<0.000000e+00> : vector<256x128xf32>
    %100 = tpu.matmul %97, %99, %cst_112 {dimension_numbers = #tpu.dot_dimension_numbers<[1], [0], [0], [1], [0, 0, 1, 1], [], []>} : vector<256x128xf32>, vector<128x128xf32>, vector<256x128xf32> -> vector<256x128xf32>
    %101 = arith.addf %95, %100 : vector<256x128xf32>
    %c1_113 = arith.constant 1 : index
    %c1_114 = arith.constant 1 : index
    %c0_115 = arith.constant 0 : index
    %102 = vector.load %arg5[%c1_113, %c1_114, %c0_115] : memref<18x18x128xf32, #tpu.memory_space<vmem>>, vector<16x16x128xf32>
    %103 = vector.shape_cast %102 : vector<16x16x128xf32> to vector<256x128xf32>
    %c1_116 = arith.constant 1 : index
    %c4_117 = arith.constant 4 : index
    %c0_118 = arith.constant 0 : index
    %c0_119 = arith.constant 0 : index
    %104 = vector.load %arg2[%c1_116, %c4_117, %c0_118, %c0_119] : memref<3x9x128x128xf32, #tpu.memory_space<vmem>>, vector<1x1x128x128xf32>
    %105 = vector.shape_cast %104 : vector<1x1x128x128xf32> to vector<128x128xf32>
    %cst_120 = arith.constant dense<0.000000e+00> : vector<256x128xf32>
    %106 = tpu.matmul %103, %105, %cst_120 {dimension_numbers = #tpu.dot_dimension_numbers<[1], [0], [0], [1], [0, 0, 1, 1], [], []>} : vector<256x128xf32>, vector<128x128xf32>, vector<256x128xf32> -> vector<256x128xf32>
    %107 = arith.addf %101, %106 : vector<256x128xf32>
    %c1_121 = arith.constant 1 : index
    %c2_122 = arith.constant 2 : index
    %c0_123 = arith.constant 0 : index
    %108 = vector.load %arg5[%c1_121, %c2_122, %c0_123] : memref<18x18x128xf32, #tpu.memory_space<vmem>>, vector<16x16x128xf32>
    %109 = vector.shape_cast %108 : vector<16x16x128xf32> to vector<256x128xf32>
    %c1_124 = arith.constant 1 : index
    %c5_125 = arith.constant 5 : index
    %c0_126 = arith.constant 0 : index
    %c0_127 = arith.constant 0 : index
    %110 = vector.load %arg2[%c1_124, %c5_125, %c0_126, %c0_127] : memref<3x9x128x128xf32, #tpu.memory_space<vmem>>, vector<1x1x128x128xf32>
    %111 = vector.shape_cast %110 : vector<1x1x128x128xf32> to vector<128x128xf32>
    %cst_128 = arith.constant dense<0.000000e+00> : vector<256x128xf32>
    %112 = tpu.matmul %109, %111, %cst_128 {dimension_numbers = #tpu.dot_dimension_numbers<[1], [0], [0], [1], [0, 0, 1, 1], [], []>} : vector<256x128xf32>, vector<128x128xf32>, vector<256x128xf32> -> vector<256x128xf32>
    %113 = arith.addf %107, %112 : vector<256x128xf32>
    %c2_129 = arith.constant 2 : index
    %c0_130 = arith.constant 0 : index
    %c0_131 = arith.constant 0 : index
    %114 = vector.load %arg5[%c2_129, %c0_130, %c0_131] : memref<18x18x128xf32, #tpu.memory_space<vmem>>, vector<16x16x128xf32>
    %115 = vector.shape_cast %114 : vector<16x16x128xf32> to vector<256x128xf32>
    %c1_132 = arith.constant 1 : index
    %c6_133 = arith.constant 6 : index
    %c0_134 = arith.constant 0 : index
    %c0_135 = arith.constant 0 : index
    %116 = vector.load %arg2[%c1_132, %c6_133, %c0_134, %c0_135] : memref<3x9x128x128xf32, #tpu.memory_space<vmem>>, vector<1x1x128x128xf32>
    %117 = vector.shape_cast %116 : vector<1x1x128x128xf32> to vector<128x128xf32>
    %cst_136 = arith.constant dense<0.000000e+00> : vector<256x128xf32>
    %118 = tpu.matmul %115, %117, %cst_136 {dimension_numbers = #tpu.dot_dimension_numbers<[1], [0], [0], [1], [0, 0, 1, 1], [], []>} : vector<256x128xf32>, vector<128x128xf32>, vector<256x128xf32> -> vector<256x128xf32>
    %119 = arith.addf %113, %118 : vector<256x128xf32>
    %c2_137 = arith.constant 2 : index
    %c1_138 = arith.constant 1 : index
    %c0_139 = arith.constant 0 : index
    %120 = vector.load %arg5[%c2_137, %c1_138, %c0_139] : memref<18x18x128xf32, #tpu.memory_space<vmem>>, vector<16x16x128xf32>
    %121 = vector.shape_cast %120 : vector<16x16x128xf32> to vector<256x128xf32>
    %c1_140 = arith.constant 1 : index
    %c7_141 = arith.constant 7 : index
    %c0_142 = arith.constant 0 : index
    %c0_143 = arith.constant 0 : index
    %122 = vector.load %arg2[%c1_140, %c7_141, %c0_142, %c0_143] : memref<3x9x128x128xf32, #tpu.memory_space<vmem>>, vector<1x1x128x128xf32>
    %123 = vector.shape_cast %122 : vector<1x1x128x128xf32> to vector<128x128xf32>
    %cst_144 = arith.constant dense<0.000000e+00> : vector<256x128xf32>
    %124 = tpu.matmul %121, %123, %cst_144 {dimension_numbers = #tpu.dot_dimension_numbers<[1], [0], [0], [1], [0, 0, 1, 1], [], []>} : vector<256x128xf32>, vector<128x128xf32>, vector<256x128xf32> -> vector<256x128xf32>
    %125 = arith.addf %119, %124 : vector<256x128xf32>
    %c2_145 = arith.constant 2 : index
    %c2_146 = arith.constant 2 : index
    %c0_147 = arith.constant 0 : index
    %126 = vector.load %arg5[%c2_145, %c2_146, %c0_147] : memref<18x18x128xf32, #tpu.memory_space<vmem>>, vector<16x16x128xf32>
    %127 = vector.shape_cast %126 : vector<16x16x128xf32> to vector<256x128xf32>
    %c1_148 = arith.constant 1 : index
    %c8_149 = arith.constant 8 : index
    %c0_150 = arith.constant 0 : index
    %c0_151 = arith.constant 0 : index
    %128 = vector.load %arg2[%c1_148, %c8_149, %c0_150, %c0_151] : memref<3x9x128x128xf32, #tpu.memory_space<vmem>>, vector<1x1x128x128xf32>
    %129 = vector.shape_cast %128 : vector<1x1x128x128xf32> to vector<128x128xf32>
    %cst_152 = arith.constant dense<0.000000e+00> : vector<256x128xf32>
    %130 = tpu.matmul %127, %129, %cst_152 {dimension_numbers = #tpu.dot_dimension_numbers<[1], [0], [0], [1], [0, 0, 1, 1], [], []>} : vector<256x128xf32>, vector<128x128xf32>, vector<256x128xf32> -> vector<256x128xf32>
    %131 = arith.addf %125, %130 : vector<256x128xf32>
    %cst_153 = arith.constant 0.000000e+00 : f32
    %132 = vector.broadcast %cst_153 : f32 to vector<256x128xf32>
    %133 = arith.maximumf %131, %132 : vector<256x128xf32>
    %134 = vector.broadcast %6 : vector<1x128xf32> to vector<256x128xf32>
    %135 = arith.addf %133, %134 : vector<256x128xf32>
    %136 = vector.shape_cast %135 : vector<256x128xf32> to vector<16x16x128xf32>
    %c1_154 = arith.constant 1 : index
    %c1_155 = arith.constant 1 : index
    %c0_156 = arith.constant 0 : index
    %137 = vector.load %arg5[%c1_154, %c1_155, %c0_156] : memref<18x18x128xf32, #tpu.memory_space<vmem>>, vector<16x16x128xf32>
    tpu.vector_store %arg5[%c1_154, %c1_155, %c0_156], %136 {strides = array<i32>} : memref<18x18x128xf32, #tpu.memory_space<vmem>>, vector<16x16x128xf32>,
    %cst_157 = arith.constant 0.000000e+00 : f32
    %138 = vector.broadcast %cst_157 : f32 to vector<256x128xf32>
    %c0_158 = arith.constant 0 : index
    %c0_159 = arith.constant 0 : index
    %c0_160 = arith.constant 0 : index
    %139 = vector.load %arg5[%c0_158, %c0_159, %c0_160] : memref<18x18x128xf32, #tpu.memory_space<vmem>>, vector<16x16x128xf32>
    %140 = vector.shape_cast %139 : vector<16x16x128xf32> to vector<256x128xf32>
    %c2_161 = arith.constant 2 : index
    %c0_162 = arith.constant 0 : index
    %c0_163 = arith.constant 0 : index
    %c0_164 = arith.constant 0 : index
    %141 = vector.load %arg2[%c2_161, %c0_162, %c0_163, %c0_164] : memref<3x9x128x128xf32, #tpu.memory_space<vmem>>, vector<1x1x128x128xf32>
    %142 = vector.shape_cast %141 : vector<1x1x128x128xf32> to vector<128x128xf32>
    %cst_165 = arith.constant dense<0.000000e+00> : vector<256x128xf32>
    %143 = tpu.matmul %140, %142, %cst_165 {dimension_numbers = #tpu.dot_dimension_numbers<[1], [0], [0], [1], [0, 0, 1, 1], [], []>} : vector<256x128xf32>, vector<128x128xf32>, vector<256x128xf32> -> vector<256x128xf32>
    %144 = arith.addf %138, %143 : vector<256x128xf32>
    %c0_166 = arith.constant 0 : index
    %c1_167 = arith.constant 1 : index
    %c0_168 = arith.constant 0 : index
    %145 = vector.load %arg5[%c0_166, %c1_167, %c0_168] : memref<18x18x128xf32, #tpu.memory_space<vmem>>, vector<16x16x128xf32>
    %146 = vector.shape_cast %145 : vector<16x16x128xf32> to vector<256x128xf32>
    %c2_169 = arith.constant 2 : index
    %c1_170 = arith.constant 1 : index
    %c0_171 = arith.constant 0 : index
    %c0_172 = arith.constant 0 : index
    %147 = vector.load %arg2[%c2_169, %c1_170, %c0_171, %c0_172] : memref<3x9x128x128xf32, #tpu.memory_space<vmem>>, vector<1x1x128x128xf32>
    %148 = vector.shape_cast %147 : vector<1x1x128x128xf32> to vector<128x128xf32>
    %cst_173 = arith.constant dense<0.000000e+00> : vector<256x128xf32>
    %149 = tpu.matmul %146, %148, %cst_173 {dimension_numbers = #tpu.dot_dimension_numbers<[1], [0], [0], [1], [0, 0, 1, 1], [], []>} : vector<256x128xf32>, vector<128x128xf32>, vector<256x128xf32> -> vector<256x128xf32>
    %150 = arith.addf %144, %149 : vector<256x128xf32>
    %c0_174 = arith.constant 0 : index
    %c2_175 = arith.constant 2 : index
    %c0_176 = arith.constant 0 : index
    %151 = vector.load %arg5[%c0_174, %c2_175, %c0_176] : memref<18x18x128xf32, #tpu.memory_space<vmem>>, vector<16x16x128xf32>
    %152 = vector.shape_cast %151 : vector<16x16x128xf32> to vector<256x128xf32>
    %c2_177 = arith.constant 2 : index
    %c2_178 = arith.constant 2 : index
    %c0_179 = arith.constant 0 : index
    %c0_180 = arith.constant 0 : index
    %153 = vector.load %arg2[%c2_177, %c2_178, %c0_179, %c0_180] : memref<3x9x128x128xf32, #tpu.memory_space<vmem>>, vector<1x1x128x128xf32>
    %154 = vector.shape_cast %153 : vector<1x1x128x128xf32> to vector<128x128xf32>
    %cst_181 = arith.constant dense<0.000000e+00> : vector<256x128xf32>
    %155 = tpu.matmul %152, %154, %cst_181 {dimension_numbers = #tpu.dot_dimension_numbers<[1], [0], [0], [1], [0, 0, 1, 1], [], []>} : vector<256x128xf32>, vector<128x128xf32>, vector<256x128xf32> -> vector<256x128xf32>
    %156 = arith.addf %150, %155 : vector<256x128xf32>
    %c1_182 = arith.constant 1 : index
    %c0_183 = arith.constant 0 : index
    %c0_184 = arith.constant 0 : index
    %157 = vector.load %arg5[%c1_182, %c0_183, %c0_184] : memref<18x18x128xf32, #tpu.memory_space<vmem>>, vector<16x16x128xf32>
    %158 = vector.shape_cast %157 : vector<16x16x128xf32> to vector<256x128xf32>
    %c2_185 = arith.constant 2 : index
    %c3_186 = arith.constant 3 : index
    %c0_187 = arith.constant 0 : index
    %c0_188 = arith.constant 0 : index
    %159 = vector.load %arg2[%c2_185, %c3_186, %c0_187, %c0_188] : memref<3x9x128x128xf32, #tpu.memory_space<vmem>>, vector<1x1x128x128xf32>
    %160 = vector.shape_cast %159 : vector<1x1x128x128xf32> to vector<128x128xf32>
    %cst_189 = arith.constant dense<0.000000e+00> : vector<256x128xf32>
    %161 = tpu.matmul %158, %160, %cst_189 {dimension_numbers = #tpu.dot_dimension_numbers<[1], [0], [0], [1], [0, 0, 1, 1], [], []>} : vector<256x128xf32>, vector<128x128xf32>, vector<256x128xf32> -> vector<256x128xf32>
    %162 = arith.addf %156, %161 : vector<256x128xf32>
    %c1_190 = arith.constant 1 : index
    %c1_191 = arith.constant 1 : index
    %c0_192 = arith.constant 0 : index
    %163 = vector.load %arg5[%c1_190, %c1_191, %c0_192] : memref<18x18x128xf32, #tpu.memory_space<vmem>>, vector<16x16x128xf32>
    %164 = vector.shape_cast %163 : vector<16x16x128xf32> to vector<256x128xf32>
    %c2_193 = arith.constant 2 : index
    %c4_194 = arith.constant 4 : index
    %c0_195 = arith.constant 0 : index
    %c0_196 = arith.constant 0 : index
    %165 = vector.load %arg2[%c2_193, %c4_194, %c0_195, %c0_196] : memref<3x9x128x128xf32, #tpu.memory_space<vmem>>, vector<1x1x128x128xf32>
    %166 = vector.shape_cast %165 : vector<1x1x128x128xf32> to vector<128x128xf32>
    %cst_197 = arith.constant dense<0.000000e+00> : vector<256x128xf32>
    %167 = tpu.matmul %164, %166, %cst_197 {dimension_numbers = #tpu.dot_dimension_numbers<[1], [0], [0], [1], [0, 0, 1, 1], [], []>} : vector<256x128xf32>, vector<128x128xf32>, vector<256x128xf32> -> vector<256x128xf32>
    %168 = arith.addf %162, %167 : vector<256x128xf32>
    %c1_198 = arith.constant 1 : index
    %c2_199 = arith.constant 2 : index
    %c0_200 = arith.constant 0 : index
    %169 = vector.load %arg5[%c1_198, %c2_199, %c0_200] : memref<18x18x128xf32, #tpu.memory_space<vmem>>, vector<16x16x128xf32>
    %170 = vector.shape_cast %169 : vector<16x16x128xf32> to vector<256x128xf32>
    %c2_201 = arith.constant 2 : index
    %c5_202 = arith.constant 5 : index
    %c0_203 = arith.constant 0 : index
    %c0_204 = arith.constant 0 : index
    %171 = vector.load %arg2[%c2_201, %c5_202, %c0_203, %c0_204] : memref<3x9x128x128xf32, #tpu.memory_space<vmem>>, vector<1x1x128x128xf32>
    %172 = vector.shape_cast %171 : vector<1x1x128x128xf32> to vector<128x128xf32>
    %cst_205 = arith.constant dense<0.000000e+00> : vector<256x128xf32>
    %173 = tpu.matmul %170, %172, %cst_205 {dimension_numbers = #tpu.dot_dimension_numbers<[1], [0], [0], [1], [0, 0, 1, 1], [], []>} : vector<256x128xf32>, vector<128x128xf32>, vector<256x128xf32> -> vector<256x128xf32>
    %174 = arith.addf %168, %173 : vector<256x128xf32>
    %c2_206 = arith.constant 2 : index
    %c0_207 = arith.constant 0 : index
    %c0_208 = arith.constant 0 : index
    %175 = vector.load %arg5[%c2_206, %c0_207, %c0_208] : memref<18x18x128xf32, #tpu.memory_space<vmem>>, vector<16x16x128xf32>
    %176 = vector.shape_cast %175 : vector<16x16x128xf32> to vector<256x128xf32>
    %c2_209 = arith.constant 2 : index
    %c6_210 = arith.constant 6 : index
    %c0_211 = arith.constant 0 : index
    %c0_212 = arith.constant 0 : index
    %177 = vector.load %arg2[%c2_209, %c6_210, %c0_211, %c0_212] : memref<3x9x128x128xf32, #tpu.memory_space<vmem>>, vector<1x1x128x128xf32>
    %178 = vector.shape_cast %177 : vector<1x1x128x128xf32> to vector<128x128xf32>
    %cst_213 = arith.constant dense<0.000000e+00> : vector<256x128xf32>
    %179 = tpu.matmul %176, %178, %cst_213 {dimension_numbers = #tpu.dot_dimension_numbers<[1], [0], [0], [1], [0, 0, 1, 1], [], []>} : vector<256x128xf32>, vector<128x128xf32>, vector<256x128xf32> -> vector<256x128xf32>
    %180 = arith.addf %174, %179 : vector<256x128xf32>
    %c2_214 = arith.constant 2 : index
    %c1_215 = arith.constant 1 : index
    %c0_216 = arith.constant 0 : index
    %181 = vector.load %arg5[%c2_214, %c1_215, %c0_216] : memref<18x18x128xf32, #tpu.memory_space<vmem>>, vector<16x16x128xf32>
    %182 = vector.shape_cast %181 : vector<16x16x128xf32> to vector<256x128xf32>
    %c2_217 = arith.constant 2 : index
    %c7_218 = arith.constant 7 : index
    %c0_219 = arith.constant 0 : index
    %c0_220 = arith.constant 0 : index
    %183 = vector.load %arg2[%c2_217, %c7_218, %c0_219, %c0_220] : memref<3x9x128x128xf32, #tpu.memory_space<vmem>>, vector<1x1x128x128xf32>
    %184 = vector.shape_cast %183 : vector<1x1x128x128xf32> to vector<128x128xf32>
    %cst_221 = arith.constant dense<0.000000e+00> : vector<256x128xf32>
    %185 = tpu.matmul %182, %184, %cst_221 {dimension_numbers = #tpu.dot_dimension_numbers<[1], [0], [0], [1], [0, 0, 1, 1], [], []>} : vector<256x128xf32>, vector<128x128xf32>, vector<256x128xf32> -> vector<256x128xf32>
    %186 = arith.addf %180, %185 : vector<256x128xf32>
    %c2_222 = arith.constant 2 : index
    %c2_223 = arith.constant 2 : index
    %c0_224 = arith.constant 0 : index
    %187 = vector.load %arg5[%c2_222, %c2_223, %c0_224] : memref<18x18x128xf32, #tpu.memory_space<vmem>>, vector<16x16x128xf32>
    %188 = vector.shape_cast %187 : vector<16x16x128xf32> to vector<256x128xf32>
    %c2_225 = arith.constant 2 : index
    %c8_226 = arith.constant 8 : index
    %c0_227 = arith.constant 0 : index
    %c0_228 = arith.constant 0 : index
    %189 = vector.load %arg2[%c2_225, %c8_226, %c0_227, %c0_228] : memref<3x9x128x128xf32, #tpu.memory_space<vmem>>, vector<1x1x128x128xf32>
    %190 = vector.shape_cast %189 : vector<1x1x128x128xf32> to vector<128x128xf32>
    %cst_229 = arith.constant dense<0.000000e+00> : vector<256x128xf32>
    %191 = tpu.matmul %188, %190, %cst_229 {dimension_numbers = #tpu.dot_dimension_numbers<[1], [0], [0], [1], [0, 0, 1, 1], [], []>} : vector<256x128xf32>, vector<128x128xf32>, vector<256x128xf32> -> vector<256x128xf32>
    %192 = arith.addf %186, %191 : vector<256x128xf32>
    %c0_230 = arith.constant 0 : index
    %c0_231 = arith.constant 0 : index
    %c0_232 = arith.constant 0 : index
    %193 = vector.load %arg3[%c0_230, %c0_231, %c0_232] : memref<1x256x128xf32, #tpu.memory_space<vmem>>, vector<1x256x128xf32>
    %194 = vector.shape_cast %193 : vector<1x256x128xf32> to vector<256x128xf32>
    %195 = arith.addf %192, %194 : vector<256x128xf32>
    %c0_233 = arith.constant 0 : index
    %c0_234 = arith.constant 0 : index
    %c0_235 = arith.constant 0 : index
    %196 = vector.load %arg4[%c0_233, %c0_234, %c0_235] : memref<1x256x128xf32, #tpu.memory_space<vmem>>, vector<1x256x128xf32>
    %197 = vector.shape_cast %196 : vector<1x256x128xf32> to vector<256x128xf32>
    %198 = vector.shape_cast %195 : vector<256x128xf32> to vector<1x256x128xf32>
    tpu.vector_store %arg4[%c0_233, %c0_234, %c0_235], %198 {strides = array<i32>} : memref<1x256x128xf32, #tpu.memory_space<vmem>>, vector<1x256x128xf32>,
    return
  }
  func.func @transform_0(%arg0: i32) -> (i32, i32, i32, i32) {
    %c0_i32 = arith.constant 0 : i32
    %c0_i32_0 = arith.constant 0 : i32
    %c0_i32_1 = arith.constant 0 : i32
    %c0_i32_2 = arith.constant 0 : i32
    return %arg0, %c0_i32, %c0_i32_0, %c0_i32_1 : i32, i32, i32, i32
  }
  func.func @transform_1(%arg0: i32) -> (i32, i32, i32, i32) {
    %c0_i32 = arith.constant 0 : i32
    %c0_i32_0 = arith.constant 0 : i32
    %c0_i32_1 = arith.constant 0 : i32
    %c0_i32_2 = arith.constant 0 : i32
    %c0_i32_3 = arith.constant 0 : i32
    return %c0_i32, %c0_i32_0, %c0_i32_1, %c0_i32_2 : i32, i32, i32, i32
  }
  func.func @transform_2(%arg0: i32) -> (i32, i32, i32) {
    %c0_i32 = arith.constant 0 : i32
    %c0_i32_0 = arith.constant 0 : i32
    %c0_i32_1 = arith.constant 0 : i32
    return %arg0, %c0_i32, %c0_i32_0 : i32, i32, i32
  }
  func.func @transform_3(%arg0: i32) -> (i32, i32, i32) {
    %c0_i32 = arith.constant 0 : i32
    %c0_i32_0 = arith.constant 0 : i32
    %c0_i32_1 = arith.constant 0 : i32
    return %arg0, %c0_i32, %c0_i32_0 : i32, i32, i32
  }
}

</mosaic_0001>

<llo_original>
// kernel: run.1
$region0: #{run.1}
  #allocation0 [shape = 'u32[]', space=smem, size = 0x4, offset = 0x4, fixed_abs, tag = 'smem constant byte address 0x4 - core index']
  #allocation1 [shape = 'u32[144,128]{1,0:T(1,128)}', space=vmem, size = 0x12000, scoped, tag = 'internal scratch']
  #allocation2 [shape = 'f32[18,18,128]{2,1,0:T(8,128)}', space=vmem, size = 0x36000, scoped, tag = 'scratch operand']
  %s0 = inlined_call_operand.vmem [shape: f32[2,18,18,128], index: 0, kind: input, shape index: {}]
  %s1 = inlined_call_operand.vmem [shape: f32[3,9,128,128], index: 1, kind: input, shape index: {}]
  %s2 = inlined_call_operand.vmem [shape: f32[2,256,128], index: 2, kind: input, shape index: {}]
  %s3 = inlined_call_operand.vmem [shape: f32[2,256,128], index: 3, kind: output, shape index: {}]
  %s4 = sld [smem:[#allocation0]]
  $region45: #{run.1} parent=0
    _
  %s6 = ssub.s32 1, %s4
  %s7 = scalar_select 0, %s6, %s4
  loop: start=0, step=1, limit=4
  $region2: #{run.1} parent=0 // loop_pre_header
    _
  $region3: #{run.1} parent=0 // loop_header
    %s9 = sphi 0, %s13
    %p10 = scmp.ge.s32.totalorder %s9, 4
    %s19 = sphi 0, %s21
    %s22 = sphi 0, %s19
    %s23 = sphi 0, %s22
    %s39 = sphi 0, %s23
    %s43 = sphi 0, %s43
    %s45 = sphi 0, %s43
    %s46 = sphi 0, %s45
    %s60 = sphi 0, %s46
    %s66 = sphi 0, %s68
    %s69 = sphi 0, %s66
    %s70 = sphi 0, %s69
    %s86 = sphi 0, %s70
    %s92 = sphi 0, %s94
    %s95 = sphi 0, %s92
    %s96 = sphi 0, %s95
    %s112 = sphi 0, %s96
  $region4: #{run.1} parent=0 // loop_header_branch
    %12 = sbr.rel (%p10) target = $region8
  $region5: #{run.1} parent=0 // loop_body
    %s14 = ssub.s32 %s9, 1
    %s15 = ssub.s32 %s9, 2
    %s16 = sadd.s32 %s9, 1
    %s17 = ssub.s32 %s9, %s16
    %p18 = scmp.eq.s32.totalorder %s17, 0
    %s20 = sadd.s32 %s19, 1
    %s21 = scalar_select %p18, %s19, %s20
    %p24 = pneg %p18
    %p25 = scmp.eq.s32.totalorder %s9, 1
    %p26 = por %p24, %p25
    %p27 = scmp.ne.s32.totalorder %s19, %s22
    %p28 = scmp.eq.s32.totalorder %s9, 0
    %p29 = por %p27, %p28
    %p30 = scmp.ne.s32.totalorder %s19, %s22
    %p31 = scmp.eq.s32.totalorder %s14, 1
    %p32 = por %p30, %p31
    %p33 = scmp.ne.s32.totalorder %s22, %s23
    %p34 = scmp.eq.s32.totalorder %s14, 0
    %p35 = por %p33, %p34
    %p36 = scmp.ne.s32.totalorder %s22, %s23
    %p37 = scmp.eq.s32.totalorder %s15, 1
    %p38 = por %p36, %p37
    %p40 = scmp.ne.s32.totalorder %s23, %s39
    %p41 = scmp.eq.s32.totalorder %s15, 0
    %p42 = por %p40, %p41
    %s44 = sadd.s32 %s43, 1
    %p47 = scmp.eq.s32.totalorder %s9, 1
    %p48 = scmp.ne.s32.totalorder %s43, %s45
    %p49 = scmp.eq.s32.totalorder %s9, 0
    %p50 = por %p48, %p49
    %p51 = scmp.ne.s32.totalorder %s43, %s45
    %p52 = scmp.eq.s32.totalorder %s14, 1
    %p53 = por %p51, %p52
    %p54 = scmp.ne.s32.totalorder %s45, %s46
    %p55 = scmp.eq.s32.totalorder %s14, 0
    %p56 = por %p54, %p55
    %p57 = scmp.ne.s32.totalorder %s45, %s46
    %p58 = scmp.eq.s32.totalorder %s15, 1
    %p59 = por %p57, %p58
    %p61 = scmp.ne.s32.totalorder %s46, %s60
    %p62 = scmp.eq.s32.totalorder %s15, 0
    %p63 = por %p61, %p62
    %s64 = ssub.s32 %s9, %s16
    %p65 = scmp.eq.s32.totalorder %s64, 0
    %s67 = sadd.s32 %s66, 1
    %s68 = scalar_select %p65, %s66, %s67
    %p71 = pneg %p65
    %p72 = scmp.eq.s32.totalorder %s9, 1
    %p73 = por %p71, %p72
    %p74 = scmp.ne.s32.totalorder %s66, %s69
    %p75 = scmp.eq.s32.totalorder %s9, 0
    %p76 = por %p74, %p75
    %p77 = scmp.ne.s32.totalorder %s66, %s69
    %p78 = scmp.eq.s32.totalorder %s14, 1
    %p79 = por %p77, %p78
    %p80 = scmp.ne.s32.totalorder %s69, %s70
    %p81 = scmp.eq.s32.totalorder %s14, 0
    %p82 = por %p80, %p81
    %p83 = scmp.ne.s32.totalorder %s69, %s70
    %p84 = scmp.eq.s32.totalorder %s15, 1
    %p85 = por %p83, %p84
    %p87 = scmp.ne.s32.totalorder %s70, %s86
    %p88 = scmp.eq.s32.totalorder %s15, 0
    %p89 = por %p87, %p88
    %s90 = ssub.s32 %s9, %s16
    %p91 = scmp.eq.s32.totalorder %s90, 0
    %s93 = sadd.s32 %s92, 1
    %s94 = scalar_select %p91, %s92, %s93
    %p97 = pneg %p91
    %p98 = scmp.eq.s32.totalorder %s9, 1
    %p99 = por %p97, %p98
    %p100 = scmp.ne.s32.totalorder %s92, %s95
    %p101 = scmp.eq.s32.totalorder %s9, 0
    %p102 = por %p100, %p101
    %p103 = scmp.ne.s32.totalorder %s92, %s95
    %p104 = scmp.eq.s32.totalorder %s14, 1
    %p105 = por %p103, %p104
    %p106 = scmp.ne.s32.totalorder %s95, %s96
    %p107 = scmp.eq.s32.totalorder %s14, 0
    %p108 = por %p106, %p107
    %p109 = scmp.ne.s32.totalorder %s95, %s96
    %p110 = scmp.eq.s32.totalorder %s15, 1
    %p111 = por %p109, %p110
    %p113 = scmp.ne.s32.totalorder %s96, %s112
    %p114 = scmp.eq.s32.totalorder %s15, 0
    %p115 = por %p113, %p114
    %p116 = scmp.le.s32.totalorder 1, %s9
    %p117 = scmp.lt.s32.totalorder %s9, 3
    %p118 = pnand %p116, %p117
    %p119 = pneg %p118
    // Predicated region
    $region9: #{run.1} parent=5 // pred_check
      _
    $region10: #{run.1} parent=5 // pred_check_branch
      %121 = sbr.rel (%p118) target = $region12
    $region11: #{run.1} parent=5 // pred_region
      %s122 = ssub.s32 %s9, 1
      // Predicated region
      $region13: #{run.1} parent=11 // pred_check
        %p123 = pneg %p56
      $region14: #{run.1} parent=11 // pred_check_branch
        %125 = sbr.rel (%p123) target = $region16
      $region15: #{run.1} parent=11 // pred_region
        _
      $region16: #{run.1} parent=11 // pred_fallthru
        _
    $region12: #{run.1} parent=5 // pred_fallthru
      _
    %p126 = scmp.lt.s32.totalorder %s9, 2
    // Predicated region
    $region17: #{run.1} parent=5 // pred_check
      %p127 = pneg %p126
    $region18: #{run.1} parent=5 // pred_check_branch
      %129 = sbr.rel (%p127) target = $region20
    $region19: #{run.1} parent=5 // pred_region
      // Predicated region
      $region21: #{run.1} parent=19 // pred_check
        %p130 = pneg %p29
      $region22: #{run.1} parent=19 // pred_check_branch
        %132 = sbr.rel (%p130) target = $region24
      $region23: #{run.1} parent=19 // pred_region
        %p133 = scmp.lt.s32.totalorder %s9, 1
        %s134 = scalar_select %p133, %s9, 1
        %s135 = smul.addr %s134, 54
        %s136 = smul.addr %s135, 8
        %s137 = scalar_lea.vmem %s0, %s136
      $region24: #{run.1} parent=19 // pred_fallthru
        _
      // Predicated region
      $region25: #{run.1} parent=19 // pred_check
        %p138 = pneg %p76
      $region26: #{run.1} parent=19 // pred_check_branch
        %140 = sbr.rel (%p138) target = $region28
      $region27: #{run.1} parent=19 // pred_region
        %p141 = scmp.lt.s32.totalorder %s9, 1
        %s142 = scalar_select %p141, %s9, 1
        %s143 = smul.addr %s142, 32
        %s144 = smul.addr %s143, 8
        %s145 = scalar_lea.vmem %s2, %s144
      $region28: #{run.1} parent=19 // pred_fallthru
        _
    $region20: #{run.1} parent=5 // pred_fallthru
      _
    %p146 = scmp.le.s32.totalorder 1, %s9
    %p147 = scmp.lt.s32.totalorder %s9, 3
    %p148 = pnand %p146, %p147
    %p149 = pneg %p148
    // Predicated region
    $region29: #{run.1} parent=5 // pred_check
      _
    $region30: #{run.1} parent=5 // pred_check_branch
      %151 = sbr.rel (%p148) target = $region32
    $region31: #{run.1} parent=5 // pred_region
      %s152 = ssub.s32 %s9, 1
      %p153 = scmp.lt.s32.totalorder %s14, 1
      %s154 = scalar_select %p153, %s14, 1
      %s155 = smul.addr %s154, 54
      %s156 = smul.addr %s155, 8
      %s157 = scalar_lea.vmem %s0, %s156
      %p158 = pneg %p35
      %p159 = pneg %p32
      %p160 = pneg %p56
      %p161 = pneg %p53
      %p162 = scmp.lt.s32.totalorder %s14, 1
      %s163 = scalar_select %p162, %s14, 1
      %s164 = smul.addr %s163, 32
      %s165 = smul.addr %s164, 8
      %s166 = scalar_lea.vmem %s2, %s165
      %p167 = pneg %p82
      %p168 = pneg %p79
      %p169 = pneg %p108
      %p170 = pneg %p105
      %p171 = scmp.lt.s32.totalorder %s14, 1
      %s172 = scalar_select %p171, %s14, 1
      %s173 = smul.addr %s172, 32
      %s174 = smul.addr %s173, 8
      %s175 = scalar_lea.vmem %s3, %s174
      %p176 = scmp.lt.s32.totalorder %s14, 1
      %s177 = scalar_select %p176, %s14, 1
      %s178 = smul.addr %s177, 54
      %s179 = smul.addr %s178, 8
      %s180 = scalar_lea.vmem %s0, %s179
      %p181 = scmp.lt.s32.totalorder %s14, 1
      %s182 = scalar_select %p181, %s14, 1
      %s183 = smul.addr %s182, 32
      %s184 = smul.addr %s183, 8
      %s185 = scalar_lea.vmem %s2, %s184
      %p186 = scmp.lt.s32.totalorder %s14, 1
      %s187 = scalar_select %p186, %s14, 1
      %s188 = smul.addr %s187, 32
      %s189 = smul.addr %s188, 8
      %s190 = scalar_lea.vmem %s3, %s189
      %191 = vst [vmem:[#allocation2] sm:$0xff] 0.0
      %192 = vst [vmem:[#allocation2 + $0x8] sm:$0xff] 0.0
      %193 = vst [vmem:[#allocation2 + $0x10] sm:$0x3] 0.0
      %194 = vst [vmem:[#allocation2 + $0x18] sm:$0xff] 0.0
      %195 = vst [vmem:[#allocation2 + $0x20] sm:$0xff] 0.0
      %196 = vst [vmem:[#allocation2 + $0x28] sm:$0x3] 0.0
      %197 = vst [vmem:[#allocation2 + $0x30] sm:$0xff] 0.0
      %198 = vst [vmem:[#allocation2 + $0x38] sm:$0xff] 0.0
      %199 = vst [vmem:[#allocation2 + $0x40] sm:$0x3] 0.0
      %200 = vst [vmem:[#allocation2 + $0x48] sm:$0xff] 0.0
      %201 = vst [vmem:[#allocation2 + $0x50] sm:$0xff] 0.0
      %202 = vst [vmem:[#allocation2 + $0x58] sm:$0x3] 0.0
      %203 = vst [vmem:[#allocation2 + $0x60] sm:$0xff] 0.0
      %204 = vst [vmem:[#allocation2 + $0x68] sm:$0xff] 0.0
      %205 = vst [vmem:[#allocation2 + $0x70] sm:$0x3] 0.0
      %206 = vst [vmem:[#allocation2 + $0x78] sm:$0xff] 0.0
      %207 = vst [vmem:[#allocation2 + $0x80] sm:$0xff] 0.0
      %208 = vst [vmem:[#allocation2 + $0x88] sm:$0x3] 0.0
      %209 = vst [vmem:[#allocation2 + $0x90] sm:$0xff] 0.0
      %210 = vst [vmem:[#allocation2 + $0x98] sm:$0xff] 0.0
      %211 = vst [vmem:[#allocation2 + $0xa0] sm:$0x3] 0.0
      %212 = vst [vmem:[#allocation2 + $0xa8] sm:$0xff] 0.0
      %213 = vst [vmem:[#allocation2 + $0xb0] sm:$0xff] 0.0
      %214 = vst [vmem:[#allocation2 + $0xb8] sm:$0x3] 0.0
      %215 = vst [vmem:[#allocation2 + $0xc0] sm:$0xff] 0.0
      %216 = vst [vmem:[#allocation2 + $0xc8] sm:$0xff] 0.0
      %217 = vst [vmem:[#allocation2 + $0xd0] sm:$0x3] 0.0
      %218 = vst [vmem:[#allocation2 + $0xd8] sm:$0xff] 0.0
      %219 = vst [vmem:[#allocation2 + $0xe0] sm:$0xff] 0.0
      %220 = vst [vmem:[#allocation2 + $0xe8] sm:$0x3] 0.0
      %221 = vst [vmem:[#allocation2 + $0xf0] sm:$0xff] 0.0
      %222 = vst [vmem:[#allocation2 + $0xf8] sm:$0xff] 0.0
      %223 = vst [vmem:[#allocation2 + $0x100] sm:$0x3] 0.0
      %224 = vst [vmem:[#allocation2 + $0x108] sm:$0xff] 0.0
      %225 = vst [vmem:[#allocation2 + $0x110] sm:$0xff] 0.0
      %226 = vst [vmem:[#allocation2 + $0x118] sm:$0x3] 0.0
      %227 = vst [vmem:[#allocation2 + $0x120] sm:$0xff] 0.0
      %228 = vst [vmem:[#allocation2 + $0x128] sm:$0xff] 0.0
      %229 = vst [vmem:[#allocation2 + $0x130] sm:$0x3] 0.0
      %230 = vst [vmem:[#allocation2 + $0x138] sm:$0xff] 0.0
      %231 = vst [vmem:[#allocation2 + $0x140] sm:$0xff] 0.0
      %232 = vst [vmem:[#allocation2 + $0x148] sm:$0x3] 0.0
      %233 = vst [vmem:[#allocation2 + $0x150] sm:$0xff] 0.0
      %234 = vst [vmem:[#allocation2 + $0x158] sm:$0xff] 0.0
      %235 = vst [vmem:[#allocation2 + $0x160] sm:$0x3] 0.0
      %236 = vst [vmem:[#allocation2 + $0x168] sm:$0xff] 0.0
      %237 = vst [vmem:[#allocation2 + $0x170] sm:$0xff] 0.0
      %238 = vst [vmem:[#allocation2 + $0x178] sm:$0x3] 0.0
      %239 = vst [vmem:[#allocation2 + $0x180] sm:$0xff] 0.0
      %240 = vst [vmem:[#allocation2 + $0x188] sm:$0xff] 0.0
      %241 = vst [vmem:[#allocation2 + $0x190] sm:$0x3] 0.0
      %242 = vst [vmem:[#allocation2 + $0x198] sm:$0xff] 0.0
      %243 = vst [vmem:[#allocation2 + $0x1a0] sm:$0xff] 0.0
      %244 = vst [vmem:[#allocation2 + $0x1a8] sm:$0x3] 0.0
      %v245 = vlaneseq
      %v246 = vand.u32 %v245, 127
      %vm247 = vcmp.eq.s32.totalorder %v246, 0
      %v248 = vsel %vm247, 1, 0
      %v249 = vcvt.s32.f32 %v248
      %v250 = vld [vmem:[%s180] sm:$0xff]
      %v251 = vld [vmem:[%s180 + $0x8] sm:$0xff]
      %v252 = vld [vmem:[%s180 + $0x18] sm:$0xff]
      %v253 = vld [vmem:[%s180 + $0x20] sm:$0xff]
      %v254 = vld [vmem:[%s180 + $0x30] sm:$0xff]
      %v255 = vld [vmem:[%s180 + $0x38] sm:$0xff]
      %v256 = vld [vmem:[%s180 + $0x48] sm:$0xff]
      %v257 = vld [vmem:[%s180 + $0x50] sm:$0xff]
      %v258 = vld [vmem:[%s180 + $0x60] sm:$0xff]
      %v259 = vld [vmem:[%s180 + $0x68] sm:$0xff]
      %v260 = vld [vmem:[%s180 + $0x78] sm:$0xff]
      %v261 = vld [vmem:[%s180 + $0x80] sm:$0xff]
      %v262 = vld [vmem:[%s180 + $0x90] sm:$0xff]
      %v263 = vld [vmem:[%s180 + $0x98] sm:$0xff]
      %v264 = vld [vmem:[%s180 + $0xa8] sm:$0xff]
      %v265 = vld [vmem:[%s180 + $0xb0] sm:$0xff]
      %v266 = vld [vmem:[%s180 + $0xc0] sm:$0xff]
      %v267 = vld [vmem:[%s180 + $0xc8] sm:$0xff]
      %v268 = vld [vmem:[%s180 + $0xd8] sm:$0xff]
      %v269 = vld [vmem:[%s180 + $0xe0] sm:$0xff]
      %v270 = vld [vmem:[%s180 + $0xf0] sm:$0xff]
      %v271 = vld [vmem:[%s180 + $0xf8] sm:$0xff]
      %v272 = vld [vmem:[%s180 + $0x108] sm:$0xff]
      %v273 = vld [vmem:[%s180 + $0x110] sm:$0xff]
      %v274 = vld [vmem:[%s180 + $0x120] sm:$0xff]
      %v275 = vld [vmem:[%s180 + $0x128] sm:$0xff]
      %v276 = vld [vmem:[%s180 + $0x138] sm:$0xff]
      %v277 = vld [vmem:[%s180 + $0x140] sm:$0xff]
      %v278 = vld [vmem:[%s180 + $0x150] sm:$0xff]
      %v279 = vld [vmem:[%s180 + $0x158] sm:$0xff]
      %v280 = vld [vmem:[%s180 + $0x168] sm:$0xff]
      %v281 = vld [vmem:[%s180 + $0x170] sm:$0xff]
      %v282 = vld [vmem:[%s1] sm:$0xff]
      %v283 = vld [vmem:[%s1 + $0x8] sm:$0xff]
      %v284 = vld [vmem:[%s1 + $0x10] sm:$0xff]
      %v285 = vld [vmem:[%s1 + $0x18] sm:$0xff]
      %v286 = vld [vmem:[%s1 + $0x20] sm:$0xff]
      %v287 = vld [vmem:[%s1 + $0x28] sm:$0xff]
      %v288 = vld [vmem:[%s1 + $0x30] sm:$0xff]
      %v289 = vld [vmem:[%s1 + $0x38] sm:$0xff]
      %v290 = vld [vmem:[%s1 + $0x40] sm:$0xff]
      %v291 = vld [vmem:[%s1 + $0x48] sm:$0xff]
      %v292 = vld [vmem:[%s1 + $0x50] sm:$0xff]
      %v293 = vld [vmem:[%s1 + $0x58] sm:$0xff]
      %v294 = vld [vmem:[%s1 + $0x60] sm:$0xff]
      %v295 = vld [vmem:[%s1 + $0x68] sm:$0xff]
      %v296 = vld [vmem:[%s1 + $0x70] sm:$0xff]
      %v297 = vld [vmem:[%s1 + $0x78] sm:$0xff]
      %v298 = vld [vmem:[%s180 + $0x1] sm:$0xff]
      %v299 = vld [vmem:[%s180 + $0x9] sm:$0xff]
      %v300 = vld [vmem:[%s180 + $0x19] sm:$0xff]
      %v301 = vld [vmem:[%s180 + $0x21] sm:$0xff]
      %v302 = vld [vmem:[%s180 + $0x31] sm:$0xff]
      %v303 = vld [vmem:[%s180 + $0x39] sm:$0xff]
      %v304 = vld [vmem:[%s180 + $0x49] sm:$0xff]
      %v305 = vld [vmem:[%s180 + $0x51] sm:$0xff]
      %v306 = vld [vmem:[%s180 + $0x61] sm:$0xff]
      %v307 = vld [vmem:[%s180 + $0x69] sm:$0xff]
      %v308 = vld [vmem:[%s180 + $0x79] sm:$0xff]
      %v309 = vld [vmem:[%s180 + $0x81] sm:$0xff]
      %v310 = vld [vmem:[%s180 + $0x91] sm:$0xff]
      %v311 = vld [vmem:[%s180 + $0x99] sm:$0xff]
      %v312 = vld [vmem:[%s180 + $0xa9] sm:$0xff]
      %v313 = vld [vmem:[%s180 + $0xb1] sm:$0xff]
      %v314 = vld [vmem:[%s180 + $0xc1] sm:$0xff]
      %v315 = vld [vmem:[%s180 + $0xc9] sm:$0xff]
      %v316 = vld [vmem:[%s180 + $0xd9] sm:$0xff]
      %v317 = vld [vmem:[%s180 + $0xe1] sm:$0xff]
      %v318 = vld [vmem:[%s180 + $0xf1] sm:$0xff]
      %v319 = vld [vmem:[%s180 + $0xf9] sm:$0xff]
      %v320 = vld [vmem:[%s180 + $0x109] sm:$0xff]
      %v321 = vld [vmem:[%s180 + $0x111] sm:$0xff]
      %v322 = vld [vmem:[%s180 + $0x121] sm:$0xff]
      %v323 = vld [vmem:[%s180 + $0x129] sm:$0xff]
      %v324 = vld [vmem:[%s180 + $0x139] sm:$0xff]
      %v325 = vld [vmem:[%s180 + $0x141] sm:$0xff]
      %v326 = vld [vmem:[%s180 + $0x151] sm:$0xff]
      %v327 = vld [vmem:[%s180 + $0x159] sm:$0xff]
      %v328 = vld [vmem:[%s180 + $0x169] sm:$0xff]
      %v329 = vld [vmem:[%s180 + $0x171] sm:$0xff]
      %s330 = scalar_lea.vmem %s1, 128
      %v331 = vld [vmem:[%s330] sm:$0xff]
      %v332 = vld [vmem:[%s330 + $0x8] sm:$0xff]
      %v333 = vld [vmem:[%s330 + $0x10] sm:$0xff]
      %v334 = vld [vmem:[%s330 + $0x18] sm:$0xff]
      %v335 = vld [vmem:[%s330 + $0x20] sm:$0xff]
      %v336 = vld [vmem:[%s330 + $0x28] sm:$0xff]
      %v337 = vld [vmem:[%s330 + $0x30] sm:$0xff]
      %v338 = vld [vmem:[%s330 + $0x38] sm:$0xff]
      %v339 = vld [vmem:[%s330 + $0x40] sm:$0xff]
      %v340 = vld [vmem:[%s330 + $0x48] sm:$0xff]
      %v341 = vld [vmem:[%s330 + $0x50] sm:$0xff]
      %v342 = vld [vmem:[%s330 + $0x58] sm:$0xff]
      %v343 = vld [vmem:[%s330 + $0x60] sm:$0xff]
      %v344 = vld [vmem:[%s330 + $0x68] sm:$0xff]
      %v345 = vld [vmem:[%s330 + $0x70] sm:$0xff]
      %v346 = vld [vmem:[%s330 + $0x78] sm:$0xff]
      %347 = vmatprep.subr.mxu0 0.0
      %348 = vmatpush1.msra.mxu0 %v331
      %349 = vmatprep.subr.mxu0 0.0
      %350 = vmatpush1.msra.mxu0 %v332
      %351 = vmatprep.subr.mxu0 0.0
      %352 = vmatpush1.msra.mxu0 %v333
      %353 = vmatprep.subr.mxu0 0.0
      %354 = vmatpush1.msra.mxu0 %v334
      %355 = vmatprep.subr.mxu0 0.0
      %356 = vmatpush1.msra.mxu0 %v335
      %357 = vmatprep.subr.mxu0 0.0
      %358 = vmatpush1.msra.mxu0 %v336
      %359 = vmatprep.subr.mxu0 0.0
      %360 = vmatpush1.msra.mxu0 %v337
      %361 = vmatprep.subr.mxu0 0.0
      %362 = vmatpush1.msra.mxu0 %v338
      %363 = vmatprep.subr.mxu0 0.0
      %364 = vmatpush1.msra.mxu0 %v339
      %365 = vmatprep.subr.mxu0 0.0
      %366 = vmatpush1.msra.mxu0 %v340
      %367 = vmatprep.subr.mxu0 0.0
      %368 = vmatpush1.msra.mxu0 %v341
      %369 = vmatprep.subr.mxu0 0.0
      %370 = vmatpush1.msra.mxu0 %v342
      %371 = vmatprep.subr.mxu0 0.0
      %372 = vmatpush1.msra.mxu0 %v343
      %373 = vmatprep.subr.mxu0 0.0
      %374 = vmatpush1.msra.mxu0 %v344
      %375 = vmatprep.subr.mxu0 0.0
      %376 = vmatpush1.msra.mxu0 %v345
      %377 = vmatprep.subr.mxu0 0.0
      %378 = vmatpush1.msra.mxu0 %v346
      %379 = vmatprep.subr.mxu0 0.0
      %380 = vmatpush1.msra.mxu0 0.0
      %381 = vmatprep.subr.mxu0 0.0
      %382 = vmatpush1.msra.mxu0 0.0
      %383 = vmatprep.subr.mxu0 0.0
      %384 = vmatpush1.msra.mxu0 0.0
      %385 = vmatprep.subr.mxu0 0.0
      %386 = vmatpush1.msra.mxu0 0.0
      %387 = vmatprep.subr.mxu0 0.0
      %388 = vmatpush1.msra.mxu0 0.0
      %389 = vmatprep.subr.mxu0 0.0
      %390 = vmatpush1.msra.mxu0 0.0
      %391 = vmatprep.subr.mxu0 0.0
      %392 = vmatpush1.msra.mxu0 0.0
      %393 = vmatprep.subr.mxu0 0.0
      %394 = vmatpush1.msra.mxu0 0.0
      %395 = vmatprep.subr.mxu0 0.0
      %396 = vmatpush1.msra.mxu0 0.0
      %397 = vmatprep.subr.mxu0 0.0
      %398 = vmatpush1.msra.mxu0 0.0
      %399 = vmatprep.subr.mxu0 0.0
      %400 = vmatpush1.msra.mxu0 0.0
      %401 = vmatprep.subr.mxu0 0.0
      %402 = vmatpush1.msra.mxu0 0.0
      %403 = vmatprep.subr.mxu0 0.0
      %404 = vmatpush1.msra.mxu0 0.0
      %405 = vmatprep.subr.mxu0 0.0
      %406 = vmatpush1.msra.mxu0 0.0
      %407 = vmatprep.subr.mxu0 0.0
      %408 = vmatpush1.msra.mxu0 0.0
      %409 = vmatprep.subr.mxu0 0.0
      %410 = vmatpush1.msra.mxu0 0.0
      %411 = vmatprep.mubr.f32.mxu0 0.0
      %412 = vmatmul.mubr.f32.gmra.mrb[0].mxu0 %v298
      %v413 = vpop.f32.mrb[0].mxu0
      %v414 = vadd.f32 0.0, %v413
      %v415 = vpop.f32.mrb[0].mxu0
      %416 = vmatprep.mubr.f32.mxu0 0.0
      %417 = vmatmul.mubr.f32.gmra.mrb[0].mxu0 %v299
      %v418 = vpop.f32.mrb[0].mxu0
      %v419 = vadd.f32 0.0, %v418
      %v420 = vpop.f32.mrb[0].mxu0
      %421 = vmatprep.mubr.f32.mxu0 0.0
      %422 = vmatmul.mubr.f32.gmra.mrb[0].mxu0 %v300
      %v423 = vpop.f32.mrb[0].mxu0
      %v424 = vadd.f32 0.0, %v423
      %v425 = vpop.f32.mrb[0].mxu0
      %426 = vmatprep.mubr.f32.mxu0 0.0
      %427 = vmatmul.mubr.f32.gmra.mrb[0].mxu0 %v301
      %v428 = vpop.f32.mrb[0].mxu0
      %v429 = vadd.f32 0.0, %v428
      %v430 = vpop.f32.mrb[0].mxu0
      %431 = vmatprep.mubr.f32.mxu0 0.0
      %432 = vmatmul.mubr.f32.gmra.mrb[0].mxu0 %v302
      %v433 = vpop.f32.mrb[0].mxu0
      %v434 = vadd.f32 0.0, %v433
      %v435 = vpop.f32.mrb[0].mxu0
      %436 = vmatprep.mubr.f32.mxu0 0.0
      %437 = vmatmul.mubr.f32.gmra.mrb[0].mxu0 %v303
      %v438 = vpop.f32.mrb[0].mxu0
      %v439 = vadd.f32 0.0, %v438
      %v440 = vpop.f32.mrb[0].mxu0
      %441 = vmatprep.mubr.f32.mxu0 0.0
      %442 = vmatmul.mubr.f32.gmra.mrb[0].mxu0 %v304
      %v443 = vpop.f32.mrb[0].mxu0
      %v444 = vadd.f32 0.0, %v443
      %v445 = vpop.f32.mrb[0].mxu0
      %446 = vmatprep.mubr.f32.mxu0 0.0
      %447 = vmatmul.mubr.f32.gmra.mrb[0].mxu0 %v305
      %v448 = vpop.f32.mrb[0].mxu0
      %v449 = vadd.f32 0.0, %v448
      %v450 = vpop.f32.mrb[0].mxu0
      %451 = vmatprep.mubr.f32.mxu0 0.0
      %452 = vmatmul.mubr.f32.gmra.mrb[0].mxu0 %v306
      %v453 = vpop.f32.mrb[0].mxu0
      %v454 = vadd.f32 0.0, %v453
      %v455 = vpop.f32.mrb[0].mxu0
      %456 = vmatprep.mubr.f32.mxu0 0.0
      %457 = vmatmul.mubr.f32.gmra.mrb[0].mxu0 %v307
      %v458 = vpop.f32.mrb[0].mxu0
      %v459 = vadd.f32 0.0, %v458
      %v460 = vpop.f32.mrb[0].mxu0
      %461 = vmatprep.mubr.f32.mxu0 0.0
      %462 = vmatmul.mubr.f32.gmra.mrb[0].mxu0 %v308
      %v463 = vpop.f32.mrb[0].mxu0
      %v464 = vadd.f32 0.0, %v463
      %v465 = vpop.f32.mrb[0].mxu0
      %466 = vmatprep.mubr.f32.mxu0 0.0
      %467 = vmatmul.mubr.f32.gmra.mrb[0].mxu0 %v309
      %v468 = vpop.f32.mrb[0].mxu0
      %v469 = vadd.f32 0.0, %v468
      %v470 = vpop.f32.mrb[0].mxu0
      %471 = vmatprep.mubr.f32.mxu0 0.0
      %472 = vmatmul.mubr.f32.gmra.mrb[0].mxu0 %v310
      %v473 = vpop.f32.mrb[0].mxu0
      %v474 = vadd.f32 0.0, %v473
      %v475 = vpop.f32.mrb[0].mxu0
      %476 = vmatprep.mubr.f32.mxu0 0.0
      %477 = vmatmul.mubr.f32.gmra.mrb[0].mxu0 %v311
      %v478 = vpop.f32.mrb[0].mxu0
      %v479 = vadd.f32 0.0, %v478
      %v480 = vpop.f32.mrb[0].mxu0
      %481 = vmatprep.mubr.f32.mxu0 0.0
      %482 = vmatmul.mubr.f32.gmra.mrb[0].mxu0 %v312
      %v483 = vpop.f32.mrb[0].mxu0
      %v484 = vadd.f32 0.0, %v483
      %v485 = vpop.f32.mrb[0].mxu0
      %486 = vmatprep.mubr.f32.mxu0 0.0
      %487 = vmatmul.mubr.f32.gmra.mrb[0].mxu0 %v313
      %v488 = vpop.f32.mrb[0].mxu0
      %v489 = vadd.f32 0.0, %v488
      %v490 = vpop.f32.mrb[0].mxu0
      %491 = vmatprep.mubr.f32.mxu0 0.0
      %492 = vmatmul.mubr.f32.gmra.mrb[0].mxu0 %v314
      %v493 = vpop.f32.mrb[0].mxu0
      %v494 = vadd.f32 0.0, %v493
      %v495 = vpop.f32.mrb[0].mxu0
      %496 = vmatprep.mubr.f32.mxu0 0.0
      %497 = vmatmul.mubr.f32.gmra.mrb[0].mxu0 %v315
      %v498 = vpop.f32.mrb[0].mxu0
      %v499 = vadd.f32 0.0, %v498
      %v500 = vpop.f32.mrb[0].mxu0
      %501 = vmatprep.mubr.f32.mxu0 0.0
      %502 = vmatmul.mubr.f32.gmra.mrb[0].mxu0 %v316
      %v503 = vpop.f32.mrb[0].mxu0
      %v504 = vadd.f32 0.0, %v503
      %v505 = vpop.f32.mrb[0].mxu0
      %506 = vmatprep.mubr.f32.mxu0 0.0
      %507 = vmatmul.mubr.f32.gmra.mrb[0].mxu0 %v317
      %v508 = vpop.f32.mrb[0].mxu0
      %v509 = vadd.f32 0.0, %v508
      %v510 = vpop.f32.mrb[0].mxu0
      %511 = vmatprep.mubr.f32.mxu0 0.0
      %512 = vmatmul.mubr.f32.gmra.mrb[0].mxu0 %v318
      %v513 = vpop.f32.mrb[0].mxu0
      %v514 = vadd.f32 0.0, %v513
      %v515 = vpop.f32.mrb[0].mxu0
      %516 = vmatprep.mubr.f32.mxu0 0.0
      %517 = vmatmul.mubr.f32.gmra.mrb[0].mxu0 %v319
      %v518 = vpop.f32.mrb[0].mxu0
      %v519 = vadd.f32 0.0, %v518
      %v520 = vpop.f32.mrb[0].mxu0
      %521 = vmatprep.mubr.f32.mxu0 0.0
      %522 = vmatmul.mubr.f32.gmra.mrb[0].mxu0 %v320
      %v523 = vpop.f32.mrb[0].mxu0
      %v524 = vadd.f32 0.0, %v523
      %v525 = vpop.f32.mrb[0].mxu0
      %526 = vmatprep.mubr.f32.mxu0 0.0
      %527 = vmatmul.mubr.f32.gmra.mrb[0].mxu0 %v321
      %v528 = vpop.f32.mrb[0].mxu0
      %v529 = vadd.f32 0.0, %v528
      %v530 = vpop.f32.mrb[0].mxu0
      %531 = vmatprep.mubr.f32.mxu0 0.0
      %532 = vmatmul.mubr.f32.gmra.mrb[0].mxu0 %v322
      %v533 = vpop.f32.mrb[0].mxu0
      %v534 = vadd.f32 0.0, %v533
      %v535 = vpop.f32.mrb[0].mxu0
      %536 = vmatprep.mubr.f32.mxu0 0.0
      %537 = vmatmul.mubr.f32.gmra.mrb[0].mxu0 %v323
      %v538 = vpop.f32.mrb[0].mxu0
      %v539 = vadd.f32 0.0, %v538
      %v540 = vpop.f32.mrb[0].mxu0
      %541 = vmatprep.mubr.f32.mxu0 0.0
      %542 = vmatmul.mubr.f32.gmra.mrb[0].mxu0 %v324
      %v543 = vpop.f32.mrb[0].mxu0
      %v544 = vadd.f32 0.0, %v543
      %v545 = vpop.f32.mrb[0].mxu0
      %546 = vmatprep.mubr.f32.mxu0 0.0
      %547 = vmatmul.mubr.f32.gmra.mrb[0].mxu0 %v325
      %v548 = vpop.f32.mrb[0].mxu0
      %v549 = vadd.f32 0.0, %v548
      %v550 = vpop.f32.mrb[0].mxu0
      %551 = vmatprep.mubr.f32.mxu0 0.0
      %552 = vmatmul.mubr.f32.gmra.mrb[0].mxu0 %v326
      %v553 = vpop.f32.mrb[0].mxu0
      %v554 = vadd.f32 0.0, %v553
      %v555 = vpop.f32.mrb[0].mxu0
      %556 = vmatprep.mubr.f32.mxu0 0.0
      %557 = vmatmul.mubr.f32.gmra.mrb[0].mxu0 %v327
      %v558 = vpop.f32.mrb[0].mxu0
      %v559 = vadd.f32 0.0, %v558
      %v560 = vpop.f32.mrb[0].mxu0
      %561 = vmatprep.mubr.f32.mxu0 0.0
      %562 = vmatmul.mubr.f32.gmra.mrb[0].mxu0 %v328
      %v563 = vpop.f32.mrb[0].mxu0
      %v564 = vadd.f32 0.0, %v563
      %v565 = vpop.f32.mrb[0].mxu0
      %566 = vmatprep.mubr.f32.mxu0 0.0
      %567 = vmatmul.mubr.f32.gmra.mrb[0].mxu0 %v329
      %v568 = vpop.f32.mrb[0].mxu0
      %v569 = vadd.f32 0.0, %v568
      %v570 = vpop.f32.mrb[0].mxu0
      %571 = vdwg.mxu0
      %572 = vmatprep.subr.mxu0 0.0
      %573 = vmatpush1.msra.mxu0 %v282
      %574 = vmatprep.subr.mxu0 0.0
      %575 = vmatpush1.msra.mxu0 %v283
      %576 = vmatprep.subr.mxu0 0.0
      %577 = vmatpush1.msra.mxu0 %v284
      %578 = vmatprep.subr.mxu0 0.0
      %579 = vmatpush1.msra.mxu0 %v285
      %580 = vmatprep.subr.mxu0 0.0
      %581 = vmatpush1.msra.mxu0 %v286
      %582 = vmatprep.subr.mxu0 0.0
      %583 = vmatpush1.msra.mxu0 %v287
      %584 = vmatprep.subr.mxu0 0.0
      %585 = vmatpush1.msra.mxu0 %v288
      %586 = vmatprep.subr.mxu0 0.0
      %587 = vmatpush1.msra.mxu0 %v289
      %588 = vmatprep.subr.mxu0 0.0
      %589 = vmatpush1.msra.mxu0 %v290
      %590 = vmatprep.subr.mxu0 0.0
      %591 = vmatpush1.msra.mxu0 %v291
      %592 = vmatprep.subr.mxu0 0.0
      %593 = vmatpush1.msra.mxu0 %v292
      %594 = vmatprep.subr.mxu0 0.0
      %595 = vmatpush1.msra.mxu0 %v293
      %596 = vmatprep.subr.mxu0 0.0
      %597 = vmatpush1.msra.mxu0 %v294
      %598 = vmatprep.subr.mxu0 0.0
      %599 = vmatpush1.msra.mxu0 %v295
      %600 = vmatprep.subr.mxu0 0.0
      %601 = vmatpush1.msra.mxu0 %v296
      %602 = vmatprep.subr.mxu0 0.0
      %603 = vmatpush1.msra.mxu0 %v297
      %604 = vmatprep.subr.mxu0 0.0
      %605 = vmatpush1.msra.mxu0 0.0
      %606 = vmatprep.subr.mxu0 0.0
      %607 = vmatpush1.msra.mxu0 0.0
      %608 = vmatprep.subr.mxu0 0.0
      %609 = vmatpush1.msra.mxu0 0.0
      %610 = vmatprep.subr.mxu0 0.0
      %611 = vmatpush1.msra.mxu0 0.0
      %612 = vmatprep.subr.mxu0 0.0
      %613 = vmatpush1.msra.mxu0 0.0
      %614 = vmatprep.subr.mxu0 0.0
      %615 = vmatpush1.msra.mxu0 0.0
      %616 = vmatprep.subr.mxu0 0.0
      %617 = vmatpush1.msra.mxu0 0.0
      %618 = vmatprep.subr.mxu0 0.0
      %619 = vmatpush1.msra.mxu0 0.0
      %620 = vmatprep.subr.mxu0 0.0
      %621 = vmatpush1.msra.mxu0 0.0
      %622 = vmatprep.subr.mxu0 0.0
      %623 = vmatpush1.msra.mxu0 0.0
      %624 = vmatprep.subr.mxu0 0.0
      %625 = vmatpush1.msra.mxu0 0.0
      %626 = vmatprep.subr.mxu0 0.0
      %627 = vmatpush1.msra.mxu0 0.0
      %628 = vmatprep.subr.mxu0 0.0
      %629 = vmatpush1.msra.mxu0 0.0
      %630 = vmatprep.subr.mxu0 0.0
      %631 = vmatpush1.msra.mxu0 0.0
      %632 = vmatprep.subr.mxu0 0.0
      %633 = vmatpush1.msra.mxu0 0.0
      %634 = vmatprep.subr.mxu0 0.0
      %635 = vmatpush1.msra.mxu0 0.0
      %636 = vmatprep.mubr.f32.mxu0 0.0
      %637 = vmatmul.mubr.f32.gmra.mrb[0].mxu0 %v250
      %v638 = vpop.f32.mrb[0].mxu0
      %v639 = vadd.f32 %v414, %v638
      %v640 = vpop.f32.mrb[0].mxu0
      %641 = vmatprep.mubr.f32.mxu0 0.0
      %642 = vmatmul.mubr.f32.gmra.mrb[0].mxu0 %v251
      %v643 = vpop.f32.mrb[0].mxu0
      %v644 = vadd.f32 %v419, %v643
      %v645 = vpop.f32.mrb[0].mxu0
      %646 = vmatprep.mubr.f32.mxu0 0.0
      %647 = vmatmul.mubr.f32.gmra.mrb[0].mxu0 %v252
      %v648 = vpop.f32.mrb[0].mxu0
      %v649 = vadd.f32 %v424, %v648
      %v650 = vpop.f32.mrb[0].mxu0
      %651 = vmatprep.mubr.f32.mxu0 0.0
      %652 = vmatmul.mubr.f32.gmra.mrb[0].mxu0 %v253
      %v653 = vpop.f32.mrb[0].mxu0
      %v654 = vadd.f32 %v429, %v653
      %v655 = vpop.f32.mrb[0].mxu0
      %656 = vmatprep.mubr.f32.mxu0 0.0
      %657 = vmatmul.mubr.f32.gmra.mrb[0].mxu0 %v254
      %v658 = vpop.f32.mrb[0].mxu0
      %v659 = vadd.f32 %v434, %v658
      %v660 = vpop.f32.mrb[0].mxu0
      %661 = vmatprep.mubr.f32.mxu0 0.0
      %662 = vmatmul.mubr.f32.gmra.mrb[0].mxu0 %v255
      %v663 = vpop.f32.mrb[0].mxu0
      %v664 = vadd.f32 %v439, %v663
      %v665 = vpop.f32.mrb[0].mxu0
      %666 = vmatprep.mubr.f32.mxu0 0.0
      %667 = vmatmul.mubr.f32.gmra.mrb[0].mxu0 %v256
      %v668 = vpop.f32.mrb[0].mxu0
      %v669 = vadd.f32 %v444, %v668
      %v670 = vpop.f32.mrb[0].mxu0
      %671 = vmatprep.mubr.f32.mxu0 0.0
      %672 = vmatmul.mubr.f32.gmra.mrb[0].mxu0 %v257
      %v673 = vpop.f32.mrb[0].mxu0
      %v674 = vadd.f32 %v449, %v673
      %v675 = vpop.f32.mrb[0].mxu0
      %676 = vmatprep.mubr.f32.mxu0 0.0
      %677 = vmatmul.mubr.f32.gmra.mrb[0].mxu0 %v258
      %v678 = vpop.f32.mrb[0].mxu0
      %v679 = vadd.f32 %v454, %v678
      %v680 = vpop.f32.mrb[0].mxu0
      %681 = vmatprep.mubr.f32.mxu0 0.0
      %682 = vmatmul.mubr.f32.gmra.mrb[0].mxu0 %v259
      %v683 = vpop.f32.mrb[0].mxu0
      %v684 = vadd.f32 %v459, %v683
      %v685 = vpop.f32.mrb[0].mxu0
      %686 = vmatprep.mubr.f32.mxu0 0.0
      %687 = vmatmul.mubr.f32.gmra.mrb[0].mxu0 %v260
      %v688 = vpop.f32.mrb[0].mxu0
      %v689 = vadd.f32 %v464, %v688
      %v690 = vpop.f32.mrb[0].mxu0
      %691 = vmatprep.mubr.f32.mxu0 0.0
      %692 = vmatmul.mubr.f32.gmra.mrb[0].mxu0 %v261
      %v693 = vpop.f32.mrb[0].mxu0
      %v694 = vadd.f32 %v469, %v693
      %v695 = vpop.f32.mrb[0].mxu0
      %696 = vmatprep.mubr.f32.mxu0 0.0
      %697 = vmatmul.mubr.f32.gmra.mrb[0].mxu0 %v262
      %v698 = vpop.f32.mrb[0].mxu0
      %v699 = vadd.f32 %v474, %v698
      %v700 = vpop.f32.mrb[0].mxu0
      %701 = vmatprep.mubr.f32.mxu0 0.0
      %702 = vmatmul.mubr.f32.gmra.mrb[0].mxu0 %v263
      %v703 = vpop.f32.mrb[0].mxu0
      %v704 = vadd.f32 %v479, %v703
      %v705 = vpop.f32.mrb[0].mxu0
      %706 = vmatprep.mubr.f32.mxu0 0.0
      %707 = vmatmul.mubr.f32.gmra.mrb[0].mxu0 %v264
      %v708 = vpop.f32.mrb[0].mxu0
      %v709 = vadd.f32 %v484, %v708
      %v710 = vpop.f32.mrb[0].mxu0
      %711 = vmatprep.mubr.f32.mxu0 0.0
      %712 = vmatmul.mubr.f32.gmra.mrb[0].mxu0 %v265
      %v713 = vpop.f32.mrb[0].mxu0
      %v714 = vadd.f32 %v489, %v713
      %v715 = vpop.f32.mrb[0].mxu0
      %716 = vmatprep.mubr.f32.mxu0 0.0
      %717 = vmatmul.mubr.f32.gmra.mrb[0].mxu0 %v266
      %v718 = vpop.f32.mrb[0].mxu0
      %v719 = vadd.f32 %v494, %v718
      %v720 = vpop.f32.mrb[0].mxu0
      %721 = vmatprep.mubr.f32.mxu0 0.0
      %722 = vmatmul.mubr.f32.gmra.mrb[0].mxu0 %v267
      %v723 = vpop.f32.mrb[0].mxu0
      %v724 = vadd.f32 %v499, %v723
      %v725 = vpop.f32.mrb[0].mxu0
      %726 = vmatprep.mubr.f32.mxu0 0.0
      %727 = vmatmul.mubr.f32.gmra.mrb[0].mxu0 %v268
      %v728 = vpop.f32.mrb[0].mxu0
      %v729 = vadd.f32 %v504, %v728
      %v730 = vpop.f32.mrb[0].mxu0
      %731 = vmatprep.mubr.f32.mxu0 0.0
      %732 = vmatmul.mubr.f32.gmra.mrb[0].mxu0 %v269
      %v733 = vpop.f32.mrb[0].mxu0
      %v734 = vadd.f32 %v509, %v733
      %v735 = vpop.f32.mrb[0].mxu0
      %736 = vmatprep.mubr.f32.mxu0 0.0
      %737 = vmatmul.mubr.f32.gmra.mrb[0].mxu0 %v270
      %v738 = vpop.f32.mrb[0].mxu0
      %v739 = vadd.f32 %v514, %v738
      %v740 = vpop.f32.mrb[0].mxu0
      %741 = vmatprep.mubr.f32.mxu0 0.0
      %742 = vmatmul.mubr.f32.gmra.mrb[0].mxu0 %v271
      %v743 = vpop.f32.mrb[0].mxu0
      %v744 = vadd.f32 %v519, %v743
      %v745 = vpop.f32.mrb[0].mxu0
      %746 = vmatprep.mubr.f32.mxu0 0.0
      %747 = vmatmul.mubr.f32.gmra.mrb[0].mxu0 %v272
      %v748 = vpop.f32.mrb[0].mxu0
      %v749 = vadd.f32 %v524, %v748
      %v750 = vpop.f32.mrb[0].mxu0
      %751 = vmatprep.mubr.f32.mxu0 0.0
      %752 = vmatmul.mubr.f32.gmra.mrb[0].mxu0 %v273
      %v753 = vpop.f32.mrb[0].mxu0
      %v754 = vadd.f32 %v529, %v753
      %v755 = vpop.f32.mrb[0].mxu0
      %756 = vmatprep.mubr.f32.mxu0 0.0
      %757 = vmatmul.mubr.f32.gmra.mrb[0].mxu0 %v274
      %v758 = vpop.f32.mrb[0].mxu0
      %v759 = vadd.f32 %v534, %v758
      %v760 = vpop.f32.mrb[0].mxu0
      %761 = vmatprep.mubr.f32.mxu0 0.0
      %762 = vmatmul.mubr.f32.gmra.mrb[0].mxu0 %v275
      %v763 = vpop.f32.mrb[0].mxu0
      %v764 = vadd.f32 %v539, %v763
      %v765 = vpop.f32.mrb[0].mxu0
      %766 = vmatprep.mubr.f32.mxu0 0.0
      %767 = vmatmul.mubr.f32.gmra.mrb[0].mxu0 %v276
      %v768 = vpop.f32.mrb[0].mxu0
      %v769 = vadd.f32 %v544, %v768
      %v770 = vpop.f32.mrb[0].mxu0
      %771 = vmatprep.mubr.f32.mxu0 0.0
      %772 = vmatmul.mubr.f32.gmra.mrb[0].mxu0 %v277
      %v773 = vpop.f32.mrb[0].mxu0
      %v774 = vadd.f32 %v549, %v773
      %v775 = vpop.f32.mrb[0].mxu0
      %776 = vmatprep.mubr.f32.mxu0 0.0
      %777 = vmatmul.mubr.f32.gmra.mrb[0].mxu0 %v278
      %v778 = vpop.f32.mrb[0].mxu0
      %v779 = vadd.f32 %v554, %v778
      %v780 = vpop.f32.mrb[0].mxu0
      %781 = vmatprep.mubr.f32.mxu0 0.0
      %782 = vmatmul.mubr.f32.gmra.mrb[0].mxu0 %v279
      %v783 = vpop.f32.mrb[0].mxu0
      %v784 = vadd.f32 %v559, %v783
      %v785 = vpop.f32.mrb[0].mxu0
      %786 = vmatprep.mubr.f32.mxu0 0.0
      %787 = vmatmul.mubr.f32.gmra.mrb[0].mxu0 %v280
      %v788 = vpop.f32.mrb[0].mxu0
      %v789 = vadd.f32 %v564, %v788
      %v790 = vpop.f32.mrb[0].mxu0
      %791 = vmatprep.mubr.f32.mxu0 0.0
      %792 = vmatmul.mubr.f32.gmra.mrb[0].mxu0 %v281
      %v793 = vpop.f32.mrb[0].mxu0
      %v794 = vadd.f32 %v569, %v793
      %v795 = vpop.f32.mrb[0].mxu0
      %796 = vdwg.mxu0
      %v797 = vld [vmem:[%s180 + $0x2] sm:$0xff]
      %v798 = vld [vmem:[%s180 + $0xa] sm:$0xff]
      %v799 = vld [vmem:[%s180 + $0x1a] sm:$0xff]
      %v800 = vld [vmem:[%s180 + $0x22] sm:$0xff]
      %v801 = vld [vmem:[%s180 + $0x32] sm:$0xff]
      %v802 = vld [vmem:[%s180 + $0x3a] sm:$0xff]
      %v803 = vld [vmem:[%s180 + $0x4a] sm:$0xff]
      %v804 = vld [vmem:[%s180 + $0x52] sm:$0xff]
      %v805 = vld [vmem:[%s180 + $0x62] sm:$0xff]
      %v806 = vld [vmem:[%s180 + $0x6a] sm:$0xff]
      %v807 = vld [vmem:[%s180 + $0x7a] sm:$0xff]
      %v808 = vld [vmem:[%s180 + $0x82] sm:$0xff]
      %v809 = vld [vmem:[%s180 + $0x92] sm:$0xff]
      %v810 = vld [vmem:[%s180 + $0x9a] sm:$0xff]
      %v811 = vld [vmem:[%s180 + $0xaa] sm:$0xff]
      %v812 = vld [vmem:[%s180 + $0xb2] sm:$0xff]
      %v813 = vld [vmem:[%s180 + $0xc2] sm:$0xff]
      %v814 = vld [vmem:[%s180 + $0xca] sm:$0xff]
      %v815 = vld [vmem:[%s180 + $0xda] sm:$0xff]
      %v816 = vld [vmem:[%s180 + $0xe2] sm:$0xff]
      %v817 = vld [vmem:[%s180 + $0xf2] sm:$0xff]
      %v818 = vld [vmem:[%s180 + $0xfa] sm:$0xff]
      %v819 = vld [vmem:[%s180 + $0x10a] sm:$0xff]
      %v820 = vld [vmem:[%s180 + $0x112] sm:$0xff]
      %v821 = vld [vmem:[%s180 + $0x122] sm:$0xff]
      %v822 = vld [vmem:[%s180 + $0x12a] sm:$0xff]
      %v823 = vld [vmem:[%s180 + $0x13a] sm:$0xff]
      %v824 = vld [vmem:[%s180 + $0x142] sm:$0xff]
      %v825 = vld [vmem:[%s180 + $0x152] sm:$0xff]
      %v826 = vld [vmem:[%s180 + $0x15a] sm:$0xff]
      %v827 = vld [vmem:[%s180 + $0x16a] sm:$0xff]
      %v828 = vld [vmem:[%s180 + $0x172] sm:$0xff]
      %s829 = scalar_lea.vmem %s1, 256
      %v830 = vld [vmem:[%s829] sm:$0xff]
      %v831 = vld [vmem:[%s829 + $0x8] sm:$0xff]
      %v832 = vld [vmem:[%s829 + $0x10] sm:$0xff]
      %v833 = vld [vmem:[%s829 + $0x18] sm:$0xff]
      %v834 = vld [vmem:[%s829 + $0x20] sm:$0xff]
      %v835 = vld [vmem:[%s829 + $0x28] sm:$0xff]
      %v836 = vld [vmem:[%s829 + $0x30] sm:$0xff]
      %v837 = vld [vmem:[%s829 + $0x38] sm:$0xff]
      %v838 = vld [vmem:[%s829 + $0x40] sm:$0xff]
      %v839 = vld [vmem:[%s829 + $0x48] sm:$0xff]
      %v840 = vld [vmem:[%s829 + $0x50] sm:$0xff]
      %v841 = vld [vmem:[%s829 + $0x58] sm:$0xff]
      %v842 = vld [vmem:[%s829 + $0x60] sm:$0xff]
      %v843 = vld [vmem:[%s829 + $0x68] sm:$0xff]
      %v844 = vld [vmem:[%s829 + $0x70] sm:$0xff]
      %v845 = vld [vmem:[%s829 + $0x78] sm:$0xff]
      %846 = vmatprep.subr.mxu0 0.0
      %847 = vmatpush1.msra.mxu0 %v830
      %848 = vmatprep.subr.mxu0 0.0
      %849 = vmatpush1.msra.mxu0 %v831
      %850 = vmatprep.subr.mxu0 0.0
      %851 = vmatpush1.msra.mxu0 %v832
      %852 = vmatprep.subr.mxu0 0.0
      %853 = vmatpush1.msra.mxu0 %v833
      %854 = vmatprep.subr.mxu0 0.0
      %855 = vmatpush1.msra.mxu0 %v834
      %856 = vmatprep.subr.mxu0 0.0
      %857 = vmatpush1.msra.mxu0 %v835
      %858 = vmatprep.subr.mxu0 0.0
      %859 = vmatpush1.msra.mxu0 %v836
      %860 = vmatprep.subr.mxu0 0.0
      %861 = vmatpush1.msra.mxu0 %v837
      %862 = vmatprep.subr.mxu0 0.0
      %863 = vmatpush1.msra.mxu0 %v838
      %864 = vmatprep.subr.mxu0 0.0
      %865 = vmatpush1.msra.mxu0 %v839
      %866 = vmatprep.subr.mxu0 0.0
      %867 = vmatpush1.msra.mxu0 %v840
      %868 = vmatprep.subr.mxu0 0.0
      %869 = vmatpush1.msra.mxu0 %v841
      %870 = vmatprep.subr.mxu0 0.0
      %871 = vmatpush1.msra.mxu0 %v842
      %872 = vmatprep.subr.mxu0 0.0
      %873 = vmatpush1.msra.mxu0 %v843
      %874 = vmatprep.subr.mxu0 0.0
      %875 = vmatpush1.msra.mxu0 %v844
      %876 = vmatprep.subr.mxu0 0.0
      %877 = vmatpush1.msra.mxu0 %v845
      %878 = vmatprep.subr.mxu0 0.0
      %879 = vmatpush1.msra.mxu0 0.0
      %880 = vmatprep.subr.mxu0 0.0
      %881 = vmatpush1.msra.mxu0 0.0
      %882 = vmatprep.subr.mxu0 0.0
      %883 = vmatpush1.msra.mxu0 0.0
      %884 = vmatprep.subr.mxu0 0.0
      %885 = vmatpush1.msra.mxu0 0.0
      %886 = vmatprep.subr.mxu0 0.0
      %887 = vmatpush1.msra.mxu0 0.0
      %888 = vmatprep.subr.mxu0 0.0
      %889 = vmatpush1.msra.mxu0 0.0
      %890 = vmatprep.subr.mxu0 0.0
      %891 = vmatpush1.msra.mxu0 0.0
      %892 = vmatprep.subr.mxu0 0.0
      %893 = vmatpush1.msra.mxu0 0.0
      %894 = vmatprep.subr.mxu0 0.0
      %895 = vmatpush1.msra.mxu0 0.0
      %896 = vmatprep.subr.mxu0 0.0
      %897 = vmatpush1.msra.mxu0 0.0
      %898 = vmatprep.subr.mxu0 0.0
      %899 = vmatpush1.msra.mxu0 0.0
      %900 = vmatprep.subr.mxu0 0.0
      %901 = vmatpush1.msra.mxu0 0.0
      %902 = vmatprep.subr.mxu0 0.0
      %903 = vmatpush1.msra.mxu0 0.0
      %904 = vmatprep.subr.mxu0 0.0
      %905 = vmatpush1.msra.mxu0 0.0
      %906 = vmatprep.subr.mxu0 0.0
      %907 = vmatpush1.msra.mxu0 0.0
      %908 = vmatprep.subr.mxu0 0.0
      %909 = vmatpush1.msra.mxu0 0.0
      %910 = vmatprep.mubr.f32.mxu0 0.0
      %911 = vmatmul.mubr.f32.gmra.mrb[0].mxu0 %v797
      %v912 = vpop.f32.mrb[0].mxu0
      %v913 = vadd.f32 0.0, %v912
      %v914 = vpop.f32.mrb[0].mxu0
      %915 = vmatprep.mubr.f32.mxu0 0.0
      %916 = vmatmul.mubr.f32.gmra.mrb[0].mxu0 %v798
      %v917 = vpop.f32.mrb[0].mxu0
      %v918 = vadd.f32 0.0, %v917
      %v919 = vpop.f32.mrb[0].mxu0
      %920 = vmatprep.mubr.f32.mxu0 0.0
      %921 = vmatmul.mubr.f32.gmra.mrb[0].mxu0 %v799
      %v922 = vpop.f32.mrb[0].mxu0
      %v923 = vadd.f32 0.0, %v922
      %v924 = vpop.f32.mrb[0].mxu0
      %925 = vmatprep.mubr.f32.mxu0 0.0
      %926 = vmatmul.mubr.f32.gmra.mrb[0].mxu0 %v800
      %v927 = vpop.f32.mrb[0].mxu0
      %v928 = vadd.f32 0.0, %v927
      %v929 = vpop.f32.mrb[0].mxu0
      %930 = vmatprep.mubr.f32.mxu0 0.0
      %931 = vmatmul.mubr.f32.gmra.mrb[0].mxu0 %v801
      %v932 = vpop.f32.mrb[0].mxu0
      %v933 = vadd.f32 0.0, %v932
      %v934 = vpop.f32.mrb[0].mxu0
      %935 = vmatprep.mubr.f32.mxu0 0.0
      %936 = vmatmul.mubr.f32.gmra.mrb[0].mxu0 %v802
      %v937 = vpop.f32.mrb[0].mxu0
      %v938 = vadd.f32 0.0, %v937
      %v939 = vpop.f32.mrb[0].mxu0
      %940 = vmatprep.mubr.f32.mxu0 0.0
      %941 = vmatmul.mubr.f32.gmra.mrb[0].mxu0 %v803
      %v942 = vpop.f32.mrb[0].mxu0
      %v943 = vadd.f32 0.0, %v942
      %v944 = vpop.f32.mrb[0].mxu0
      %945 = vmatprep.mubr.f32.mxu0 0.0
      %946 = vmatmul.mubr.f32.gmra.mrb[0].mxu0 %v804
      %v947 = vpop.f32.mrb[0].mxu0
      %v948 = vadd.f32 0.0, %v947
      %v949 = vpop.f32.mrb[0].mxu0
      %950 = vmatprep.mubr.f32.mxu0 0.0
      %951 = vmatmul.mubr.f32.gmra.mrb[0].mxu0 %v805
      %v952 = vpop.f32.mrb[0].mxu0
      %v953 = vadd.f32 0.0, %v952
      %v954 = vpop.f32.mrb[0].mxu0
      %955 = vmatprep.mubr.f32.mxu0 0.0
      %956 = vmatmul.mubr.f32.gmra.mrb[0].mxu0 %v806
      %v957 = vpop.f32.mrb[0].mxu0
      %v958 = vadd.f32 0.0, %v957
      %v959 = vpop.f32.mrb[0].mxu0
      %960 = vmatprep.mubr.f32.mxu0 0.0
      %961 = vmatmul.mubr.f32.gmra.mrb[0].mxu0 %v807
      %v962 = vpop.f32.mrb[0].mxu0
      %v963 = vadd.f32 0.0, %v962
      %v964 = vpop.f32.mrb[0].mxu0
      %965 = vmatprep.mubr.f32.mxu0 0.0
      %966 = vmatmul.mubr.f32.gmra.mrb[0].mxu0 %v808
      %v967 = vpop.f32.mrb[0].mxu0
      %v968 = vadd.f32 0.0, %v967
      %v969 = vpop.f32.mrb[0].mxu0
      %970 = vmatprep.mubr.f32.mxu0 0.0
      %971 = vmatmul.mubr.f32.gmra.mrb[0].mxu0 %v809
      %v972 = vpop.f32.mrb[0].mxu0
      %v973 = vadd.f32 0.0, %v972
      %v974 = vpop.f32.mrb[0].mxu0
      %975 = vmatprep.mubr.f32.mxu0 0.0
      %976 = vmatmul.mubr.f32.gmra.mrb[0].mxu0 %v810
      %v977 = vpop.f32.mrb[0].mxu0
      %v978 = vadd.f32 0.0, %v977
      %v979 = vpop.f32.mrb[0].mxu0
      %980 = vmatprep.mubr.f32.mxu0 0.0
      %981 = vmatmul.mubr.f32.gmra.mrb[0].mxu0 %v811
      %v982 = vpop.f32.mrb[0].mxu0
      %v983 = vadd.f32 0.0, %v982
      %v984 = vpop.f32.mrb[0].mxu0
      %985 = vmatprep.mubr.f32.mxu0 0.0
      %986 = vmatmul.mubr.f32.gmra.mrb[0].mxu0 %v812
      %v987 = vpop.f32.mrb[0].mxu0
      %v988 = vadd.f32 0.0, %v987
      %v989 = vpop.f32.mrb[0].mxu0
      %990 = vmatprep.mubr.f32.mxu0 0.0
      %991 = vmatmul.mubr.f32.gmra.mrb[0].mxu0 %v813
      %v992 = vpop.f32.mrb[0].mxu0
      %v993 = vadd.f32 0.0, %v992
      %v994 = vpop.f32.mrb[0].mxu0
      %995 = vmatprep.mubr.f32.mxu0 0.0
      %996 = vmatmul.mubr.f32.gmra.mrb[0].mxu0 %v814
      %v997 = vpop.f32.mrb[0].mxu0
      %v998 = vadd.f32 0.0, %v997
      %v999 = vpop.f32.mrb[0].mxu0
      %1000 = vmatprep.mubr.f32.mxu0 0.0
      %1001 = vmatmul.mubr.f32.gmra.mrb[0].mxu0 %v815
      %v1002 = vpop.f32.mrb[0].mxu0
      %v1003 = vadd.f32 0.0, %v1002
      %v1004 = vpop.f32.mrb[0].mxu0
      %1005 = vmatprep.mubr.f32.mxu0 0.0
      %1006 = vmatmul.mubr.f32.gmra.mrb[0].mxu0 %v816
      %v1007 = vpop.f32.mrb[0].mxu0
      %v1008 = vadd.f32 0.0, %v1007
      %v1009 = vpop.f32.mrb[0].mxu0
      %1010 = vmatprep.mubr.f32.mxu0 0.0
      %1011 = vmatmul.mubr.f32.gmra.mrb[0].mxu0 %v817
      %v1012 = vpop.f32.mrb[0].mxu0
      %v1013 = vadd.f32 0.0, %v1012
      %v1014 = vpop.f32.mrb[0].mxu0
      %1015 = vmatprep.mubr.f32.mxu0 0.0
      %1016 = vmatmul.mubr.f32.gmra.mrb[0].mxu0 %v818
      %v1017 = vpop.f32.mrb[0].mxu0
      %v1018 = vadd.f32 0.0, %v1017
      %v1019 = vpop.f32.mrb[0].mxu0
      %1020 = vmatprep.mubr.f32.mxu0 0.0
      %1021 = vmatmul.mubr.f32.gmra.mrb[0].mxu0 %v819
      %v1022 = vpop.f32.mrb[0].mxu0
      %v1023 = vadd.f32 0.0, %v1022
      %v1024 = vpop.f32.mrb[0].mxu0
      %1025 = vmatprep.mubr.f32.mxu0 0.0
      %1026 = vmatmul.mubr.f32.gmra.mrb[0].mxu0 %v820
      %v1027 = vpop.f32.mrb[0].mxu0
      %v1028 = vadd.f32 0.0, %v1027
      %v1029 = vpop.f32.mrb[0].mxu0
      %1030 = vmatprep.mubr.f32.mxu0 0.0
      %1031 = vmatmul.mubr.f32.gmra.mrb[0].mxu0 %v821
      %v1032 = vpop.f32.mrb[0].mxu0
      %v1033 = vadd.f32 0.0, %v1032
      %v1034 = vpop.f32.mrb[0].mxu0
      %1035 = vmatprep.mubr.f32.mxu0 0.0
      %1036 = vmatmul.mubr.f32.gmra.mrb[0].mxu0 %v822
      %v1037 = vpop.f32.mrb[0].mxu0
      %v1038 = vadd.f32 0.0, %v1037
      %v1039 = vpop.f32.mrb[0].mxu0
      %1040 = vmatprep.mubr.f32.mxu0 0.0
      %1041 = vmatmul.mubr.f32.gmra.mrb[0].mxu0 %v823
      %v1042 = vpop.f32.mrb[0].mxu0
      %v1043 = vadd.f32 0.0, %v1042
      %v1044 = vpop.f32.mrb[0].mxu0
      %1045 = vmatprep.mubr.f32.mxu0 0.0
      %1046 = vmatmul.mubr.f32.gmra.mrb[0].mxu0 %v824
      %v1047 = vpop.f32.mrb[0].mxu0
      %v1048 = vadd.f32 0.0, %v1047
      %v1049 = vpop.f32.mrb[0].mxu0
      %1050 = vmatprep.mubr.f32.mxu0 0.0
      %1051 = vmatmul.mubr.f32.gmra.mrb[0].mxu0 %v825
      %v1052 = vpop.f32.mrb[0].mxu0
      %v1053 = vadd.f32 0.0, %v1052
      %v1054 = vpop.f32.mrb[0].mxu0
      %1055 = vmatprep.mubr.f32.mxu0 0.0
      %1056 = vmatmul.mubr.f32.gmra.mrb[0].mxu0 %v826
      %v1057 = vpop.f32.mrb[0].mxu0
      %v1058 = vadd.f32 0.0, %v1057
      %v1059 = vpop.f32.mrb[0].mxu0
      %1060 = vmatprep.mubr.f32.mxu0 0.0
      %1061 = vmatmul.mubr.f32.gmra.mrb[0].mxu0 %v827
      %v1062 = vpop.f32.mrb[0].mxu0
      %v1063 = vadd.f32 0.0, %v1062
      %v1064 = vpop.f32.mrb[0].mxu0
      %1065 = vmatprep.mubr.f32.mxu0 0.0
      %1066 = vmatmul.mubr.f32.gmra.mrb[0].mxu0 %v828
      %v1067 = vpop.f32.mrb[0].mxu0
      %v1068 = vadd.f32 0.0, %v1067
      %v1069 = vpop.f32.mrb[0].mxu0
      %1070 = vdwg.mxu0
      %v1071 = vadd.f32 %v639, %v913
      %v1072 = vadd.f32 %v644, %v918
      %v1073 = vadd.f32 %v649, %v923
      %v1074 = vadd.f32 %v654, %v928
      %v1075 = vadd.f32 %v659, %v933
      %v1076 = vadd.f32 %v664, %v938
      %v1077 = vadd.f32 %v669, %v943
      %v1078 = vadd.f32 %v674, %v948
      %v1079 = vadd.f32 %v679, %v953
      %v1080 = vadd.f32 %v684, %v958
      %v1081 = vadd.f32 %v689, %v963
      %v1082 = vadd.f32 %v694, %v968
      %v1083 = vadd.f32 %v699, %v973
      %v1084 = vadd.f32 %v704, %v978
      %v1085 = vadd.f32 %v709, %v983
      %v1086 = vadd.f32 %v714, %v988
      %v1087 = vadd.f32 %v719, %v993
      %v1088 = vadd.f32 %v724, %v998
      %v1089 = vadd.f32 %v729, %v1003
      %v1090 = vadd.f32 %v734, %v1008
      %v1091 = vadd.f32 %v739, %v1013
      %v1092 = vadd.f32 %v744, %v1018
      %v1093 = vadd.f32 %v749, %v1023
      %v1094 = vadd.f32 %v754, %v1028
      %v1095 = vadd.f32 %v759, %v1033
      %v1096 = vadd.f32 %v764, %v1038
      %v1097 = vadd.f32 %v769, %v1043
      %v1098 = vadd.f32 %v774, %v1048
      %v1099 = vadd.f32 %v779, %v1053
      %v1100 = vadd.f32 %v784, %v1058
      %v1101 = vadd.f32 %v789, %v1063
      %v1102 = vadd.f32 %v794, %v1068
      %s1103 = scalar_lea.vmem %s180, 24
      %v1104 = vld [vmem:[%s1103] sm:$0xff]
      %v1105 = vld [vmem:[%s1103 + $0x8] sm:$0xff]
      %v1106 = vld [vmem:[%s1103 + $0x18] sm:$0xff]
      %v1107 = vld [vmem:[%s1103 + $0x20] sm:$0xff]
      %v1108 = vld [vmem:[%s1103 + $0x30] sm:$0xff]
      %v1109 = vld [vmem:[%s1103 + $0x38] sm:$0xff]
      %v1110 = vld [vmem:[%s1103 + $0x48] sm:$0xff]
      %v1111 = vld [vmem:[%s1103 + $0x50] sm:$0xff]
      %v1112 = vld [vmem:[%s1103 + $0x60] sm:$0xff]
      %v1113 = vld [vmem:[%s1103 + $0x68] sm:$0xff]
      %v1114 = vld [vmem:[%s1103 + $0x78] sm:$0xff]
      %v1115 = vld [vmem:[%s1103 + $0x80] sm:$0xff]
      %v1116 = vld [vmem:[%s1103 + $0x90] sm:$0xff]
      %v1117 = vld [vmem:[%s1103 + $0x98] sm:$0xff]
      %v1118 = vld [vmem:[%s1103 + $0xa8] sm:$0xff]
      %v1119 = vld [vmem:[%s1103 + $0xb0] sm:$0xff]
      %v1120 = vld [vmem:[%s1103 + $0xc0] sm:$0xff]
      %v1121 = vld [vmem:[%s1103 + $0xc8] sm:$0xff]
      %v1122 = vld [vmem:[%s1103 + $0xd8] sm:$0xff]
      %v1123 = vld [vmem:[%s1103 + $0xe0] sm:$0xff]
      %v1124 = vld [vmem:[%s1103 + $0xf0] sm:$0xff]
      %v1125 = vld [vmem:[%s1103 + $0xf8] sm:$0xff]
      %v1126 = vld [vmem:[%s1103 + $0x108] sm:$0xff]
      %v1127 = vld [vmem:[%s1103 + $0x110] sm:$0xff]
      %v1128 = vld [vmem:[%s1103 + $0x120] sm:$0xff]
      %v1129 = vld [vmem:[%s1103 + $0x128] sm:$0xff]
      %v1130 = vld [vmem:[%s1103 + $0x138] sm:$0xff]
      %v1131 = vld [vmem:[%s1103 + $0x140] sm:$0xff]
      %v1132 = vld [vmem:[%s1103 + $0x150] sm:$0xff]
      %v1133 = vld [vmem:[%s1103 + $0x158] sm:$0xff]
      %v1134 = vld [vmem:[%s1103 + $0x168] sm:$0xff]
      %v1135 = vld [vmem:[%s1103 + $0x170] sm:$0xff]
      %s1136 = scalar_lea.vmem %s1, 384
      %v1137 = vld [vmem:[%s1136] sm:$0xff]
      %v1138 = vld [vmem:[%s1136 + $0x8] sm:$0xff]
      %v1139 = vld [vmem:[%s1136 + $0x10] sm:$0xff]
      %v1140 = vld [vmem:[%s1136 + $0x18] sm:$0xff]
      %v1141 = vld [vmem:[%s1136 + $0x20] sm:$0xff]
      %v1142 = vld [vmem:[%s1136 + $0x28] sm:$0xff]
      %v1143 = vld [vmem:[%s1136 + $0x30] sm:$0xff]
      %v1144 = vld [vmem:[%s1136 + $0x38] sm:$0xff]
      %v1145 = vld [vmem:[%s1136 + $0x40] sm:$0xff]
      %v1146 = vld [vmem:[%s1136 + $0x48] sm:$0xff]
      %v1147 = vld [vmem:[%s1136 + $0x50] sm:$0xff]
      %v1148 = vld [vmem:[%s1136 + $0x58] sm:$0xff]
      %v1149 = vld [vmem:[%s1136 + $0x60] sm:$0xff]
      %v1150 = vld [vmem:[%s1136 + $0x68] sm:$0xff]
      %v1151 = vld [vmem:[%s1136 + $0x70] sm:$0xff]
      %v1152 = vld [vmem:[%s1136 + $0x78] sm:$0xff]
      %1153 = vmatprep.subr.mxu0 0.0
      %1154 = vmatpush1.msra.mxu0 %v1137
      %1155 = vmatprep.subr.mxu0 0.0
      %1156 = vmatpush1.msra.mxu0 %v1138
      %1157 = vmatprep.subr.mxu0 0.0
      %1158 = vmatpush1.msra.mxu0 %v1139
      %1159 = vmatprep.subr.mxu0 0.0
      %1160 = vmatpush1.msra.mxu0 %v1140
      %1161 = vmatprep.subr.mxu0 0.0
      %1162 = vmatpush1.msra.mxu0 %v1141
      %1163 = vmatprep.subr.mxu0 0.0
      %1164 = vmatpush1.msra.mxu0 %v1142
      %1165 = vmatprep.subr.mxu0 0.0
      %1166 = vmatpush1.msra.mxu0 %v1143
      %1167 = vmatprep.subr.mxu0 0.0
      %1168 = vmatpush1.msra.mxu0 %v1144
      %1169 = vmatprep.subr.mxu0 0.0
      %1170 = vmatpush1.msra.mxu0 %v1145
      %1171 = vmatprep.subr.mxu0 0.0
      %1172 = vmatpush1.msra.mxu0 %v1146
      %1173 = vmatprep.subr.mxu0 0.0
      %1174 = vmatpush1.msra.mxu0 %v1147
      %1175 = vmatprep.subr.mxu0 0.0
      %1176 = vmatpush1.msra.mxu0 %v1148
      %1177 = vmatprep.subr.mxu0 0.0
      %1178 = vmatpush1.msra.mxu0 %v1149
      %1179 = vmatprep.subr.mxu0 0.0
      %1180 = vmatpush1.msra.mxu0 %v1150
      %1181 = vmatprep.subr.mxu0 0.0
      %1182 = vmatpush1.msra.mxu0 %v1151
      %1183 = vmatprep.subr.mxu0 0.0
      %1184 = vmatpush1.msra.mxu0 %v1152
      %1185 = vmatprep.subr.mxu0 0.0
      %1186 = vmatpush1.msra.mxu0 0.0
      %1187 = vmatprep.subr.mxu0 0.0
      %1188 = vmatpush1.msra.mxu0 0.0
      %1189 = vmatprep.subr.mxu0 0.0
      %1190 = vmatpush1.msra.mxu0 0.0
      %1191 = vmatprep.subr.mxu0 0.0
      %1192 = vmatpush1.msra.mxu0 0.0
      %1193 = vmatprep.subr.mxu0 0.0
      %1194 = vmatpush1.msra.mxu0 0.0
      %1195 = vmatprep.subr.mxu0 0.0
      %1196 = vmatpush1.msra.mxu0 0.0
      %1197 = vmatprep.subr.mxu0 0.0
      %1198 = vmatpush1.msra.mxu0 0.0
      %1199 = vmatprep.subr.mxu0 0.0
      %1200 = vmatpush1.msra.mxu0 0.0
      %1201 = vmatprep.subr.mxu0 0.0
      %1202 = vmatpush1.msra.mxu0 0.0
      %1203 = vmatprep.subr.mxu0 0.0
      %1204 = vmatpush1.msra.mxu0 0.0
      %1205 = vmatprep.subr.mxu0 0.0
      %1206 = vmatpush1.msra.mxu0 0.0
      %1207 = vmatprep.subr.mxu0 0.0
      %1208 = vmatpush1.msra.mxu0 0.0
      %1209 = vmatprep.subr.mxu0 0.0
      %1210 = vmatpush1.msra.mxu0 0.0
      %1211 = vmatprep.subr.mxu0 0.0
      %1212 = vmatpush1.msra.mxu0 0.0
      %1213 = vmatprep.subr.mxu0 0.0
      %1214 = vmatpush1.msra.mxu0 0.0
      %1215 = vmatprep.subr.mxu0 0.0
      %1216 = vmatpush1.msra.mxu0 0.0
      %1217 = vmatprep.mubr.f32.mxu0 0.0
      %1218 = vmatmul.mubr.f32.gmra.mrb[0].mxu0 %v1104
      %v1219 = vpop.f32.mrb[0].mxu0
      %v1220 = vadd.f32 0.0, %v1219
      %v1221 = vpop.f32.mrb[0].mxu0
      %1222 = vmatprep.mubr.f32.mxu0 0.0
      %1223 = vmatmul.mubr.f32.gmra.mrb[0].mxu0 %v1105
      %v1224 = vpop.f32.mrb[0].mxu0
      %v1225 = vadd.f32 0.0, %v1224
      %v1226 = vpop.f32.mrb[0].mxu0
      %1227 = vmatprep.mubr.f32.mxu0 0.0
      %1228 = vmatmul.mubr.f32.gmra.mrb[0].mxu0 %v1106
      %v1229 = vpop.f32.mrb[0].mxu0
      %v1230 = vadd.f32 0.0, %v1229
      %v1231 = vpop.f32.mrb[0].mxu0
      %1232 = vmatprep.mubr.f32.mxu0 0.0
      %1233 = vmatmul.mubr.f32.gmra.mrb[0].mxu0 %v1107
      %v1234 = vpop.f32.mrb[0].mxu0
      %v1235 = vadd.f32 0.0, %v1234
      %v1236 = vpop.f32.mrb[0].mxu0
      %1237 = vmatprep.mubr.f32.mxu0 0.0
      %1238 = vmatmul.mubr.f32.gmra.mrb[0].mxu0 %v1108
      %v1239 = vpop.f32.mrb[0].mxu0
      %v1240 = vadd.f32 0.0, %v1239
      %v1241 = vpop.f32.mrb[0].mxu0
      %1242 = vmatprep.mubr.f32.mxu0 0.0
      %1243 = vmatmul.mubr.f32.gmra.mrb[0].mxu0 %v1109
      %v1244 = vpop.f32.mrb[0].mxu0
      %v1245 = vadd.f32 0.0, %v1244
      %v1246 = vpop.f32.mrb[0].mxu0
      %1247 = vmatprep.mubr.f32.mxu0 0.0
      %1248 = vmatmul.mubr.f32.gmra.mrb[0].mxu0 %v1110
      %v1249 = vpop.f32.mrb[0].mxu0
      %v1250 = vadd.f32 0.0, %v1249
      %v1251 = vpop.f32.mrb[0].mxu0
      %1252 = vmatprep.mubr.f32.mxu0 0.0
      %1253 = vmatmul.mubr.f32.gmra.mrb[0].mxu0 %v1111
      %v1254 = vpop.f32.mrb[0].mxu0
      %v1255 = vadd.f32 0.0, %v1254
      %v1256 = vpop.f32.mrb[0].mxu0
      %1257 = vmatprep.mubr.f32.mxu0 0.0
      %1258 = vmatmul.mubr.f32.gmra.mrb[0].mxu0 %v1112
      %v1259 = vpop.f32.mrb[0].mxu0
      %v1260 = vadd.f32 0.0, %v1259
      %v1261 = vpop.f32.mrb[0].mxu0
      %1262 = vmatprep.mubr.f32.mxu0 0.0
      %1263 = vmatmul.mubr.f32.gmra.mrb[0].mxu0 %v1113
      %v1264 = vpop.f32.mrb[0].mxu0
      %v1265 = vadd.f32 0.0, %v1264
      %v1266 = vpop.f32.mrb[0].mxu0
      %1267 = vmatprep.mubr.f32.mxu0 0.0
      %1268 = vmatmul.mubr.f32.gmra.mrb[0].mxu0 %v1114
      %v1269 = vpop.f32.mrb[0].mxu0
      %v1270 = vadd.f32 0.0, %v1269
      %v1271 = vpop.f32.mrb[0].mxu0
      %1272 = vmatprep.mubr.f32.mxu0 0.0
      %1273 = vmatmul.mubr.f32.gmra.mrb[0].mxu0 %v1115
      %v1274 = vpop.f32.mrb[0].mxu0
      %v1275 = vadd.f32 0.0, %v1274
      %v1276 = vpop.f32.mrb[0].mxu0
      %1277 = vmatprep.mubr.f32.mxu0 0.0
      %1278 = vmatmul.mubr.f32.gmra.mrb[0].mxu0 %v1116
      %v1279 = vpop.f32.mrb[0].mxu0
      %v1280 = vadd.f32 0.0, %v1279
      %v1281 = vpop.f32.mrb[0].mxu0
      %1282 = vmatprep.mubr.f32.mxu0 0.0
      %1283 = vmatmul.mubr.f32.gmra.mrb[0].mxu0 %v1117
      %v1284 = vpop.f32.mrb[0].mxu0
      %v1285 = vadd.f32 0.0, %v1284
      %v1286 = vpop.f32.mrb[0].mxu0
      %1287 = vmatprep.mubr.f32.mxu0 0.0
      %1288 = vmatmul.mubr.f32.gmra.mrb[0].mxu0 %v1118
      %v1289 = vpop.f32.mrb[0].mxu0
      %v1290 = vadd.f32 0.0, %v1289
      %v1291 = vpop.f32.mrb[0].mxu0
      %1292 = vmatprep.mubr.f32.mxu0 0.0
      %1293 = vmatmul.mubr.f32.gmra.mrb[0].mxu0 %v1119
      %v1294 = vpop.f32.mrb[0].mxu0
      %v1295 = vadd.f32 0.0, %v1294
      %v1296 = vpop.f32.mrb[0].mxu0
      %1297 = vmatprep.mubr.f32.mxu0 0.0
      %1298 = vmatmul.mubr.f32.gmra.mrb[0].mxu0 %v1120
      %v1299 = vpop.f32.mrb[0].mxu0
      %v1300 = vadd.f32 0.0, %v1299
      %v1301 = vpop.f32.mrb[0].mxu0
      %1302 = vmatprep.mubr.f32.mxu0 0.0
      %1303 = vmatmul.mubr.f32.gmra.mrb[0].mxu0 %v1121
      %v1304 = vpop.f32.mrb[0].mxu0
      %v1305 = vadd.f32 0.0, %v1304
      %v1306 = vpop.f32.mrb[0].mxu0
      %1307 = vmatprep.mubr.f32.mxu0 0.0
      %1308 = vmatmul.mubr.f32.gmra.mrb[0].mxu0 %v1122
      %v1309 = vpop.f32.mrb[0].mxu0
      %v1310 = vadd.f32 0.0, %v1309
      %v1311 = vpop.f32.mrb[0].mxu0
      %1312 = vmatprep.mubr.f32.mxu0 0.0
      %1313 = vmatmul.mubr.f32.gmra.mrb[0].mxu0 %v1123
      %v1314 = vpop.f32.mrb[0].mxu0
      %v1315 = vadd.f32 0.0, %v1314
      %v1316 = vpop.f32.mrb[0].mxu0
      %1317 = vmatprep.mubr.f32.mxu0 0.0
      %1318 = vmatmul.mubr.f32.gmra.mrb[0].mxu0 %v1124
      %v1319 = vpop.f32.mrb[0].mxu0
      %v1320 = vadd.f32 0.0, %v1319
      %v1321 = vpop.f32.mrb[0].mxu0
      %1322 = vmatprep.mubr.f32.mxu0 0.0
      %1323 = vmatmul.mubr.f32.gmra.mrb[0].mxu0 %v1125
      %v1324 = vpop.f32.mrb[0].mxu0
      %v1325 = vadd.f32 0.0, %v1324
      %v1326 = vpop.f32.mrb[0].mxu0
      %1327 = vmatprep.mubr.f32.mxu0 0.0
      %1328 = vmatmul.mubr.f32.gmra.mrb[0].mxu0 %v1126
      %v1329 = vpop.f32.mrb[0].mxu0
      %v1330 = vadd.f32 0.0, %v1329
      %v1331 = vpop.f32.mrb[0].mxu0
      %1332 = vmatprep.mubr.f32.mxu0 0.0
      %1333 = vmatmul.mubr.f32.gmra.mrb[0].mxu0 %v1127
      %v1334 = vpop.f32.mrb[0].mxu0
      %v1335 = vadd.f32 0.0, %v1334
      %v1336 = vpop.f32.mrb[0].mxu0
      %1337 = vmatprep.mubr.f32.mxu0 0.0
      %1338 = vmatmul.mubr.f32.gmra.mrb[0].mxu0 %v1128
      %v1339 = vpop.f32.mrb[0].mxu0
      %v1340 = vadd.f32 0.0, %v1339
      %v1341 = vpop.f32.mrb[0].mxu0
      %1342 = vmatprep.mubr.f32.mxu0 0.0
      %1343 = vmatmul.mubr.f32.gmra.mrb[0].mxu0 %v1129
      %v1344 = vpop.f32.mrb[0].mxu0
      %v1345 = vadd.f32 0.0, %v1344
      %v1346 = vpop.f32.mrb[0].mxu0
      %1347 = vmatprep.mubr.f32.mxu0 0.0
      %1348 = vmatmul.mubr.f32.gmra.mrb[0].mxu0 %v1130
      %v1349 = vpop.f32.mrb[0].mxu0
      %v1350 = vadd.f32 0.0, %v1349
      %v1351 = vpop.f32.mrb[0].mxu0
      %1352 = vmatprep.mubr.f32.mxu0 0.0
      %1353 = vmatmul.mubr.f32.gmra.mrb[0].mxu0 %v1131
      %v1354 = vpop.f32.mrb[0].mxu0
      %v1355 = vadd.f32 0.0, %v1354
      %v1356 = vpop.f32.mrb[0].mxu0
      %1357 = vmatprep.mubr.f32.mxu0 0.0
      %1358 = vmatmul.mubr.f32.gmra.mrb[0].mxu0 %v1132
      %v1359 = vpop.f32.mrb[0].mxu0
      %v1360 = vadd.f32 0.0, %v1359
      %v1361 = vpop.f32.mrb[0].mxu0
      %1362 = vmatprep.mubr.f32.mxu0 0.0
      %1363 = vmatmul.mubr.f32.gmra.mrb[0].mxu0 %v1133
      %v1364 = vpop.f32.mrb[0].mxu0
      %v1365 = vadd.f32 0.0, %v1364
      %v1366 = vpop.f32.mrb[0].mxu0
      %1367 = vmatprep.mubr.f32.mxu0 0.0
      %1368 = vmatmul.mubr.f32.gmra.mrb[0].mxu0 %v1134
      %v1369 = vpop.f32.mrb[0].mxu0
      %v1370 = vadd.f32 0.0, %v1369
      %v1371 = vpop.f32.mrb[0].mxu0
      %1372 = vmatprep.mubr.f32.mxu0 0.0
      %1373 = vmatmul.mubr.f32.gmra.mrb[0].mxu0 %v1135
      %v1374 = vpop.f32.mrb[0].mxu0
      %v1375 = vadd.f32 0.0, %v1374
      %v1376 = vpop.f32.mrb[0].mxu0
      %1377 = vdwg.mxu0
      %v1378 = vadd.f32 %v1071, %v1220
      %v1379 = vadd.f32 %v1072, %v1225
      %v1380 = vadd.f32 %v1073, %v1230
      %v1381 = vadd.f32 %v1074, %v1235
      %v1382 = vadd.f32 %v1075, %v1240
      %v1383 = vadd.f32 %v1076, %v1245
      %v1384 = vadd.f32 %v1077, %v1250
      %v1385 = vadd.f32 %v1078, %v1255
      %v1386 = vadd.f32 %v1079, %v1260
      %v1387 = vadd.f32 %v1080, %v1265
      %v1388 = vadd.f32 %v1081, %v1270
      %v1389 = vadd.f32 %v1082, %v1275
      %v1390 = vadd.f32 %v1083, %v1280
      %v1391 = vadd.f32 %v1084, %v1285
      %v1392 = vadd.f32 %v1085, %v1290
      %v1393 = vadd.f32 %v1086, %v1295
      %v1394 = vadd.f32 %v1087, %v1300
      %v1395 = vadd.f32 %v1088, %v1305
      %v1396 = vadd.f32 %v1089, %v1310
      %v1397 = vadd.f32 %v1090, %v1315
      %v1398 = vadd.f32 %v1091, %v1320
      %v1399 = vadd.f32 %v1092, %v1325
      %v1400 = vadd.f32 %v1093, %v1330
      %v1401 = vadd.f32 %v1094, %v1335
      %v1402 = vadd.f32 %v1095, %v1340
      %v1403 = vadd.f32 %v1096, %v1345
      %v1404 = vadd.f32 %v1097, %v1350
      %v1405 = vadd.f32 %v1098, %v1355
      %v1406 = vadd.f32 %v1099, %v1360
      %v1407 = vadd.f32 %v1100, %v1365
      %v1408 = vadd.f32 %v1101, %v1370
      %v1409 = vadd.f32 %v1102, %v1375
      %v1410 = vld [vmem:[%s1103 + $0x1] sm:$0xff]
      %v1411 = vld [vmem:[%s1103 + $0x9] sm:$0xff]
      %v1412 = vld [vmem:[%s1103 + $0x19] sm:$0xff]
      %v1413 = vld [vmem:[%s1103 + $0x21] sm:$0xff]
      %v1414 = vld [vmem:[%s1103 + $0x31] sm:$0xff]
      %v1415 = vld [vmem:[%s1103 + $0x39] sm:$0xff]
      %v1416 = vld [vmem:[%s1103 + $0x49] sm:$0xff]
      %v1417 = vld [vmem:[%s1103 + $0x51] sm:$0xff]
      %v1418 = vld [vmem:[%s1103 + $0x61] sm:$0xff]
      %v1419 = vld [vmem:[%s1103 + $0x69] sm:$0xff]
      %v1420 = vld [vmem:[%s1103 + $0x79] sm:$0xff]
      %v1421 = vld [vmem:[%s1103 + $0x81] sm:$0xff]
      %v1422 = vld [vmem:[%s1103 + $0x91] sm:$0xff]
      %v1423 = vld [vmem:[%s1103 + $0x99] sm:$0xff]
      %v1424 = vld [vmem:[%s1103 + $0xa9] sm:$0xff]
      %v1425 = vld [vmem:[%s1103 + $0xb1] sm:$0xff]
      %v1426 = vld [vmem:[%s1103 + $0xc1] sm:$0xff]
      %v1427 = vld [vmem:[%s1103 + $0xc9] sm:$0xff]
      %v1428 = vld [vmem:[%s1103 + $0xd9] sm:$0xff]
      %v1429 = vld [vmem:[%s1103 + $0xe1] sm:$0xff]
      %v1430 = vld [vmem:[%s1103 + $0xf1] sm:$0xff]
      %v1431 = vld [vmem:[%s1103 + $0xf9] sm:$0xff]
      %v1432 = vld [vmem:[%s1103 + $0x109] sm:$0xff]
      %v1433 = vld [vmem:[%s1103 + $0x111] sm:$0xff]
      %v1434 = vld [vmem:[%s1103 + $0x121] sm:$0xff]
      %v1435 = vld [vmem:[%s1103 + $0x129] sm:$0xff]
      %v1436 = vld [vmem:[%s1103 + $0x139] sm:$0xff]
      %v1437 = vld [vmem:[%s1103 + $0x141] sm:$0xff]
      %v1438 = vld [vmem:[%s1103 + $0x151] sm:$0xff]
      %v1439 = vld [vmem:[%s1103 + $0x159] sm:$0xff]
      %v1440 = vld [vmem:[%s1103 + $0x169] sm:$0xff]
      %v1441 = vld [vmem:[%s1103 + $0x171] sm:$0xff]
      %s1442 = scalar_lea.vmem %s1, 512
      %v1443 = vld [vmem:[%s1442] sm:$0xff]
      %v1444 = vld [vmem:[%s1442 + $0x8] sm:$0xff]
      %v1445 = vld [vmem:[%s1442 + $0x10] sm:$0xff]
      %v1446 = vld [vmem:[%s1442 + $0x18] sm:$0xff]
      %v1447 = vld [vmem:[%s1442 + $0x20] sm:$0xff]
      %v1448 = vld [vmem:[%s1442 + $0x28] sm:$0xff]
      %v1449 = vld [vmem:[%s1442 + $0x30] sm:$0xff]
      %v1450 = vld [vmem:[%s1442 + $0x38] sm:$0xff]
      %v1451 = vld [vmem:[%s1442 + $0x40] sm:$0xff]
      %v1452 = vld [vmem:[%s1442 + $0x48] sm:$0xff]
      %v1453 = vld [vmem:[%s1442 + $0x50] sm:$0xff]
      %v1454 = vld [vmem:[%s1442 + $0x58] sm:$0xff]
      %v1455 = vld [vmem:[%s1442 + $0x60] sm:$0xff]
      %v1456 = vld [vmem:[%s1442 + $0x68] sm:$0xff]
      %v1457 = vld [vmem:[%s1442 + $0x70] sm:$0xff]
      %v1458 = vld [vmem:[%s1442 + $0x78] sm:$0xff]
      %1459 = vmatprep.subr.mxu0 0.0
      %1460 = vmatpush1.msra.mxu0 %v1443
      %1461 = vmatprep.subr.mxu0 0.0
      %1462 = vmatpush1.msra.mxu0 %v1444
      %1463 = vmatprep.subr.mxu0 0.0
      %1464 = vmatpush1.msra.mxu0 %v1445
      %1465 = vmatprep.subr.mxu0 0.0
      %1466 = vmatpush1.msra.mxu0 %v1446
      %1467 = vmatprep.subr.mxu0 0.0
      %1468 = vmatpush1.msra.mxu0 %v1447
      %1469 = vmatprep.subr.mxu0 0.0
      %1470 = vmatpush1.msra.mxu0 %v1448
      %1471 = vmatprep.subr.mxu0 0.0
      %1472 = vmatpush1.msra.mxu0 %v1449
      %1473 = vmatprep.subr.mxu0 0.0
      %1474 = vmatpush1.msra.mxu0 %v1450
      %1475 = vmatprep.subr.mxu0 0.0
      %1476 = vmatpush1.msra.mxu0 %v1451
      %1477 = vmatprep.subr.mxu0 0.0
      %1478 = vmatpush1.msra.mxu0 %v1452
      %1479 = vmatprep.subr.mxu0 0.0
      %1480 = vmatpush1.msra.mxu0 %v1453
      %1481 = vmatprep.subr.mxu0 0.0
      %1482 = vmatpush1.msra.mxu0 %v1454
      %1483 = vmatprep.subr.mxu0 0.0
      %1484 = vmatpush1.msra.mxu0 %v1455
      %1485 = vmatprep.subr.mxu0 0.0
      %1486 = vmatpush1.msra.mxu0 %v1456
      %1487 = vmatprep.subr.mxu0 0.0
      %1488 = vmatpush1.msra.mxu0 %v1457
      %1489 = vmatprep.subr.mxu0 0.0
      %1490 = vmatpush1.msra.mxu0 %v1458
      %1491 = vmatprep.subr.mxu0 0.0
      %1492 = vmatpush1.msra.mxu0 0.0
      %1493 = vmatprep.subr.mxu0 0.0
      %1494 = vmatpush1.msra.mxu0 0.0
      %1495 = vmatprep.subr.mxu0 0.0
      %1496 = vmatpush1.msra.mxu0 0.0
      %1497 = vmatprep.subr.mxu0 0.0
      %1498 = vmatpush1.msra.mxu0 0.0
      %1499 = vmatprep.subr.mxu0 0.0
      %1500 = vmatpush1.msra.mxu0 0.0
      %1501 = vmatprep.subr.mxu0 0.0
      %1502 = vmatpush1.msra.mxu0 0.0
      %1503 = vmatprep.subr.mxu0 0.0
      %1504 = vmatpush1.msra.mxu0 0.0
      %1505 = vmatprep.subr.mxu0 0.0
      %1506 = vmatpush1.msra.mxu0 0.0
      %1507 = vmatprep.subr.mxu0 0.0
      %1508 = vmatpush1.msra.mxu0 0.0
      %1509 = vmatprep.subr.mxu0 0.0
      %1510 = vmatpush1.msra.mxu0 0.0
      %1511 = vmatprep.subr.mxu0 0.0
      %1512 = vmatpush1.msra.mxu0 0.0
      %1513 = vmatprep.subr.mxu0 0.0
      %1514 = vmatpush1.msra.mxu0 0.0
      %1515 = vmatprep.subr.mxu0 0.0
      %1516 = vmatpush1.msra.mxu0 0.0
      %1517 = vmatprep.subr.mxu0 0.0
      %1518 = vmatpush1.msra.mxu0 0.0
      %1519 = vmatprep.subr.mxu0 0.0
      %1520 = vmatpush1.msra.mxu0 0.0
      %1521 = vmatprep.subr.mxu0 0.0
      %1522 = vmatpush1.msra.mxu0 0.0
      %1523 = vmatprep.mubr.f32.mxu0 0.0
      %1524 = vmatmul.mubr.f32.gmra.mrb[0].mxu0 %v1410
      %v1525 = vpop.f32.mrb[0].mxu0
      %v1526 = vadd.f32 0.0, %v1525
      %v1527 = vpop.f32.mrb[0].mxu0
      %1528 = vmatprep.mubr.f32.mxu0 0.0
      %1529 = vmatmul.mubr.f32.gmra.mrb[0].mxu0 %v1411
      %v1530 = vpop.f32.mrb[0].mxu0
      %v1531 = vadd.f32 0.0, %v1530
      %v1532 = vpop.f32.mrb[0].mxu0
      %1533 = vmatprep.mubr.f32.mxu0 0.0
      %1534 = vmatmul.mubr.f32.gmra.mrb[0].mxu0 %v1412
      %v1535 = vpop.f32.mrb[0].mxu0
      %v1536 = vadd.f32 0.0, %v1535
      %v1537 = vpop.f32.mrb[0].mxu0
      %1538 = vmatprep.mubr.f32.mxu0 0.0
      %1539 = vmatmul.mubr.f32.gmra.mrb[0].mxu0 %v1413
      %v1540 = vpop.f32.mrb[0].mxu0
      %v1541 = vadd.f32 0.0, %v1540
      %v1542 = vpop.f32.mrb[0].mxu0
      %1543 = vmatprep.mubr.f32.mxu0 0.0
      %1544 = vmatmul.mubr.f32.gmra.mrb[0].mxu0 %v1414
      %v1545 = vpop.f32.mrb[0].mxu0
      %v1546 = vadd.f32 0.0, %v1545
      %v1547 = vpop.f32.mrb[0].mxu0
      %1548 = vmatprep.mubr.f32.mxu0 0.0
      %1549 = vmatmul.mubr.f32.gmra.mrb[0].mxu0 %v1415
      %v1550 = vpop.f32.mrb[0].mxu0
      %v1551 = vadd.f32 0.0, %v1550
      %v1552 = vpop.f32.mrb[0].mxu0
      %1553 = vmatprep.mubr.f32.mxu0 0.0
      %1554 = vmatmul.mubr.f32.gmra.mrb[0].mxu0 %v1416
      %v1555 = vpop.f32.mrb[0].mxu0
      %v1556 = vadd.f32 0.0, %v1555
      %v1557 = vpop.f32.mrb[0].mxu0
      %1558 = vmatprep.mubr.f32.mxu0 0.0
      %1559 = vmatmul.mubr.f32.gmra.mrb[0].mxu0 %v1417
      %v1560 = vpop.f32.mrb[0].mxu0
      %v1561 = vadd.f32 0.0, %v1560
      %v1562 = vpop.f32.mrb[0].mxu0
      %1563 = vmatprep.mubr.f32.mxu0 0.0
      %1564 = vmatmul.mubr.f32.gmra.mrb[0].mxu0 %v1418
      %v1565 = vpop.f32.mrb[0].mxu0
      %v1566 = vadd.f32 0.0, %v1565
      %v1567 = vpop.f32.mrb[0].mxu0
      %1568 = vmatprep.mubr.f32.mxu0 0.0
      %1569 = vmatmul.mubr.f32.gmra.mrb[0].mxu0 %v1419
      %v1570 = vpop.f32.mrb[0].mxu0
      %v1571 = vadd.f32 0.0, %v1570
      %v1572 = vpop.f32.mrb[0].mxu0
      %1573 = vmatprep.mubr.f32.mxu0 0.0
      %1574 = vmatmul.mubr.f32.gmra.mrb[0].mxu0 %v1420
      %v1575 = vpop.f32.mrb[0].mxu0
      %v1576 = vadd.f32 0.0, %v1575
      %v1577 = vpop.f32.mrb[0].mxu0
      %1578 = vmatprep.mubr.f32.mxu0 0.0
      %1579 = vmatmul.mubr.f32.gmra.mrb[0].mxu0 %v1421
      %v1580 = vpop.f32.mrb[0].mxu0
      %v1581 = vadd.f32 0.0, %v1580
      %v1582 = vpop.f32.mrb[0].mxu0
      %1583 = vmatprep.mubr.f32.mxu0 0.0
      %1584 = vmatmul.mubr.f32.gmra.mrb[0].mxu0 %v1422
      %v1585 = vpop.f32.mrb[0].mxu0
      %v1586 = vadd.f32 0.0, %v1585
      %v1587 = vpop.f32.mrb[0].mxu0
      %1588 = vmatprep.mubr.f32.mxu0 0.0
      %1589 = vmatmul.mubr.f32.gmra.mrb[0].mxu0 %v1423
      %v1590 = vpop.f32.mrb[0].mxu0
      %v1591 = vadd.f32 0.0, %v1590
      %v1592 = vpop.f32.mrb[0].mxu0
      %1593 = vmatprep.mubr.f32.mxu0 0.0
      %1594 = vmatmul.mubr.f32.gmra.mrb[0].mxu0 %v1424
      %v1595 = vpop.f32.mrb[0].mxu0
      %v1596 = vadd.f32 0.0, %v1595
      %v1597 = vpop.f32.mrb[0].mxu0
      %1598 = vmatprep.mubr.f32.mxu0 0.0
      %1599 = vmatmul.mubr.f32.gmra.mrb[0].mxu0 %v1425
      %v1600 = vpop.f32.mrb[0].mxu0
      %v1601 = vadd.f32 0.0, %v1600
      %v1602 = vpop.f32.mrb[0].mxu0
      %1603 = vmatprep.mubr.f32.mxu0 0.0
      %1604 = vmatmul.mubr.f32.gmra.mrb[0].mxu0 %v1426
      %v1605 = vpop.f32.mrb[0].mxu0
      %v1606 = vadd.f32 0.0, %v1605
      %v1607 = vpop.f32.mrb[0].mxu0
      %1608 = vmatprep.mubr.f32.mxu0 0.0
      %1609 = vmatmul.mubr.f32.gmra.mrb[0].mxu0 %v1427
      %v1610 = vpop.f32.mrb[0].mxu0
      %v1611 = vadd.f32 0.0, %v1610
      %v1612 = vpop.f32.mrb[0].mxu0
      %1613 = vmatprep.mubr.f32.mxu0 0.0
      %1614 = vmatmul.mubr.f32.gmra.mrb[0].mxu0 %v1428
      %v1615 = vpop.f32.mrb[0].mxu0
      %v1616 = vadd.f32 0.0, %v1615
      %v1617 = vpop.f32.mrb[0].mxu0
      %1618 = vmatprep.mubr.f32.mxu0 0.0
      %1619 = vmatmul.mubr.f32.gmra.mrb[0].mxu0 %v1429
      %v1620 = vpop.f32.mrb[0].mxu0
      %v1621 = vadd.f32 0.0, %v1620
      %v1622 = vpop.f32.mrb[0].mxu0
      %1623 = vmatprep.mubr.f32.mxu0 0.0
      %1624 = vmatmul.mubr.f32.gmra.mrb[0].mxu0 %v1430
      %v1625 = vpop.f32.mrb[0].mxu0
      %v1626 = vadd.f32 0.0, %v1625
      %v1627 = vpop.f32.mrb[0].mxu0
      %1628 = vmatprep.mubr.f32.mxu0 0.0
      %1629 = vmatmul.mubr.f32.gmra.mrb[0].mxu0 %v1431
      %v1630 = vpop.f32.mrb[0].mxu0
      %v1631 = vadd.f32 0.0, %v1630
      %v1632 = vpop.f32.mrb[0].mxu0
      %1633 = vmatprep.mubr.f32.mxu0 0.0
      %1634 = vmatmul.mubr.f32.gmra.mrb[0].mxu0 %v1432
      %v1635 = vpop.f32.mrb[0].mxu0
      %v1636 = vadd.f32 0.0, %v1635
      %v1637 = vpop.f32.mrb[0].mxu0
      %1638 = vmatprep.mubr.f32.mxu0 0.0
      %1639 = vmatmul.mubr.f32.gmra.mrb[0].mxu0 %v1433
      %v1640 = vpop.f32.mrb[0].mxu0
      %v1641 = vadd.f32 0.0, %v1640
      %v1642 = vpop.f32.mrb[0].mxu0
      %1643 = vmatprep.mubr.f32.mxu0 0.0
      %1644 = vmatmul.mubr.f32.gmra.mrb[0].mxu0 %v1434
      %v1645 = vpop.f32.mrb[0].mxu0
      %v1646 = vadd.f32 0.0, %v1645
      %v1647 = vpop.f32.mrb[0].mxu0
      %1648 = vmatprep.mubr.f32.mxu0 0.0
      %1649 = vmatmul.mubr.f32.gmra.mrb[0].mxu0 %v1435
      %v1650 = vpop.f32.mrb[0].mxu0
      %v1651 = vadd.f32 0.0, %v1650
      %v1652 = vpop.f32.mrb[0].mxu0
      %1653 = vmatprep.mubr.f32.mxu0 0.0
      %1654 = vmatmul.mubr.f32.gmra.mrb[0].mxu0 %v1436
      %v1655 = vpop.f32.mrb[0].mxu0
      %v1656 = vadd.f32 0.0, %v1655
      %v1657 = vpop.f32.mrb[0].mxu0
      %1658 = vmatprep.mubr.f32.mxu0 0.0
      %1659 = vmatmul.mubr.f32.gmra.mrb[0].mxu0 %v1437
      %v1660 = vpop.f32.mrb[0].mxu0
      %v1661 = vadd.f32 0.0, %v1660
      %v1662 = vpop.f32.mrb[0].mxu0
      %1663 = vmatprep.mubr.f32.mxu0 0.0
      %1664 = vmatmul.mubr.f32.gmra.mrb[0].mxu0 %v1438
      %v1665 = vpop.f32.mrb[0].mxu0
      %v1666 = vadd.f32 0.0, %v1665
      %v1667 = vpop.f32.mrb[0].mxu0
      %1668 = vmatprep.mubr.f32.mxu0 0.0
      %1669 = vmatmul.mubr.f32.gmra.mrb[0].mxu0 %v1439
      %v1670 = vpop.f32.mrb[0].mxu0
      %v1671 = vadd.f32 0.0, %v1670
      %v1672 = vpop.f32.mrb[0].mxu0
      %1673 = vmatprep.mubr.f32.mxu0 0.0
      %1674 = vmatmul.mubr.f32.gmra.mrb[0].mxu0 %v1440
      %v1675 = vpop.f32.mrb[0].mxu0
      %v1676 = vadd.f32 0.0, %v1675
      %v1677 = vpop.f32.mrb[0].mxu0
      %1678 = vmatprep.mubr.f32.mxu0 0.0
      %1679 = vmatmul.mubr.f32.gmra.mrb[0].mxu0 %v1441
      %v1680 = vpop.f32.mrb[0].mxu0
      %v1681 = vadd.f32 0.0, %v1680
      %v1682 = vpop.f32.mrb[0].mxu0
      %1683 = vdwg.mxu0
      %v1684 = vadd.f32 %v1378, %v1526
      %v1685 = vadd.f32 %v1379, %v1531
      %v1686 = vadd.f32 %v1380, %v1536
      %v1687 = vadd.f32 %v1381, %v1541
      %v1688 = vadd.f32 %v1382, %v1546
      %v1689 = vadd.f32 %v1383, %v1551
      %v1690 = vadd.f32 %v1384, %v1556
      %v1691 = vadd.f32 %v1385, %v1561
      %v1692 = vadd.f32 %v1386, %v1566
      %v1693 = vadd.f32 %v1387, %v1571
      %v1694 = vadd.f32 %v1388, %v1576
      %v1695 = vadd.f32 %v1389, %v1581
      %v1696 = vadd.f32 %v1390, %v1586
      %v1697 = vadd.f32 %v1391, %v1591
      %v1698 = vadd.f32 %v1392, %v1596
      %v1699 = vadd.f32 %v1393, %v1601
      %v1700 = vadd.f32 %v1394, %v1606
      %v1701 = vadd.f32 %v1395, %v1611
      %v1702 = vadd.f32 %v1396, %v1616
      %v1703 = vadd.f32 %v1397, %v1621
      %v1704 = vadd.f32 %v1398, %v1626
      %v1705 = vadd.f32 %v1399, %v1631
      %v1706 = vadd.f32 %v1400, %v1636
      %v1707 = vadd.f32 %v1401, %v1641
      %v1708 = vadd.f32 %v1402, %v1646
      %v1709 = vadd.f32 %v1403, %v1651
      %v1710 = vadd.f32 %v1404, %v1656
      %v1711 = vadd.f32 %v1405, %v1661
      %v1712 = vadd.f32 %v1406, %v1666
      %v1713 = vadd.f32 %v1407, %v1671
      %v1714 = vadd.f32 %v1408, %v1676
      %v1715 = vadd.f32 %v1409, %v1681
      %v1716 = vld [vmem:[%s1103 + $0x2] sm:$0xff]
      %v1717 = vld [vmem:[%s1103 + $0xa] sm:$0xff]
      %v1718 = vld [vmem:[%s1103 + $0x1a] sm:$0xff]
      %v1719 = vld [vmem:[%s1103 + $0x22] sm:$0xff]
      %v1720 = vld [vmem:[%s1103 + $0x32] sm:$0xff]
      %v1721 = vld [vmem:[%s1103 + $0x3a] sm:$0xff]
      %v1722 = vld [vmem:[%s1103 + $0x4a] sm:$0xff]
      %v1723 = vld [vmem:[%s1103 + $0x52] sm:$0xff]
      %v1724 = vld [vmem:[%s1103 + $0x62] sm:$0xff]
      %v1725 = vld [vmem:[%s1103 + $0x6a] sm:$0xff]
      %v1726 = vld [vmem:[%s1103 + $0x7a] sm:$0xff]
      %v1727 = vld [vmem:[%s1103 + $0x82] sm:$0xff]
      %v1728 = vld [vmem:[%s1103 + $0x92] sm:$0xff]
      %v1729 = vld [vmem:[%s1103 + $0x9a] sm:$0xff]
      %v1730 = vld [vmem:[%s1103 + $0xaa] sm:$0xff]
      %v1731 = vld [vmem:[%s1103 + $0xb2] sm:$0xff]
      %v1732 = vld [vmem:[%s1103 + $0xc2] sm:$0xff]
      %v1733 = vld [vmem:[%s1103 + $0xca] sm:$0xff]
      %v1734 = vld [vmem:[%s1103 + $0xda] sm:$0xff]
      %v1735 = vld [vmem:[%s1103 + $0xe2] sm:$0xff]
      %v1736 = vld [vmem:[%s1103 + $0xf2] sm:$0xff]
      %v1737 = vld [vmem:[%s1103 + $0xfa] sm:$0xff]
      %v1738 = vld [vmem:[%s1103 + $0x10a] sm:$0xff]
      %v1739 = vld [vmem:[%s1103 + $0x112] sm:$0xff]
      %v1740 = vld [vmem:[%s1103 + $0x122] sm:$0xff]
      %v1741 = vld [vmem:[%s1103 + $0x12a] sm:$0xff]
      %v1742 = vld [vmem:[%s1103 + $0x13a] sm:$0xff]
      %v1743 = vld [vmem:[%s1103 + $0x142] sm:$0xff]
      %v1744 = vld [vmem:[%s1103 + $0x152] sm:$0xff]
      %v1745 = vld [vmem:[%s1103 + $0x15a] sm:$0xff]
      %v1746 = vld [vmem:[%s1103 + $0x16a] sm:$0xff]
      %v1747 = vld [vmem:[%s1103 + $0x172] sm:$0xff]
      %s1748 = scalar_lea.vmem %s1, 640
      %v1749 = vld [vmem:[%s1748] sm:$0xff]
      %v1750 = vld [vmem:[%s1748 + $0x8] sm:$0xff]
      %v1751 = vld [vmem:[%s1748 + $0x10] sm:$0xff]
      %v1752 = vld [vmem:[%s1748 + $0x18] sm:$0xff]
      %v1753 = vld [vmem:[%s1748 + $0x20] sm:$0xff]
      %v1754 = vld [vmem:[%s1748 + $0x28] sm:$0xff]
      %v1755 = vld [vmem:[%s1748 + $0x30] sm:$0xff]
      %v1756 = vld [vmem:[%s1748 + $0x38] sm:$0xff]
      %v1757 = vld [vmem:[%s1748 + $0x40] sm:$0xff]
      %v1758 = vld [vmem:[%s1748 + $0x48] sm:$0xff]
      %v1759 = vld [vmem:[%s1748 + $0x50] sm:$0xff]
      %v1760 = vld [vmem:[%s1748 + $0x58] sm:$0xff]
      %v1761 = vld [vmem:[%s1748 + $0x60] sm:$0xff]
      %v1762 = vld [vmem:[%s1748 + $0x68] sm:$0xff]
      %v1763 = vld [vmem:[%s1748 + $0x70] sm:$0xff]
      %v1764 = vld [vmem:[%s1748 + $0x78] sm:$0xff]
      %1765 = vmatprep.subr.mxu0 0.0
      %1766 = vmatpush1.msra.mxu0 %v1749
      %1767 = vmatprep.subr.mxu0 0.0
      %1768 = vmatpush1.msra.mxu0 %v1750
      %1769 = vmatprep.subr.mxu0 0.0
      %1770 = vmatpush1.msra.mxu0 %v1751
      %1771 = vmatprep.subr.mxu0 0.0
      %1772 = vmatpush1.msra.mxu0 %v1752
      %1773 = vmatprep.subr.mxu0 0.0
      %1774 = vmatpush1.msra.mxu0 %v1753
      %1775 = vmatprep.subr.mxu0 0.0
      %1776 = vmatpush1.msra.mxu0 %v1754
      %1777 = vmatprep.subr.mxu0 0.0
      %1778 = vmatpush1.msra.mxu0 %v1755
      %1779 = vmatprep.subr.mxu0 0.0
      %1780 = vmatpush1.msra.mxu0 %v1756
      %1781 = vmatprep.subr.mxu0 0.0
      %1782 = vmatpush1.msra.mxu0 %v1757
      %1783 = vmatprep.subr.mxu0 0.0
      %1784 = vmatpush1.msra.mxu0 %v1758
      %1785 = vmatprep.subr.mxu0 0.0
      %1786 = vmatpush1.msra.mxu0 %v1759
      %1787 = vmatprep.subr.mxu0 0.0
      %1788 = vmatpush1.msra.mxu0 %v1760
      %1789 = vmatprep.subr.mxu0 0.0
      %1790 = vmatpush1.msra.mxu0 %v1761
      %1791 = vmatprep.subr.mxu0 0.0
      %1792 = vmatpush1.msra.mxu0 %v1762
      %1793 = vmatprep.subr.mxu0 0.0
      %1794 = vmatpush1.msra.mxu0 %v1763
      %1795 = vmatprep.subr.mxu0 0.0
      %1796 = vmatpush1.msra.mxu0 %v1764
      %1797 = vmatprep.subr.mxu0 0.0
      %1798 = vmatpush1.msra.mxu0 0.0
      %1799 = vmatprep.subr.mxu0 0.0
      %1800 = vmatpush1.msra.mxu0 0.0
      %1801 = vmatprep.subr.mxu0 0.0
      %1802 = vmatpush1.msra.mxu0 0.0
      %1803 = vmatprep.subr.mxu0 0.0
      %1804 = vmatpush1.msra.mxu0 0.0
      %1805 = vmatprep.subr.mxu0 0.0
      %1806 = vmatpush1.msra.mxu0 0.0
      %1807 = vmatprep.subr.mxu0 0.0
      %1808 = vmatpush1.msra.mxu0 0.0
      %1809 = vmatprep.subr.mxu0 0.0
      %1810 = vmatpush1.msra.mxu0 0.0
      %1811 = vmatprep.subr.mxu0 0.0
      %1812 = vmatpush1.msra.mxu0 0.0
      %1813 = vmatprep.subr.mxu0 0.0
      %1814 = vmatpush1.msra.mxu0 0.0
      %1815 = vmatprep.subr.mxu0 0.0
      %1816 = vmatpush1.msra.mxu0 0.0
      %1817 = vmatprep.subr.mxu0 0.0
      %1818 = vmatpush1.msra.mxu0 0.0
      %1819 = vmatprep.subr.mxu0 0.0
      %1820 = vmatpush1.msra.mxu0 0.0
      %1821 = vmatprep.subr.mxu0 0.0
      %1822 = vmatpush1.msra.mxu0 0.0
      %1823 = vmatprep.subr.mxu0 0.0
      %1824 = vmatpush1.msra.mxu0 0.0
      %1825 = vmatprep.subr.mxu0 0.0
      %1826 = vmatpush1.msra.mxu0 0.0
      %1827 = vmatprep.subr.mxu0 0.0
      %1828 = vmatpush1.msra.mxu0 0.0
      %1829 = vmatprep.mubr.f32.mxu0 0.0
      %1830 = vmatmul.mubr.f32.gmra.mrb[0].mxu0 %v1716
      %v1831 = vpop.f32.mrb[0].mxu0
      %v1832 = vadd.f32 0.0, %v1831
      %v1833 = vpop.f32.mrb[0].mxu0
      %1834 = vmatprep.mubr.f32.mxu0 0.0
      %1835 = vmatmul.mubr.f32.gmra.mrb[0].mxu0 %v1717
      %v1836 = vpop.f32.mrb[0].mxu0
      %v1837 = vadd.f32 0.0, %v1836
      %v1838 = vpop.f32.mrb[0].mxu0
      %1839 = vmatprep.mubr.f32.mxu0 0.0
      %1840 = vmatmul.mubr.f32.gmra.mrb[0].mxu0 %v1718
      %v1841 = vpop.f32.mrb[0].mxu0
      %v1842 = vadd.f32 0.0, %v1841
      %v1843 = vpop.f32.mrb[0].mxu0
      %1844 = vmatprep.mubr.f32.mxu0 0.0
      %1845 = vmatmul.mubr.f32.gmra.mrb[0].mxu0 %v1719
      %v1846 = vpop.f32.mrb[0].mxu0
      %v1847 = vadd.f32 0.0, %v1846
      %v1848 = vpop.f32.mrb[0].mxu0
      %1849 = vmatprep.mubr.f32.mxu0 0.0
      %1850 = vmatmul.mubr.f32.gmra.mrb[0].mxu0 %v1720
      %v1851 = vpop.f32.mrb[0].mxu0
      %v1852 = vadd.f32 0.0, %v1851
      %v1853 = vpop.f32.mrb[0].mxu0
      %1854 = vmatprep.mubr.f32.mxu0 0.0
      %1855 = vmatmul.mubr.f32.gmra.mrb[0].mxu0 %v1721
      %v1856 = vpop.f32.mrb[0].mxu0
      %v1857 = vadd.f32 0.0, %v1856
      %v1858 = vpop.f32.mrb[0].mxu0
      %1859 = vmatprep.mubr.f32.mxu0 0.0
      %1860 = vmatmul.mubr.f32.gmra.mrb[0].mxu0 %v1722
      %v1861 = vpop.f32.mrb[0].mxu0
      %v1862 = vadd.f32 0.0, %v1861
      %v1863 = vpop.f32.mrb[0].mxu0
      %1864 = vmatprep.mubr.f32.mxu0 0.0
      %1865 = vmatmul.mubr.f32.gmra.mrb[0].mxu0 %v1723
      %v1866 = vpop.f32.mrb[0].mxu0
      %v1867 = vadd.f32 0.0, %v1866
      %v1868 = vpop.f32.mrb[0].mxu0
      %1869 = vmatprep.mubr.f32.mxu0 0.0
      %1870 = vmatmul.mubr.f32.gmra.mrb[0].mxu0 %v1724
      %v1871 = vpop.f32.mrb[0].mxu0
      %v1872 = vadd.f32 0.0, %v1871
      %v1873 = vpop.f32.mrb[0].mxu0
      %1874 = vmatprep.mubr.f32.mxu0 0.0
      %1875 = vmatmul.mubr.f32.gmra.mrb[0].mxu0 %v1725
      %v1876 = vpop.f32.mrb[0].mxu0
      %v1877 = vadd.f32 0.0, %v1876
      %v1878 = vpop.f32.mrb[0].mxu0
      %1879 = vmatprep.mubr.f32.mxu0 0.0
      %1880 = vmatmul.mubr.f32.gmra.mrb[0].mxu0 %v1726
      %v1881 = vpop.f32.mrb[0].mxu0
      %v1882 = vadd.f32 0.0, %v1881
      %v1883 = vpop.f32.mrb[0].mxu0
      %1884 = vmatprep.mubr.f32.mxu0 0.0
      %1885 = vmatmul.mubr.f32.gmra.mrb[0].mxu0 %v1727
      %v1886 = vpop.f32.mrb[0].mxu0
      %v1887 = vadd.f32 0.0, %v1886
      %v1888 = vpop.f32.mrb[0].mxu0
      %1889 = vmatprep.mubr.f32.mxu0 0.0
      %1890 = vmatmul.mubr.f32.gmra.mrb[0].mxu0 %v1728
      %v1891 = vpop.f32.mrb[0].mxu0
      %v1892 = vadd.f32 0.0, %v1891
      %v1893 = vpop.f32.mrb[0].mxu0
      %1894 = vmatprep.mubr.f32.mxu0 0.0
      %1895 = vmatmul.mubr.f32.gmra.mrb[0].mxu0 %v1729
      %v1896 = vpop.f32.mrb[0].mxu0
      %v1897 = vadd.f32 0.0, %v1896
      %v1898 = vpop.f32.mrb[0].mxu0
      %1899 = vmatprep.mubr.f32.mxu0 0.0
      %1900 = vmatmul.mubr.f32.gmra.mrb[0].mxu0 %v1730
      %v1901 = vpop.f32.mrb[0].mxu0
      %v1902 = vadd.f32 0.0, %v1901
      %v1903 = vpop.f32.mrb[0].mxu0
      %1904 = vmatprep.mubr.f32.mxu0 0.0
      %1905 = vmatmul.mubr.f32.gmra.mrb[0].mxu0 %v1731
      %v1906 = vpop.f32.mrb[0].mxu0
      %v1907 = vadd.f32 0.0, %v1906
      %v1908 = vpop.f32.mrb[0].mxu0
      %1909 = vmatprep.mubr.f32.mxu0 0.0
      %1910 = vmatmul.mubr.f32.gmra.mrb[0].mxu0 %v1732
      %v1911 = vpop.f32.mrb[0].mxu0
      %v1912 = vadd.f32 0.0, %v1911
      %v1913 = vpop.f32.mrb[0].mxu0
      %1914 = vmatprep.mubr.f32.mxu0 0.0
      %1915 = vmatmul.mubr.f32.gmra.mrb[0].mxu0 %v1733
      %v1916 = vpop.f32.mrb[0].mxu0
      %v1917 = vadd.f32 0.0, %v1916
      %v1918 = vpop.f32.mrb[0].mxu0
      %1919 = vmatprep.mubr.f32.mxu0 0.0
      %1920 = vmatmul.mubr.f32.gmra.mrb[0].mxu0 %v1734
      %v1921 = vpop.f32.mrb[0].mxu0
      %v1922 = vadd.f32 0.0, %v1921
      %v1923 = vpop.f32.mrb[0].mxu0
      %1924 = vmatprep.mubr.f32.mxu0 0.0
      %1925 = vmatmul.mubr.f32.gmra.mrb[0].mxu0 %v1735
      %v1926 = vpop.f32.mrb[0].mxu0
      %v1927 = vadd.f32 0.0, %v1926
      %v1928 = vpop.f32.mrb[0].mxu0
      %1929 = vmatprep.mubr.f32.mxu0 0.0
      %1930 = vmatmul.mubr.f32.gmra.mrb[0].mxu0 %v1736
      %v1931 = vpop.f32.mrb[0].mxu0
      %v1932 = vadd.f32 0.0, %v1931
      %v1933 = vpop.f32.mrb[0].mxu0
      %1934 = vmatprep.mubr.f32.mxu0 0.0
      %1935 = vmatmul.mubr.f32.gmra.mrb[0].mxu0 %v1737
      %v1936 = vpop.f32.mrb[0].mxu0
      %v1937 = vadd.f32 0.0, %v1936
      %v1938 = vpop.f32.mrb[0].mxu0
      %1939 = vmatprep.mubr.f32.mxu0 0.0
      %1940 = vmatmul.mubr.f32.gmra.mrb[0].mxu0 %v1738
      %v1941 = vpop.f32.mrb[0].mxu0
      %v1942 = vadd.f32 0.0, %v1941
      %v1943 = vpop.f32.mrb[0].mxu0
      %1944 = vmatprep.mubr.f32.mxu0 0.0
      %1945 = vmatmul.mubr.f32.gmra.mrb[0].mxu0 %v1739
      %v1946 = vpop.f32.mrb[0].mxu0
      %v1947 = vadd.f32 0.0, %v1946
      %v1948 = vpop.f32.mrb[0].mxu0
      %1949 = vmatprep.mubr.f32.mxu0 0.0
      %1950 = vmatmul.mubr.f32.gmra.mrb[0].mxu0 %v1740
      %v1951 = vpop.f32.mrb[0].mxu0
      %v1952 = vadd.f32 0.0, %v1951
      %v1953 = vpop.f32.mrb[0].mxu0
      %1954 = vmatprep.mubr.f32.mxu0 0.0
      %1955 = vmatmul.mubr.f32.gmra.mrb[0].mxu0 %v1741
      %v1956 = vpop.f32.mrb[0].mxu0
      %v1957 = vadd.f32 0.0, %v1956
      %v1958 = vpop.f32.mrb[0].mxu0
      %1959 = vmatprep.mubr.f32.mxu0 0.0
      %1960 = vmatmul.mubr.f32.gmra.mrb[0].mxu0 %v1742
      %v1961 = vpop.f32.mrb[0].mxu0
      %v1962 = vadd.f32 0.0, %v1961
      %v1963 = vpop.f32.mrb[0].mxu0
      %1964 = vmatprep.mubr.f32.mxu0 0.0
      %1965 = vmatmul.mubr.f32.gmra.mrb[0].mxu0 %v1743
      %v1966 = vpop.f32.mrb[0].mxu0
      %v1967 = vadd.f32 0.0, %v1966
      %v1968 = vpop.f32.mrb[0].mxu0
      %1969 = vmatprep.mubr.f32.mxu0 0.0
      %1970 = vmatmul.mubr.f32.gmra.mrb[0].mxu0 %v1744
      %v1971 = vpop.f32.mrb[0].mxu0
      %v1972 = vadd.f32 0.0, %v1971
      %v1973 = vpop.f32.mrb[0].mxu0
      %1974 = vmatprep.mubr.f32.mxu0 0.0
      %1975 = vmatmul.mubr.f32.gmra.mrb[0].mxu0 %v1745
      %v1976 = vpop.f32.mrb[0].mxu0
      %v1977 = vadd.f32 0.0, %v1976
      %v1978 = vpop.f32.mrb[0].mxu0
      %1979 = vmatprep.mubr.f32.mxu0 0.0
      %1980 = vmatmul.mubr.f32.gmra.mrb[0].mxu0 %v1746
      %v1981 = vpop.f32.mrb[0].mxu0
      %v1982 = vadd.f32 0.0, %v1981
      %v1983 = vpop.f32.mrb[0].mxu0
      %1984 = vmatprep.mubr.f32.mxu0 0.0
      %1985 = vmatmul.mubr.f32.gmra.mrb[0].mxu0 %v1747
      %v1986 = vpop.f32.mrb[0].mxu0
      %v1987 = vadd.f32 0.0, %v1986
      %v1988 = vpop.f32.mrb[0].mxu0
      %1989 = vdwg.mxu0
      %v1990 = vadd.f32 %v1684, %v1832
      %v1991 = vadd.f32 %v1685, %v1837
      %v1992 = vadd.f32 %v1686, %v1842
      %v1993 = vadd.f32 %v1687, %v1847
      %v1994 = vadd.f32 %v1688, %v1852
      %v1995 = vadd.f32 %v1689, %v1857
      %v1996 = vadd.f32 %v1690, %v1862
      %v1997 = vadd.f32 %v1691, %v1867
      %v1998 = vadd.f32 %v1692, %v1872
      %v1999 = vadd.f32 %v1693, %v1877
      %v2000 = vadd.f32 %v1694, %v1882
      %v2001 = vadd.f32 %v1695, %v1887
      %v2002 = vadd.f32 %v1696, %v1892
      %v2003 = vadd.f32 %v1697, %v1897
      %v2004 = vadd.f32 %v1698, %v1902
      %v2005 = vadd.f32 %v1699, %v1907
      %v2006 = vadd.f32 %v1700, %v1912
      %v2007 = vadd.f32 %v1701, %v1917
      %v2008 = vadd.f32 %v1702, %v1922
      %v2009 = vadd.f32 %v1703, %v1927
      %v2010 = vadd.f32 %v1704, %v1932
      %v2011 = vadd.f32 %v1705, %v1937
      %v2012 = vadd.f32 %v1706, %v1942
      %v2013 = vadd.f32 %v1707, %v1947
      %v2014 = vadd.f32 %v1708, %v1952
      %v2015 = vadd.f32 %v1709, %v1957
      %v2016 = vadd.f32 %v1710, %v1962
      %v2017 = vadd.f32 %v1711, %v1967
      %v2018 = vadd.f32 %v1712, %v1972
      %v2019 = vadd.f32 %v1713, %v1977
      %v2020 = vadd.f32 %v1714, %v1982
      %v2021 = vadd.f32 %v1715, %v1987
      %s2022 = scalar_lea.vmem %s180, 48
      %v2023 = vld [vmem:[%s2022] sm:$0xff]
      %v2024 = vld [vmem:[%s2022 + $0x8] sm:$0xff]
      %v2025 = vld [vmem:[%s2022 + $0x18] sm:$0xff]
      %v2026 = vld [vmem:[%s2022 + $0x20] sm:$0xff]
      %v2027 = vld [vmem:[%s2022 + $0x30] sm:$0xff]
      %v2028 = vld [vmem:[%s2022 + $0x38] sm:$0xff]
      %v2029 = vld [vmem:[%s2022 + $0x48] sm:$0xff]
      %v2030 = vld [vmem:[%s2022 + $0x50] sm:$0xff]
      %v2031 = vld [vmem:[%s2022 + $0x60] sm:$0xff]
      %v2032 = vld [vmem:[%s2022 + $0x68] sm:$0xff]
      %v2033 = vld [vmem:[%s2022 + $0x78] sm:$0xff]
      %v2034 = vld [vmem:[%s2022 + $0x80] sm:$0xff]
      %v2035 = vld [vmem:[%s2022 + $0x90] sm:$0xff]
      %v2036 = vld [vmem:[%s2022 + $0x98] sm:$0xff]
      %v2037 = vld [vmem:[%s2022 + $0xa8] sm:$0xff]
      %v2038 = vld [vmem:[%s2022 + $0xb0] sm:$0xff]
      %v2039 = vld [vmem:[%s2022 + $0xc0] sm:$0xff]
      %v2040 = vld [vmem:[%s2022 + $0xc8] sm:$0xff]
      %v2041 = vld [vmem:[%s2022 + $0xd8] sm:$0xff]
      %v2042 = vld [vmem:[%s2022 + $0xe0] sm:$0xff]
      %v2043 = vld [vmem:[%s2022 + $0xf0] sm:$0xff]
      %v2044 = vld [vmem:[%s2022 + $0xf8] sm:$0xff]
      %v2045 = vld [vmem:[%s2022 + $0x108] sm:$0xff]
      %v2046 = vld [vmem:[%s2022 + $0x110] sm:$0xff]
      %v2047 = vld [vmem:[%s2022 + $0x120] sm:$0xff]
      %v2048 = vld [vmem:[%s2022 + $0x128] sm:$0xff]
      %v2049 = vld [vmem:[%s2022 + $0x138] sm:$0xff]
      %v2050 = vld [vmem:[%s2022 + $0x140] sm:$0xff]
      %v2051 = vld [vmem:[%s2022 + $0x150] sm:$0xff]
      %v2052 = vld [vmem:[%s2022 + $0x158] sm:$0xff]
      %v2053 = vld [vmem:[%s2022 + $0x168] sm:$0xff]
      %v2054 = vld [vmem:[%s2022 + $0x170] sm:$0xff]
      %s2055 = scalar_lea.vmem %s1, 768
      %v2056 = vld [vmem:[%s2055] sm:$0xff]
      %v2057 = vld [vmem:[%s2055 + $0x8] sm:$0xff]
      %v2058 = vld [vmem:[%s2055 + $0x10] sm:$0xff]
      %v2059 = vld [vmem:[%s2055 + $0x18] sm:$0xff]
      %v2060 = vld [vmem:[%s2055 + $0x20] sm:$0xff]
      %v2061 = vld [vmem:[%s2055 + $0x28] sm:$0xff]
      %v2062 = vld [vmem:[%s2055 + $0x30] sm:$0xff]
      %v2063 = vld [vmem:[%s2055 + $0x38] sm:$0xff]
      %v2064 = vld [vmem:[%s2055 + $0x40] sm:$0xff]
      %v2065 = vld [vmem:[%s2055 + $0x48] sm:$0xff]
      %v2066 = vld [vmem:[%s2055 + $0x50] sm:$0xff]
      %v2067 = vld [vmem:[%s2055 + $0x58] sm:$0xff]
      %v2068 = vld [vmem:[%s2055 + $0x60] sm:$0xff]
      %v2069 = vld [vmem:[%s2055 + $0x68] sm:$0xff]
      %v2070 = vld [vmem:[%s2055 + $0x70] sm:$0xff]
      %v2071 = vld [vmem:[%s2055 + $0x78] sm:$0xff]
      %2072 = vmatprep.subr.mxu0 0.0
      %2073 = vmatpush1.msra.mxu0 %v2056
      %2074 = vmatprep.subr.mxu0 0.0
      %2075 = vmatpush1.msra.mxu0 %v2057
      %2076 = vmatprep.subr.mxu0 0.0
      %2077 = vmatpush1.msra.mxu0 %v2058
      %2078 = vmatprep.subr.mxu0 0.0
      %2079 = vmatpush1.msra.mxu0 %v2059
      %2080 = vmatprep.subr.mxu0 0.0
      %2081 = vmatpush1.msra.mxu0 %v2060
      %2082 = vmatprep.subr.mxu0 0.0
      %2083 = vmatpush1.msra.mxu0 %v2061
      %2084 = vmatprep.subr.mxu0 0.0
      %2085 = vmatpush1.msra.mxu0 %v2062
      %2086 = vmatprep.subr.mxu0 0.0
      %2087 = vmatpush1.msra.mxu0 %v2063
      %2088 = vmatprep.subr.mxu0 0.0
      %2089 = vmatpush1.msra.mxu0 %v2064
      %2090 = vmatprep.subr.mxu0 0.0
      %2091 = vmatpush1.msra.mxu0 %v2065
      %2092 = vmatprep.subr.mxu0 0.0
      %2093 = vmatpush1.msra.mxu0 %v2066
      %2094 = vmatprep.subr.mxu0 0.0
      %2095 = vmatpush1.msra.mxu0 %v2067
      %2096 = vmatprep.subr.mxu0 0.0
      %2097 = vmatpush1.msra.mxu0 %v2068
      %2098 = vmatprep.subr.mxu0 0.0
      %2099 = vmatpush1.msra.mxu0 %v2069
      %2100 = vmatprep.subr.mxu0 0.0
      %2101 = vmatpush1.msra.mxu0 %v2070
      %2102 = vmatprep.subr.mxu0 0.0
      %2103 = vmatpush1.msra.mxu0 %v2071
      %2104 = vmatprep.subr.mxu0 0.0
      %2105 = vmatpush1.msra.mxu0 0.0
      %2106 = vmatprep.subr.mxu0 0.0
      %2107 = vmatpush1.msra.mxu0 0.0
      %2108 = vmatprep.subr.mxu0 0.0
      %2109 = vmatpush1.msra.mxu0 0.0
      %2110 = vmatprep.subr.mxu0 0.0
      %2111 = vmatpush1.msra.mxu0 0.0
      %2112 = vmatprep.subr.mxu0 0.0
      %2113 = vmatpush1.msra.mxu0 0.0
      %2114 = vmatprep.subr.mxu0 0.0
      %2115 = vmatpush1.msra.mxu0 0.0
      %2116 = vmatprep.subr.mxu0 0.0
      %2117 = vmatpush1.msra.mxu0 0.0
      %2118 = vmatprep.subr.mxu0 0.0
      %2119 = vmatpush1.msra.mxu0 0.0
      %2120 = vmatprep.subr.mxu0 0.0
      %2121 = vmatpush1.msra.mxu0 0.0
      %2122 = vmatprep.subr.mxu0 0.0
      %2123 = vmatpush1.msra.mxu0 0.0
      %2124 = vmatprep.subr.mxu0 0.0
      %2125 = vmatpush1.msra.mxu0 0.0
      %2126 = vmatprep.subr.mxu0 0.0
      %2127 = vmatpush1.msra.mxu0 0.0
      %2128 = vmatprep.subr.mxu0 0.0
      %2129 = vmatpush1.msra.mxu0 0.0
      %2130 = vmatprep.subr.mxu0 0.0
      %2131 = vmatpush1.msra.mxu0 0.0
      %2132 = vmatprep.subr.mxu0 0.0
      %2133 = vmatpush1.msra.mxu0 0.0
      %2134 = vmatprep.subr.mxu0 0.0
      %2135 = vmatpush1.msra.mxu0 0.0
      %2136 = vmatprep.mubr.f32.mxu0 0.0
      %2137 = vmatmul.mubr.f32.gmra.mrb[0].mxu0 %v2023
      %v2138 = vpop.f32.mrb[0].mxu0
      %v2139 = vadd.f32 0.0, %v2138
      %v2140 = vpop.f32.mrb[0].mxu0
      %2141 = vmatprep.mubr.f32.mxu0 0.0
      %2142 = vmatmul.mubr.f32.gmra.mrb[0].mxu0 %v2024
      %v2143 = vpop.f32.mrb[0].mxu0
      %v2144 = vadd.f32 0.0, %v2143
      %v2145 = vpop.f32.mrb[0].mxu0
      %2146 = vmatprep.mubr.f32.mxu0 0.0
      %2147 = vmatmul.mubr.f32.gmra.mrb[0].mxu0 %v2025
      %v2148 = vpop.f32.mrb[0].mxu0
      %v2149 = vadd.f32 0.0, %v2148
      %v2150 = vpop.f32.mrb[0].mxu0
      %2151 = vmatprep.mubr.f32.mxu0 0.0
      %2152 = vmatmul.mubr.f32.gmra.mrb[0].mxu0 %v2026
      %v2153 = vpop.f32.mrb[0].mxu0
      %v2154 = vadd.f32 0.0, %v2153
      %v2155 = vpop.f32.mrb[0].mxu0
      %2156 = vmatprep.mubr.f32.mxu0 0.0
      %2157 = vmatmul.mubr.f32.gmra.mrb[0].mxu0 %v2027
      %v2158 = vpop.f32.mrb[0].mxu0
      %v2159 = vadd.f32 0.0, %v2158
      %v2160 = vpop.f32.mrb[0].mxu0
      %2161 = vmatprep.mubr.f32.mxu0 0.0
      %2162 = vmatmul.mubr.f32.gmra.mrb[0].mxu0 %v2028
      %v2163 = vpop.f32.mrb[0].mxu0
      %v2164 = vadd.f32 0.0, %v2163
      %v2165 = vpop.f32.mrb[0].mxu0
      %2166 = vmatprep.mubr.f32.mxu0 0.0
      %2167 = vmatmul.mubr.f32.gmra.mrb[0].mxu0 %v2029
      %v2168 = vpop.f32.mrb[0].mxu0
      %v2169 = vadd.f32 0.0, %v2168
      %v2170 = vpop.f32.mrb[0].mxu0
      %2171 = vmatprep.mubr.f32.mxu0 0.0
      %2172 = vmatmul.mubr.f32.gmra.mrb[0].mxu0 %v2030
      %v2173 = vpop.f32.mrb[0].mxu0
      %v2174 = vadd.f32 0.0, %v2173
      %v2175 = vpop.f32.mrb[0].mxu0
      %2176 = vmatprep.mubr.f32.mxu0 0.0
      %2177 = vmatmul.mubr.f32.gmra.mrb[0].mxu0 %v2031
      %v2178 = vpop.f32.mrb[0].mxu0
      %v2179 = vadd.f32 0.0, %v2178
      %v2180 = vpop.f32.mrb[0].mxu0
      %2181 = vmatprep.mubr.f32.mxu0 0.0
      %2182 = vmatmul.mubr.f32.gmra.mrb[0].mxu0 %v2032
      %v2183 = vpop.f32.mrb[0].mxu0
      %v2184 = vadd.f32 0.0, %v2183
      %v2185 = vpop.f32.mrb[0].mxu0
      %2186 = vmatprep.mubr.f32.mxu0 0.0
      %2187 = vmatmul.mubr.f32.gmra.mrb[0].mxu0 %v2033
      %v2188 = vpop.f32.mrb[0].mxu0
      %v2189 = vadd.f32 0.0, %v2188
      %v2190 = vpop.f32.mrb[0].mxu0
      %2191 = vmatprep.mubr.f32.mxu0 0.0
      %2192 = vmatmul.mubr.f32.gmra.mrb[0].mxu0 %v2034
      %v2193 = vpop.f32.mrb[0].mxu0
      %v2194 = vadd.f32 0.0, %v2193
      %v2195 = vpop.f32.mrb[0].mxu0
      %2196 = vmatprep.mubr.f32.mxu0 0.0
      %2197 = vmatmul.mubr.f32.gmra.mrb[0].mxu0 %v2035
      %v2198 = vpop.f32.mrb[0].mxu0
      %v2199 = vadd.f32 0.0, %v2198
      %v2200 = vpop.f32.mrb[0].mxu0
      %2201 = vmatprep.mubr.f32.mxu0 0.0
      %2202 = vmatmul.mubr.f32.gmra.mrb[0].mxu0 %v2036
      %v2203 = vpop.f32.mrb[0].mxu0
      %v2204 = vadd.f32 0.0, %v2203
      %v2205 = vpop.f32.mrb[0].mxu0
      %2206 = vmatprep.mubr.f32.mxu0 0.0
      %2207 = vmatmul.mubr.f32.gmra.mrb[0].mxu0 %v2037
      %v2208 = vpop.f32.mrb[0].mxu0
      %v2209 = vadd.f32 0.0, %v2208
      %v2210 = vpop.f32.mrb[0].mxu0
      %2211 = vmatprep.mubr.f32.mxu0 0.0
      %2212 = vmatmul.mubr.f32.gmra.mrb[0].mxu0 %v2038
      %v2213 = vpop.f32.mrb[0].mxu0
      %v2214 = vadd.f32 0.0, %v2213
      %v2215 = vpop.f32.mrb[0].mxu0
      %2216 = vmatprep.mubr.f32.mxu0 0.0
      %2217 = vmatmul.mubr.f32.gmra.mrb[0].mxu0 %v2039
      %v2218 = vpop.f32.mrb[0].mxu0
      %v2219 = vadd.f32 0.0, %v2218
      %v2220 = vpop.f32.mrb[0].mxu0
      %2221 = vmatprep.mubr.f32.mxu0 0.0
      %2222 = vmatmul.mubr.f32.gmra.mrb[0].mxu0 %v2040
      %v2223 = vpop.f32.mrb[0].mxu0
      %v2224 = vadd.f32 0.0, %v2223
      %v2225 = vpop.f32.mrb[0].mxu0
      %2226 = vmatprep.mubr.f32.mxu0 0.0
      %2227 = vmatmul.mubr.f32.gmra.mrb[0].mxu0 %v2041
      %v2228 = vpop.f32.mrb[0].mxu0
      %v2229 = vadd.f32 0.0, %v2228
      %v2230 = vpop.f32.mrb[0].mxu0
      %2231 = vmatprep.mubr.f32.mxu0 0.0
      %2232 = vmatmul.mubr.f32.gmra.mrb[0].mxu0 %v2042
      %v2233 = vpop.f32.mrb[0].mxu0
      %v2234 = vadd.f32 0.0, %v2233
      %v2235 = vpop.f32.mrb[0].mxu0
      %2236 = vmatprep.mubr.f32.mxu0 0.0
      %2237 = vmatmul.mubr.f32.gmra.mrb[0].mxu0 %v2043
      %v2238 = vpop.f32.mrb[0].mxu0
      %v2239 = vadd.f32 0.0, %v2238
      %v2240 = vpop.f32.mrb[0].mxu0
      %2241 = vmatprep.mubr.f32.mxu0 0.0
      %2242 = vmatmul.mubr.f32.gmra.mrb[0].mxu0 %v2044
      %v2243 = vpop.f32.mrb[0].mxu0
      %v2244 = vadd.f32 0.0, %v2243
      %v2245 = vpop.f32.mrb[0].mxu0
      %2246 = vmatprep.mubr.f32.mxu0 0.0
      %2247 = vmatmul.mubr.f32.gmra.mrb[0].mxu0 %v2045
      %v2248 = vpop.f32.mrb[0].mxu0
      %v2249 = vadd.f32 0.0, %v2248
      %v2250 = vpop.f32.mrb[0].mxu0
      %2251 = vmatprep.mubr.f32.mxu0 0.0
      %2252 = vmatmul.mubr.f32.gmra.mrb[0].mxu0 %v2046
      %v2253 = vpop.f32.mrb[0].mxu0
      %v2254 = vadd.f32 0.0, %v2253
      %v2255 = vpop.f32.mrb[0].mxu0
      %2256 = vmatprep.mubr.f32.mxu0 0.0
      %2257 = vmatmul.mubr.f32.gmra.mrb[0].mxu0 %v2047
      %v2258 = vpop.f32.mrb[0].mxu0
      %v2259 = vadd.f32 0.0, %v2258
      %v2260 = vpop.f32.mrb[0].mxu0
      %2261 = vmatprep.mubr.f32.mxu0 0.0
      %2262 = vmatmul.mubr.f32.gmra.mrb[0].mxu0 %v2048
      %v2263 = vpop.f32.mrb[0].mxu0
      %v2264 = vadd.f32 0.0, %v2263
      %v2265 = vpop.f32.mrb[0].mxu0
      %2266 = vmatprep.mubr.f32.mxu0 0.0
      %2267 = vmatmul.mubr.f32.gmra.mrb[0].mxu0 %v2049
      %v2268 = vpop.f32.mrb[0].mxu0
      %v2269 = vadd.f32 0.0, %v2268
      %v2270 = vpop.f32.mrb[0].mxu0
      %2271 = vmatprep.mubr.f32.mxu0 0.0
      %2272 = vmatmul.mubr.f32.gmra.mrb[0].mxu0 %v2050
      %v2273 = vpop.f32.mrb[0].mxu0
      %v2274 = vadd.f32 0.0, %v2273
      %v2275 = vpop.f32.mrb[0].mxu0
      %2276 = vmatprep.mubr.f32.mxu0 0.0
      %2277 = vmatmul.mubr.f32.gmra.mrb[0].mxu0 %v2051
      %v2278 = vpop.f32.mrb[0].mxu0
      %v2279 = vadd.f32 0.0, %v2278
      %v2280 = vpop.f32.mrb[0].mxu0
      %2281 = vmatprep.mubr.f32.mxu0 0.0
      %2282 = vmatmul.mubr.f32.gmra.mrb[0].mxu0 %v2052
      %v2283 = vpop.f32.mrb[0].mxu0
      %v2284 = vadd.f32 0.0, %v2283
      %v2285 = vpop.f32.mrb[0].mxu0
      %2286 = vmatprep.mubr.f32.mxu0 0.0
      %2287 = vmatmul.mubr.f32.gmra.mrb[0].mxu0 %v2053
      %v2288 = vpop.f32.mrb[0].mxu0
      %v2289 = vadd.f32 0.0, %v2288
      %v2290 = vpop.f32.mrb[0].mxu0
      %2291 = vmatprep.mubr.f32.mxu0 0.0
      %2292 = vmatmul.mubr.f32.gmra.mrb[0].mxu0 %v2054
      %v2293 = vpop.f32.mrb[0].mxu0
      %v2294 = vadd.f32 0.0, %v2293
      %v2295 = vpop.f32.mrb[0].mxu0
      %2296 = vdwg.mxu0
      %v2297 = vadd.f32 %v1990, %v2139
      %v2298 = vadd.f32 %v1991, %v2144
      %v2299 = vadd.f32 %v1992, %v2149
      %v2300 = vadd.f32 %v1993, %v2154
      %v2301 = vadd.f32 %v1994, %v2159
      %v2302 = vadd.f32 %v1995, %v2164
      %v2303 = vadd.f32 %v1996, %v2169
      %v2304 = vadd.f32 %v1997, %v2174
      %v2305 = vadd.f32 %v1998, %v2179
      %v2306 = vadd.f32 %v1999, %v2184
      %v2307 = vadd.f32 %v2000, %v2189
      %v2308 = vadd.f32 %v2001, %v2194
      %v2309 = vadd.f32 %v2002, %v2199
      %v2310 = vadd.f32 %v2003, %v2204
      %v2311 = vadd.f32 %v2004, %v2209
      %v2312 = vadd.f32 %v2005, %v2214
      %v2313 = vadd.f32 %v2006, %v2219
      %v2314 = vadd.f32 %v2007, %v2224
      %v2315 = vadd.f32 %v2008, %v2229
      %v2316 = vadd.f32 %v2009, %v2234
      %v2317 = vadd.f32 %v2010, %v2239
      %v2318 = vadd.f32 %v2011, %v2244
      %v2319 = vadd.f32 %v2012, %v2249
      %v2320 = vadd.f32 %v2013, %v2254
      %v2321 = vadd.f32 %v2014, %v2259
      %v2322 = vadd.f32 %v2015, %v2264
      %v2323 = vadd.f32 %v2016, %v2269
      %v2324 = vadd.f32 %v2017, %v2274
      %v2325 = vadd.f32 %v2018, %v2279
      %v2326 = vadd.f32 %v2019, %v2284
      %v2327 = vadd.f32 %v2020, %v2289
      %v2328 = vadd.f32 %v2021, %v2294
      %v2329 = vld [vmem:[%s2022 + $0x1] sm:$0xff]
      %v2330 = vld [vmem:[%s2022 + $0x9] sm:$0xff]
      %v2331 = vld [vmem:[%s2022 + $0x19] sm:$0xff]
      %v2332 = vld [vmem:[%s2022 + $0x21] sm:$0xff]
      %v2333 = vld [vmem:[%s2022 + $0x31] sm:$0xff]
      %v2334 = vld [vmem:[%s2022 + $0x39] sm:$0xff]
      %v2335 = vld [vmem:[%s2022 + $0x49] sm:$0xff]
      %v2336 = vld [vmem:[%s2022 + $0x51] sm:$0xff]
      %v2337 = vld [vmem:[%s2022 + $0x61] sm:$0xff]
      %v2338 = vld [vmem:[%s2022 + $0x69] sm:$0xff]
      %v2339 = vld [vmem:[%s2022 + $0x79] sm:$0xff]
      %v2340 = vld [vmem:[%s2022 + $0x81] sm:$0xff]
      %v2341 = vld [vmem:[%s2022 + $0x91] sm:$0xff]
      %v2342 = vld [vmem:[%s2022 + $0x99] sm:$0xff]
      %v2343 = vld [vmem:[%s2022 + $0xa9] sm:$0xff]
      %v2344 = vld [vmem:[%s2022 + $0xb1] sm:$0xff]
      %v2345 = vld [vmem:[%s2022 + $0xc1] sm:$0xff]
      %v2346 = vld [vmem:[%s2022 + $0xc9] sm:$0xff]
      %v2347 = vld [vmem:[%s2022 + $0xd9] sm:$0xff]
      %v2348 = vld [vmem:[%s2022 + $0xe1] sm:$0xff]
      %v2349 = vld [vmem:[%s2022 + $0xf1] sm:$0xff]
      %v2350 = vld [vmem:[%s2022 + $0xf9] sm:$0xff]
      %v2351 = vld [vmem:[%s2022 + $0x109] sm:$0xff]
      %v2352 = vld [vmem:[%s2022 + $0x111] sm:$0xff]
      %v2353 = vld [vmem:[%s2022 + $0x121] sm:$0xff]
      %v2354 = vld [vmem:[%s2022 + $0x129] sm:$0xff]
      %v2355 = vld [vmem:[%s2022 + $0x139] sm:$0xff]
      %v2356 = vld [vmem:[%s2022 + $0x141] sm:$0xff]
      %v2357 = vld [vmem:[%s2022 + $0x151] sm:$0xff]
      %v2358 = vld [vmem:[%s2022 + $0x159] sm:$0xff]
      %v2359 = vld [vmem:[%s2022 + $0x169] sm:$0xff]
      %v2360 = vld [vmem:[%s2022 + $0x171] sm:$0xff]
      %s2361 = scalar_lea.vmem %s1, 896
      %v2362 = vld [vmem:[%s2361] sm:$0xff]
      %v2363 = vld [vmem:[%s2361 + $0x8] sm:$0xff]
      %v2364 = vld [vmem:[%s2361 + $0x10] sm:$0xff]
      %v2365 = vld [vmem:[%s2361 + $0x18] sm:$0xff]
      %v2366 = vld [vmem:[%s2361 + $0x20] sm:$0xff]
      %v2367 = vld [vmem:[%s2361 + $0x28] sm:$0xff]
      %v2368 = vld [vmem:[%s2361 + $0x30] sm:$0xff]
      %v2369 = vld [vmem:[%s2361 + $0x38] sm:$0xff]
      %v2370 = vld [vmem:[%s2361 + $0x40] sm:$0xff]
      %v2371 = vld [vmem:[%s2361 + $0x48] sm:$0xff]
      %v2372 = vld [vmem:[%s2361 + $0x50] sm:$0xff]
      %v2373 = vld [vmem:[%s2361 + $0x58] sm:$0xff]
      %v2374 = vld [vmem:[%s2361 + $0x60] sm:$0xff]
      %v2375 = vld [vmem:[%s2361 + $0x68] sm:$0xff]
      %v2376 = vld [vmem:[%s2361 + $0x70] sm:$0xff]
      %v2377 = vld [vmem:[%s2361 + $0x78] sm:$0xff]
      %2378 = vmatprep.subr.mxu0 0.0
      %2379 = vmatpush1.msra.mxu0 %v2362
      %2380 = vmatprep.subr.mxu0 0.0
      %2381 = vmatpush1.msra.mxu0 %v2363
      %2382 = vmatprep.subr.mxu0 0.0
      %2383 = vmatpush1.msra.mxu0 %v2364
      %2384 = vmatprep.subr.mxu0 0.0
      %2385 = vmatpush1.msra.mxu0 %v2365
      %2386 = vmatprep.subr.mxu0 0.0
      %2387 = vmatpush1.msra.mxu0 %v2366
      %2388 = vmatprep.subr.mxu0 0.0
      %2389 = vmatpush1.msra.mxu0 %v2367
      %2390 = vmatprep.subr.mxu0 0.0
      %2391 = vmatpush1.msra.mxu0 %v2368
      %2392 = vmatprep.subr.mxu0 0.0
      %2393 = vmatpush1.msra.mxu0 %v2369
      %2394 = vmatprep.subr.mxu0 0.0
      %2395 = vmatpush1.msra.mxu0 %v2370
      %2396 = vmatprep.subr.mxu0 0.0
      %2397 = vmatpush1.msra.mxu0 %v2371
      %2398 = vmatprep.subr.mxu0 0.0
      %2399 = vmatpush1.msra.mxu0 %v2372
      %2400 = vmatprep.subr.mxu0 0.0
      %2401 = vmatpush1.msra.mxu0 %v2373
      %2402 = vmatprep.subr.mxu0 0.0
      %2403 = vmatpush1.msra.mxu0 %v2374
      %2404 = vmatprep.subr.mxu0 0.0
      %2405 = vmatpush1.msra.mxu0 %v2375
      %2406 = vmatprep.subr.mxu0 0.0
      %2407 = vmatpush1.msra.mxu0 %v2376
      %2408 = vmatprep.subr.mxu0 0.0
      %2409 = vmatpush1.msra.mxu0 %v2377
      %2410 = vmatprep.subr.mxu0 0.0
      %2411 = vmatpush1.msra.mxu0 0.0
      %2412 = vmatprep.subr.mxu0 0.0
      %2413 = vmatpush1.msra.mxu0 0.0
      %2414 = vmatprep.subr.mxu0 0.0
      %2415 = vmatpush1.msra.mxu0 0.0
      %2416 = vmatprep.subr.mxu0 0.0
      %2417 = vmatpush1.msra.mxu0 0.0
      %2418 = vmatprep.subr.mxu0 0.0
      %2419 = vmatpush1.msra.mxu0 0.0
      %2420 = vmatprep.subr.mxu0 0.0
      %2421 = vmatpush1.msra.mxu0 0.0
      %2422 = vmatprep.subr.mxu0 0.0
      %2423 = vmatpush1.msra.mxu0 0.0
      %2424 = vmatprep.subr.mxu0 0.0
      %2425 = vmatpush1.msra.mxu0 0.0
      %2426 = vmatprep.subr.mxu0 0.0
      %2427 = vmatpush1.msra.mxu0 0.0
      %2428 = vmatprep.subr.mxu0 0.0
      %2429 = vmatpush1.msra.mxu0 0.0
      %2430 = vmatprep.subr.mxu0 0.0
      %2431 = vmatpush1.msra.mxu0 0.0
      %2432 = vmatprep.subr.mxu0 0.0
      %2433 = vmatpush1.msra.mxu0 0.0
      %2434 = vmatprep.subr.mxu0 0.0
      %2435 = vmatpush1.msra.mxu0 0.0
      %2436 = vmatprep.subr.mxu0 0.0
      %2437 = vmatpush1.msra.mxu0 0.0
      %2438 = vmatprep.subr.mxu0 0.0
      %2439 = vmatpush1.msra.mxu0 0.0
      %2440 = vmatprep.subr.mxu0 0.0
      %2441 = vmatpush1.msra.mxu0 0.0
      %2442 = vmatprep.mubr.f32.mxu0 0.0
      %2443 = vmatmul.mubr.f32.gmra.mrb[0].mxu0 %v2329
      %v2444 = vpop.f32.mrb[0].mxu0
      %v2445 = vadd.f32 0.0, %v2444
      %v2446 = vpop.f32.mrb[0].mxu0
      %2447 = vmatprep.mubr.f32.mxu0 0.0
      %2448 = vmatmul.mubr.f32.gmra.mrb[0].mxu0 %v2330
      %v2449 = vpop.f32.mrb[0].mxu0
      %v2450 = vadd.f32 0.0, %v2449
      %v2451 = vpop.f32.mrb[0].mxu0
      %2452 = vmatprep.mubr.f32.mxu0 0.0
      %2453 = vmatmul.mubr.f32.gmra.mrb[0].mxu0 %v2331
      %v2454 = vpop.f32.mrb[0].mxu0
      %v2455 = vadd.f32 0.0, %v2454
      %v2456 = vpop.f32.mrb[0].mxu0
      %2457 = vmatprep.mubr.f32.mxu0 0.0
      %2458 = vmatmul.mubr.f32.gmra.mrb[0].mxu0 %v2332
      %v2459 = vpop.f32.mrb[0].mxu0
      %v2460 = vadd.f32 0.0, %v2459
      %v2461 = vpop.f32.mrb[0].mxu0
      %2462 = vmatprep.mubr.f32.mxu0 0.0
      %2463 = vmatmul.mubr.f32.gmra.mrb[0].mxu0 %v2333
      %v2464 = vpop.f32.mrb[0].mxu0
      %v2465 = vadd.f32 0.0, %v2464
      %v2466 = vpop.f32.mrb[0].mxu0
      %2467 = vmatprep.mubr.f32.mxu0 0.0
      %2468 = vmatmul.mubr.f32.gmra.mrb[0].mxu0 %v2334
      %v2469 = vpop.f32.mrb[0].mxu0
      %v2470 = vadd.f32 0.0, %v2469
      %v2471 = vpop.f32.mrb[0].mxu0
      %2472 = vmatprep.mubr.f32.mxu0 0.0
      %2473 = vmatmul.mubr.f32.gmra.mrb[0].mxu0 %v2335
      %v2474 = vpop.f32.mrb[0].mxu0
      %v2475 = vadd.f32 0.0, %v2474
      %v2476 = vpop.f32.mrb[0].mxu0
      %2477 = vmatprep.mubr.f32.mxu0 0.0
      %2478 = vmatmul.mubr.f32.gmra.mrb[0].mxu0 %v2336
      %v2479 = vpop.f32.mrb[0].mxu0
      %v2480 = vadd.f32 0.0, %v2479
      %v2481 = vpop.f32.mrb[0].mxu0
      %2482 = vmatprep.mubr.f32.mxu0 0.0
      %2483 = vmatmul.mubr.f32.gmra.mrb[0].mxu0 %v2337
      %v2484 = vpop.f32.mrb[0].mxu0
      %v2485 = vadd.f32 0.0, %v2484
      %v2486 = vpop.f32.mrb[0].mxu0
      %2487 = vmatprep.mubr.f32.mxu0 0.0
      %2488 = vmatmul.mubr.f32.gmra.mrb[0].mxu0 %v2338
      %v2489 = vpop.f32.mrb[0].mxu0
      %v2490 = vadd.f32 0.0, %v2489
      %v2491 = vpop.f32.mrb[0].mxu0
      %2492 = vmatprep.mubr.f32.mxu0 0.0
      %2493 = vmatmul.mubr.f32.gmra.mrb[0].mxu0 %v2339
      %v2494 = vpop.f32.mrb[0].mxu0
      %v2495 = vadd.f32 0.0, %v2494
      %v2496 = vpop.f32.mrb[0].mxu0
      %2497 = vmatprep.mubr.f32.mxu0 0.0
      %2498 = vmatmul.mubr.f32.gmra.mrb[0].mxu0 %v2340
      %v2499 = vpop.f32.mrb[0].mxu0
      %v2500 = vadd.f32 0.0, %v2499
      %v2501 = vpop.f32.mrb[0].mxu0
      %2502 = vmatprep.mubr.f32.mxu0 0.0
      %2503 = vmatmul.mubr.f32.gmra.mrb[0].mxu0 %v2341
      %v2504 = vpop.f32.mrb[0].mxu0
      %v2505 = vadd.f32 0.0, %v2504
      %v2506 = vpop.f32.mrb[0].mxu0
      %2507 = vmatprep.mubr.f32.mxu0 0.0
      %2508 = vmatmul.mubr.f32.gmra.mrb[0].mxu0 %v2342
      %v2509 = vpop.f32.mrb[0].mxu0
      %v2510 = vadd.f32 0.0, %v2509
      %v2511 = vpop.f32.mrb[0].mxu0
      %2512 = vmatprep.mubr.f32.mxu0 0.0
      %2513 = vmatmul.mubr.f32.gmra.mrb[0].mxu0 %v2343
      %v2514 = vpop.f32.mrb[0].mxu0
      %v2515 = vadd.f32 0.0, %v2514
      %v2516 = vpop.f32.mrb[0].mxu0
      %2517 = vmatprep.mubr.f32.mxu0 0.0
      %2518 = vmatmul.mubr.f32.gmra.mrb[0].mxu0 %v2344
      %v2519 = vpop.f32.mrb[0].mxu0
      %v2520 = vadd.f32 0.0, %v2519
      %v2521 = vpop.f32.mrb[0].mxu0
      %2522 = vmatprep.mubr.f32.mxu0 0.0
      %2523 = vmatmul.mubr.f32.gmra.mrb[0].mxu0 %v2345
      %v2524 = vpop.f32.mrb[0].mxu0
      %v2525 = vadd.f32 0.0, %v2524
      %v2526 = vpop.f32.mrb[0].mxu0
      %2527 = vmatprep.mubr.f32.mxu0 0.0
      %2528 = vmatmul.mubr.f32.gmra.mrb[0].mxu0 %v2346
      %v2529 = vpop.f32.mrb[0].mxu0
      %v2530 = vadd.f32 0.0, %v2529
      %v2531 = vpop.f32.mrb[0].mxu0
      %2532 = vmatprep.mubr.f32.mxu0 0.0
      %2533 = vmatmul.mubr.f32.gmra.mrb[0].mxu0 %v2347
      %v2534 = vpop.f32.mrb[0].mxu0
      %v2535 = vadd.f32 0.0, %v2534
      %v2536 = vpop.f32.mrb[0].mxu0
      %2537 = vmatprep.mubr.f32.mxu0 0.0
      %2538 = vmatmul.mubr.f32.gmra.mrb[0].mxu0 %v2348
      %v2539 = vpop.f32.mrb[0].mxu0
      %v2540 = vadd.f32 0.0, %v2539
      %v2541 = vpop.f32.mrb[0].mxu0
      %2542 = vmatprep.mubr.f32.mxu0 0.0
      %2543 = vmatmul.mubr.f32.gmra.mrb[0].mxu0 %v2349
      %v2544 = vpop.f32.mrb[0].mxu0
      %v2545 = vadd.f32 0.0, %v2544
      %v2546 = vpop.f32.mrb[0].mxu0
      %2547 = vmatprep.mubr.f32.mxu0 0.0
      %2548 = vmatmul.mubr.f32.gmra.mrb[0].mxu0 %v2350
      %v2549 = vpop.f32.mrb[0].mxu0
      %v2550 = vadd.f32 0.0, %v2549
      %v2551 = vpop.f32.mrb[0].mxu0
      %2552 = vmatprep.mubr.f32.mxu0 0.0
      %2553 = vmatmul.mubr.f32.gmra.mrb[0].mxu0 %v2351
      %v2554 = vpop.f32.mrb[0].mxu0
      %v2555 = vadd.f32 0.0, %v2554
      %v2556 = vpop.f32.mrb[0].mxu0
      %2557 = vmatprep.mubr.f32.mxu0 0.0
      %2558 = vmatmul.mubr.f32.gmra.mrb[0].mxu0 %v2352
      %v2559 = vpop.f32.mrb[0].mxu0
      %v2560 = vadd.f32 0.0, %v2559
      %v2561 = vpop.f32.mrb[0].mxu0
      %2562 = vmatprep.mubr.f32.mxu0 0.0
      %2563 = vmatmul.mubr.f32.gmra.mrb[0].mxu0 %v2353
      %v2564 = vpop.f32.mrb[0].mxu0
      %v2565 = vadd.f32 0.0, %v2564
      %v2566 = vpop.f32.mrb[0].mxu0
      %2567 = vmatprep.mubr.f32.mxu0 0.0
      %2568 = vmatmul.mubr.f32.gmra.mrb[0].mxu0 %v2354
      %v2569 = vpop.f32.mrb[0].mxu0
      %v2570 = vadd.f32 0.0, %v2569
      %v2571 = vpop.f32.mrb[0].mxu0
      %2572 = vmatprep.mubr.f32.mxu0 0.0
      %2573 = vmatmul.mubr.f32.gmra.mrb[0].mxu0 %v2355
      %v2574 = vpop.f32.mrb[0].mxu0
      %v2575 = vadd.f32 0.0, %v2574
      %v2576 = vpop.f32.mrb[0].mxu0
      %2577 = vmatprep.mubr.f32.mxu0 0.0
      %2578 = vmatmul.mubr.f32.gmra.mrb[0].mxu0 %v2356
      %v2579 = vpop.f32.mrb[0].mxu0
      %v2580 = vadd.f32 0.0, %v2579
      %v2581 = vpop.f32.mrb[0].mxu0
      %2582 = vmatprep.mubr.f32.mxu0 0.0
      %2583 = vmatmul.mubr.f32.gmra.mrb[0].mxu0 %v2357
      %v2584 = vpop.f32.mrb[0].mxu0
      %v2585 = vadd.f32 0.0, %v2584
      %v2586 = vpop.f32.mrb[0].mxu0
      %2587 = vmatprep.mubr.f32.mxu0 0.0
      %2588 = vmatmul.mubr.f32.gmra.mrb[0].mxu0 %v2358
      %v2589 = vpop.f32.mrb[0].mxu0
      %v2590 = vadd.f32 0.0, %v2589
      %v2591 = vpop.f32.mrb[0].mxu0
      %2592 = vmatprep.mubr.f32.mxu0 0.0
      %2593 = vmatmul.mubr.f32.gmra.mrb[0].mxu0 %v2359
      %v2594 = vpop.f32.mrb[0].mxu0
      %v2595 = vadd.f32 0.0, %v2594
      %v2596 = vpop.f32.mrb[0].mxu0
      %2597 = vmatprep.mubr.f32.mxu0 0.0
      %2598 = vmatmul.mubr.f32.gmra.mrb[0].mxu0 %v2360
      %v2599 = vpop.f32.mrb[0].mxu0
      %v2600 = vadd.f32 0.0, %v2599
      %v2601 = vpop.f32.mrb[0].mxu0
      %2602 = vdwg.mxu0
      %v2603 = vadd.f32 %v2297, %v2445
      %v2604 = vadd.f32 %v2298, %v2450
      %v2605 = vadd.f32 %v2299, %v2455
      %v2606 = vadd.f32 %v2300, %v2460
      %v2607 = vadd.f32 %v2301, %v2465
      %v2608 = vadd.f32 %v2302, %v2470
      %v2609 = vadd.f32 %v2303, %v2475
      %v2610 = vadd.f32 %v2304, %v2480
      %v2611 = vadd.f32 %v2305, %v2485
      %v2612 = vadd.f32 %v2306, %v2490
      %v2613 = vadd.f32 %v2307, %v2495
      %v2614 = vadd.f32 %v2308, %v2500
      %v2615 = vadd.f32 %v2309, %v2505
      %v2616 = vadd.f32 %v2310, %v2510
      %v2617 = vadd.f32 %v2311, %v2515
      %v2618 = vadd.f32 %v2312, %v2520
      %v2619 = vadd.f32 %v2313, %v2525
      %v2620 = vadd.f32 %v2314, %v2530
      %v2621 = vadd.f32 %v2315, %v2535
      %v2622 = vadd.f32 %v2316, %v2540
      %v2623 = vadd.f32 %v2317, %v2545
      %v2624 = vadd.f32 %v2318, %v2550
      %v2625 = vadd.f32 %v2319, %v2555
      %v2626 = vadd.f32 %v2320, %v2560
      %v2627 = vadd.f32 %v2321, %v2565
      %v2628 = vadd.f32 %v2322, %v2570
      %v2629 = vadd.f32 %v2323, %v2575
      %v2630 = vadd.f32 %v2324, %v2580
      %v2631 = vadd.f32 %v2325, %v2585
      %v2632 = vadd.f32 %v2326, %v2590
      %v2633 = vadd.f32 %v2327, %v2595
      %v2634 = vadd.f32 %v2328, %v2600
      %v2635 = vld [vmem:[%s2022 + $0x2] sm:$0xff]
      %v2636 = vld [vmem:[%s2022 + $0xa] sm:$0xff]
      %v2637 = vld [vmem:[%s2022 + $0x1a] sm:$0xff]
      %v2638 = vld [vmem:[%s2022 + $0x22] sm:$0xff]
      %v2639 = vld [vmem:[%s2022 + $0x32] sm:$0xff]
      %v2640 = vld [vmem:[%s2022 + $0x3a] sm:$0xff]
      %v2641 = vld [vmem:[%s2022 + $0x4a] sm:$0xff]
      %v2642 = vld [vmem:[%s2022 + $0x52] sm:$0xff]
      %v2643 = vld [vmem:[%s2022 + $0x62] sm:$0xff]
      %v2644 = vld [vmem:[%s2022 + $0x6a] sm:$0xff]
      %v2645 = vld [vmem:[%s2022 + $0x7a] sm:$0xff]
      %v2646 = vld [vmem:[%s2022 + $0x82] sm:$0xff]
      %v2647 = vld [vmem:[%s2022 + $0x92] sm:$0xff]
      %v2648 = vld [vmem:[%s2022 + $0x9a] sm:$0xff]
      %v2649 = vld [vmem:[%s2022 + $0xaa] sm:$0xff]
      %v2650 = vld [vmem:[%s2022 + $0xb2] sm:$0xff]
      %v2651 = vld [vmem:[%s2022 + $0xc2] sm:$0xff]
      %v2652 = vld [vmem:[%s2022 + $0xca] sm:$0xff]
      %v2653 = vld [vmem:[%s2022 + $0xda] sm:$0xff]
      %v2654 = vld [vmem:[%s2022 + $0xe2] sm:$0xff]
      %v2655 = vld [vmem:[%s2022 + $0xf2] sm:$0xff]
      %v2656 = vld [vmem:[%s2022 + $0xfa] sm:$0xff]
      %v2657 = vld [vmem:[%s2022 + $0x10a] sm:$0xff]
      %v2658 = vld [vmem:[%s2022 + $0x112] sm:$0xff]
      %v2659 = vld [vmem:[%s2022 + $0x122] sm:$0xff]
      %v2660 = vld [vmem:[%s2022 + $0x12a] sm:$0xff]
      %v2661 = vld [vmem:[%s2022 + $0x13a] sm:$0xff]
      %v2662 = vld [vmem:[%s2022 + $0x142] sm:$0xff]
      %v2663 = vld [vmem:[%s2022 + $0x152] sm:$0xff]
      %v2664 = vld [vmem:[%s2022 + $0x15a] sm:$0xff]
      %v2665 = vld [vmem:[%s2022 + $0x16a] sm:$0xff]
      %v2666 = vld [vmem:[%s2022 + $0x172] sm:$0xff]
      %s2667 = scalar_lea.vmem %s1, 1024
      %v2668 = vld [vmem:[%s2667] sm:$0xff]
      %v2669 = vld [vmem:[%s2667 + $0x8] sm:$0xff]
      %v2670 = vld [vmem:[%s2667 + $0x10] sm:$0xff]
      %v2671 = vld [vmem:[%s2667 + $0x18] sm:$0xff]
      %v2672 = vld [vmem:[%s2667 + $0x20] sm:$0xff]
      %v2673 = vld [vmem:[%s2667 + $0x28] sm:$0xff]
      %v2674 = vld [vmem:[%s2667 + $0x30] sm:$0xff]
      %v2675 = vld [vmem:[%s2667 + $0x38] sm:$0xff]
      %v2676 = vld [vmem:[%s2667 + $0x40] sm:$0xff]
      %v2677 = vld [vmem:[%s2667 + $0x48] sm:$0xff]
      %v2678 = vld [vmem:[%s2667 + $0x50] sm:$0xff]
      %v2679 = vld [vmem:[%s2667 + $0x58] sm:$0xff]
      %v2680 = vld [vmem:[%s2667 + $0x60] sm:$0xff]
      %v2681 = vld [vmem:[%s2667 + $0x68] sm:$0xff]
      %v2682 = vld [vmem:[%s2667 + $0x70] sm:$0xff]
      %v2683 = vld [vmem:[%s2667 + $0x78] sm:$0xff]
      %2684 = vmatprep.subr.mxu0 0.0
      %2685 = vmatpush1.msra.mxu0 %v2668
      %2686 = vmatprep.subr.mxu0 0.0
      %2687 = vmatpush1.msra.mxu0 %v2669
      %2688 = vmatprep.subr.mxu0 0.0
      %2689 = vmatpush1.msra.mxu0 %v2670
      %2690 = vmatprep.subr.mxu0 0.0
      %2691 = vmatpush1.msra.mxu0 %v2671
      %2692 = vmatprep.subr.mxu0 0.0
      %2693 = vmatpush1.msra.mxu0 %v2672
      %2694 = vmatprep.subr.mxu0 0.0
      %2695 = vmatpush1.msra.mxu0 %v2673
      %2696 = vmatprep.subr.mxu0 0.0
      %2697 = vmatpush1.msra.mxu0 %v2674
      %2698 = vmatprep.subr.mxu0 0.0
      %2699 = vmatpush1.msra.mxu0 %v2675
      %2700 = vmatprep.subr.mxu0 0.0
      %2701 = vmatpush1.msra.mxu0 %v2676
      %2702 = vmatprep.subr.mxu0 0.0
      %2703 = vmatpush1.msra.mxu0 %v2677
      %2704 = vmatprep.subr.mxu0 0.0
      %2705 = vmatpush1.msra.mxu0 %v2678
      %2706 = vmatprep.subr.mxu0 0.0
      %2707 = vmatpush1.msra.mxu0 %v2679
      %2708 = vmatprep.subr.mxu0 0.0
      %2709 = vmatpush1.msra.mxu0 %v2680
      %2710 = vmatprep.subr.mxu0 0.0
      %2711 = vmatpush1.msra.mxu0 %v2681
      %2712 = vmatprep.subr.mxu0 0.0
      %2713 = vmatpush1.msra.mxu0 %v2682
      %2714 = vmatprep.subr.mxu0 0.0
      %2715 = vmatpush1.msra.mxu0 %v2683
      %2716 = vmatprep.subr.mxu0 0.0
      %2717 = vmatpush1.msra.mxu0 0.0
      %2718 = vmatprep.subr.mxu0 0.0
      %2719 = vmatpush1.msra.mxu0 0.0
      %2720 = vmatprep.subr.mxu0 0.0
      %2721 = vmatpush1.msra.mxu0 0.0
      %2722 = vmatprep.subr.mxu0 0.0
      %2723 = vmatpush1.msra.mxu0 0.0
      %2724 = vmatprep.subr.mxu0 0.0
      %2725 = vmatpush1.msra.mxu0 0.0
      %2726 = vmatprep.subr.mxu0 0.0
      %2727 = vmatpush1.msra.mxu0 0.0
      %2728 = vmatprep.subr.mxu0 0.0
      %2729 = vmatpush1.msra.mxu0 0.0
      %2730 = vmatprep.subr.mxu0 0.0
      %2731 = vmatpush1.msra.mxu0 0.0
      %2732 = vmatprep.subr.mxu0 0.0
      %2733 = vmatpush1.msra.mxu0 0.0
      %2734 = vmatprep.subr.mxu0 0.0
      %2735 = vmatpush1.msra.mxu0 0.0
      %2736 = vmatprep.subr.mxu0 0.0
      %2737 = vmatpush1.msra.mxu0 0.0
      %2738 = vmatprep.subr.mxu0 0.0
      %2739 = vmatpush1.msra.mxu0 0.0
      %2740 = vmatprep.subr.mxu0 0.0
      %2741 = vmatpush1.msra.mxu0 0.0
      %2742 = vmatprep.subr.mxu0 0.0
      %2743 = vmatpush1.msra.mxu0 0.0
      %2744 = vmatprep.subr.mxu0 0.0
      %2745 = vmatpush1.msra.mxu0 0.0
      %2746 = vmatprep.subr.mxu0 0.0
      %2747 = vmatpush1.msra.mxu0 0.0
      %2748 = vmatprep.mubr.f32.mxu0 0.0
      %2749 = vmatmul.mubr.f32.gmra.mrb[0].mxu0 %v2635
      %v2750 = vpop.f32.mrb[0].mxu0
      %v2751 = vadd.f32 0.0, %v2750
      %v2752 = vpop.f32.mrb[0].mxu0
      %2753 = vmatprep.mubr.f32.mxu0 0.0
      %2754 = vmatmul.mubr.f32.gmra.mrb[0].mxu0 %v2636
      %v2755 = vpop.f32.mrb[0].mxu0
      %v2756 = vadd.f32 0.0, %v2755
      %v2757 = vpop.f32.mrb[0].mxu0
      %2758 = vmatprep.mubr.f32.mxu0 0.0
      %2759 = vmatmul.mubr.f32.gmra.mrb[0].mxu0 %v2637
      %v2760 = vpop.f32.mrb[0].mxu0
      %v2761 = vadd.f32 0.0, %v2760
      %v2762 = vpop.f32.mrb[0].mxu0
      %2763 = vmatprep.mubr.f32.mxu0 0.0
      %2764 = vmatmul.mubr.f32.gmra.mrb[0].mxu0 %v2638
      %v2765 = vpop.f32.mrb[0].mxu0
      %v2766 = vadd.f32 0.0, %v2765
      %v2767 = vpop.f32.mrb[0].mxu0
      %2768 = vmatprep.mubr.f32.mxu0 0.0
      %2769 = vmatmul.mubr.f32.gmra.mrb[0].mxu0 %v2639
      %v2770 = vpop.f32.mrb[0].mxu0
      %v2771 = vadd.f32 0.0, %v2770
      %v2772 = vpop.f32.mrb[0].mxu0
      %2773 = vmatprep.mubr.f32.mxu0 0.0
      %2774 = vmatmul.mubr.f32.gmra.mrb[0].mxu0 %v2640
      %v2775 = vpop.f32.mrb[0].mxu0
      %v2776 = vadd.f32 0.0, %v2775
      %v2777 = vpop.f32.mrb[0].mxu0
      %2778 = vmatprep.mubr.f32.mxu0 0.0
      %2779 = vmatmul.mubr.f32.gmra.mrb[0].mxu0 %v2641
      %v2780 = vpop.f32.mrb[0].mxu0
      %v2781 = vadd.f32 0.0, %v2780
      %v2782 = vpop.f32.mrb[0].mxu0
      %2783 = vmatprep.mubr.f32.mxu0 0.0
      %2784 = vmatmul.mubr.f32.gmra.mrb[0].mxu0 %v2642
      %v2785 = vpop.f32.mrb[0].mxu0
      %v2786 = vadd.f32 0.0, %v2785
      %v2787 = vpop.f32.mrb[0].mxu0
      %2788 = vmatprep.mubr.f32.mxu0 0.0
      %2789 = vmatmul.mubr.f32.gmra.mrb[0].mxu0 %v2643
      %v2790 = vpop.f32.mrb[0].mxu0
      %v2791 = vadd.f32 0.0, %v2790
      %v2792 = vpop.f32.mrb[0].mxu0
      %2793 = vmatprep.mubr.f32.mxu0 0.0
      %2794 = vmatmul.mubr.f32.gmra.mrb[0].mxu0 %v2644
      %v2795 = vpop.f32.mrb[0].mxu0
      %v2796 = vadd.f32 0.0, %v2795
      %v2797 = vpop.f32.mrb[0].mxu0
      %2798 = vmatprep.mubr.f32.mxu0 0.0
      %2799 = vmatmul.mubr.f32.gmra.mrb[0].mxu0 %v2645
      %v2800 = vpop.f32.mrb[0].mxu0
      %v2801 = vadd.f32 0.0, %v2800
      %v2802 = vpop.f32.mrb[0].mxu0
      %2803 = vmatprep.mubr.f32.mxu0 0.0
      %2804 = vmatmul.mubr.f32.gmra.mrb[0].mxu0 %v2646
      %v2805 = vpop.f32.mrb[0].mxu0
      %v2806 = vadd.f32 0.0, %v2805
      %v2807 = vpop.f32.mrb[0].mxu0
      %2808 = vmatprep.mubr.f32.mxu0 0.0
      %2809 = vmatmul.mubr.f32.gmra.mrb[0].mxu0 %v2647
      %v2810 = vpop.f32.mrb[0].mxu0
      %v2811 = vadd.f32 0.0, %v2810
      %v2812 = vpop.f32.mrb[0].mxu0
      %2813 = vmatprep.mubr.f32.mxu0 0.0
      %2814 = vmatmul.mubr.f32.gmra.mrb[0].mxu0 %v2648
      %v2815 = vpop.f32.mrb[0].mxu0
      %v2816 = vadd.f32 0.0, %v2815
      %v2817 = vpop.f32.mrb[0].mxu0
      %2818 = vmatprep.mubr.f32.mxu0 0.0
      %2819 = vmatmul.mubr.f32.gmra.mrb[0].mxu0 %v2649
      %v2820 = vpop.f32.mrb[0].mxu0
      %v2821 = vadd.f32 0.0, %v2820
      %v2822 = vpop.f32.mrb[0].mxu0
      %2823 = vmatprep.mubr.f32.mxu0 0.0
      %2824 = vmatmul.mubr.f32.gmra.mrb[0].mxu0 %v2650
      %v2825 = vpop.f32.mrb[0].mxu0
      %v2826 = vadd.f32 0.0, %v2825
      %v2827 = vpop.f32.mrb[0].mxu0
      %2828 = vmatprep.mubr.f32.mxu0 0.0
      %2829 = vmatmul.mubr.f32.gmra.mrb[0].mxu0 %v2651
      %v2830 = vpop.f32.mrb[0].mxu0
      %v2831 = vadd.f32 0.0, %v2830
      %v2832 = vpop.f32.mrb[0].mxu0
      %2833 = vmatprep.mubr.f32.mxu0 0.0
      %2834 = vmatmul.mubr.f32.gmra.mrb[0].mxu0 %v2652
      %v2835 = vpop.f32.mrb[0].mxu0
      %v2836 = vadd.f32 0.0, %v2835
      %v2837 = vpop.f32.mrb[0].mxu0
      %2838 = vmatprep.mubr.f32.mxu0 0.0
      %2839 = vmatmul.mubr.f32.gmra.mrb[0].mxu0 %v2653
      %v2840 = vpop.f32.mrb[0].mxu0
      %v2841 = vadd.f32 0.0, %v2840
      %v2842 = vpop.f32.mrb[0].mxu0
      %2843 = vmatprep.mubr.f32.mxu0 0.0
      %2844 = vmatmul.mubr.f32.gmra.mrb[0].mxu0 %v2654
      %v2845 = vpop.f32.mrb[0].mxu0
      %v2846 = vadd.f32 0.0, %v2845
      %v2847 = vpop.f32.mrb[0].mxu0
      %2848 = vmatprep.mubr.f32.mxu0 0.0
      %2849 = vmatmul.mubr.f32.gmra.mrb[0].mxu0 %v2655
      %v2850 = vpop.f32.mrb[0].mxu0
      %v2851 = vadd.f32 0.0, %v2850
      %v2852 = vpop.f32.mrb[0].mxu0
      %2853 = vmatprep.mubr.f32.mxu0 0.0
      %2854 = vmatmul.mubr.f32.gmra.mrb[0].mxu0 %v2656
      %v2855 = vpop.f32.mrb[0].mxu0
      %v2856 = vadd.f32 0.0, %v2855
      %v2857 = vpop.f32.mrb[0].mxu0
      %2858 = vmatprep.mubr.f32.mxu0 0.0
      %2859 = vmatmul.mubr.f32.gmra.mrb[0].mxu0 %v2657
      %v2860 = vpop.f32.mrb[0].mxu0
      %v2861 = vadd.f32 0.0, %v2860
      %v2862 = vpop.f32.mrb[0].mxu0
      %2863 = vmatprep.mubr.f32.mxu0 0.0
      %2864 = vmatmul.mubr.f32.gmra.mrb[0].mxu0 %v2658
      %v2865 = vpop.f32.mrb[0].mxu0
      %v2866 = vadd.f32 0.0, %v2865
      %v2867 = vpop.f32.mrb[0].mxu0
      %2868 = vmatprep.mubr.f32.mxu0 0.0
      %2869 = vmatmul.mubr.f32.gmra.mrb[0].mxu0 %v2659
      %v2870 = vpop.f32.mrb[0].mxu0
      %v2871 = vadd.f32 0.0, %v2870
      %v2872 = vpop.f32.mrb[0].mxu0
      %2873 = vmatprep.mubr.f32.mxu0 0.0
      %2874 = vmatmul.mubr.f32.gmra.mrb[0].mxu0 %v2660
      %v2875 = vpop.f32.mrb[0].mxu0
      %v2876 = vadd.f32 0.0, %v2875
      %v2877 = vpop.f32.mrb[0].mxu0
      %2878 = vmatprep.mubr.f32.mxu0 0.0
      %2879 = vmatmul.mubr.f32.gmra.mrb[0].mxu0 %v2661
      %v2880 = vpop.f32.mrb[0].mxu0
      %v2881 = vadd.f32 0.0, %v2880
      %v2882 = vpop.f32.mrb[0].mxu0
      %2883 = vmatprep.mubr.f32.mxu0 0.0
      %2884 = vmatmul.mubr.f32.gmra.mrb[0].mxu0 %v2662
      %v2885 = vpop.f32.mrb[0].mxu0
      %v2886 = vadd.f32 0.0, %v2885
      %v2887 = vpop.f32.mrb[0].mxu0
      %2888 = vmatprep.mubr.f32.mxu0 0.0
      %2889 = vmatmul.mubr.f32.gmra.mrb[0].mxu0 %v2663
      %v2890 = vpop.f32.mrb[0].mxu0
      %v2891 = vadd.f32 0.0, %v2890
      %v2892 = vpop.f32.mrb[0].mxu0
      %2893 = vmatprep.mubr.f32.mxu0 0.0
      %2894 = vmatmul.mubr.f32.gmra.mrb[0].mxu0 %v2664
      %v2895 = vpop.f32.mrb[0].mxu0
      %v2896 = vadd.f32 0.0, %v2895
      %v2897 = vpop.f32.mrb[0].mxu0
      %2898 = vmatprep.mubr.f32.mxu0 0.0
      %2899 = vmatmul.mubr.f32.gmra.mrb[0].mxu0 %v2665
      %v2900 = vpop.f32.mrb[0].mxu0
      %v2901 = vadd.f32 0.0, %v2900
      %v2902 = vpop.f32.mrb[0].mxu0
      %2903 = vmatprep.mubr.f32.mxu0 0.0
      %2904 = vmatmul.mubr.f32.gmra.mrb[0].mxu0 %v2666
      %v2905 = vpop.f32.mrb[0].mxu0
      %v2906 = vadd.f32 0.0, %v2905
      %v2907 = vpop.f32.mrb[0].mxu0
      %2908 = vdwg.mxu0
      %v2909 = vadd.f32 %v2603, %v2751
      %v2910 = vadd.f32 %v2604, %v2756
      %v2911 = vadd.f32 %v2605, %v2761
      %v2912 = vadd.f32 %v2606, %v2766
      %v2913 = vadd.f32 %v2607, %v2771
      %v2914 = vadd.f32 %v2608, %v2776
      %v2915 = vadd.f32 %v2609, %v2781
      %v2916 = vadd.f32 %v2610, %v2786
      %v2917 = vadd.f32 %v2611, %v2791
      %v2918 = vadd.f32 %v2612, %v2796
      %v2919 = vadd.f32 %v2613, %v2801
      %v2920 = vadd.f32 %v2614, %v2806
      %v2921 = vadd.f32 %v2615, %v2811
      %v2922 = vadd.f32 %v2616, %v2816
      %v2923 = vadd.f32 %v2617, %v2821
      %v2924 = vadd.f32 %v2618, %v2826
      %v2925 = vadd.f32 %v2619, %v2831
      %v2926 = vadd.f32 %v2620, %v2836
      %v2927 = vadd.f32 %v2621, %v2841
      %v2928 = vadd.f32 %v2622, %v2846
      %v2929 = vadd.f32 %v2623, %v2851
      %v2930 = vadd.f32 %v2624, %v2856
      %v2931 = vadd.f32 %v2625, %v2861
      %v2932 = vadd.f32 %v2626, %v2866
      %v2933 = vadd.f32 %v2627, %v2871
      %v2934 = vadd.f32 %v2628, %v2876
      %v2935 = vadd.f32 %v2629, %v2881
      %v2936 = vadd.f32 %v2630, %v2886
      %v2937 = vadd.f32 %v2631, %v2891
      %v2938 = vadd.f32 %v2632, %v2896
      %v2939 = vadd.f32 %v2633, %v2901
      %v2940 = vadd.f32 %v2634, %v2906
      %v2941 = vmax.f32 %v2909, 0.0
      %v2942 = vmax.f32 %v2910, 0.0
      %v2943 = vmax.f32 %v2911, 0.0
      %v2944 = vmax.f32 %v2912, 0.0
      %v2945 = vmax.f32 %v2913, 0.0
      %v2946 = vmax.f32 %v2914, 0.0
      %v2947 = vmax.f32 %v2915, 0.0
      %v2948 = vmax.f32 %v2916, 0.0
      %v2949 = vmax.f32 %v2917, 0.0
      %v2950 = vmax.f32 %v2918, 0.0
      %v2951 = vmax.f32 %v2919, 0.0
      %v2952 = vmax.f32 %v2920, 0.0
      %v2953 = vmax.f32 %v2921, 0.0
      %v2954 = vmax.f32 %v2922, 0.0
      %v2955 = vmax.f32 %v2923, 0.0
      %v2956 = vmax.f32 %v2924, 0.0
      %v2957 = vmax.f32 %v2925, 0.0
      %v2958 = vmax.f32 %v2926, 0.0
      %v2959 = vmax.f32 %v2927, 0.0
      %v2960 = vmax.f32 %v2928, 0.0
      %v2961 = vmax.f32 %v2929, 0.0
      %v2962 = vmax.f32 %v2930, 0.0
      %v2963 = vmax.f32 %v2931, 0.0
      %v2964 = vmax.f32 %v2932, 0.0
      %v2965 = vmax.f32 %v2933, 0.0
      %v2966 = vmax.f32 %v2934, 0.0
      %v2967 = vmax.f32 %v2935, 0.0
      %v2968 = vmax.f32 %v2936, 0.0
      %v2969 = vmax.f32 %v2937, 0.0
      %v2970 = vmax.f32 %v2938, 0.0
      %v2971 = vmax.f32 %v2939, 0.0
      %v2972 = vmax.f32 %v2940, 0.0
      %v2973 = vadd.f32 %v2941, %v249
      %v2974 = vadd.f32 %v2942, %v249
      %v2975 = vadd.f32 %v2943, %v249
      %v2976 = vadd.f32 %v2944, %v249
      %v2977 = vadd.f32 %v2945, %v249
      %v2978 = vadd.f32 %v2946, %v249
      %v2979 = vadd.f32 %v2947, %v249
      %v2980 = vadd.f32 %v2948, %v249
      %v2981 = vadd.f32 %v2949, %v249
      %v2982 = vadd.f32 %v2950, %v249
      %v2983 = vadd.f32 %v2951, %v249
      %v2984 = vadd.f32 %v2952, %v249
      %v2985 = vadd.f32 %v2953, %v249
      %v2986 = vadd.f32 %v2954, %v249
      %v2987 = vadd.f32 %v2955, %v249
      %v2988 = vadd.f32 %v2956, %v249
      %v2989 = vadd.f32 %v2957, %v249
      %v2990 = vadd.f32 %v2958, %v249
      %v2991 = vadd.f32 %v2959, %v249
      %v2992 = vadd.f32 %v2960, %v249
      %v2993 = vadd.f32 %v2961, %v249
      %v2994 = vadd.f32 %v2962, %v249
      %v2995 = vadd.f32 %v2963, %v249
      %v2996 = vadd.f32 %v2964, %v249
      %v2997 = vadd.f32 %v2965, %v249
      %v2998 = vadd.f32 %v2966, %v249
      %v2999 = vadd.f32 %v2967, %v249
      %v3000 = vadd.f32 %v2968, %v249
      %v3001 = vadd.f32 %v2969, %v249
      %v3002 = vadd.f32 %v2970, %v249
      %v3003 = vadd.f32 %v2971, %v249
      %v3004 = vadd.f32 %v2972, %v249
      %s3005 = scalar_lea.vmem [#allocation2], 24
      %3006 = vst [vmem:[%s3005 + $0x1] sm:$0xff] %v2973
      %3007 = vst [vmem:[%s3005 + $0x9] sm:$0xff] %v2974
      %3008 = vst [vmem:[%s3005 + $0x19] sm:$0xff] %v2975
      %3009 = vst [vmem:[%s3005 + $0x21] sm:$0xff] %v2976
      %3010 = vst [vmem:[%s3005 + $0x31] sm:$0xff] %v2977
      %3011 = vst [vmem:[%s3005 + $0x39] sm:$0xff] %v2978
      %3012 = vst [vmem:[%s3005 + $0x49] sm:$0xff] %v2979
      %3013 = vst [vmem:[%s3005 + $0x51] sm:$0xff] %v2980
      %3014 = vst [vmem:[%s3005 + $0x61] sm:$0xff] %v2981
      %3015 = vst [vmem:[%s3005 + $0x69] sm:$0xff] %v2982
      %3016 = vst [vmem:[%s3005 + $0x79] sm:$0xff] %v2983
      %3017 = vst [vmem:[%s3005 + $0x81] sm:$0xff] %v2984
      %3018 = vst [vmem:[%s3005 + $0x91] sm:$0xff] %v2985
      %3019 = vst [vmem:[%s3005 + $0x99] sm:$0xff] %v2986
      %3020 = vst [vmem:[%s3005 + $0xa9] sm:$0xff] %v2987
      %3021 = vst [vmem:[%s3005 + $0xb1] sm:$0xff] %v2988
      %3022 = vst [vmem:[%s3005 + $0xc1] sm:$0xff] %v2989
      %3023 = vst [vmem:[%s3005 + $0xc9] sm:$0xff] %v2990
      %3024 = vst [vmem:[%s3005 + $0xd9] sm:$0xff] %v2991
      %3025 = vst [vmem:[%s3005 + $0xe1] sm:$0xff] %v2992
      %3026 = vst [vmem:[%s3005 + $0xf1] sm:$0xff] %v2993
      %3027 = vst [vmem:[%s3005 + $0xf9] sm:$0xff] %v2994
      %3028 = vst [vmem:[%s3005 + $0x109] sm:$0xff] %v2995
      %3029 = vst [vmem:[%s3005 + $0x111] sm:$0xff] %v2996
      %3030 = vst [vmem:[%s3005 + $0x121] sm:$0xff] %v2997
      %3031 = vst [vmem:[%s3005 + $0x129] sm:$0xff] %v2998
      %3032 = vst [vmem:[%s3005 + $0x139] sm:$0xff] %v2999
      %3033 = vst [vmem:[%s3005 + $0x141] sm:$0xff] %v3000
      %3034 = vst [vmem:[%s3005 + $0x151] sm:$0xff] %v3001
      %3035 = vst [vmem:[%s3005 + $0x159] sm:$0xff] %v3002
      %3036 = vst [vmem:[%s3005 + $0x169] sm:$0xff] %v3003
      %3037 = vst [vmem:[%s3005 + $0x171] sm:$0xff] %v3004
      %v3038 = vld [vmem:[#allocation2] sm:$0xff]
      %v3039 = vld [vmem:[#allocation2 + $0x8] sm:$0xff]
      %v3040 = vld [vmem:[#allocation2 + $0x18] sm:$0xff]
      %v3041 = vld [vmem:[#allocation2 + $0x20] sm:$0xff]
      %v3042 = vld [vmem:[#allocation2 + $0x30] sm:$0xff]
      %v3043 = vld [vmem:[#allocation2 + $0x38] sm:$0xff]
      %v3044 = vld [vmem:[#allocation2 + $0x48] sm:$0xff]
      %v3045 = vld [vmem:[#allocation2 + $0x50] sm:$0xff]
      %v3046 = vld [vmem:[#allocation2 + $0x60] sm:$0xff]
      %v3047 = vld [vmem:[#allocation2 + $0x68] sm:$0xff]
      %v3048 = vld [vmem:[#allocation2 + $0x78] sm:$0xff]
      %v3049 = vld [vmem:[#allocation2 + $0x80] sm:$0xff]
      %v3050 = vld [vmem:[#allocation2 + $0x90] sm:$0xff]
      %v3051 = vld [vmem:[#allocation2 + $0x98] sm:$0xff]
      %v3052 = vld [vmem:[#allocation2 + $0xa8] sm:$0xff]
      %v3053 = vld [vmem:[#allocation2 + $0xb0] sm:$0xff]
      %v3054 = vld [vmem:[#allocation2 + $0xc0] sm:$0xff]
      %v3055 = vld [vmem:[#allocation2 + $0xc8] sm:$0xff]
      %v3056 = vld [vmem:[#allocation2 + $0xd8] sm:$0xff]
      %v3057 = vld [vmem:[#allocation2 + $0xe0] sm:$0xff]
      %v3058 = vld [vmem:[#allocation2 + $0xf0] sm:$0xff]
      %v3059 = vld [vmem:[#allocation2 + $0xf8] sm:$0xff]
      %v3060 = vld [vmem:[#allocation2 + $0x108] sm:$0xff]
      %v3061 = vld [vmem:[#allocation2 + $0x110] sm:$0xff]
      %v3062 = vld [vmem:[#allocation2 + $0x120] sm:$0xff]
      %v3063 = vld [vmem:[#allocation2 + $0x128] sm:$0xff]
      %v3064 = vld [vmem:[#allocation2 + $0x138] sm:$0xff]
      %v3065 = vld [vmem:[#allocation2 + $0x140] sm:$0xff]
      %v3066 = vld [vmem:[#allocation2 + $0x150] sm:$0xff]
      %v3067 = vld [vmem:[#allocation2 + $0x158] sm:$0xff]
      %v3068 = vld [vmem:[#allocation2 + $0x168] sm:$0xff]
      %v3069 = vld [vmem:[#allocation2 + $0x170] sm:$0xff]
      %s3070 = scalar_lea.vmem %s1, 1152
      %v3071 = vld [vmem:[%s3070] sm:$0xff]
      %v3072 = vld [vmem:[%s3070 + $0x8] sm:$0xff]
      %v3073 = vld [vmem:[%s3070 + $0x10] sm:$0xff]
      %v3074 = vld [vmem:[%s3070 + $0x18] sm:$0xff]
      %v3075 = vld [vmem:[%s3070 + $0x20] sm:$0xff]
      %v3076 = vld [vmem:[%s3070 + $0x28] sm:$0xff]
      %v3077 = vld [vmem:[%s3070 + $0x30] sm:$0xff]
      %v3078 = vld [vmem:[%s3070 + $0x38] sm:$0xff]
      %v3079 = vld [vmem:[%s3070 + $0x40] sm:$0xff]
      %v3080 = vld [vmem:[%s3070 + $0x48] sm:$0xff]
      %v3081 = vld [vmem:[%s3070 + $0x50] sm:$0xff]
      %v3082 = vld [vmem:[%s3070 + $0x58] sm:$0xff]
      %v3083 = vld [vmem:[%s3070 + $0x60] sm:$0xff]
      %v3084 = vld [vmem:[%s3070 + $0x68] sm:$0xff]
      %v3085 = vld [vmem:[%s3070 + $0x70] sm:$0xff]
      %v3086 = vld [vmem:[%s3070 + $0x78] sm:$0xff]
      %v3087 = vld [vmem:[#allocation2 + $0x1] sm:$0xff]
      %v3088 = vld [vmem:[#allocation2 + $0x9] sm:$0xff]
      %v3089 = vld [vmem:[#allocation2 + $0x19] sm:$0xff]
      %v3090 = vld [vmem:[#allocation2 + $0x21] sm:$0xff]
      %v3091 = vld [vmem:[#allocation2 + $0x31] sm:$0xff]
      %v3092 = vld [vmem:[#allocation2 + $0x39] sm:$0xff]
      %v3093 = vld [vmem:[#allocation2 + $0x49] sm:$0xff]
      %v3094 = vld [vmem:[#allocation2 + $0x51] sm:$0xff]
      %v3095 = vld [vmem:[#allocation2 + $0x61] sm:$0xff]
      %v3096 = vld [vmem:[#allocation2 + $0x69] sm:$0xff]
      %v3097 = vld [vmem:[#allocation2 + $0x79] sm:$0xff]
      %v3098 = vld [vmem:[#allocation2 + $0x81] sm:$0xff]
      %v3099 = vld [vmem:[#allocation2 + $0x91] sm:$0xff]
      %v3100 = vld [vmem:[#allocation2 + $0x99] sm:$0xff]
      %v3101 = vld [vmem:[#allocation2 + $0xa9] sm:$0xff]
      %v3102 = vld [vmem:[#allocation2 + $0xb1] sm:$0xff]
      %v3103 = vld [vmem:[#allocation2 + $0xc1] sm:$0xff]
      %v3104 = vld [vmem:[#allocation2 + $0xc9] sm:$0xff]
      %v3105 = vld [vmem:[#allocation2 + $0xd9] sm:$0xff]
      %v3106 = vld [vmem:[#allocation2 + $0xe1] sm:$0xff]
      %v3107 = vld [vmem:[#allocation2 + $0xf1] sm:$0xff]
      %v3108 = vld [vmem:[#allocation2 + $0xf9] sm:$0xff]
      %v3109 = vld [vmem:[#allocation2 + $0x109] sm:$0xff]
      %v3110 = vld [vmem:[#allocation2 + $0x111] sm:$0xff]
      %v3111 = vld [vmem:[#allocation2 + $0x121] sm:$0xff]
      %v3112 = vld [vmem:[#allocation2 + $0x129] sm:$0xff]
      %v3113 = vld [vmem:[#allocation2 + $0x139] sm:$0xff]
      %v3114 = vld [vmem:[#allocation2 + $0x141] sm:$0xff]
      %v3115 = vld [vmem:[#allocation2 + $0x151] sm:$0xff]
      %v3116 = vld [vmem:[#allocation2 + $0x159] sm:$0xff]
      %v3117 = vld [vmem:[#allocation2 + $0x169] sm:$0xff]
      %v3118 = vld [vmem:[#allocation2 + $0x171] sm:$0xff]
      %s3119 = scalar_lea.vmem %s1, 1280
      %v3120 = vld [vmem:[%s3119] sm:$0xff]
      %v3121 = vld [vmem:[%s3119 + $0x8] sm:$0xff]
      %v3122 = vld [vmem:[%s3119 + $0x10] sm:$0xff]
      %v3123 = vld [vmem:[%s3119 + $0x18] sm:$0xff]
      %v3124 = vld [vmem:[%s3119 + $0x20] sm:$0xff]
      %v3125 = vld [vmem:[%s3119 + $0x28] sm:$0xff]
      %v3126 = vld [vmem:[%s3119 + $0x30] sm:$0xff]
      %v3127 = vld [vmem:[%s3119 + $0x38] sm:$0xff]
      %v3128 = vld [vmem:[%s3119 + $0x40] sm:$0xff]
      %v3129 = vld [vmem:[%s3119 + $0x48] sm:$0xff]
      %v3130 = vld [vmem:[%s3119 + $0x50] sm:$0xff]
      %v3131 = vld [vmem:[%s3119 + $0x58] sm:$0xff]
      %v3132 = vld [vmem:[%s3119 + $0x60] sm:$0xff]
      %v3133 = vld [vmem:[%s3119 + $0x68] sm:$0xff]
      %v3134 = vld [vmem:[%s3119 + $0x70] sm:$0xff]
      %v3135 = vld [vmem:[%s3119 + $0x78] sm:$0xff]
      %3136 = vmatprep.subr.mxu0 0.0
      %3137 = vmatpush1.msra.mxu0 %v3120
      %3138 = vmatprep.subr.mxu0 0.0
      %3139 = vmatpush1.msra.mxu0 %v3121
      %3140 = vmatprep.subr.mxu0 0.0
      %3141 = vmatpush1.msra.mxu0 %v3122
      %3142 = vmatprep.subr.mxu0 0.0
      %3143 = vmatpush1.msra.mxu0 %v3123
      %3144 = vmatprep.subr.mxu0 0.0
      %3145 = vmatpush1.msra.mxu0 %v3124
      %3146 = vmatprep.subr.mxu0 0.0
      %3147 = vmatpush1.msra.mxu0 %v3125
      %3148 = vmatprep.subr.mxu0 0.0
      %3149 = vmatpush1.msra.mxu0 %v3126
      %3150 = vmatprep.subr.mxu0 0.0
      %3151 = vmatpush1.msra.mxu0 %v3127
      %3152 = vmatprep.subr.mxu0 0.0
      %3153 = vmatpush1.msra.mxu0 %v3128
      %3154 = vmatprep.subr.mxu0 0.0
      %3155 = vmatpush1.msra.mxu0 %v3129
      %3156 = vmatprep.subr.mxu0 0.0
      %3157 = vmatpush1.msra.mxu0 %v3130
      %3158 = vmatprep.subr.mxu0 0.0
      %3159 = vmatpush1.msra.mxu0 %v3131
      %3160 = vmatprep.subr.mxu0 0.0
      %3161 = vmatpush1.msra.mxu0 %v3132
      %3162 = vmatprep.subr.mxu0 0.0
      %3163 = vmatpush1.msra.mxu0 %v3133
      %3164 = vmatprep.subr.mxu0 0.0
      %3165 = vmatpush1.msra.mxu0 %v3134
      %3166 = vmatprep.subr.mxu0 0.0
      %3167 = vmatpush1.msra.mxu0 %v3135
      %3168 = vmatprep.subr.mxu0 0.0
      %3169 = vmatpush1.msra.mxu0 0.0
      %3170 = vmatprep.subr.mxu0 0.0
      %3171 = vmatpush1.msra.mxu0 0.0
      %3172 = vmatprep.subr.mxu0 0.0
      %3173 = vmatpush1.msra.mxu0 0.0
      %3174 = vmatprep.subr.mxu0 0.0
      %3175 = vmatpush1.msra.mxu0 0.0
      %3176 = vmatprep.subr.mxu0 0.0
      %3177 = vmatpush1.msra.mxu0 0.0
      %3178 = vmatprep.subr.mxu0 0.0
      %3179 = vmatpush1.msra.mxu0 0.0
      %3180 = vmatprep.subr.mxu0 0.0
      %3181 = vmatpush1.msra.mxu0 0.0
      %3182 = vmatprep.subr.mxu0 0.0
      %3183 = vmatpush1.msra.mxu0 0.0
      %3184 = vmatprep.subr.mxu0 0.0
      %3185 = vmatpush1.msra.mxu0 0.0
      %3186 = vmatprep.subr.mxu0 0.0
      %3187 = vmatpush1.msra.mxu0 0.0
      %3188 = vmatprep.subr.mxu0 0.0
      %3189 = vmatpush1.msra.mxu0 0.0
      %3190 = vmatprep.subr.mxu0 0.0
      %3191 = vmatpush1.msra.mxu0 0.0
      %3192 = vmatprep.subr.mxu0 0.0
      %3193 = vmatpush1.msra.mxu0 0.0
      %3194 = vmatprep.subr.mxu0 0.0
      %3195 = vmatpush1.msra.mxu0 0.0
      %3196 = vmatprep.subr.mxu0 0.0
      %3197 = vmatpush1.msra.mxu0 0.0
      %3198 = vmatprep.subr.mxu0 0.0
      %3199 = vmatpush1.msra.mxu0 0.0
      %3200 = vmatprep.mubr.f32.mxu0 0.0
      %3201 = vmatmul.mubr.f32.gmra.mrb[0].mxu0 %v3087
      %v3202 = vpop.f32.mrb[0].mxu0
      %v3203 = vadd.f32 0.0, %v3202
      %v3204 = vpop.f32.mrb[0].mxu0
      %3205 = vmatprep.mubr.f32.mxu0 0.0
      %3206 = vmatmul.mubr.f32.gmra.mrb[0].mxu0 %v3088
      %v3207 = vpop.f32.mrb[0].mxu0
      %v3208 = vadd.f32 0.0, %v3207
      %v3209 = vpop.f32.mrb[0].mxu0
      %3210 = vmatprep.mubr.f32.mxu0 0.0
      %3211 = vmatmul.mubr.f32.gmra.mrb[0].mxu0 %v3089
      %v3212 = vpop.f32.mrb[0].mxu0
      %v3213 = vadd.f32 0.0, %v3212
      %v3214 = vpop.f32.mrb[0].mxu0
      %3215 = vmatprep.mubr.f32.mxu0 0.0
      %3216 = vmatmul.mubr.f32.gmra.mrb[0].mxu0 %v3090
      %v3217 = vpop.f32.mrb[0].mxu0
      %v3218 = vadd.f32 0.0, %v3217
      %v3219 = vpop.f32.mrb[0].mxu0
      %3220 = vmatprep.mubr.f32.mxu0 0.0
      %3221 = vmatmul.mubr.f32.gmra.mrb[0].mxu0 %v3091
      %v3222 = vpop.f32.mrb[0].mxu0
      %v3223 = vadd.f32 0.0, %v3222
      %v3224 = vpop.f32.mrb[0].mxu0
      %3225 = vmatprep.mubr.f32.mxu0 0.0
      %3226 = vmatmul.mubr.f32.gmra.mrb[0].mxu0 %v3092
      %v3227 = vpop.f32.mrb[0].mxu0
      %v3228 = vadd.f32 0.0, %v3227
      %v3229 = vpop.f32.mrb[0].mxu0
      %3230 = vmatprep.mubr.f32.mxu0 0.0
      %3231 = vmatmul.mubr.f32.gmra.mrb[0].mxu0 %v3093
      %v3232 = vpop.f32.mrb[0].mxu0
      %v3233 = vadd.f32 0.0, %v3232
      %v3234 = vpop.f32.mrb[0].mxu0
      %3235 = vmatprep.mubr.f32.mxu0 0.0
      %3236 = vmatmul.mubr.f32.gmra.mrb[0].mxu0 %v3094
      %v3237 = vpop.f32.mrb[0].mxu0
      %v3238 = vadd.f32 0.0, %v3237
      %v3239 = vpop.f32.mrb[0].mxu0
      %3240 = vmatprep.mubr.f32.mxu0 0.0
      %3241 = vmatmul.mubr.f32.gmra.mrb[0].mxu0 %v3095
      %v3242 = vpop.f32.mrb[0].mxu0
      %v3243 = vadd.f32 0.0, %v3242
      %v3244 = vpop.f32.mrb[0].mxu0
      %3245 = vmatprep.mubr.f32.mxu0 0.0
      %3246 = vmatmul.mubr.f32.gmra.mrb[0].mxu0 %v3096
      %v3247 = vpop.f32.mrb[0].mxu0
      %v3248 = vadd.f32 0.0, %v3247
      %v3249 = vpop.f32.mrb[0].mxu0
      %3250 = vmatprep.mubr.f32.mxu0 0.0
      %3251 = vmatmul.mubr.f32.gmra.mrb[0].mxu0 %v3097
      %v3252 = vpop.f32.mrb[0].mxu0
      %v3253 = vadd.f32 0.0, %v3252
      %v3254 = vpop.f32.mrb[0].mxu0
      %3255 = vmatprep.mubr.f32.mxu0 0.0
      %3256 = vmatmul.mubr.f32.gmra.mrb[0].mxu0 %v3098
      %v3257 = vpop.f32.mrb[0].mxu0
      %v3258 = vadd.f32 0.0, %v3257
      %v3259 = vpop.f32.mrb[0].mxu0
      %3260 = vmatprep.mubr.f32.mxu0 0.0
      %3261 = vmatmul.mubr.f32.gmra.mrb[0].mxu0 %v3099
      %v3262 = vpop.f32.mrb[0].mxu0
      %v3263 = vadd.f32 0.0, %v3262
      %v3264 = vpop.f32.mrb[0].mxu0
      %3265 = vmatprep.mubr.f32.mxu0 0.0
      %3266 = vmatmul.mubr.f32.gmra.mrb[0].mxu0 %v3100
      %v3267 = vpop.f32.mrb[0].mxu0
      %v3268 = vadd.f32 0.0, %v3267
      %v3269 = vpop.f32.mrb[0].mxu0
      %3270 = vmatprep.mubr.f32.mxu0 0.0
      %3271 = vmatmul.mubr.f32.gmra.mrb[0].mxu0 %v3101
      %v3272 = vpop.f32.mrb[0].mxu0
      %v3273 = vadd.f32 0.0, %v3272
      %v3274 = vpop.f32.mrb[0].mxu0
      %3275 = vmatprep.mubr.f32.mxu0 0.0
      %3276 = vmatmul.mubr.f32.gmra.mrb[0].mxu0 %v3102
      %v3277 = vpop.f32.mrb[0].mxu0
      %v3278 = vadd.f32 0.0, %v3277
      %v3279 = vpop.f32.mrb[0].mxu0
      %3280 = vmatprep.mubr.f32.mxu0 0.0
      %3281 = vmatmul.mubr.f32.gmra.mrb[0].mxu0 %v3103
      %v3282 = vpop.f32.mrb[0].mxu0
      %v3283 = vadd.f32 0.0, %v3282
      %v3284 = vpop.f32.mrb[0].mxu0
      %3285 = vmatprep.mubr.f32.mxu0 0.0
      %3286 = vmatmul.mubr.f32.gmra.mrb[0].mxu0 %v3104
      %v3287 = vpop.f32.mrb[0].mxu0
      %v3288 = vadd.f32 0.0, %v3287
      %v3289 = vpop.f32.mrb[0].mxu0
      %3290 = vmatprep.mubr.f32.mxu0 0.0
      %3291 = vmatmul.mubr.f32.gmra.mrb[0].mxu0 %v3105
      %v3292 = vpop.f32.mrb[0].mxu0
      %v3293 = vadd.f32 0.0, %v3292
      %v3294 = vpop.f32.mrb[0].mxu0
      %3295 = vmatprep.mubr.f32.mxu0 0.0
      %3296 = vmatmul.mubr.f32.gmra.mrb[0].mxu0 %v3106
      %v3297 = vpop.f32.mrb[0].mxu0
      %v3298 = vadd.f32 0.0, %v3297
      %v3299 = vpop.f32.mrb[0].mxu0
      %3300 = vmatprep.mubr.f32.mxu0 0.0
      %3301 = vmatmul.mubr.f32.gmra.mrb[0].mxu0 %v3107
      %v3302 = vpop.f32.mrb[0].mxu0
      %v3303 = vadd.f32 0.0, %v3302
      %v3304 = vpop.f32.mrb[0].mxu0
      %3305 = vmatprep.mubr.f32.mxu0 0.0
      %3306 = vmatmul.mubr.f32.gmra.mrb[0].mxu0 %v3108
      %v3307 = vpop.f32.mrb[0].mxu0
      %v3308 = vadd.f32 0.0, %v3307
      %v3309 = vpop.f32.mrb[0].mxu0
      %3310 = vmatprep.mubr.f32.mxu0 0.0
      %3311 = vmatmul.mubr.f32.gmra.mrb[0].mxu0 %v3109
      %v3312 = vpop.f32.mrb[0].mxu0
      %v3313 = vadd.f32 0.0, %v3312
      %v3314 = vpop.f32.mrb[0].mxu0
      %3315 = vmatprep.mubr.f32.mxu0 0.0
      %3316 = vmatmul.mubr.f32.gmra.mrb[0].mxu0 %v3110
      %v3317 = vpop.f32.mrb[0].mxu0
      %v3318 = vadd.f32 0.0, %v3317
      %v3319 = vpop.f32.mrb[0].mxu0
      %3320 = vmatprep.mubr.f32.mxu0 0.0
      %3321 = vmatmul.mubr.f32.gmra.mrb[0].mxu0 %v3111
      %v3322 = vpop.f32.mrb[0].mxu0
      %v3323 = vadd.f32 0.0, %v3322
      %v3324 = vpop.f32.mrb[0].mxu0
      %3325 = vmatprep.mubr.f32.mxu0 0.0
      %3326 = vmatmul.mubr.f32.gmra.mrb[0].mxu0 %v3112
      %v3327 = vpop.f32.mrb[0].mxu0
      %v3328 = vadd.f32 0.0, %v3327
      %v3329 = vpop.f32.mrb[0].mxu0
      %3330 = vmatprep.mubr.f32.mxu0 0.0
      %3331 = vmatmul.mubr.f32.gmra.mrb[0].mxu0 %v3113
      %v3332 = vpop.f32.mrb[0].mxu0
      %v3333 = vadd.f32 0.0, %v3332
      %v3334 = vpop.f32.mrb[0].mxu0
      %3335 = vmatprep.mubr.f32.mxu0 0.0
      %3336 = vmatmul.mubr.f32.gmra.mrb[0].mxu0 %v3114
      %v3337 = vpop.f32.mrb[0].mxu0
      %v3338 = vadd.f32 0.0, %v3337
      %v3339 = vpop.f32.mrb[0].mxu0
      %3340 = vmatprep.mubr.f32.mxu0 0.0
      %3341 = vmatmul.mubr.f32.gmra.mrb[0].mxu0 %v3115
      %v3342 = vpop.f32.mrb[0].mxu0
      %v3343 = vadd.f32 0.0, %v3342
      %v3344 = vpop.f32.mrb[0].mxu0
      %3345 = vmatprep.mubr.f32.mxu0 0.0
      %3346 = vmatmul.mubr.f32.gmra.mrb[0].mxu0 %v3116
      %v3347 = vpop.f32.mrb[0].mxu0
      %v3348 = vadd.f32 0.0, %v3347
      %v3349 = vpop.f32.mrb[0].mxu0
      %3350 = vmatprep.mubr.f32.mxu0 0.0
      %3351 = vmatmul.mubr.f32.gmra.mrb[0].mxu0 %v3117
      %v3352 = vpop.f32.mrb[0].mxu0
      %v3353 = vadd.f32 0.0, %v3352
      %v3354 = vpop.f32.mrb[0].mxu0
      %3355 = vmatprep.mubr.f32.mxu0 0.0
      %3356 = vmatmul.mubr.f32.gmra.mrb[0].mxu0 %v3118
      %v3357 = vpop.f32.mrb[0].mxu0
      %v3358 = vadd.f32 0.0, %v3357
      %v3359 = vpop.f32.mrb[0].mxu0
      %3360 = vdwg.mxu0
      %3361 = vmatprep.subr.mxu0 0.0
      %3362 = vmatpush1.msra.mxu0 %v3071
      %3363 = vmatprep.subr.mxu0 0.0
      %3364 = vmatpush1.msra.mxu0 %v3072
      %3365 = vmatprep.subr.mxu0 0.0
      %3366 = vmatpush1.msra.mxu0 %v3073
      %3367 = vmatprep.subr.mxu0 0.0
      %3368 = vmatpush1.msra.mxu0 %v3074
      %3369 = vmatprep.subr.mxu0 0.0
      %3370 = vmatpush1.msra.mxu0 %v3075
      %3371 = vmatprep.subr.mxu0 0.0
      %3372 = vmatpush1.msra.mxu0 %v3076
      %3373 = vmatprep.subr.mxu0 0.0
      %3374 = vmatpush1.msra.mxu0 %v3077
      %3375 = vmatprep.subr.mxu0 0.0
      %3376 = vmatpush1.msra.mxu0 %v3078
      %3377 = vmatprep.subr.mxu0 0.0
      %3378 = vmatpush1.msra.mxu0 %v3079
      %3379 = vmatprep.subr.mxu0 0.0
      %3380 = vmatpush1.msra.mxu0 %v3080
      %3381 = vmatprep.subr.mxu0 0.0
      %3382 = vmatpush1.msra.mxu0 %v3081
      %3383 = vmatprep.subr.mxu0 0.0
      %3384 = vmatpush1.msra.mxu0 %v3082
      %3385 = vmatprep.subr.mxu0 0.0
      %3386 = vmatpush1.msra.mxu0 %v3083
      %3387 = vmatprep.subr.mxu0 0.0
      %3388 = vmatpush1.msra.mxu0 %v3084
      %3389 = vmatprep.subr.mxu0 0.0
      %3390 = vmatpush1.msra.mxu0 %v3085
      %3391 = vmatprep.subr.mxu0 0.0
      %3392 = vmatpush1.msra.mxu0 %v3086
      %3393 = vmatprep.subr.mxu0 0.0
      %3394 = vmatpush1.msra.mxu0 0.0
      %3395 = vmatprep.subr.mxu0 0.0
      %3396 = vmatpush1.msra.mxu0 0.0
      %3397 = vmatprep.subr.mxu0 0.0
      %3398 = vmatpush1.msra.mxu0 0.0
      %3399 = vmatprep.subr.mxu0 0.0
      %3400 = vmatpush1.msra.mxu0 0.0
      %3401 = vmatprep.subr.mxu0 0.0
      %3402 = vmatpush1.msra.mxu0 0.0
      %3403 = vmatprep.subr.mxu0 0.0
      %3404 = vmatpush1.msra.mxu0 0.0
      %3405 = vmatprep.subr.mxu0 0.0
      %3406 = vmatpush1.msra.mxu0 0.0
      %3407 = vmatprep.subr.mxu0 0.0
      %3408 = vmatpush1.msra.mxu0 0.0
      %3409 = vmatprep.subr.mxu0 0.0
      %3410 = vmatpush1.msra.mxu0 0.0
      %3411 = vmatprep.subr.mxu0 0.0
      %3412 = vmatpush1.msra.mxu0 0.0
      %3413 = vmatprep.subr.mxu0 0.0
      %3414 = vmatpush1.msra.mxu0 0.0
      %3415 = vmatprep.subr.mxu0 0.0
      %3416 = vmatpush1.msra.mxu0 0.0
      %3417 = vmatprep.subr.mxu0 0.0
      %3418 = vmatpush1.msra.mxu0 0.0
      %3419 = vmatprep.subr.mxu0 0.0
      %3420 = vmatpush1.msra.mxu0 0.0
      %3421 = vmatprep.subr.mxu0 0.0
      %3422 = vmatpush1.msra.mxu0 0.0
      %3423 = vmatprep.subr.mxu0 0.0
      %3424 = vmatpush1.msra.mxu0 0.0
      %3425 = vmatprep.mubr.f32.mxu0 0.0
      %3426 = vmatmul.mubr.f32.gmra.mrb[0].mxu0 %v3038
      %v3427 = vpop.f32.mrb[0].mxu0
      %v3428 = vadd.f32 %v3203, %v3427
      %v3429 = vpop.f32.mrb[0].mxu0
      %3430 = vmatprep.mubr.f32.mxu0 0.0
      %3431 = vmatmul.mubr.f32.gmra.mrb[0].mxu0 %v3039
      %v3432 = vpop.f32.mrb[0].mxu0
      %v3433 = vadd.f32 %v3208, %v3432
      %v3434 = vpop.f32.mrb[0].mxu0
      %3435 = vmatprep.mubr.f32.mxu0 0.0
      %3436 = vmatmul.mubr.f32.gmra.mrb[0].mxu0 %v3040
      %v3437 = vpop.f32.mrb[0].mxu0
      %v3438 = vadd.f32 %v3213, %v3437
      %v3439 = vpop.f32.mrb[0].mxu0
      %3440 = vmatprep.mubr.f32.mxu0 0.0
      %3441 = vmatmul.mubr.f32.gmra.mrb[0].mxu0 %v3041
      %v3442 = vpop.f32.mrb[0].mxu0
      %v3443 = vadd.f32 %v3218, %v3442
      %v3444 = vpop.f32.mrb[0].mxu0
      %3445 = vmatprep.mubr.f32.mxu0 0.0
      %3446 = vmatmul.mubr.f32.gmra.mrb[0].mxu0 %v3042
      %v3447 = vpop.f32.mrb[0].mxu0
      %v3448 = vadd.f32 %v3223, %v3447
      %v3449 = vpop.f32.mrb[0].mxu0
      %3450 = vmatprep.mubr.f32.mxu0 0.0
      %3451 = vmatmul.mubr.f32.gmra.mrb[0].mxu0 %v3043
      %v3452 = vpop.f32.mrb[0].mxu0
      %v3453 = vadd.f32 %v3228, %v3452
      %v3454 = vpop.f32.mrb[0].mxu0
      %3455 = vmatprep.mubr.f32.mxu0 0.0
      %3456 = vmatmul.mubr.f32.gmra.mrb[0].mxu0 %v3044
      %v3457 = vpop.f32.mrb[0].mxu0
      %v3458 = vadd.f32 %v3233, %v3457
      %v3459 = vpop.f32.mrb[0].mxu0
      %3460 = vmatprep.mubr.f32.mxu0 0.0
      %3461 = vmatmul.mubr.f32.gmra.mrb[0].mxu0 %v3045
      %v3462 = vpop.f32.mrb[0].mxu0
      %v3463 = vadd.f32 %v3238, %v3462
      %v3464 = vpop.f32.mrb[0].mxu0
      %3465 = vmatprep.mubr.f32.mxu0 0.0
      %3466 = vmatmul.mubr.f32.gmra.mrb[0].mxu0 %v3046
      %v3467 = vpop.f32.mrb[0].mxu0
      %v3468 = vadd.f32 %v3243, %v3467
      %v3469 = vpop.f32.mrb[0].mxu0
      %3470 = vmatprep.mubr.f32.mxu0 0.0
      %3471 = vmatmul.mubr.f32.gmra.mrb[0].mxu0 %v3047
      %v3472 = vpop.f32.mrb[0].mxu0
      %v3473 = vadd.f32 %v3248, %v3472
      %v3474 = vpop.f32.mrb[0].mxu0
      %3475 = vmatprep.mubr.f32.mxu0 0.0
      %3476 = vmatmul.mubr.f32.gmra.mrb[0].mxu0 %v3048
      %v3477 = vpop.f32.mrb[0].mxu0
      %v3478 = vadd.f32 %v3253, %v3477
      %v3479 = vpop.f32.mrb[0].mxu0
      %3480 = vmatprep.mubr.f32.mxu0 0.0
      %3481 = vmatmul.mubr.f32.gmra.mrb[0].mxu0 %v3049
      %v3482 = vpop.f32.mrb[0].mxu0
      %v3483 = vadd.f32 %v3258, %v3482
      %v3484 = vpop.f32.mrb[0].mxu0
      %3485 = vmatprep.mubr.f32.mxu0 0.0
      %3486 = vmatmul.mubr.f32.gmra.mrb[0].mxu0 %v3050
      %v3487 = vpop.f32.mrb[0].mxu0
      %v3488 = vadd.f32 %v3263, %v3487
      %v3489 = vpop.f32.mrb[0].mxu0
      %3490 = vmatprep.mubr.f32.mxu0 0.0
      %3491 = vmatmul.mubr.f32.gmra.mrb[0].mxu0 %v3051
      %v3492 = vpop.f32.mrb[0].mxu0
      %v3493 = vadd.f32 %v3268, %v3492
      %v3494 = vpop.f32.mrb[0].mxu0
      %3495 = vmatprep.mubr.f32.mxu0 0.0
      %3496 = vmatmul.mubr.f32.gmra.mrb[0].mxu0 %v3052
      %v3497 = vpop.f32.mrb[0].mxu0
      %v3498 = vadd.f32 %v3273, %v3497
      %v3499 = vpop.f32.mrb[0].mxu0
      %3500 = vmatprep.mubr.f32.mxu0 0.0
      %3501 = vmatmul.mubr.f32.gmra.mrb[0].mxu0 %v3053
      %v3502 = vpop.f32.mrb[0].mxu0
      %v3503 = vadd.f32 %v3278, %v3502
      %v3504 = vpop.f32.mrb[0].mxu0
      %3505 = vmatprep.mubr.f32.mxu0 0.0
      %3506 = vmatmul.mubr.f32.gmra.mrb[0].mxu0 %v3054
      %v3507 = vpop.f32.mrb[0].mxu0
      %v3508 = vadd.f32 %v3283, %v3507
      %v3509 = vpop.f32.mrb[0].mxu0
      %3510 = vmatprep.mubr.f32.mxu0 0.0
      %3511 = vmatmul.mubr.f32.gmra.mrb[0].mxu0 %v3055
      %v3512 = vpop.f32.mrb[0].mxu0
      %v3513 = vadd.f32 %v3288, %v3512
      %v3514 = vpop.f32.mrb[0].mxu0
      %3515 = vmatprep.mubr.f32.mxu0 0.0
      %3516 = vmatmul.mubr.f32.gmra.mrb[0].mxu0 %v3056
      %v3517 = vpop.f32.mrb[0].mxu0
      %v3518 = vadd.f32 %v3293, %v3517
      %v3519 = vpop.f32.mrb[0].mxu0
      %3520 = vmatprep.mubr.f32.mxu0 0.0
      %3521 = vmatmul.mubr.f32.gmra.mrb[0].mxu0 %v3057
      %v3522 = vpop.f32.mrb[0].mxu0
      %v3523 = vadd.f32 %v3298, %v3522
      %v3524 = vpop.f32.mrb[0].mxu0
      %3525 = vmatprep.mubr.f32.mxu0 0.0
      %3526 = vmatmul.mubr.f32.gmra.mrb[0].mxu0 %v3058
      %v3527 = vpop.f32.mrb[0].mxu0
      %v3528 = vadd.f32 %v3303, %v3527
      %v3529 = vpop.f32.mrb[0].mxu0
      %3530 = vmatprep.mubr.f32.mxu0 0.0
      %3531 = vmatmul.mubr.f32.gmra.mrb[0].mxu0 %v3059
      %v3532 = vpop.f32.mrb[0].mxu0
      %v3533 = vadd.f32 %v3308, %v3532
      %v3534 = vpop.f32.mrb[0].mxu0
      %3535 = vmatprep.mubr.f32.mxu0 0.0
      %3536 = vmatmul.mubr.f32.gmra.mrb[0].mxu0 %v3060
      %v3537 = vpop.f32.mrb[0].mxu0
      %v3538 = vadd.f32 %v3313, %v3537
      %v3539 = vpop.f32.mrb[0].mxu0
      %3540 = vmatprep.mubr.f32.mxu0 0.0
      %3541 = vmatmul.mubr.f32.gmra.mrb[0].mxu0 %v3061
      %v3542 = vpop.f32.mrb[0].mxu0
      %v3543 = vadd.f32 %v3318, %v3542
      %v3544 = vpop.f32.mrb[0].mxu0
      %3545 = vmatprep.mubr.f32.mxu0 0.0
      %3546 = vmatmul.mubr.f32.gmra.mrb[0].mxu0 %v3062
      %v3547 = vpop.f32.mrb[0].mxu0
      %v3548 = vadd.f32 %v3323, %v3547
      %v3549 = vpop.f32.mrb[0].mxu0
      %3550 = vmatprep.mubr.f32.mxu0 0.0
      %3551 = vmatmul.mubr.f32.gmra.mrb[0].mxu0 %v3063
      %v3552 = vpop.f32.mrb[0].mxu0
      %v3553 = vadd.f32 %v3328, %v3552
      %v3554 = vpop.f32.mrb[0].mxu0
      %3555 = vmatprep.mubr.f32.mxu0 0.0
      %3556 = vmatmul.mubr.f32.gmra.mrb[0].mxu0 %v3064
      %v3557 = vpop.f32.mrb[0].mxu0
      %v3558 = vadd.f32 %v3333, %v3557
      %v3559 = vpop.f32.mrb[0].mxu0
      %3560 = vmatprep.mubr.f32.mxu0 0.0
      %3561 = vmatmul.mubr.f32.gmra.mrb[0].mxu0 %v3065
      %v3562 = vpop.f32.mrb[0].mxu0
      %v3563 = vadd.f32 %v3338, %v3562
      %v3564 = vpop.f32.mrb[0].mxu0
      %3565 = vmatprep.mubr.f32.mxu0 0.0
      %3566 = vmatmul.mubr.f32.gmra.mrb[0].mxu0 %v3066
      %v3567 = vpop.f32.mrb[0].mxu0
      %v3568 = vadd.f32 %v3343, %v3567
      %v3569 = vpop.f32.mrb[0].mxu0
      %3570 = vmatprep.mubr.f32.mxu0 0.0
      %3571 = vmatmul.mubr.f32.gmra.mrb[0].mxu0 %v3067
      %v3572 = vpop.f32.mrb[0].mxu0
      %v3573 = vadd.f32 %v3348, %v3572
      %v3574 = vpop.f32.mrb[0].mxu0
      %3575 = vmatprep.mubr.f32.mxu0 0.0
      %3576 = vmatmul.mubr.f32.gmra.mrb[0].mxu0 %v3068
      %v3577 = vpop.f32.mrb[0].mxu0
      %v3578 = vadd.f32 %v3353, %v3577
      %v3579 = vpop.f32.mrb[0].mxu0
      %3580 = vmatprep.mubr.f32.mxu0 0.0
      %3581 = vmatmul.mubr.f32.gmra.mrb[0].mxu0 %v3069
      %v3582 = vpop.f32.mrb[0].mxu0
      %v3583 = vadd.f32 %v3358, %v3582
      %v3584 = vpop.f32.mrb[0].mxu0
      %3585 = vdwg.mxu0
      %v3586 = vld [vmem:[#allocation2 + $0x2] sm:$0xff]
      %v3587 = vld [vmem:[#allocation2 + $0xa] sm:$0xff]
      %v3588 = vld [vmem:[#allocation2 + $0x1a] sm:$0xff]
      %v3589 = vld [vmem:[#allocation2 + $0x22] sm:$0xff]
      %v3590 = vld [vmem:[#allocation2 + $0x32] sm:$0xff]
      %v3591 = vld [vmem:[#allocation2 + $0x3a] sm:$0xff]
      %v3592 = vld [vmem:[#allocation2 + $0x4a] sm:$0xff]
      %v3593 = vld [vmem:[#allocation2 + $0x52] sm:$0xff]
      %v3594 = vld [vmem:[#allocation2 + $0x62] sm:$0xff]
      %v3595 = vld [vmem:[#allocation2 + $0x6a] sm:$0xff]
      %v3596 = vld [vmem:[#allocation2 + $0x7a] sm:$0xff]
      %v3597 = vld [vmem:[#allocation2 + $0x82] sm:$0xff]
      %v3598 = vld [vmem:[#allocation2 + $0x92] sm:$0xff]
      %v3599 = vld [vmem:[#allocation2 + $0x9a] sm:$0xff]
      %v3600 = vld [vmem:[#allocation2 + $0xaa] sm:$0xff]
      %v3601 = vld [vmem:[#allocation2 + $0xb2] sm:$0xff]
      %v3602 = vld [vmem:[#allocation2 + $0xc2] sm:$0xff]
      %v3603 = vld [vmem:[#allocation2 + $0xca] sm:$0xff]
      %v3604 = vld [vmem:[#allocation2 + $0xda] sm:$0xff]
      %v3605 = vld [vmem:[#allocation2 + $0xe2] sm:$0xff]
      %v3606 = vld [vmem:[#allocation2 + $0xf2] sm:$0xff]
      %v3607 = vld [vmem:[#allocation2 + $0xfa] sm:$0xff]
      %v3608 = vld [vmem:[#allocation2 + $0x10a] sm:$0xff]
      %v3609 = vld [vmem:[#allocation2 + $0x112] sm:$0xff]
      %v3610 = vld [vmem:[#allocation2 + $0x122] sm:$0xff]
      %v3611 = vld [vmem:[#allocation2 + $0x12a] sm:$0xff]
      %v3612 = vld [vmem:[#allocation2 + $0x13a] sm:$0xff]
      %v3613 = vld [vmem:[#allocation2 + $0x142] sm:$0xff]
      %v3614 = vld [vmem:[#allocation2 + $0x152] sm:$0xff]
      %v3615 = vld [vmem:[#allocation2 + $0x15a] sm:$0xff]
      %v3616 = vld [vmem:[#allocation2 + $0x16a] sm:$0xff]
      %v3617 = vld [vmem:[#allocation2 + $0x172] sm:$0xff]
      %s3618 = scalar_lea.vmem %s1, 1408
      %v3619 = vld [vmem:[%s3618] sm:$0xff]
      %v3620 = vld [vmem:[%s3618 + $0x8] sm:$0xff]
      %v3621 = vld [vmem:[%s3618 + $0x10] sm:$0xff]
      %v3622 = vld [vmem:[%s3618 + $0x18] sm:$0xff]
      %v3623 = vld [vmem:[%s3618 + $0x20] sm:$0xff]
      %v3624 = vld [vmem:[%s3618 + $0x28] sm:$0xff]
      %v3625 = vld [vmem:[%s3618 + $0x30] sm:$0xff]
      %v3626 = vld [vmem:[%s3618 + $0x38] sm:$0xff]
      %v3627 = vld [vmem:[%s3618 + $0x40] sm:$0xff]
      %v3628 = vld [vmem:[%s3618 + $0x48] sm:$0xff]
      %v3629 = vld [vmem:[%s3618 + $0x50] sm:$0xff]
      %v3630 = vld [vmem:[%s3618 + $0x58] sm:$0xff]
      %v3631 = vld [vmem:[%s3618 + $0x60] sm:$0xff]
      %v3632 = vld [vmem:[%s3618 + $0x68] sm:$0xff]
      %v3633 = vld [vmem:[%s3618 + $0x70] sm:$0xff]
      %v3634 = vld [vmem:[%s3618 + $0x78] sm:$0xff]
      %3635 = vmatprep.subr.mxu0 0.0
      %3636 = vmatpush1.msra.mxu0 %v3619
      %3637 = vmatprep.subr.mxu0 0.0
      %3638 = vmatpush1.msra.mxu0 %v3620
      %3639 = vmatprep.subr.mxu0 0.0
      %3640 = vmatpush1.msra.mxu0 %v3621
      %3641 = vmatprep.subr.mxu0 0.0
      %3642 = vmatpush1.msra.mxu0 %v3622
      %3643 = vmatprep.subr.mxu0 0.0
      %3644 = vmatpush1.msra.mxu0 %v3623
      %3645 = vmatprep.subr.mxu0 0.0
      %3646 = vmatpush1.msra.mxu0 %v3624
      %3647 = vmatprep.subr.mxu0 0.0
      %3648 = vmatpush1.msra.mxu0 %v3625
      %3649 = vmatprep.subr.mxu0 0.0
      %3650 = vmatpush1.msra.mxu0 %v3626
      %3651 = vmatprep.subr.mxu0 0.0
      %3652 = vmatpush1.msra.mxu0 %v3627
      %3653 = vmatprep.subr.mxu0 0.0
      %3654 = vmatpush1.msra.mxu0 %v3628
      %3655 = vmatprep.subr.mxu0 0.0
      %3656 = vmatpush1.msra.mxu0 %v3629
      %3657 = vmatprep.subr.mxu0 0.0
      %3658 = vmatpush1.msra.mxu0 %v3630
      %3659 = vmatprep.subr.mxu0 0.0
      %3660 = vmatpush1.msra.mxu0 %v3631
      %3661 = vmatprep.subr.mxu0 0.0
      %3662 = vmatpush1.msra.mxu0 %v3632
      %3663 = vmatprep.subr.mxu0 0.0
      %3664 = vmatpush1.msra.mxu0 %v3633
      %3665 = vmatprep.subr.mxu0 0.0
      %3666 = vmatpush1.msra.mxu0 %v3634
      %3667 = vmatprep.subr.mxu0 0.0
      %3668 = vmatpush1.msra.mxu0 0.0
      %3669 = vmatprep.subr.mxu0 0.0
      %3670 = vmatpush1.msra.mxu0 0.0
      %3671 = vmatprep.subr.mxu0 0.0
      %3672 = vmatpush1.msra.mxu0 0.0
      %3673 = vmatprep.subr.mxu0 0.0
      %3674 = vmatpush1.msra.mxu0 0.0
      %3675 = vmatprep.subr.mxu0 0.0
      %3676 = vmatpush1.msra.mxu0 0.0
      %3677 = vmatprep.subr.mxu0 0.0
      %3678 = vmatpush1.msra.mxu0 0.0
      %3679 = vmatprep.subr.mxu0 0.0
      %3680 = vmatpush1.msra.mxu0 0.0
      %3681 = vmatprep.subr.mxu0 0.0
      %3682 = vmatpush1.msra.mxu0 0.0
      %3683 = vmatprep.subr.mxu0 0.0
      %3684 = vmatpush1.msra.mxu0 0.0
      %3685 = vmatprep.subr.mxu0 0.0
      %3686 = vmatpush1.msra.mxu0 0.0
      %3687 = vmatprep.subr.mxu0 0.0
      %3688 = vmatpush1.msra.mxu0 0.0
      %3689 = vmatprep.subr.mxu0 0.0
      %3690 = vmatpush1.msra.mxu0 0.0
      %3691 = vmatprep.subr.mxu0 0.0
      %3692 = vmatpush1.msra.mxu0 0.0
      %3693 = vmatprep.subr.mxu0 0.0
      %3694 = vmatpush1.msra.mxu0 0.0
      %3695 = vmatprep.subr.mxu0 0.0
      %3696 = vmatpush1.msra.mxu0 0.0
      %3697 = vmatprep.subr.mxu0 0.0
      %3698 = vmatpush1.msra.mxu0 0.0
      %3699 = vmatprep.mubr.f32.mxu0 0.0
      %3700 = vmatmul.mubr.f32.gmra.mrb[0].mxu0 %v3586
      %v3701 = vpop.f32.mrb[0].mxu0
      %v3702 = vadd.f32 0.0, %v3701
      %v3703 = vpop.f32.mrb[0].mxu0
      %3704 = vmatprep.mubr.f32.mxu0 0.0
      %3705 = vmatmul.mubr.f32.gmra.mrb[0].mxu0 %v3587
      %v3706 = vpop.f32.mrb[0].mxu0
      %v3707 = vadd.f32 0.0, %v3706
      %v3708 = vpop.f32.mrb[0].mxu0
      %3709 = vmatprep.mubr.f32.mxu0 0.0
      %3710 = vmatmul.mubr.f32.gmra.mrb[0].mxu0 %v3588
      %v3711 = vpop.f32.mrb[0].mxu0
      %v3712 = vadd.f32 0.0, %v3711
      %v3713 = vpop.f32.mrb[0].mxu0
      %3714 = vmatprep.mubr.f32.mxu0 0.0
      %3715 = vmatmul.mubr.f32.gmra.mrb[0].mxu0 %v3589
      %v3716 = vpop.f32.mrb[0].mxu0
      %v3717 = vadd.f32 0.0, %v3716
      %v3718 = vpop.f32.mrb[0].mxu0
      %3719 = vmatprep.mubr.f32.mxu0 0.0
      %3720 = vmatmul.mubr.f32.gmra.mrb[0].mxu0 %v3590
      %v3721 = vpop.f32.mrb[0].mxu0
      %v3722 = vadd.f32 0.0, %v3721
      %v3723 = vpop.f32.mrb[0].mxu0
      %3724 = vmatprep.mubr.f32.mxu0 0.0
      %3725 = vmatmul.mubr.f32.gmra.mrb[0].mxu0 %v3591
      %v3726 = vpop.f32.mrb[0].mxu0
      %v3727 = vadd.f32 0.0, %v3726
      %v3728 = vpop.f32.mrb[0].mxu0
      %3729 = vmatprep.mubr.f32.mxu0 0.0
      %3730 = vmatmul.mubr.f32.gmra.mrb[0].mxu0 %v3592
      %v3731 = vpop.f32.mrb[0].mxu0
      %v3732 = vadd.f32 0.0, %v3731
      %v3733 = vpop.f32.mrb[0].mxu0
      %3734 = vmatprep.mubr.f32.mxu0 0.0
      %3735 = vmatmul.mubr.f32.gmra.mrb[0].mxu0 %v3593
      %v3736 = vpop.f32.mrb[0].mxu0
      %v3737 = vadd.f32 0.0, %v3736
      %v3738 = vpop.f32.mrb[0].mxu0
      %3739 = vmatprep.mubr.f32.mxu0 0.0
      %3740 = vmatmul.mubr.f32.gmra.mrb[0].mxu0 %v3594
      %v3741 = vpop.f32.mrb[0].mxu0
      %v3742 = vadd.f32 0.0, %v3741
      %v3743 = vpop.f32.mrb[0].mxu0
      %3744 = vmatprep.mubr.f32.mxu0 0.0
      %3745 = vmatmul.mubr.f32.gmra.mrb[0].mxu0 %v3595
      %v3746 = vpop.f32.mrb[0].mxu0
      %v3747 = vadd.f32 0.0, %v3746
      %v3748 = vpop.f32.mrb[0].mxu0
      %3749 = vmatprep.mubr.f32.mxu0 0.0
      %3750 = vmatmul.mubr.f32.gmra.mrb[0].mxu0 %v3596
      %v3751 = vpop.f32.mrb[0].mxu0
      %v3752 = vadd.f32 0.0, %v3751
      %v3753 = vpop.f32.mrb[0].mxu0
      %3754 = vmatprep.mubr.f32.mxu0 0.0
      %3755 = vmatmul.mubr.f32.gmra.mrb[0].mxu0 %v3597
      %v3756 = vpop.f32.mrb[0].mxu0
      %v3757 = vadd.f32 0.0, %v3756
      %v3758 = vpop.f32.mrb[0].mxu0
      %3759 = vmatprep.mubr.f32.mxu0 0.0
      %3760 = vmatmul.mubr.f32.gmra.mrb[0].mxu0 %v3598
      %v3761 = vpop.f32.mrb[0].mxu0
      %v3762 = vadd.f32 0.0, %v3761
      %v3763 = vpop.f32.mrb[0].mxu0
      %3764 = vmatprep.mubr.f32.mxu0 0.0
      %3765 = vmatmul.mubr.f32.gmra.mrb[0].mxu0 %v3599
      %v3766 = vpop.f32.mrb[0].mxu0
      %v3767 = vadd.f32 0.0, %v3766
      %v3768 = vpop.f32.mrb[0].mxu0
      %3769 = vmatprep.mubr.f32.mxu0 0.0
      %3770 = vmatmul.mubr.f32.gmra.mrb[0].mxu0 %v3600
      %v3771 = vpop.f32.mrb[0].mxu0
      %v3772 = vadd.f32 0.0, %v3771
      %v3773 = vpop.f32.mrb[0].mxu0
      %3774 = vmatprep.mubr.f32.mxu0 0.0
      %3775 = vmatmul.mubr.f32.gmra.mrb[0].mxu0 %v3601
      %v3776 = vpop.f32.mrb[0].mxu0
      %v3777 = vadd.f32 0.0, %v3776
      %v3778 = vpop.f32.mrb[0].mxu0
      %3779 = vmatprep.mubr.f32.mxu0 0.0
      %3780 = vmatmul.mubr.f32.gmra.mrb[0].mxu0 %v3602
      %v3781 = vpop.f32.mrb[0].mxu0
      %v3782 = vadd.f32 0.0, %v3781
      %v3783 = vpop.f32.mrb[0].mxu0
      %3784 = vmatprep.mubr.f32.mxu0 0.0
      %3785 = vmatmul.mubr.f32.gmra.mrb[0].mxu0 %v3603
      %v3786 = vpop.f32.mrb[0].mxu0
      %v3787 = vadd.f32 0.0, %v3786
      %v3788 = vpop.f32.mrb[0].mxu0
      %3789 = vmatprep.mubr.f32.mxu0 0.0
      %3790 = vmatmul.mubr.f32.gmra.mrb[0].mxu0 %v3604
      %v3791 = vpop.f32.mrb[0].mxu0
      %v3792 = vadd.f32 0.0, %v3791
      %v3793 = vpop.f32.mrb[0].mxu0
      %3794 = vmatprep.mubr.f32.mxu0 0.0
      %3795 = vmatmul.mubr.f32.gmra.mrb[0].mxu0 %v3605
      %v3796 = vpop.f32.mrb[0].mxu0
      %v3797 = vadd.f32 0.0, %v3796
      %v3798 = vpop.f32.mrb[0].mxu0
      %3799 = vmatprep.mubr.f32.mxu0 0.0
      %3800 = vmatmul.mubr.f32.gmra.mrb[0].mxu0 %v3606
      %v3801 = vpop.f32.mrb[0].mxu0
      %v3802 = vadd.f32 0.0, %v3801
      %v3803 = vpop.f32.mrb[0].mxu0
      %3804 = vmatprep.mubr.f32.mxu0 0.0
      %3805 = vmatmul.mubr.f32.gmra.mrb[0].mxu0 %v3607
      %v3806 = vpop.f32.mrb[0].mxu0
      %v3807 = vadd.f32 0.0, %v3806
      %v3808 = vpop.f32.mrb[0].mxu0
      %3809 = vmatprep.mubr.f32.mxu0 0.0
      %3810 = vmatmul.mubr.f32.gmra.mrb[0].mxu0 %v3608
      %v3811 = vpop.f32.mrb[0].mxu0
      %v3812 = vadd.f32 0.0, %v3811
      %v3813 = vpop.f32.mrb[0].mxu0
      %3814 = vmatprep.mubr.f32.mxu0 0.0
      %3815 = vmatmul.mubr.f32.gmra.mrb[0].mxu0 %v3609
      %v3816 = vpop.f32.mrb[0].mxu0
      %v3817 = vadd.f32 0.0, %v3816
      %v3818 = vpop.f32.mrb[0].mxu0
      %3819 = vmatprep.mubr.f32.mxu0 0.0
      %3820 = vmatmul.mubr.f32.gmra.mrb[0].mxu0 %v3610
      %v3821 = vpop.f32.mrb[0].mxu0
      %v3822 = vadd.f32 0.0, %v3821
      %v3823 = vpop.f32.mrb[0].mxu0
      %3824 = vmatprep.mubr.f32.mxu0 0.0
      %3825 = vmatmul.mubr.f32.gmra.mrb[0].mxu0 %v3611
      %v3826 = vpop.f32.mrb[0].mxu0
      %v3827 = vadd.f32 0.0, %v3826
      %v3828 = vpop.f32.mrb[0].mxu0
      %3829 = vmatprep.mubr.f32.mxu0 0.0
      %3830 = vmatmul.mubr.f32.gmra.mrb[0].mxu0 %v3612
      %v3831 = vpop.f32.mrb[0].mxu0
      %v3832 = vadd.f32 0.0, %v3831
      %v3833 = vpop.f32.mrb[0].mxu0
      %3834 = vmatprep.mubr.f32.mxu0 0.0
      %3835 = vmatmul.mubr.f32.gmra.mrb[0].mxu0 %v3613
      %v3836 = vpop.f32.mrb[0].mxu0
      %v3837 = vadd.f32 0.0, %v3836
      %v3838 = vpop.f32.mrb[0].mxu0
      %3839 = vmatprep.mubr.f32.mxu0 0.0
      %3840 = vmatmul.mubr.f32.gmra.mrb[0].mxu0 %v3614
      %v3841 = vpop.f32.mrb[0].mxu0
      %v3842 = vadd.f32 0.0, %v3841
      %v3843 = vpop.f32.mrb[0].mxu0
      %3844 = vmatprep.mubr.f32.mxu0 0.0
      %3845 = vmatmul.mubr.f32.gmra.mrb[0].mxu0 %v3615
      %v3846 = vpop.f32.mrb[0].mxu0
      %v3847 = vadd.f32 0.0, %v3846
      %v3848 = vpop.f32.mrb[0].mxu0
      %3849 = vmatprep.mubr.f32.mxu0 0.0
      %3850 = vmatmul.mubr.f32.gmra.mrb[0].mxu0 %v3616
      %v3851 = vpop.f32.mrb[0].mxu0
      %v3852 = vadd.f32 0.0, %v3851
      %v3853 = vpop.f32.mrb[0].mxu0
      %3854 = vmatprep.mubr.f32.mxu0 0.0
      %3855 = vmatmul.mubr.f32.gmra.mrb[0].mxu0 %v3617
      %v3856 = vpop.f32.mrb[0].mxu0
      %v3857 = vadd.f32 0.0, %v3856
      %v3858 = vpop.f32.mrb[0].mxu0
      %3859 = vdwg.mxu0
      %v3860 = vadd.f32 %v3428, %v3702
      %v3861 = vadd.f32 %v3433, %v3707
      %v3862 = vadd.f32 %v3438, %v3712
      %v3863 = vadd.f32 %v3443, %v3717
      %v3864 = vadd.f32 %v3448, %v3722
      %v3865 = vadd.f32 %v3453, %v3727
      %v3866 = vadd.f32 %v3458, %v3732
      %v3867 = vadd.f32 %v3463, %v3737
      %v3868 = vadd.f32 %v3468, %v3742
      %v3869 = vadd.f32 %v3473, %v3747
      %v3870 = vadd.f32 %v3478, %v3752
      %v3871 = vadd.f32 %v3483, %v3757
      %v3872 = vadd.f32 %v3488, %v3762
      %v3873 = vadd.f32 %v3493, %v3767
      %v3874 = vadd.f32 %v3498, %v3772
      %v3875 = vadd.f32 %v3503, %v3777
      %v3876 = vadd.f32 %v3508, %v3782
      %v3877 = vadd.f32 %v3513, %v3787
      %v3878 = vadd.f32 %v3518, %v3792
      %v3879 = vadd.f32 %v3523, %v3797
      %v3880 = vadd.f32 %v3528, %v3802
      %v3881 = vadd.f32 %v3533, %v3807
      %v3882 = vadd.f32 %v3538, %v3812
      %v3883 = vadd.f32 %v3543, %v3817
      %v3884 = vadd.f32 %v3548, %v3822
      %v3885 = vadd.f32 %v3553, %v3827
      %v3886 = vadd.f32 %v3558, %v3832
      %v3887 = vadd.f32 %v3563, %v3837
      %v3888 = vadd.f32 %v3568, %v3842
      %v3889 = vadd.f32 %v3573, %v3847
      %v3890 = vadd.f32 %v3578, %v3852
      %v3891 = vadd.f32 %v3583, %v3857
      %v3892 = vld [vmem:[%s3005] sm:$0xff]
      %v3893 = vld [vmem:[%s3005 + $0x8] sm:$0xff]
      %v3894 = vld [vmem:[%s3005 + $0x18] sm:$0xff]
      %v3895 = vld [vmem:[%s3005 + $0x20] sm:$0xff]
      %v3896 = vld [vmem:[%s3005 + $0x30] sm:$0xff]
      %v3897 = vld [vmem:[%s3005 + $0x38] sm:$0xff]
      %v3898 = vld [vmem:[%s3005 + $0x48] sm:$0xff]
      %v3899 = vld [vmem:[%s3005 + $0x50] sm:$0xff]
      %v3900 = vld [vmem:[%s3005 + $0x60] sm:$0xff]
      %v3901 = vld [vmem:[%s3005 + $0x68] sm:$0xff]
      %v3902 = vld [vmem:[%s3005 + $0x78] sm:$0xff]
      %v3903 = vld [vmem:[%s3005 + $0x80] sm:$0xff]
      %v3904 = vld [vmem:[%s3005 + $0x90] sm:$0xff]
      %v3905 = vld [vmem:[%s3005 + $0x98] sm:$0xff]
      %v3906 = vld [vmem:[%s3005 + $0xa8] sm:$0xff]
      %v3907 = vld [vmem:[%s3005 + $0xb0] sm:$0xff]
      %v3908 = vld [vmem:[%s3005 + $0xc0] sm:$0xff]
      %v3909 = vld [vmem:[%s3005 + $0xc8] sm:$0xff]
      %v3910 = vld [vmem:[%s3005 + $0xd8] sm:$0xff]
      %v3911 = vld [vmem:[%s3005 + $0xe0] sm:$0xff]
      %v3912 = vld [vmem:[%s3005 + $0xf0] sm:$0xff]
      %v3913 = vld [vmem:[%s3005 + $0xf8] sm:$0xff]
      %v3914 = vld [vmem:[%s3005 + $0x108] sm:$0xff]
      %v3915 = vld [vmem:[%s3005 + $0x110] sm:$0xff]
      %v3916 = vld [vmem:[%s3005 + $0x120] sm:$0xff]
      %v3917 = vld [vmem:[%s3005 + $0x128] sm:$0xff]
      %v3918 = vld [vmem:[%s3005 + $0x138] sm:$0xff]
      %v3919 = vld [vmem:[%s3005 + $0x140] sm:$0xff]
      %v3920 = vld [vmem:[%s3005 + $0x150] sm:$0xff]
      %v3921 = vld [vmem:[%s3005 + $0x158] sm:$0xff]
      %v3922 = vld [vmem:[%s3005 + $0x168] sm:$0xff]
      %v3923 = vld [vmem:[%s3005 + $0x170] sm:$0xff]
      %s3924 = scalar_lea.vmem %s1, 1536
      %v3925 = vld [vmem:[%s3924] sm:$0xff]
      %v3926 = vld [vmem:[%s3924 + $0x8] sm:$0xff]
      %v3927 = vld [vmem:[%s3924 + $0x10] sm:$0xff]
      %v3928 = vld [vmem:[%s3924 + $0x18] sm:$0xff]
      %v3929 = vld [vmem:[%s3924 + $0x20] sm:$0xff]
      %v3930 = vld [vmem:[%s3924 + $0x28] sm:$0xff]
      %v3931 = vld [vmem:[%s3924 + $0x30] sm:$0xff]
      %v3932 = vld [vmem:[%s3924 + $0x38] sm:$0xff]
      %v3933 = vld [vmem:[%s3924 + $0x40] sm:$0xff]
      %v3934 = vld [vmem:[%s3924 + $0x48] sm:$0xff]
      %v3935 = vld [vmem:[%s3924 + $0x50] sm:$0xff]
      %v3936 = vld [vmem:[%s3924 + $0x58] sm:$0xff]
      %v3937 = vld [vmem:[%s3924 + $0x60] sm:$0xff]
      %v3938 = vld [vmem:[%s3924 + $0x68] sm:$0xff]
      %v3939 = vld [vmem:[%s3924 + $0x70] sm:$0xff]
      %v3940 = vld [vmem:[%s3924 + $0x78] sm:$0xff]
      %3941 = vmatprep.subr.mxu0 0.0
      %3942 = vmatpush1.msra.mxu0 %v3925
      %3943 = vmatprep.subr.mxu0 0.0
      %3944 = vmatpush1.msra.mxu0 %v3926
      %3945 = vmatprep.subr.mxu0 0.0
      %3946 = vmatpush1.msra.mxu0 %v3927
      %3947 = vmatprep.subr.mxu0 0.0
      %3948 = vmatpush1.msra.mxu0 %v3928
      %3949 = vmatprep.subr.mxu0 0.0
      %3950 = vmatpush1.msra.mxu0 %v3929
      %3951 = vmatprep.subr.mxu0 0.0
      %3952 = vmatpush1.msra.mxu0 %v3930
      %3953 = vmatprep.subr.mxu0 0.0
      %3954 = vmatpush1.msra.mxu0 %v3931
      %3955 = vmatprep.subr.mxu0 0.0
      %3956 = vmatpush1.msra.mxu0 %v3932
      %3957 = vmatprep.subr.mxu0 0.0
      %3958 = vmatpush1.msra.mxu0 %v3933
      %3959 = vmatprep.subr.mxu0 0.0
      %3960 = vmatpush1.msra.mxu0 %v3934
      %3961 = vmatprep.subr.mxu0 0.0
      %3962 = vmatpush1.msra.mxu0 %v3935
      %3963 = vmatprep.subr.mxu0 0.0
      %3964 = vmatpush1.msra.mxu0 %v3936
      %3965 = vmatprep.subr.mxu0 0.0
      %3966 = vmatpush1.msra.mxu0 %v3937
      %3967 = vmatprep.subr.mxu0 0.0
      %3968 = vmatpush1.msra.mxu0 %v3938
      %3969 = vmatprep.subr.mxu0 0.0
      %3970 = vmatpush1.msra.mxu0 %v3939
      %3971 = vmatprep.subr.mxu0 0.0
      %3972 = vmatpush1.msra.mxu0 %v3940
      %3973 = vmatprep.subr.mxu0 0.0
      %3974 = vmatpush1.msra.mxu0 0.0
      %3975 = vmatprep.subr.mxu0 0.0
      %3976 = vmatpush1.msra.mxu0 0.0
      %3977 = vmatprep.subr.mxu0 0.0
      %3978 = vmatpush1.msra.mxu0 0.0
      %3979 = vmatprep.subr.mxu0 0.0
      %3980 = vmatpush1.msra.mxu0 0.0
      %3981 = vmatprep.subr.mxu0 0.0
      %3982 = vmatpush1.msra.mxu0 0.0
      %3983 = vmatprep.subr.mxu0 0.0
      %3984 = vmatpush1.msra.mxu0 0.0
      %3985 = vmatprep.subr.mxu0 0.0
      %3986 = vmatpush1.msra.mxu0 0.0
      %3987 = vmatprep.subr.mxu0 0.0
      %3988 = vmatpush1.msra.mxu0 0.0
      %3989 = vmatprep.subr.mxu0 0.0
      %3990 = vmatpush1.msra.mxu0 0.0
      %3991 = vmatprep.subr.mxu0 0.0
      %3992 = vmatpush1.msra.mxu0 0.0
      %3993 = vmatprep.subr.mxu0 0.0
      %3994 = vmatpush1.msra.mxu0 0.0
      %3995 = vmatprep.subr.mxu0 0.0
      %3996 = vmatpush1.msra.mxu0 0.0
      %3997 = vmatprep.subr.mxu0 0.0
      %3998 = vmatpush1.msra.mxu0 0.0
      %3999 = vmatprep.subr.mxu0 0.0
      %4000 = vmatpush1.msra.mxu0 0.0
      %4001 = vmatprep.subr.mxu0 0.0
      %4002 = vmatpush1.msra.mxu0 0.0
      %4003 = vmatprep.subr.mxu0 0.0
      %4004 = vmatpush1.msra.mxu0 0.0
      %4005 = vmatprep.mubr.f32.mxu0 0.0
      %4006 = vmatmul.mubr.f32.gmra.mrb[0].mxu0 %v3892
      %v4007 = vpop.f32.mrb[0].mxu0
      %v4008 = vadd.f32 0.0, %v4007
      %v4009 = vpop.f32.mrb[0].mxu0
      %4010 = vmatprep.mubr.f32.mxu0 0.0
      %4011 = vmatmul.mubr.f32.gmra.mrb[0].mxu0 %v3893
      %v4012 = vpop.f32.mrb[0].mxu0
      %v4013 = vadd.f32 0.0, %v4012
      %v4014 = vpop.f32.mrb[0].mxu0
      %4015 = vmatprep.mubr.f32.mxu0 0.0
      %4016 = vmatmul.mubr.f32.gmra.mrb[0].mxu0 %v3894
      %v4017 = vpop.f32.mrb[0].mxu0
      %v4018 = vadd.f32 0.0, %v4017
      %v4019 = vpop.f32.mrb[0].mxu0
      %4020 = vmatprep.mubr.f32.mxu0 0.0
      %4021 = vmatmul.mubr.f32.gmra.mrb[0].mxu0 %v3895
      %v4022 = vpop.f32.mrb[0].mxu0
      %v4023 = vadd.f32 0.0, %v4022
      %v4024 = vpop.f32.mrb[0].mxu0
      %4025 = vmatprep.mubr.f32.mxu0 0.0
      %4026 = vmatmul.mubr.f32.gmra.mrb[0].mxu0 %v3896
      %v4027 = vpop.f32.mrb[0].mxu0
      %v4028 = vadd.f32 0.0, %v4027
      %v4029 = vpop.f32.mrb[0].mxu0
      %4030 = vmatprep.mubr.f32.mxu0 0.0
      %4031 = vmatmul.mubr.f32.gmra.mrb[0].mxu0 %v3897
      %v4032 = vpop.f32.mrb[0].mxu0
      %v4033 = vadd.f32 0.0, %v4032
      %v4034 = vpop.f32.mrb[0].mxu0
      %4035 = vmatprep.mubr.f32.mxu0 0.0
      %4036 = vmatmul.mubr.f32.gmra.mrb[0].mxu0 %v3898
      %v4037 = vpop.f32.mrb[0].mxu0
      %v4038 = vadd.f32 0.0, %v4037
      %v4039 = vpop.f32.mrb[0].mxu0
      %4040 = vmatprep.mubr.f32.mxu0 0.0
      %4041 = vmatmul.mubr.f32.gmra.mrb[0].mxu0 %v3899
      %v4042 = vpop.f32.mrb[0].mxu0
      %v4043 = vadd.f32 0.0, %v4042
      %v4044 = vpop.f32.mrb[0].mxu0
      %4045 = vmatprep.mubr.f32.mxu0 0.0
      %4046 = vmatmul.mubr.f32.gmra.mrb[0].mxu0 %v3900
      %v4047 = vpop.f32.mrb[0].mxu0
      %v4048 = vadd.f32 0.0, %v4047
      %v4049 = vpop.f32.mrb[0].mxu0
      %4050 = vmatprep.mubr.f32.mxu0 0.0
      %4051 = vmatmul.mubr.f32.gmra.mrb[0].mxu0 %v3901
      %v4052 = vpop.f32.mrb[0].mxu0
      %v4053 = vadd.f32 0.0, %v4052
      %v4054 = vpop.f32.mrb[0].mxu0
      %4055 = vmatprep.mubr.f32.mxu0 0.0
      %4056 = vmatmul.mubr.f32.gmra.mrb[0].mxu0 %v3902
      %v4057 = vpop.f32.mrb[0].mxu0
      %v4058 = vadd.f32 0.0, %v4057
      %v4059 = vpop.f32.mrb[0].mxu0
      %4060 = vmatprep.mubr.f32.mxu0 0.0
      %4061 = vmatmul.mubr.f32.gmra.mrb[0].mxu0 %v3903
      %v4062 = vpop.f32.mrb[0].mxu0
      %v4063 = vadd.f32 0.0, %v4062
      %v4064 = vpop.f32.mrb[0].mxu0
      %4065 = vmatprep.mubr.f32.mxu0 0.0
      %4066 = vmatmul.mubr.f32.gmra.mrb[0].mxu0 %v3904
      %v4067 = vpop.f32.mrb[0].mxu0
      %v4068 = vadd.f32 0.0, %v4067
      %v4069 = vpop.f32.mrb[0].mxu0
      %4070 = vmatprep.mubr.f32.mxu0 0.0
      %4071 = vmatmul.mubr.f32.gmra.mrb[0].mxu0 %v3905
      %v4072 = vpop.f32.mrb[0].mxu0
      %v4073 = vadd.f32 0.0, %v4072
      %v4074 = vpop.f32.mrb[0].mxu0
      %4075 = vmatprep.mubr.f32.mxu0 0.0
      %4076 = vmatmul.mubr.f32.gmra.mrb[0].mxu0 %v3906
      %v4077 = vpop.f32.mrb[0].mxu0
      %v4078 = vadd.f32 0.0, %v4077
      %v4079 = vpop.f32.mrb[0].mxu0
      %4080 = vmatprep.mubr.f32.mxu0 0.0
      %4081 = vmatmul.mubr.f32.gmra.mrb[0].mxu0 %v3907
      %v4082 = vpop.f32.mrb[0].mxu0
      %v4083 = vadd.f32 0.0, %v4082
      %v4084 = vpop.f32.mrb[0].mxu0
      %4085 = vmatprep.mubr.f32.mxu0 0.0
      %4086 = vmatmul.mubr.f32.gmra.mrb[0].mxu0 %v3908
      %v4087 = vpop.f32.mrb[0].mxu0
      %v4088 = vadd.f32 0.0, %v4087
      %v4089 = vpop.f32.mrb[0].mxu0
      %4090 = vmatprep.mubr.f32.mxu0 0.0
      %4091 = vmatmul.mubr.f32.gmra.mrb[0].mxu0 %v3909
      %v4092 = vpop.f32.mrb[0].mxu0
      %v4093 = vadd.f32 0.0, %v4092
      %v4094 = vpop.f32.mrb[0].mxu0
      %4095 = vmatprep.mubr.f32.mxu0 0.0
      %4096 = vmatmul.mubr.f32.gmra.mrb[0].mxu0 %v3910
      %v4097 = vpop.f32.mrb[0].mxu0
      %v4098 = vadd.f32 0.0, %v4097
      %v4099 = vpop.f32.mrb[0].mxu0
      %4100 = vmatprep.mubr.f32.mxu0 0.0
      %4101 = vmatmul.mubr.f32.gmra.mrb[0].mxu0 %v3911
      %v4102 = vpop.f32.mrb[0].mxu0
      %v4103 = vadd.f32 0.0, %v4102
      %v4104 = vpop.f32.mrb[0].mxu0
      %4105 = vmatprep.mubr.f32.mxu0 0.0
      %4106 = vmatmul.mubr.f32.gmra.mrb[0].mxu0 %v3912
      %v4107 = vpop.f32.mrb[0].mxu0
      %v4108 = vadd.f32 0.0, %v4107
      %v4109 = vpop.f32.mrb[0].mxu0
      %4110 = vmatprep.mubr.f32.mxu0 0.0
      %4111 = vmatmul.mubr.f32.gmra.mrb[0].mxu0 %v3913
      %v4112 = vpop.f32.mrb[0].mxu0
      %v4113 = vadd.f32 0.0, %v4112
      %v4114 = vpop.f32.mrb[0].mxu0
      %4115 = vmatprep.mubr.f32.mxu0 0.0
      %4116 = vmatmul.mubr.f32.gmra.mrb[0].mxu0 %v3914
      %v4117 = vpop.f32.mrb[0].mxu0
      %v4118 = vadd.f32 0.0, %v4117
      %v4119 = vpop.f32.mrb[0].mxu0
      %4120 = vmatprep.mubr.f32.mxu0 0.0
      %4121 = vmatmul.mubr.f32.gmra.mrb[0].mxu0 %v3915
      %v4122 = vpop.f32.mrb[0].mxu0
      %v4123 = vadd.f32 0.0, %v4122
      %v4124 = vpop.f32.mrb[0].mxu0
      %4125 = vmatprep.mubr.f32.mxu0 0.0
      %4126 = vmatmul.mubr.f32.gmra.mrb[0].mxu0 %v3916
      %v4127 = vpop.f32.mrb[0].mxu0
      %v4128 = vadd.f32 0.0, %v4127
      %v4129 = vpop.f32.mrb[0].mxu0
      %4130 = vmatprep.mubr.f32.mxu0 0.0
      %4131 = vmatmul.mubr.f32.gmra.mrb[0].mxu0 %v3917
      %v4132 = vpop.f32.mrb[0].mxu0
      %v4133 = vadd.f32 0.0, %v4132
      %v4134 = vpop.f32.mrb[0].mxu0
      %4135 = vmatprep.mubr.f32.mxu0 0.0
      %4136 = vmatmul.mubr.f32.gmra.mrb[0].mxu0 %v3918
      %v4137 = vpop.f32.mrb[0].mxu0
      %v4138 = vadd.f32 0.0, %v4137
      %v4139 = vpop.f32.mrb[0].mxu0
      %4140 = vmatprep.mubr.f32.mxu0 0.0
      %4141 = vmatmul.mubr.f32.gmra.mrb[0].mxu0 %v3919
      %v4142 = vpop.f32.mrb[0].mxu0
      %v4143 = vadd.f32 0.0, %v4142
      %v4144 = vpop.f32.mrb[0].mxu0
      %4145 = vmatprep.mubr.f32.mxu0 0.0
      %4146 = vmatmul.mubr.f32.gmra.mrb[0].mxu0 %v3920
      %v4147 = vpop.f32.mrb[0].mxu0
      %v4148 = vadd.f32 0.0, %v4147
      %v4149 = vpop.f32.mrb[0].mxu0
      %4150 = vmatprep.mubr.f32.mxu0 0.0
      %4151 = vmatmul.mubr.f32.gmra.mrb[0].mxu0 %v3921
      %v4152 = vpop.f32.mrb[0].mxu0
      %v4153 = vadd.f32 0.0, %v4152
      %v4154 = vpop.f32.mrb[0].mxu0
      %4155 = vmatprep.mubr.f32.mxu0 0.0
      %4156 = vmatmul.mubr.f32.gmra.mrb[0].mxu0 %v3922
      %v4157 = vpop.f32.mrb[0].mxu0
      %v4158 = vadd.f32 0.0, %v4157
      %v4159 = vpop.f32.mrb[0].mxu0
      %4160 = vmatprep.mubr.f32.mxu0 0.0
      %4161 = vmatmul.mubr.f32.gmra.mrb[0].mxu0 %v3923
      %v4162 = vpop.f32.mrb[0].mxu0
      %v4163 = vadd.f32 0.0, %v4162
      %v4164 = vpop.f32.mrb[0].mxu0
      %4165 = vdwg.mxu0
      %v4166 = vadd.f32 %v3860, %v4008
      %v4167 = vadd.f32 %v3861, %v4013
      %v4168 = vadd.f32 %v3862, %v4018
      %v4169 = vadd.f32 %v3863, %v4023
      %v4170 = vadd.f32 %v3864, %v4028
      %v4171 = vadd.f32 %v3865, %v4033
      %v4172 = vadd.f32 %v3866, %v4038
      %v4173 = vadd.f32 %v3867, %v4043
      %v4174 = vadd.f32 %v3868, %v4048
      %v4175 = vadd.f32 %v3869, %v4053
      %v4176 = vadd.f32 %v3870, %v4058
      %v4177 = vadd.f32 %v3871, %v4063
      %v4178 = vadd.f32 %v3872, %v4068
      %v4179 = vadd.f32 %v3873, %v4073
      %v4180 = vadd.f32 %v3874, %v4078
      %v4181 = vadd.f32 %v3875, %v4083
      %v4182 = vadd.f32 %v3876, %v4088
      %v4183 = vadd.f32 %v3877, %v4093
      %v4184 = vadd.f32 %v3878, %v4098
      %v4185 = vadd.f32 %v3879, %v4103
      %v4186 = vadd.f32 %v3880, %v4108
      %v4187 = vadd.f32 %v3881, %v4113
      %v4188 = vadd.f32 %v3882, %v4118
      %v4189 = vadd.f32 %v3883, %v4123
      %v4190 = vadd.f32 %v3884, %v4128
      %v4191 = vadd.f32 %v3885, %v4133
      %v4192 = vadd.f32 %v3886, %v4138
      %v4193 = vadd.f32 %v3887, %v4143
      %v4194 = vadd.f32 %v3888, %v4148
      %v4195 = vadd.f32 %v3889, %v4153
      %v4196 = vadd.f32 %v3890, %v4158
      %v4197 = vadd.f32 %v3891, %v4163
      %v4198 = vld [vmem:[%s3005 + $0x1] sm:$0xff]
      %v4199 = vld [vmem:[%s3005 + $0x9] sm:$0xff]
      %v4200 = vld [vmem:[%s3005 + $0x19] sm:$0xff]
      %v4201 = vld [vmem:[%s3005 + $0x21] sm:$0xff]
      %v4202 = vld [vmem:[%s3005 + $0x31] sm:$0xff]
      %v4203 = vld [vmem:[%s3005 + $0x39] sm:$0xff]
      %v4204 = vld [vmem:[%s3005 + $0x49] sm:$0xff]
      %v4205 = vld [vmem:[%s3005 + $0x51] sm:$0xff]
      %v4206 = vld [vmem:[%s3005 + $0x61] sm:$0xff]
      %v4207 = vld [vmem:[%s3005 + $0x69] sm:$0xff]
      %v4208 = vld [vmem:[%s3005 + $0x79] sm:$0xff]
      %v4209 = vld [vmem:[%s3005 + $0x81] sm:$0xff]
      %v4210 = vld [vmem:[%s3005 + $0x91] sm:$0xff]
      %v4211 = vld [vmem:[%s3005 + $0x99] sm:$0xff]
      %v4212 = vld [vmem:[%s3005 + $0xa9] sm:$0xff]
      %v4213 = vld [vmem:[%s3005 + $0xb1] sm:$0xff]
      %v4214 = vld [vmem:[%s3005 + $0xc1] sm:$0xff]
      %v4215 = vld [vmem:[%s3005 + $0xc9] sm:$0xff]
      %v4216 = vld [vmem:[%s3005 + $0xd9] sm:$0xff]
      %v4217 = vld [vmem:[%s3005 + $0xe1] sm:$0xff]
      %v4218 = vld [vmem:[%s3005 + $0xf1] sm:$0xff]
      %v4219 = vld [vmem:[%s3005 + $0xf9] sm:$0xff]
      %v4220 = vld [vmem:[%s3005 + $0x109] sm:$0xff]
      %v4221 = vld [vmem:[%s3005 + $0x111] sm:$0xff]
      %v4222 = vld [vmem:[%s3005 + $0x121] sm:$0xff]
      %v4223 = vld [vmem:[%s3005 + $0x129] sm:$0xff]
      %v4224 = vld [vmem:[%s3005 + $0x139] sm:$0xff]
      %v4225 = vld [vmem:[%s3005 + $0x141] sm:$0xff]
      %v4226 = vld [vmem:[%s3005 + $0x151] sm:$0xff]
      %v4227 = vld [vmem:[%s3005 + $0x159] sm:$0xff]
      %v4228 = vld [vmem:[%s3005 + $0x169] sm:$0xff]
      %v4229 = vld [vmem:[%s3005 + $0x171] sm:$0xff]
      %s4230 = scalar_lea.vmem %s1, 1664
      %v4231 = vld [vmem:[%s4230] sm:$0xff]
      %v4232 = vld [vmem:[%s4230 + $0x8] sm:$0xff]
      %v4233 = vld [vmem:[%s4230 + $0x10] sm:$0xff]
      %v4234 = vld [vmem:[%s4230 + $0x18] sm:$0xff]
      %v4235 = vld [vmem:[%s4230 + $0x20] sm:$0xff]
      %v4236 = vld [vmem:[%s4230 + $0x28] sm:$0xff]
      %v4237 = vld [vmem:[%s4230 + $0x30] sm:$0xff]
      %v4238 = vld [vmem:[%s4230 + $0x38] sm:$0xff]
      %v4239 = vld [vmem:[%s4230 + $0x40] sm:$0xff]
      %v4240 = vld [vmem:[%s4230 + $0x48] sm:$0xff]
      %v4241 = vld [vmem:[%s4230 + $0x50] sm:$0xff]
      %v4242 = vld [vmem:[%s4230 + $0x58] sm:$0xff]
      %v4243 = vld [vmem:[%s4230 + $0x60] sm:$0xff]
      %v4244 = vld [vmem:[%s4230 + $0x68] sm:$0xff]
      %v4245 = vld [vmem:[%s4230 + $0x70] sm:$0xff]
      %v4246 = vld [vmem:[%s4230 + $0x78] sm:$0xff]
      %4247 = vmatprep.subr.mxu0 0.0
      %4248 = vmatpush1.msra.mxu0 %v4231
      %4249 = vmatprep.subr.mxu0 0.0
      %4250 = vmatpush1.msra.mxu0 %v4232
      %4251 = vmatprep.subr.mxu0 0.0
      %4252 = vmatpush1.msra.mxu0 %v4233
      %4253 = vmatprep.subr.mxu0 0.0
      %4254 = vmatpush1.msra.mxu0 %v4234
      %4255 = vmatprep.subr.mxu0 0.0
      %4256 = vmatpush1.msra.mxu0 %v4235
      %4257 = vmatprep.subr.mxu0 0.0
      %4258 = vmatpush1.msra.mxu0 %v4236
      %4259 = vmatprep.subr.mxu0 0.0
      %4260 = vmatpush1.msra.mxu0 %v4237
      %4261 = vmatprep.subr.mxu0 0.0
      %4262 = vmatpush1.msra.mxu0 %v4238
      %4263 = vmatprep.subr.mxu0 0.0
      %4264 = vmatpush1.msra.mxu0 %v4239
      %4265 = vmatprep.subr.mxu0 0.0
      %4266 = vmatpush1.msra.mxu0 %v4240
      %4267 = vmatprep.subr.mxu0 0.0
      %4268 = vmatpush1.msra.mxu0 %v4241
      %4269 = vmatprep.subr.mxu0 0.0
      %4270 = vmatpush1.msra.mxu0 %v4242
      %4271 = vmatprep.subr.mxu0 0.0
      %4272 = vmatpush1.msra.mxu0 %v4243
      %4273 = vmatprep.subr.mxu0 0.0
      %4274 = vmatpush1.msra.mxu0 %v4244
      %4275 = vmatprep.subr.mxu0 0.0
      %4276 = vmatpush1.msra.mxu0 %v4245
      %4277 = vmatprep.subr.mxu0 0.0
      %4278 = vmatpush1.msra.mxu0 %v4246
      %4279 = vmatprep.subr.mxu0 0.0
      %4280 = vmatpush1.msra.mxu0 0.0
      %4281 = vmatprep.subr.mxu0 0.0
      %4282 = vmatpush1.msra.mxu0 0.0
      %4283 = vmatprep.subr.mxu0 0.0
      %4284 = vmatpush1.msra.mxu0 0.0
      %4285 = vmatprep.subr.mxu0 0.0
      %4286 = vmatpush1.msra.mxu0 0.0
      %4287 = vmatprep.subr.mxu0 0.0
      %4288 = vmatpush1.msra.mxu0 0.0
      %4289 = vmatprep.subr.mxu0 0.0
      %4290 = vmatpush1.msra.mxu0 0.0
      %4291 = vmatprep.subr.mxu0 0.0
      %4292 = vmatpush1.msra.mxu0 0.0
      %4293 = vmatprep.subr.mxu0 0.0
      %4294 = vmatpush1.msra.mxu0 0.0
      %4295 = vmatprep.subr.mxu0 0.0
      %4296 = vmatpush1.msra.mxu0 0.0
      %4297 = vmatprep.subr.mxu0 0.0
      %4298 = vmatpush1.msra.mxu0 0.0
      %4299 = vmatprep.subr.mxu0 0.0
      %4300 = vmatpush1.msra.mxu0 0.0
      %4301 = vmatprep.subr.mxu0 0.0
      %4302 = vmatpush1.msra.mxu0 0.0
      %4303 = vmatprep.subr.mxu0 0.0
      %4304 = vmatpush1.msra.mxu0 0.0
      %4305 = vmatprep.subr.mxu0 0.0
      %4306 = vmatpush1.msra.mxu0 0.0
      %4307 = vmatprep.subr.mxu0 0.0
      %4308 = vmatpush1.msra.mxu0 0.0
      %4309 = vmatprep.subr.mxu0 0.0
      %4310 = vmatpush1.msra.mxu0 0.0
      %4311 = vmatprep.mubr.f32.mxu0 0.0
      %4312 = vmatmul.mubr.f32.gmra.mrb[0].mxu0 %v4198
      %v4313 = vpop.f32.mrb[0].mxu0
      %v4314 = vadd.f32 0.0, %v4313
      %v4315 = vpop.f32.mrb[0].mxu0
      %4316 = vmatprep.mubr.f32.mxu0 0.0
      %4317 = vmatmul.mubr.f32.gmra.mrb[0].mxu0 %v4199
      %v4318 = vpop.f32.mrb[0].mxu0
      %v4319 = vadd.f32 0.0, %v4318
      %v4320 = vpop.f32.mrb[0].mxu0
      %4321 = vmatprep.mubr.f32.mxu0 0.0
      %4322 = vmatmul.mubr.f32.gmra.mrb[0].mxu0 %v4200
      %v4323 = vpop.f32.mrb[0].mxu0
      %v4324 = vadd.f32 0.0, %v4323
      %v4325 = vpop.f32.mrb[0].mxu0
      %4326 = vmatprep.mubr.f32.mxu0 0.0
      %4327 = vmatmul.mubr.f32.gmra.mrb[0].mxu0 %v4201
      %v4328 = vpop.f32.mrb[0].mxu0
      %v4329 = vadd.f32 0.0, %v4328
      %v4330 = vpop.f32.mrb[0].mxu0
      %4331 = vmatprep.mubr.f32.mxu0 0.0
      %4332 = vmatmul.mubr.f32.gmra.mrb[0].mxu0 %v4202
      %v4333 = vpop.f32.mrb[0].mxu0
      %v4334 = vadd.f32 0.0, %v4333
      %v4335 = vpop.f32.mrb[0].mxu0
      %4336 = vmatprep.mubr.f32.mxu0 0.0
      %4337 = vmatmul.mubr.f32.gmra.mrb[0].mxu0 %v4203
      %v4338 = vpop.f32.mrb[0].mxu0
      %v4339 = vadd.f32 0.0, %v4338
      %v4340 = vpop.f32.mrb[0].mxu0
      %4341 = vmatprep.mubr.f32.mxu0 0.0
      %4342 = vmatmul.mubr.f32.gmra.mrb[0].mxu0 %v4204
      %v4343 = vpop.f32.mrb[0].mxu0
      %v4344 = vadd.f32 0.0, %v4343
      %v4345 = vpop.f32.mrb[0].mxu0
      %4346 = vmatprep.mubr.f32.mxu0 0.0
      %4347 = vmatmul.mubr.f32.gmra.mrb[0].mxu0 %v4205
      %v4348 = vpop.f32.mrb[0].mxu0
      %v4349 = vadd.f32 0.0, %v4348
      %v4350 = vpop.f32.mrb[0].mxu0
      %4351 = vmatprep.mubr.f32.mxu0 0.0
      %4352 = vmatmul.mubr.f32.gmra.mrb[0].mxu0 %v4206
      %v4353 = vpop.f32.mrb[0].mxu0
      %v4354 = vadd.f32 0.0, %v4353
      %v4355 = vpop.f32.mrb[0].mxu0
      %4356 = vmatprep.mubr.f32.mxu0 0.0
      %4357 = vmatmul.mubr.f32.gmra.mrb[0].mxu0 %v4207
      %v4358 = vpop.f32.mrb[0].mxu0
      %v4359 = vadd.f32 0.0, %v4358
      %v4360 = vpop.f32.mrb[0].mxu0
      %4361 = vmatprep.mubr.f32.mxu0 0.0
      %4362 = vmatmul.mubr.f32.gmra.mrb[0].mxu0 %v4208
      %v4363 = vpop.f32.mrb[0].mxu0
      %v4364 = vadd.f32 0.0, %v4363
      %v4365 = vpop.f32.mrb[0].mxu0
      %4366 = vmatprep.mubr.f32.mxu0 0.0
      %4367 = vmatmul.mubr.f32.gmra.mrb[0].mxu0 %v4209
      %v4368 = vpop.f32.mrb[0].mxu0
      %v4369 = vadd.f32 0.0, %v4368
      %v4370 = vpop.f32.mrb[0].mxu0
      %4371 = vmatprep.mubr.f32.mxu0 0.0
      %4372 = vmatmul.mubr.f32.gmra.mrb[0].mxu0 %v4210
      %v4373 = vpop.f32.mrb[0].mxu0
      %v4374 = vadd.f32 0.0, %v4373
      %v4375 = vpop.f32.mrb[0].mxu0
      %4376 = vmatprep.mubr.f32.mxu0 0.0
      %4377 = vmatmul.mubr.f32.gmra.mrb[0].mxu0 %v4211
      %v4378 = vpop.f32.mrb[0].mxu0
      %v4379 = vadd.f32 0.0, %v4378
      %v4380 = vpop.f32.mrb[0].mxu0
      %4381 = vmatprep.mubr.f32.mxu0 0.0
      %4382 = vmatmul.mubr.f32.gmra.mrb[0].mxu0 %v4212
      %v4383 = vpop.f32.mrb[0].mxu0
      %v4384 = vadd.f32 0.0, %v4383
      %v4385 = vpop.f32.mrb[0].mxu0
      %4386 = vmatprep.mubr.f32.mxu0 0.0
      %4387 = vmatmul.mubr.f32.gmra.mrb[0].mxu0 %v4213
      %v4388 = vpop.f32.mrb[0].mxu0
      %v4389 = vadd.f32 0.0, %v4388
      %v4390 = vpop.f32.mrb[0].mxu0
      %4391 = vmatprep.mubr.f32.mxu0 0.0
      %4392 = vmatmul.mubr.f32.gmra.mrb[0].mxu0 %v4214
      %v4393 = vpop.f32.mrb[0].mxu0
      %v4394 = vadd.f32 0.0, %v4393
      %v4395 = vpop.f32.mrb[0].mxu0
      %4396 = vmatprep.mubr.f32.mxu0 0.0
      %4397 = vmatmul.mubr.f32.gmra.mrb[0].mxu0 %v4215
      %v4398 = vpop.f32.mrb[0].mxu0
      %v4399 = vadd.f32 0.0, %v4398
      %v4400 = vpop.f32.mrb[0].mxu0
      %4401 = vmatprep.mubr.f32.mxu0 0.0
      %4402 = vmatmul.mubr.f32.gmra.mrb[0].mxu0 %v4216
      %v4403 = vpop.f32.mrb[0].mxu0
      %v4404 = vadd.f32 0.0, %v4403
      %v4405 = vpop.f32.mrb[0].mxu0
      %4406 = vmatprep.mubr.f32.mxu0 0.0
      %4407 = vmatmul.mubr.f32.gmra.mrb[0].mxu0 %v4217
      %v4408 = vpop.f32.mrb[0].mxu0
      %v4409 = vadd.f32 0.0, %v4408
      %v4410 = vpop.f32.mrb[0].mxu0
      %4411 = vmatprep.mubr.f32.mxu0 0.0
      %4412 = vmatmul.mubr.f32.gmra.mrb[0].mxu0 %v4218
      %v4413 = vpop.f32.mrb[0].mxu0
      %v4414 = vadd.f32 0.0, %v4413
      %v4415 = vpop.f32.mrb[0].mxu0
      %4416 = vmatprep.mubr.f32.mxu0 0.0
      %4417 = vmatmul.mubr.f32.gmra.mrb[0].mxu0 %v4219
      %v4418 = vpop.f32.mrb[0].mxu0
      %v4419 = vadd.f32 0.0, %v4418
      %v4420 = vpop.f32.mrb[0].mxu0
      %4421 = vmatprep.mubr.f32.mxu0 0.0
      %4422 = vmatmul.mubr.f32.gmra.mrb[0].mxu0 %v4220
      %v4423 = vpop.f32.mrb[0].mxu0
      %v4424 = vadd.f32 0.0, %v4423
      %v4425 = vpop.f32.mrb[0].mxu0
      %4426 = vmatprep.mubr.f32.mxu0 0.0
      %4427 = vmatmul.mubr.f32.gmra.mrb[0].mxu0 %v4221
      %v4428 = vpop.f32.mrb[0].mxu0
      %v4429 = vadd.f32 0.0, %v4428
      %v4430 = vpop.f32.mrb[0].mxu0
      %4431 = vmatprep.mubr.f32.mxu0 0.0
      %4432 = vmatmul.mubr.f32.gmra.mrb[0].mxu0 %v4222
      %v4433 = vpop.f32.mrb[0].mxu0
      %v4434 = vadd.f32 0.0, %v4433
      %v4435 = vpop.f32.mrb[0].mxu0
      %4436 = vmatprep.mubr.f32.mxu0 0.0
      %4437 = vmatmul.mubr.f32.gmra.mrb[0].mxu0 %v4223
      %v4438 = vpop.f32.mrb[0].mxu0
      %v4439 = vadd.f32 0.0, %v4438
      %v4440 = vpop.f32.mrb[0].mxu0
      %4441 = vmatprep.mubr.f32.mxu0 0.0
      %4442 = vmatmul.mubr.f32.gmra.mrb[0].mxu0 %v4224
      %v4443 = vpop.f32.mrb[0].mxu0
      %v4444 = vadd.f32 0.0, %v4443
      %v4445 = vpop.f32.mrb[0].mxu0
      %4446 = vmatprep.mubr.f32.mxu0 0.0
      %4447 = vmatmul.mubr.f32.gmra.mrb[0].mxu0 %v4225
      %v4448 = vpop.f32.mrb[0].mxu0
      %v4449 = vadd.f32 0.0, %v4448
      %v4450 = vpop.f32.mrb[0].mxu0
      %4451 = vmatprep.mubr.f32.mxu0 0.0
      %4452 = vmatmul.mubr.f32.gmra.mrb[0].mxu0 %v4226
      %v4453 = vpop.f32.mrb[0].mxu0
      %v4454 = vadd.f32 0.0, %v4453
      %v4455 = vpop.f32.mrb[0].mxu0
      %4456 = vmatprep.mubr.f32.mxu0 0.0
      %4457 = vmatmul.mubr.f32.gmra.mrb[0].mxu0 %v4227
      %v4458 = vpop.f32.mrb[0].mxu0
      %v4459 = vadd.f32 0.0, %v4458
      %v4460 = vpop.f32.mrb[0].mxu0
      %4461 = vmatprep.mubr.f32.mxu0 0.0
      %4462 = vmatmul.mubr.f32.gmra.mrb[0].mxu0 %v4228
      %v4463 = vpop.f32.mrb[0].mxu0
      %v4464 = vadd.f32 0.0, %v4463
      %v4465 = vpop.f32.mrb[0].mxu0
      %4466 = vmatprep.mubr.f32.mxu0 0.0
      %4467 = vmatmul.mubr.f32.gmra.mrb[0].mxu0 %v4229
      %v4468 = vpop.f32.mrb[0].mxu0
      %v4469 = vadd.f32 0.0, %v4468
      %v4470 = vpop.f32.mrb[0].mxu0
      %4471 = vdwg.mxu0
      %v4472 = vadd.f32 %v4166, %v4314
      %v4473 = vadd.f32 %v4167, %v4319
      %v4474 = vadd.f32 %v4168, %v4324
      %v4475 = vadd.f32 %v4169, %v4329
      %v4476 = vadd.f32 %v4170, %v4334
      %v4477 = vadd.f32 %v4171, %v4339
      %v4478 = vadd.f32 %v4172, %v4344
      %v4479 = vadd.f32 %v4173, %v4349
      %v4480 = vadd.f32 %v4174, %v4354
      %v4481 = vadd.f32 %v4175, %v4359
      %v4482 = vadd.f32 %v4176, %v4364
      %v4483 = vadd.f32 %v4177, %v4369
      %v4484 = vadd.f32 %v4178, %v4374
      %v4485 = vadd.f32 %v4179, %v4379
      %v4486 = vadd.f32 %v4180, %v4384
      %v4487 = vadd.f32 %v4181, %v4389
      %v4488 = vadd.f32 %v4182, %v4394
      %v4489 = vadd.f32 %v4183, %v4399
      %v4490 = vadd.f32 %v4184, %v4404
      %v4491 = vadd.f32 %v4185, %v4409
      %v4492 = vadd.f32 %v4186, %v4414
      %v4493 = vadd.f32 %v4187, %v4419
      %v4494 = vadd.f32 %v4188, %v4424
      %v4495 = vadd.f32 %v4189, %v4429
      %v4496 = vadd.f32 %v4190, %v4434
      %v4497 = vadd.f32 %v4191, %v4439
      %v4498 = vadd.f32 %v4192, %v4444
      %v4499 = vadd.f32 %v4193, %v4449
      %v4500 = vadd.f32 %v4194, %v4454
      %v4501 = vadd.f32 %v4195, %v4459
      %v4502 = vadd.f32 %v4196, %v4464
      %v4503 = vadd.f32 %v4197, %v4469
      %v4504 = vld [vmem:[%s3005 + $0x2] sm:$0xff]
      %v4505 = vld [vmem:[%s3005 + $0xa] sm:$0xff]
      %v4506 = vld [vmem:[%s3005 + $0x1a] sm:$0xff]
      %v4507 = vld [vmem:[%s3005 + $0x22] sm:$0xff]
      %v4508 = vld [vmem:[%s3005 + $0x32] sm:$0xff]
      %v4509 = vld [vmem:[%s3005 + $0x3a] sm:$0xff]
      %v4510 = vld [vmem:[%s3005 + $0x4a] sm:$0xff]
      %v4511 = vld [vmem:[%s3005 + $0x52] sm:$0xff]
      %v4512 = vld [vmem:[%s3005 + $0x62] sm:$0xff]
      %v4513 = vld [vmem:[%s3005 + $0x6a] sm:$0xff]
      %v4514 = vld [vmem:[%s3005 + $0x7a] sm:$0xff]
      %v4515 = vld [vmem:[%s3005 + $0x82] sm:$0xff]
      %v4516 = vld [vmem:[%s3005 + $0x92] sm:$0xff]
      %v4517 = vld [vmem:[%s3005 + $0x9a] sm:$0xff]
      %v4518 = vld [vmem:[%s3005 + $0xaa] sm:$0xff]
      %v4519 = vld [vmem:[%s3005 + $0xb2] sm:$0xff]
      %v4520 = vld [vmem:[%s3005 + $0xc2] sm:$0xff]
      %v4521 = vld [vmem:[%s3005 + $0xca] sm:$0xff]
      %v4522 = vld [vmem:[%s3005 + $0xda] sm:$0xff]
      %v4523 = vld [vmem:[%s3005 + $0xe2] sm:$0xff]
      %v4524 = vld [vmem:[%s3005 + $0xf2] sm:$0xff]
      %v4525 = vld [vmem:[%s3005 + $0xfa] sm:$0xff]
      %v4526 = vld [vmem:[%s3005 + $0x10a] sm:$0xff]
      %v4527 = vld [vmem:[%s3005 + $0x112] sm:$0xff]
      %v4528 = vld [vmem:[%s3005 + $0x122] sm:$0xff]
      %v4529 = vld [vmem:[%s3005 + $0x12a] sm:$0xff]
      %v4530 = vld [vmem:[%s3005 + $0x13a] sm:$0xff]
      %v4531 = vld [vmem:[%s3005 + $0x142] sm:$0xff]
      %v4532 = vld [vmem:[%s3005 + $0x152] sm:$0xff]
      %v4533 = vld [vmem:[%s3005 + $0x15a] sm:$0xff]
      %v4534 = vld [vmem:[%s3005 + $0x16a] sm:$0xff]
      %v4535 = vld [vmem:[%s3005 + $0x172] sm:$0xff]
      %s4536 = scalar_lea.vmem %s1, 1792
      %v4537 = vld [vmem:[%s4536] sm:$0xff]
      %v4538 = vld [vmem:[%s4536 + $0x8] sm:$0xff]
      %v4539 = vld [vmem:[%s4536 + $0x10] sm:$0xff]
      %v4540 = vld [vmem:[%s4536 + $0x18] sm:$0xff]
      %v4541 = vld [vmem:[%s4536 + $0x20] sm:$0xff]
      %v4542 = vld [vmem:[%s4536 + $0x28] sm:$0xff]
      %v4543 = vld [vmem:[%s4536 + $0x30] sm:$0xff]
      %v4544 = vld [vmem:[%s4536 + $0x38] sm:$0xff]
      %v4545 = vld [vmem:[%s4536 + $0x40] sm:$0xff]
      %v4546 = vld [vmem:[%s4536 + $0x48] sm:$0xff]
      %v4547 = vld [vmem:[%s4536 + $0x50] sm:$0xff]
      %v4548 = vld [vmem:[%s4536 + $0x58] sm:$0xff]
      %v4549 = vld [vmem:[%s4536 + $0x60] sm:$0xff]
      %v4550 = vld [vmem:[%s4536 + $0x68] sm:$0xff]
      %v4551 = vld [vmem:[%s4536 + $0x70] sm:$0xff]
      %v4552 = vld [vmem:[%s4536 + $0x78] sm:$0xff]
      %4553 = vmatprep.subr.mxu0 0.0
      %4554 = vmatpush1.msra.mxu0 %v4537
      %4555 = vmatprep.subr.mxu0 0.0
      %4556 = vmatpush1.msra.mxu0 %v4538
      %4557 = vmatprep.subr.mxu0 0.0
      %4558 = vmatpush1.msra.mxu0 %v4539
      %4559 = vmatprep.subr.mxu0 0.0
      %4560 = vmatpush1.msra.mxu0 %v4540
      %4561 = vmatprep.subr.mxu0 0.0
      %4562 = vmatpush1.msra.mxu0 %v4541
      %4563 = vmatprep.subr.mxu0 0.0
      %4564 = vmatpush1.msra.mxu0 %v4542
      %4565 = vmatprep.subr.mxu0 0.0
      %4566 = vmatpush1.msra.mxu0 %v4543
      %4567 = vmatprep.subr.mxu0 0.0
      %4568 = vmatpush1.msra.mxu0 %v4544
      %4569 = vmatprep.subr.mxu0 0.0
      %4570 = vmatpush1.msra.mxu0 %v4545
      %4571 = vmatprep.subr.mxu0 0.0
      %4572 = vmatpush1.msra.mxu0 %v4546
      %4573 = vmatprep.subr.mxu0 0.0
      %4574 = vmatpush1.msra.mxu0 %v4547
      %4575 = vmatprep.subr.mxu0 0.0
      %4576 = vmatpush1.msra.mxu0 %v4548
      %4577 = vmatprep.subr.mxu0 0.0
      %4578 = vmatpush1.msra.mxu0 %v4549
      %4579 = vmatprep.subr.mxu0 0.0
      %4580 = vmatpush1.msra.mxu0 %v4550
      %4581 = vmatprep.subr.mxu0 0.0
      %4582 = vmatpush1.msra.mxu0 %v4551
      %4583 = vmatprep.subr.mxu0 0.0
      %4584 = vmatpush1.msra.mxu0 %v4552
      %4585 = vmatprep.subr.mxu0 0.0
      %4586 = vmatpush1.msra.mxu0 0.0
      %4587 = vmatprep.subr.mxu0 0.0
      %4588 = vmatpush1.msra.mxu0 0.0
      %4589 = vmatprep.subr.mxu0 0.0
      %4590 = vmatpush1.msra.mxu0 0.0
      %4591 = vmatprep.subr.mxu0 0.0
      %4592 = vmatpush1.msra.mxu0 0.0
      %4593 = vmatprep.subr.mxu0 0.0
      %4594 = vmatpush1.msra.mxu0 0.0
      %4595 = vmatprep.subr.mxu0 0.0
      %4596 = vmatpush1.msra.mxu0 0.0
      %4597 = vmatprep.subr.mxu0 0.0
      %4598 = vmatpush1.msra.mxu0 0.0
      %4599 = vmatprep.subr.mxu0 0.0
      %4600 = vmatpush1.msra.mxu0 0.0
      %4601 = vmatprep.subr.mxu0 0.0
      %4602 = vmatpush1.msra.mxu0 0.0
      %4603 = vmatprep.subr.mxu0 0.0
      %4604 = vmatpush1.msra.mxu0 0.0
      %4605 = vmatprep.subr.mxu0 0.0
      %4606 = vmatpush1.msra.mxu0 0.0
      %4607 = vmatprep.subr.mxu0 0.0
      %4608 = vmatpush1.msra.mxu0 0.0
      %4609 = vmatprep.subr.mxu0 0.0
      %4610 = vmatpush1.msra.mxu0 0.0
      %4611 = vmatprep.subr.mxu0 0.0
      %4612 = vmatpush1.msra.mxu0 0.0
      %4613 = vmatprep.subr.mxu0 0.0
      %4614 = vmatpush1.msra.mxu0 0.0
      %4615 = vmatprep.subr.mxu0 0.0
      %4616 = vmatpush1.msra.mxu0 0.0
      %4617 = vmatprep.mubr.f32.mxu0 0.0
      %4618 = vmatmul.mubr.f32.gmra.mrb[0].mxu0 %v4504
      %v4619 = vpop.f32.mrb[0].mxu0
      %v4620 = vadd.f32 0.0, %v4619
      %v4621 = vpop.f32.mrb[0].mxu0
      %4622 = vmatprep.mubr.f32.mxu0 0.0
      %4623 = vmatmul.mubr.f32.gmra.mrb[0].mxu0 %v4505
      %v4624 = vpop.f32.mrb[0].mxu0
      %v4625 = vadd.f32 0.0, %v4624
      %v4626 = vpop.f32.mrb[0].mxu0
      %4627 = vmatprep.mubr.f32.mxu0 0.0
      %4628 = vmatmul.mubr.f32.gmra.mrb[0].mxu0 %v4506
      %v4629 = vpop.f32.mrb[0].mxu0
      %v4630 = vadd.f32 0.0, %v4629
      %v4631 = vpop.f32.mrb[0].mxu0
      %4632 = vmatprep.mubr.f32.mxu0 0.0
      %4633 = vmatmul.mubr.f32.gmra.mrb[0].mxu0 %v4507
      %v4634 = vpop.f32.mrb[0].mxu0
      %v4635 = vadd.f32 0.0, %v4634
      %v4636 = vpop.f32.mrb[0].mxu0
      %4637 = vmatprep.mubr.f32.mxu0 0.0
      %4638 = vmatmul.mubr.f32.gmra.mrb[0].mxu0 %v4508
      %v4639 = vpop.f32.mrb[0].mxu0
      %v4640 = vadd.f32 0.0, %v4639
      %v4641 = vpop.f32.mrb[0].mxu0
      %4642 = vmatprep.mubr.f32.mxu0 0.0
      %4643 = vmatmul.mubr.f32.gmra.mrb[0].mxu0 %v4509
      %v4644 = vpop.f32.mrb[0].mxu0
      %v4645 = vadd.f32 0.0, %v4644
      %v4646 = vpop.f32.mrb[0].mxu0
      %4647 = vmatprep.mubr.f32.mxu0 0.0
      %4648 = vmatmul.mubr.f32.gmra.mrb[0].mxu0 %v4510
      %v4649 = vpop.f32.mrb[0].mxu0
      %v4650 = vadd.f32 0.0, %v4649
      %v4651 = vpop.f32.mrb[0].mxu0
      %4652 = vmatprep.mubr.f32.mxu0 0.0
      %4653 = vmatmul.mubr.f32.gmra.mrb[0].mxu0 %v4511
      %v4654 = vpop.f32.mrb[0].mxu0
      %v4655 = vadd.f32 0.0, %v4654
      %v4656 = vpop.f32.mrb[0].mxu0
      %4657 = vmatprep.mubr.f32.mxu0 0.0
      %4658 = vmatmul.mubr.f32.gmra.mrb[0].mxu0 %v4512
      %v4659 = vpop.f32.mrb[0].mxu0
      %v4660 = vadd.f32 0.0, %v4659
      %v4661 = vpop.f32.mrb[0].mxu0
      %4662 = vmatprep.mubr.f32.mxu0 0.0
      %4663 = vmatmul.mubr.f32.gmra.mrb[0].mxu0 %v4513
      %v4664 = vpop.f32.mrb[0].mxu0
      %v4665 = vadd.f32 0.0, %v4664
      %v4666 = vpop.f32.mrb[0].mxu0
      %4667 = vmatprep.mubr.f32.mxu0 0.0
      %4668 = vmatmul.mubr.f32.gmra.mrb[0].mxu0 %v4514
      %v4669 = vpop.f32.mrb[0].mxu0
      %v4670 = vadd.f32 0.0, %v4669
      %v4671 = vpop.f32.mrb[0].mxu0
      %4672 = vmatprep.mubr.f32.mxu0 0.0
      %4673 = vmatmul.mubr.f32.gmra.mrb[0].mxu0 %v4515
      %v4674 = vpop.f32.mrb[0].mxu0
      %v4675 = vadd.f32 0.0, %v4674
      %v4676 = vpop.f32.mrb[0].mxu0
      %4677 = vmatprep.mubr.f32.mxu0 0.0
      %4678 = vmatmul.mubr.f32.gmra.mrb[0].mxu0 %v4516
      %v4679 = vpop.f32.mrb[0].mxu0
      %v4680 = vadd.f32 0.0, %v4679
      %v4681 = vpop.f32.mrb[0].mxu0
      %4682 = vmatprep.mubr.f32.mxu0 0.0
      %4683 = vmatmul.mubr.f32.gmra.mrb[0].mxu0 %v4517
      %v4684 = vpop.f32.mrb[0].mxu0
      %v4685 = vadd.f32 0.0, %v4684
      %v4686 = vpop.f32.mrb[0].mxu0
      %4687 = vmatprep.mubr.f32.mxu0 0.0
      %4688 = vmatmul.mubr.f32.gmra.mrb[0].mxu0 %v4518
      %v4689 = vpop.f32.mrb[0].mxu0
      %v4690 = vadd.f32 0.0, %v4689
      %v4691 = vpop.f32.mrb[0].mxu0
      %4692 = vmatprep.mubr.f32.mxu0 0.0
      %4693 = vmatmul.mubr.f32.gmra.mrb[0].mxu0 %v4519
      %v4694 = vpop.f32.mrb[0].mxu0
      %v4695 = vadd.f32 0.0, %v4694
      %v4696 = vpop.f32.mrb[0].mxu0
      %4697 = vmatprep.mubr.f32.mxu0 0.0
      %4698 = vmatmul.mubr.f32.gmra.mrb[0].mxu0 %v4520
      %v4699 = vpop.f32.mrb[0].mxu0
      %v4700 = vadd.f32 0.0, %v4699
      %v4701 = vpop.f32.mrb[0].mxu0
      %4702 = vmatprep.mubr.f32.mxu0 0.0
      %4703 = vmatmul.mubr.f32.gmra.mrb[0].mxu0 %v4521
      %v4704 = vpop.f32.mrb[0].mxu0
      %v4705 = vadd.f32 0.0, %v4704
      %v4706 = vpop.f32.mrb[0].mxu0
      %4707 = vmatprep.mubr.f32.mxu0 0.0
      %4708 = vmatmul.mubr.f32.gmra.mrb[0].mxu0 %v4522
      %v4709 = vpop.f32.mrb[0].mxu0
      %v4710 = vadd.f32 0.0, %v4709
      %v4711 = vpop.f32.mrb[0].mxu0
      %4712 = vmatprep.mubr.f32.mxu0 0.0
      %4713 = vmatmul.mubr.f32.gmra.mrb[0].mxu0 %v4523
      %v4714 = vpop.f32.mrb[0].mxu0
      %v4715 = vadd.f32 0.0, %v4714
      %v4716 = vpop.f32.mrb[0].mxu0
      %4717 = vmatprep.mubr.f32.mxu0 0.0
      %4718 = vmatmul.mubr.f32.gmra.mrb[0].mxu0 %v4524
      %v4719 = vpop.f32.mrb[0].mxu0
      %v4720 = vadd.f32 0.0, %v4719
      %v4721 = vpop.f32.mrb[0].mxu0
      %4722 = vmatprep.mubr.f32.mxu0 0.0
      %4723 = vmatmul.mubr.f32.gmra.mrb[0].mxu0 %v4525
      %v4724 = vpop.f32.mrb[0].mxu0
      %v4725 = vadd.f32 0.0, %v4724
      %v4726 = vpop.f32.mrb[0].mxu0
      %4727 = vmatprep.mubr.f32.mxu0 0.0
      %4728 = vmatmul.mubr.f32.gmra.mrb[0].mxu0 %v4526
      %v4729 = vpop.f32.mrb[0].mxu0
      %v4730 = vadd.f32 0.0, %v4729
      %v4731 = vpop.f32.mrb[0].mxu0
      %4732 = vmatprep.mubr.f32.mxu0 0.0
      %4733 = vmatmul.mubr.f32.gmra.mrb[0].mxu0 %v4527
      %v4734 = vpop.f32.mrb[0].mxu0
      %v4735 = vadd.f32 0.0, %v4734
      %v4736 = vpop.f32.mrb[0].mxu0
      %4737 = vmatprep.mubr.f32.mxu0 0.0
      %4738 = vmatmul.mubr.f32.gmra.mrb[0].mxu0 %v4528
      %v4739 = vpop.f32.mrb[0].mxu0
      %v4740 = vadd.f32 0.0, %v4739
      %v4741 = vpop.f32.mrb[0].mxu0
      %4742 = vmatprep.mubr.f32.mxu0 0.0
      %4743 = vmatmul.mubr.f32.gmra.mrb[0].mxu0 %v4529
      %v4744 = vpop.f32.mrb[0].mxu0
      %v4745 = vadd.f32 0.0, %v4744
      %v4746 = vpop.f32.mrb[0].mxu0
      %4747 = vmatprep.mubr.f32.mxu0 0.0
      %4748 = vmatmul.mubr.f32.gmra.mrb[0].mxu0 %v4530
      %v4749 = vpop.f32.mrb[0].mxu0
      %v4750 = vadd.f32 0.0, %v4749
      %v4751 = vpop.f32.mrb[0].mxu0
      %4752 = vmatprep.mubr.f32.mxu0 0.0
      %4753 = vmatmul.mubr.f32.gmra.mrb[0].mxu0 %v4531
      %v4754 = vpop.f32.mrb[0].mxu0
      %v4755 = vadd.f32 0.0, %v4754
      %v4756 = vpop.f32.mrb[0].mxu0
      %4757 = vmatprep.mubr.f32.mxu0 0.0
      %4758 = vmatmul.mubr.f32.gmra.mrb[0].mxu0 %v4532
      %v4759 = vpop.f32.mrb[0].mxu0
      %v4760 = vadd.f32 0.0, %v4759
      %v4761 = vpop.f32.mrb[0].mxu0
      %4762 = vmatprep.mubr.f32.mxu0 0.0
      %4763 = vmatmul.mubr.f32.gmra.mrb[0].mxu0 %v4533
      %v4764 = vpop.f32.mrb[0].mxu0
      %v4765 = vadd.f32 0.0, %v4764
      %v4766 = vpop.f32.mrb[0].mxu0
      %4767 = vmatprep.mubr.f32.mxu0 0.0
      %4768 = vmatmul.mubr.f32.gmra.mrb[0].mxu0 %v4534
      %v4769 = vpop.f32.mrb[0].mxu0
      %v4770 = vadd.f32 0.0, %v4769
      %v4771 = vpop.f32.mrb[0].mxu0
      %4772 = vmatprep.mubr.f32.mxu0 0.0
      %4773 = vmatmul.mubr.f32.gmra.mrb[0].mxu0 %v4535
      %v4774 = vpop.f32.mrb[0].mxu0
      %v4775 = vadd.f32 0.0, %v4774
      %v4776 = vpop.f32.mrb[0].mxu0
      %4777 = vdwg.mxu0
      %v4778 = vadd.f32 %v4472, %v4620
      %v4779 = vadd.f32 %v4473, %v4625
      %v4780 = vadd.f32 %v4474, %v4630
      %v4781 = vadd.f32 %v4475, %v4635
      %v4782 = vadd.f32 %v4476, %v4640
      %v4783 = vadd.f32 %v4477, %v4645
      %v4784 = vadd.f32 %v4478, %v4650
      %v4785 = vadd.f32 %v4479, %v4655
      %v4786 = vadd.f32 %v4480, %v4660
      %v4787 = vadd.f32 %v4481, %v4665
      %v4788 = vadd.f32 %v4482, %v4670
      %v4789 = vadd.f32 %v4483, %v4675
      %v4790 = vadd.f32 %v4484, %v4680
      %v4791 = vadd.f32 %v4485, %v4685
      %v4792 = vadd.f32 %v4486, %v4690
      %v4793 = vadd.f32 %v4487, %v4695
      %v4794 = vadd.f32 %v4488, %v4700
      %v4795 = vadd.f32 %v4489, %v4705
      %v4796 = vadd.f32 %v4490, %v4710
      %v4797 = vadd.f32 %v4491, %v4715
      %v4798 = vadd.f32 %v4492, %v4720
      %v4799 = vadd.f32 %v4493, %v4725
      %v4800 = vadd.f32 %v4494, %v4730
      %v4801 = vadd.f32 %v4495, %v4735
      %v4802 = vadd.f32 %v4496, %v4740
      %v4803 = vadd.f32 %v4497, %v4745
      %v4804 = vadd.f32 %v4498, %v4750
      %v4805 = vadd.f32 %v4499, %v4755
      %v4806 = vadd.f32 %v4500, %v4760
      %v4807 = vadd.f32 %v4501, %v4765
      %v4808 = vadd.f32 %v4502, %v4770
      %v4809 = vadd.f32 %v4503, %v4775
      %s4810 = scalar_lea.vmem [#allocation2], 48
      %v4811 = vld [vmem:[%s4810] sm:$0xff]
      %v4812 = vld [vmem:[%s4810 + $0x8] sm:$0xff]
      %v4813 = vld [vmem:[%s4810 + $0x18] sm:$0xff]
      %v4814 = vld [vmem:[%s4810 + $0x20] sm:$0xff]
      %v4815 = vld [vmem:[%s4810 + $0x30] sm:$0xff]
      %v4816 = vld [vmem:[%s4810 + $0x38] sm:$0xff]
      %v4817 = vld [vmem:[%s4810 + $0x48] sm:$0xff]
      %v4818 = vld [vmem:[%s4810 + $0x50] sm:$0xff]
      %v4819 = vld [vmem:[%s4810 + $0x60] sm:$0xff]
      %v4820 = vld [vmem:[%s4810 + $0x68] sm:$0xff]
      %v4821 = vld [vmem:[%s4810 + $0x78] sm:$0xff]
      %v4822 = vld [vmem:[%s4810 + $0x80] sm:$0xff]
      %v4823 = vld [vmem:[%s4810 + $0x90] sm:$0xff]
      %v4824 = vld [vmem:[%s4810 + $0x98] sm:$0xff]
      %v4825 = vld [vmem:[%s4810 + $0xa8] sm:$0xff]
      %v4826 = vld [vmem:[%s4810 + $0xb0] sm:$0xff]
      %v4827 = vld [vmem:[%s4810 + $0xc0] sm:$0xff]
      %v4828 = vld [vmem:[%s4810 + $0xc8] sm:$0xff]
      %v4829 = vld [vmem:[%s4810 + $0xd8] sm:$0xff]
      %v4830 = vld [vmem:[%s4810 + $0xe0] sm:$0xff]
      %v4831 = vld [vmem:[%s4810 + $0xf0] sm:$0xff]
      %v4832 = vld [vmem:[%s4810 + $0xf8] sm:$0xff]
      %v4833 = vld [vmem:[%s4810 + $0x108] sm:$0xff]
      %v4834 = vld [vmem:[%s4810 + $0x110] sm:$0xff]
      %v4835 = vld [vmem:[%s4810 + $0x120] sm:$0xff]
      %v4836 = vld [vmem:[%s4810 + $0x128] sm:$0xff]
      %v4837 = vld [vmem:[%s4810 + $0x138] sm:$0xff]
      %v4838 = vld [vmem:[%s4810 + $0x140] sm:$0xff]
      %v4839 = vld [vmem:[%s4810 + $0x150] sm:$0xff]
      %v4840 = vld [vmem:[%s4810 + $0x158] sm:$0xff]
      %v4841 = vld [vmem:[%s4810 + $0x168] sm:$0xff]
      %v4842 = vld [vmem:[%s4810 + $0x170] sm:$0xff]
      %s4843 = scalar_lea.vmem %s1, 1920
      %v4844 = vld [vmem:[%s4843] sm:$0xff]
      %v4845 = vld [vmem:[%s4843 + $0x8] sm:$0xff]
      %v4846 = vld [vmem:[%s4843 + $0x10] sm:$0xff]
      %v4847 = vld [vmem:[%s4843 + $0x18] sm:$0xff]
      %v4848 = vld [vmem:[%s4843 + $0x20] sm:$0xff]
      %v4849 = vld [vmem:[%s4843 + $0x28] sm:$0xff]
      %v4850 = vld [vmem:[%s4843 + $0x30] sm:$0xff]
      %v4851 = vld [vmem:[%s4843 + $0x38] sm:$0xff]
      %v4852 = vld [vmem:[%s4843 + $0x40] sm:$0xff]
      %v4853 = vld [vmem:[%s4843 + $0x48] sm:$0xff]
      %v4854 = vld [vmem:[%s4843 + $0x50] sm:$0xff]
      %v4855 = vld [vmem:[%s4843 + $0x58] sm:$0xff]
      %v4856 = vld [vmem:[%s4843 + $0x60] sm:$0xff]
      %v4857 = vld [vmem:[%s4843 + $0x68] sm:$0xff]
      %v4858 = vld [vmem:[%s4843 + $0x70] sm:$0xff]
      %v4859 = vld [vmem:[%s4843 + $0x78] sm:$0xff]
      %4860 = vmatprep.subr.mxu0 0.0
      %4861 = vmatpush1.msra.mxu0 %v4844
      %4862 = vmatprep.subr.mxu0 0.0
      %4863 = vmatpush1.msra.mxu0 %v4845
      %4864 = vmatprep.subr.mxu0 0.0
      %4865 = vmatpush1.msra.mxu0 %v4846
      %4866 = vmatprep.subr.mxu0 0.0
      %4867 = vmatpush1.msra.mxu0 %v4847
      %4868 = vmatprep.subr.mxu0 0.0
      %4869 = vmatpush1.msra.mxu0 %v4848
      %4870 = vmatprep.subr.mxu0 0.0
      %4871 = vmatpush1.msra.mxu0 %v4849
      %4872 = vmatprep.subr.mxu0 0.0
      %4873 = vmatpush1.msra.mxu0 %v4850
      %4874 = vmatprep.subr.mxu0 0.0
      %4875 = vmatpush1.msra.mxu0 %v4851
      %4876 = vmatprep.subr.mxu0 0.0
      %4877 = vmatpush1.msra.mxu0 %v4852
      %4878 = vmatprep.subr.mxu0 0.0
      %4879 = vmatpush1.msra.mxu0 %v4853
      %4880 = vmatprep.subr.mxu0 0.0
      %4881 = vmatpush1.msra.mxu0 %v4854
      %4882 = vmatprep.subr.mxu0 0.0
      %4883 = vmatpush1.msra.mxu0 %v4855
      %4884 = vmatprep.subr.mxu0 0.0
      %4885 = vmatpush1.msra.mxu0 %v4856
      %4886 = vmatprep.subr.mxu0 0.0
      %4887 = vmatpush1.msra.mxu0 %v4857
      %4888 = vmatprep.subr.mxu0 0.0
      %4889 = vmatpush1.msra.mxu0 %v4858
      %4890 = vmatprep.subr.mxu0 0.0
      %4891 = vmatpush1.msra.mxu0 %v4859
      %4892 = vmatprep.subr.mxu0 0.0
      %4893 = vmatpush1.msra.mxu0 0.0
      %4894 = vmatprep.subr.mxu0 0.0
      %4895 = vmatpush1.msra.mxu0 0.0
      %4896 = vmatprep.subr.mxu0 0.0
      %4897 = vmatpush1.msra.mxu0 0.0
      %4898 = vmatprep.subr.mxu0 0.0
      %4899 = vmatpush1.msra.mxu0 0.0
      %4900 = vmatprep.subr.mxu0 0.0
      %4901 = vmatpush1.msra.mxu0 0.0
      %4902 = vmatprep.subr.mxu0 0.0
      %4903 = vmatpush1.msra.mxu0 0.0
      %4904 = vmatprep.subr.mxu0 0.0
      %4905 = vmatpush1.msra.mxu0 0.0
      %4906 = vmatprep.subr.mxu0 0.0
      %4907 = vmatpush1.msra.mxu0 0.0
      %4908 = vmatprep.subr.mxu0 0.0
      %4909 = vmatpush1.msra.mxu0 0.0
      %4910 = vmatprep.subr.mxu0 0.0
      %4911 = vmatpush1.msra.mxu0 0.0
      %4912 = vmatprep.subr.mxu0 0.0
      %4913 = vmatpush1.msra.mxu0 0.0
      %4914 = vmatprep.subr.mxu0 0.0
      %4915 = vmatpush1.msra.mxu0 0.0
      %4916 = vmatprep.subr.mxu0 0.0
      %4917 = vmatpush1.msra.mxu0 0.0
      %4918 = vmatprep.subr.mxu0 0.0
      %4919 = vmatpush1.msra.mxu0 0.0
      %4920 = vmatprep.subr.mxu0 0.0
      %4921 = vmatpush1.msra.mxu0 0.0
      %4922 = vmatprep.subr.mxu0 0.0
      %4923 = vmatpush1.msra.mxu0 0.0
      %4924 = vmatprep.mubr.f32.mxu0 0.0
      %4925 = vmatmul.mubr.f32.gmra.mrb[0].mxu0 %v4811
      %v4926 = vpop.f32.mrb[0].mxu0
      %v4927 = vadd.f32 0.0, %v4926
      %v4928 = vpop.f32.mrb[0].mxu0
      %4929 = vmatprep.mubr.f32.mxu0 0.0
      %4930 = vmatmul.mubr.f32.gmra.mrb[0].mxu0 %v4812
      %v4931 = vpop.f32.mrb[0].mxu0
      %v4932 = vadd.f32 0.0, %v4931
      %v4933 = vpop.f32.mrb[0].mxu0
      %4934 = vmatprep.mubr.f32.mxu0 0.0
      %4935 = vmatmul.mubr.f32.gmra.mrb[0].mxu0 %v4813
      %v4936 = vpop.f32.mrb[0].mxu0
      %v4937 = vadd.f32 0.0, %v4936
      %v4938 = vpop.f32.mrb[0].mxu0
      %4939 = vmatprep.mubr.f32.mxu0 0.0
      %4940 = vmatmul.mubr.f32.gmra.mrb[0].mxu0 %v4814
      %v4941 = vpop.f32.mrb[0].mxu0
      %v4942 = vadd.f32 0.0, %v4941
      %v4943 = vpop.f32.mrb[0].mxu0
      %4944 = vmatprep.mubr.f32.mxu0 0.0
      %4945 = vmatmul.mubr.f32.gmra.mrb[0].mxu0 %v4815
      %v4946 = vpop.f32.mrb[0].mxu0
      %v4947 = vadd.f32 0.0, %v4946
      %v4948 = vpop.f32.mrb[0].mxu0
      %4949 = vmatprep.mubr.f32.mxu0 0.0
      %4950 = vmatmul.mubr.f32.gmra.mrb[0].mxu0 %v4816
      %v4951 = vpop.f32.mrb[0].mxu0
      %v4952 = vadd.f32 0.0, %v4951
      %v4953 = vpop.f32.mrb[0].mxu0
      %4954 = vmatprep.mubr.f32.mxu0 0.0
      %4955 = vmatmul.mubr.f32.gmra.mrb[0].mxu0 %v4817
      %v4956 = vpop.f32.mrb[0].mxu0
      %v4957 = vadd.f32 0.0, %v4956
      %v4958 = vpop.f32.mrb[0].mxu0
      %4959 = vmatprep.mubr.f32.mxu0 0.0
      %4960 = vmatmul.mubr.f32.gmra.mrb[0].mxu0 %v4818
      %v4961 = vpop.f32.mrb[0].mxu0
      %v4962 = vadd.f32 0.0, %v4961
      %v4963 = vpop.f32.mrb[0].mxu0
      %4964 = vmatprep.mubr.f32.mxu0 0.0
      %4965 = vmatmul.mubr.f32.gmra.mrb[0].mxu0 %v4819
      %v4966 = vpop.f32.mrb[0].mxu0
      %v4967 = vadd.f32 0.0, %v4966
      %v4968 = vpop.f32.mrb[0].mxu0
      %4969 = vmatprep.mubr.f32.mxu0 0.0
      %4970 = vmatmul.mubr.f32.gmra.mrb[0].mxu0 %v4820
      %v4971 = vpop.f32.mrb[0].mxu0
      %v4972 = vadd.f32 0.0, %v4971
      %v4973 = vpop.f32.mrb[0].mxu0
      %4974 = vmatprep.mubr.f32.mxu0 0.0
      %4975 = vmatmul.mubr.f32.gmra.mrb[0].mxu0 %v4821
      %v4976 = vpop.f32.mrb[0].mxu0
      %v4977 = vadd.f32 0.0, %v4976
      %v4978 = vpop.f32.mrb[0].mxu0
      %4979 = vmatprep.mubr.f32.mxu0 0.0
      %4980 = vmatmul.mubr.f32.gmra.mrb[0].mxu0 %v4822
      %v4981 = vpop.f32.mrb[0].mxu0
      %v4982 = vadd.f32 0.0, %v4981
      %v4983 = vpop.f32.mrb[0].mxu0
      %4984 = vmatprep.mubr.f32.mxu0 0.0
      %4985 = vmatmul.mubr.f32.gmra.mrb[0].mxu0 %v4823
      %v4986 = vpop.f32.mrb[0].mxu0
      %v4987 = vadd.f32 0.0, %v4986
      %v4988 = vpop.f32.mrb[0].mxu0
      %4989 = vmatprep.mubr.f32.mxu0 0.0
      %4990 = vmatmul.mubr.f32.gmra.mrb[0].mxu0 %v4824
      %v4991 = vpop.f32.mrb[0].mxu0
      %v4992 = vadd.f32 0.0, %v4991
      %v4993 = vpop.f32.mrb[0].mxu0
      %4994 = vmatprep.mubr.f32.mxu0 0.0
      %4995 = vmatmul.mubr.f32.gmra.mrb[0].mxu0 %v4825
      %v4996 = vpop.f32.mrb[0].mxu0
      %v4997 = vadd.f32 0.0, %v4996
      %v4998 = vpop.f32.mrb[0].mxu0
      %4999 = vmatprep.mubr.f32.mxu0 0.0
      %5000 = vmatmul.mubr.f32.gmra.mrb[0].mxu0 %v4826
      %v5001 = vpop.f32.mrb[0].mxu0
      %v5002 = vadd.f32 0.0, %v5001
      %v5003 = vpop.f32.mrb[0].mxu0
      %5004 = vmatprep.mubr.f32.mxu0 0.0
      %5005 = vmatmul.mubr.f32.gmra.mrb[0].mxu0 %v4827
      %v5006 = vpop.f32.mrb[0].mxu0
      %v5007 = vadd.f32 0.0, %v5006
      %v5008 = vpop.f32.mrb[0].mxu0
      %5009 = vmatprep.mubr.f32.mxu0 0.0
      %5010 = vmatmul.mubr.f32.gmra.mrb[0].mxu0 %v4828
      %v5011 = vpop.f32.mrb[0].mxu0
      %v5012 = vadd.f32 0.0, %v5011
      %v5013 = vpop.f32.mrb[0].mxu0
      %5014 = vmatprep.mubr.f32.mxu0 0.0
      %5015 = vmatmul.mubr.f32.gmra.mrb[0].mxu0 %v4829
      %v5016 = vpop.f32.mrb[0].mxu0
      %v5017 = vadd.f32 0.0, %v5016
      %v5018 = vpop.f32.mrb[0].mxu0
      %5019 = vmatprep.mubr.f32.mxu0 0.0
      %5020 = vmatmul.mubr.f32.gmra.mrb[0].mxu0 %v4830
      %v5021 = vpop.f32.mrb[0].mxu0
      %v5022 = vadd.f32 0.0, %v5021
      %v5023 = vpop.f32.mrb[0].mxu0
      %5024 = vmatprep.mubr.f32.mxu0 0.0
      %5025 = vmatmul.mubr.f32.gmra.mrb[0].mxu0 %v4831
      %v5026 = vpop.f32.mrb[0].mxu0
      %v5027 = vadd.f32 0.0, %v5026
      %v5028 = vpop.f32.mrb[0].mxu0
      %5029 = vmatprep.mubr.f32.mxu0 0.0
      %5030 = vmatmul.mubr.f32.gmra.mrb[0].mxu0 %v4832
      %v5031 = vpop.f32.mrb[0].mxu0
      %v5032 = vadd.f32 0.0, %v5031
      %v5033 = vpop.f32.mrb[0].mxu0
      %5034 = vmatprep.mubr.f32.mxu0 0.0
      %5035 = vmatmul.mubr.f32.gmra.mrb[0].mxu0 %v4833
      %v5036 = vpop.f32.mrb[0].mxu0
      %v5037 = vadd.f32 0.0, %v5036
      %v5038 = vpop.f32.mrb[0].mxu0
      %5039 = vmatprep.mubr.f32.mxu0 0.0
      %5040 = vmatmul.mubr.f32.gmra.mrb[0].mxu0 %v4834
      %v5041 = vpop.f32.mrb[0].mxu0
      %v5042 = vadd.f32 0.0, %v5041
      %v5043 = vpop.f32.mrb[0].mxu0
      %5044 = vmatprep.mubr.f32.mxu0 0.0
      %5045 = vmatmul.mubr.f32.gmra.mrb[0].mxu0 %v4835
      %v5046 = vpop.f32.mrb[0].mxu0
      %v5047 = vadd.f32 0.0, %v5046
      %v5048 = vpop.f32.mrb[0].mxu0
      %5049 = vmatprep.mubr.f32.mxu0 0.0
      %5050 = vmatmul.mubr.f32.gmra.mrb[0].mxu0 %v4836
      %v5051 = vpop.f32.mrb[0].mxu0
      %v5052 = vadd.f32 0.0, %v5051
      %v5053 = vpop.f32.mrb[0].mxu0
      %5054 = vmatprep.mubr.f32.mxu0 0.0
      %5055 = vmatmul.mubr.f32.gmra.mrb[0].mxu0 %v4837
      %v5056 = vpop.f32.mrb[0].mxu0
      %v5057 = vadd.f32 0.0, %v5056
      %v5058 = vpop.f32.mrb[0].mxu0
      %5059 = vmatprep.mubr.f32.mxu0 0.0
      %5060 = vmatmul.mubr.f32.gmra.mrb[0].mxu0 %v4838
      %v5061 = vpop.f32.mrb[0].mxu0
      %v5062 = vadd.f32 0.0, %v5061
      %v5063 = vpop.f32.mrb[0].mxu0
      %5064 = vmatprep.mubr.f32.mxu0 0.0
      %5065 = vmatmul.mubr.f32.gmra.mrb[0].mxu0 %v4839
      %v5066 = vpop.f32.mrb[0].mxu0
      %v5067 = vadd.f32 0.0, %v5066
      %v5068 = vpop.f32.mrb[0].mxu0
      %5069 = vmatprep.mubr.f32.mxu0 0.0
      %5070 = vmatmul.mubr.f32.gmra.mrb[0].mxu0 %v4840
      %v5071 = vpop.f32.mrb[0].mxu0
      %v5072 = vadd.f32 0.0, %v5071
      %v5073 = vpop.f32.mrb[0].mxu0
      %5074 = vmatprep.mubr.f32.mxu0 0.0
      %5075 = vmatmul.mubr.f32.gmra.mrb[0].mxu0 %v4841
      %v5076 = vpop.f32.mrb[0].mxu0
      %v5077 = vadd.f32 0.0, %v5076
      %v5078 = vpop.f32.mrb[0].mxu0
      %5079 = vmatprep.mubr.f32.mxu0 0.0
      %5080 = vmatmul.mubr.f32.gmra.mrb[0].mxu0 %v4842
      %v5081 = vpop.f32.mrb[0].mxu0
      %v5082 = vadd.f32 0.0, %v5081
      %v5083 = vpop.f32.mrb[0].mxu0
      %5084 = vdwg.mxu0
      %v5085 = vadd.f32 %v4778, %v4927
      %v5086 = vadd.f32 %v4779, %v4932
      %v5087 = vadd.f32 %v4780, %v4937
      %v5088 = vadd.f32 %v4781, %v4942
      %v5089 = vadd.f32 %v4782, %v4947
      %v5090 = vadd.f32 %v4783, %v4952
      %v5091 = vadd.f32 %v4784, %v4957
      %v5092 = vadd.f32 %v4785, %v4962
      %v5093 = vadd.f32 %v4786, %v4967
      %v5094 = vadd.f32 %v4787, %v4972
      %v5095 = vadd.f32 %v4788, %v4977
      %v5096 = vadd.f32 %v4789, %v4982
      %v5097 = vadd.f32 %v4790, %v4987
      %v5098 = vadd.f32 %v4791, %v4992
      %v5099 = vadd.f32 %v4792, %v4997
      %v5100 = vadd.f32 %v4793, %v5002
      %v5101 = vadd.f32 %v4794, %v5007
      %v5102 = vadd.f32 %v4795, %v5012
      %v5103 = vadd.f32 %v4796, %v5017
      %v5104 = vadd.f32 %v4797, %v5022
      %v5105 = vadd.f32 %v4798, %v5027
      %v5106 = vadd.f32 %v4799, %v5032
      %v5107 = vadd.f32 %v4800, %v5037
      %v5108 = vadd.f32 %v4801, %v5042
      %v5109 = vadd.f32 %v4802, %v5047
      %v5110 = vadd.f32 %v4803, %v5052
      %v5111 = vadd.f32 %v4804, %v5057
      %v5112 = vadd.f32 %v4805, %v5062
      %v5113 = vadd.f32 %v4806, %v5067
      %v5114 = vadd.f32 %v4807, %v5072
      %v5115 = vadd.f32 %v4808, %v5077
      %v5116 = vadd.f32 %v4809, %v5082
      %v5117 = vld [vmem:[%s4810 + $0x1] sm:$0xff]
      %v5118 = vld [vmem:[%s4810 + $0x9] sm:$0xff]
      %v5119 = vld [vmem:[%s4810 + $0x19] sm:$0xff]
      %v5120 = vld [vmem:[%s4810 + $0x21] sm:$0xff]
      %v5121 = vld [vmem:[%s4810 + $0x31] sm:$0xff]
      %v5122 = vld [vmem:[%s4810 + $0x39] sm:$0xff]
      %v5123 = vld [vmem:[%s4810 + $0x49] sm:$0xff]
      %v5124 = vld [vmem:[%s4810 + $0x51] sm:$0xff]
      %v5125 = vld [vmem:[%s4810 + $0x61] sm:$0xff]
      %v5126 = vld [vmem:[%s4810 + $0x69] sm:$0xff]
      %v5127 = vld [vmem:[%s4810 + $0x79] sm:$0xff]
      %v5128 = vld [vmem:[%s4810 + $0x81] sm:$0xff]
      %v5129 = vld [vmem:[%s4810 + $0x91] sm:$0xff]
      %v5130 = vld [vmem:[%s4810 + $0x99] sm:$0xff]
      %v5131 = vld [vmem:[%s4810 + $0xa9] sm:$0xff]
      %v5132 = vld [vmem:[%s4810 + $0xb1] sm:$0xff]
      %v5133 = vld [vmem:[%s4810 + $0xc1] sm:$0xff]
      %v5134 = vld [vmem:[%s4810 + $0xc9] sm:$0xff]
      %v5135 = vld [vmem:[%s4810 + $0xd9] sm:$0xff]
      %v5136 = vld [vmem:[%s4810 + $0xe1] sm:$0xff]
      %v5137 = vld [vmem:[%s4810 + $0xf1] sm:$0xff]
      %v5138 = vld [vmem:[%s4810 + $0xf9] sm:$0xff]
      %v5139 = vld [vmem:[%s4810 + $0x109] sm:$0xff]
      %v5140 = vld [vmem:[%s4810 + $0x111] sm:$0xff]
      %v5141 = vld [vmem:[%s4810 + $0x121] sm:$0xff]
      %v5142 = vld [vmem:[%s4810 + $0x129] sm:$0xff]
      %v5143 = vld [vmem:[%s4810 + $0x139] sm:$0xff]
      %v5144 = vld [vmem:[%s4810 + $0x141] sm:$0xff]
      %v5145 = vld [vmem:[%s4810 + $0x151] sm:$0xff]
      %v5146 = vld [vmem:[%s4810 + $0x159] sm:$0xff]
      %v5147 = vld [vmem:[%s4810 + $0x169] sm:$0xff]
      %v5148 = vld [vmem:[%s4810 + $0x171] sm:$0xff]
      %s5149 = scalar_lea.vmem %s1, 2048
      %v5150 = vld [vmem:[%s5149] sm:$0xff]
      %v5151 = vld [vmem:[%s5149 + $0x8] sm:$0xff]
      %v5152 = vld [vmem:[%s5149 + $0x10] sm:$0xff]
      %v5153 = vld [vmem:[%s5149 + $0x18] sm:$0xff]
      %v5154 = vld [vmem:[%s5149 + $0x20] sm:$0xff]
      %v5155 = vld [vmem:[%s5149 + $0x28] sm:$0xff]
      %v5156 = vld [vmem:[%s5149 + $0x30] sm:$0xff]
      %v5157 = vld [vmem:[%s5149 + $0x38] sm:$0xff]
      %v5158 = vld [vmem:[%s5149 + $0x40] sm:$0xff]
      %v5159 = vld [vmem:[%s5149 + $0x48] sm:$0xff]
      %v5160 = vld [vmem:[%s5149 + $0x50] sm:$0xff]
      %v5161 = vld [vmem:[%s5149 + $0x58] sm:$0xff]
      %v5162 = vld [vmem:[%s5149 + $0x60] sm:$0xff]
      %v5163 = vld [vmem:[%s5149 + $0x68] sm:$0xff]
      %v5164 = vld [vmem:[%s5149 + $0x70] sm:$0xff]
      %v5165 = vld [vmem:[%s5149 + $0x78] sm:$0xff]
      %5166 = vmatprep.subr.mxu0 0.0
      %5167 = vmatpush1.msra.mxu0 %v5150
      %5168 = vmatprep.subr.mxu0 0.0
      %5169 = vmatpush1.msra.mxu0 %v5151
      %5170 = vmatprep.subr.mxu0 0.0
      %5171 = vmatpush1.msra.mxu0 %v5152
      %5172 = vmatprep.subr.mxu0 0.0
      %5173 = vmatpush1.msra.mxu0 %v5153
      %5174 = vmatprep.subr.mxu0 0.0
      %5175 = vmatpush1.msra.mxu0 %v5154
      %5176 = vmatprep.subr.mxu0 0.0
      %5177 = vmatpush1.msra.mxu0 %v5155
      %5178 = vmatprep.subr.mxu0 0.0
      %5179 = vmatpush1.msra.mxu0 %v5156
      %5180 = vmatprep.subr.mxu0 0.0
      %5181 = vmatpush1.msra.mxu0 %v5157
      %5182 = vmatprep.subr.mxu0 0.0
      %5183 = vmatpush1.msra.mxu0 %v5158
      %5184 = vmatprep.subr.mxu0 0.0
      %5185 = vmatpush1.msra.mxu0 %v5159
      %5186 = vmatprep.subr.mxu0 0.0
      %5187 = vmatpush1.msra.mxu0 %v5160
      %5188 = vmatprep.subr.mxu0 0.0
      %5189 = vmatpush1.msra.mxu0 %v5161
      %5190 = vmatprep.subr.mxu0 0.0
      %5191 = vmatpush1.msra.mxu0 %v5162
      %5192 = vmatprep.subr.mxu0 0.0
      %5193 = vmatpush1.msra.mxu0 %v5163
      %5194 = vmatprep.subr.mxu0 0.0
      %5195 = vmatpush1.msra.mxu0 %v5164
      %5196 = vmatprep.subr.mxu0 0.0
      %5197 = vmatpush1.msra.mxu0 %v5165
      %5198 = vmatprep.subr.mxu0 0.0
      %5199 = vmatpush1.msra.mxu0 0.0
      %5200 = vmatprep.subr.mxu0 0.0
      %5201 = vmatpush1.msra.mxu0 0.0
      %5202 = vmatprep.subr.mxu0 0.0
      %5203 = vmatpush1.msra.mxu0 0.0
      %5204 = vmatprep.subr.mxu0 0.0
      %5205 = vmatpush1.msra.mxu0 0.0
      %5206 = vmatprep.subr.mxu0 0.0
      %5207 = vmatpush1.msra.mxu0 0.0
      %5208 = vmatprep.subr.mxu0 0.0
      %5209 = vmatpush1.msra.mxu0 0.0
      %5210 = vmatprep.subr.mxu0 0.0
      %5211 = vmatpush1.msra.mxu0 0.0
      %5212 = vmatprep.subr.mxu0 0.0
      %5213 = vmatpush1.msra.mxu0 0.0
      %5214 = vmatprep.subr.mxu0 0.0
      %5215 = vmatpush1.msra.mxu0 0.0
      %5216 = vmatprep.subr.mxu0 0.0
      %5217 = vmatpush1.msra.mxu0 0.0
      %5218 = vmatprep.subr.mxu0 0.0
      %5219 = vmatpush1.msra.mxu0 0.0
      %5220 = vmatprep.subr.mxu0 0.0
      %5221 = vmatpush1.msra.mxu0 0.0
      %5222 = vmatprep.subr.mxu0 0.0
      %5223 = vmatpush1.msra.mxu0 0.0
      %5224 = vmatprep.subr.mxu0 0.0
      %5225 = vmatpush1.msra.mxu0 0.0
      %5226 = vmatprep.subr.mxu0 0.0
      %5227 = vmatpush1.msra.mxu0 0.0
      %5228 = vmatprep.subr.mxu0 0.0
      %5229 = vmatpush1.msra.mxu0 0.0
      %5230 = vmatprep.mubr.f32.mxu0 0.0
      %5231 = vmatmul.mubr.f32.gmra.mrb[0].mxu0 %v5117
      %v5232 = vpop.f32.mrb[0].mxu0
      %v5233 = vadd.f32 0.0, %v5232
      %v5234 = vpop.f32.mrb[0].mxu0
      %5235 = vmatprep.mubr.f32.mxu0 0.0
      %5236 = vmatmul.mubr.f32.gmra.mrb[0].mxu0 %v5118
      %v5237 = vpop.f32.mrb[0].mxu0
      %v5238 = vadd.f32 0.0, %v5237
      %v5239 = vpop.f32.mrb[0].mxu0
      %5240 = vmatprep.mubr.f32.mxu0 0.0
      %5241 = vmatmul.mubr.f32.gmra.mrb[0].mxu0 %v5119
      %v5242 = vpop.f32.mrb[0].mxu0
      %v5243 = vadd.f32 0.0, %v5242
      %v5244 = vpop.f32.mrb[0].mxu0
      %5245 = vmatprep.mubr.f32.mxu0 0.0
      %5246 = vmatmul.mubr.f32.gmra.mrb[0].mxu0 %v5120
      %v5247 = vpop.f32.mrb[0].mxu0
      %v5248 = vadd.f32 0.0, %v5247
      %v5249 = vpop.f32.mrb[0].mxu0
      %5250 = vmatprep.mubr.f32.mxu0 0.0
      %5251 = vmatmul.mubr.f32.gmra.mrb[0].mxu0 %v5121
      %v5252 = vpop.f32.mrb[0].mxu0
      %v5253 = vadd.f32 0.0, %v5252
      %v5254 = vpop.f32.mrb[0].mxu0
      %5255 = vmatprep.mubr.f32.mxu0 0.0
      %5256 = vmatmul.mubr.f32.gmra.mrb[0].mxu0 %v5122
      %v5257 = vpop.f32.mrb[0].mxu0
      %v5258 = vadd.f32 0.0, %v5257
      %v5259 = vpop.f32.mrb[0].mxu0
      %5260 = vmatprep.mubr.f32.mxu0 0.0
      %5261 = vmatmul.mubr.f32.gmra.mrb[0].mxu0 %v5123
      %v5262 = vpop.f32.mrb[0].mxu0
      %v5263 = vadd.f32 0.0, %v5262
      %v5264 = vpop.f32.mrb[0].mxu0
      %5265 = vmatprep.mubr.f32.mxu0 0.0
      %5266 = vmatmul.mubr.f32.gmra.mrb[0].mxu0 %v5124
      %v5267 = vpop.f32.mrb[0].mxu0
      %v5268 = vadd.f32 0.0, %v5267
      %v5269 = vpop.f32.mrb[0].mxu0
      %5270 = vmatprep.mubr.f32.mxu0 0.0
      %5271 = vmatmul.mubr.f32.gmra.mrb[0].mxu0 %v5125
      %v5272 = vpop.f32.mrb[0].mxu0
      %v5273 = vadd.f32 0.0, %v5272
      %v5274 = vpop.f32.mrb[0].mxu0
      %5275 = vmatprep.mubr.f32.mxu0 0.0
      %5276 = vmatmul.mubr.f32.gmra.mrb[0].mxu0 %v5126
      %v5277 = vpop.f32.mrb[0].mxu0
      %v5278 = vadd.f32 0.0, %v5277
      %v5279 = vpop.f32.mrb[0].mxu0
      %5280 = vmatprep.mubr.f32.mxu0 0.0
      %5281 = vmatmul.mubr.f32.gmra.mrb[0].mxu0 %v5127
      %v5282 = vpop.f32.mrb[0].mxu0
      %v5283 = vadd.f32 0.0, %v5282
      %v5284 = vpop.f32.mrb[0].mxu0
      %5285 = vmatprep.mubr.f32.mxu0 0.0
      %5286 = vmatmul.mubr.f32.gmra.mrb[0].mxu0 %v5128
      %v5287 = vpop.f32.mrb[0].mxu0
      %v5288 = vadd.f32 0.0, %v5287
      %v5289 = vpop.f32.mrb[0].mxu0
      %5290 = vmatprep.mubr.f32.mxu0 0.0
      %5291 = vmatmul.mubr.f32.gmra.mrb[0].mxu0 %v5129
      %v5292 = vpop.f32.mrb[0].mxu0
      %v5293 = vadd.f32 0.0, %v5292
      %v5294 = vpop.f32.mrb[0].mxu0
      %5295 = vmatprep.mubr.f32.mxu0 0.0
      %5296 = vmatmul.mubr.f32.gmra.mrb[0].mxu0 %v5130
      %v5297 = vpop.f32.mrb[0].mxu0
      %v5298 = vadd.f32 0.0, %v5297
      %v5299 = vpop.f32.mrb[0].mxu0
      %5300 = vmatprep.mubr.f32.mxu0 0.0
      %5301 = vmatmul.mubr.f32.gmra.mrb[0].mxu0 %v5131
      %v5302 = vpop.f32.mrb[0].mxu0
      %v5303 = vadd.f32 0.0, %v5302
      %v5304 = vpop.f32.mrb[0].mxu0
      %5305 = vmatprep.mubr.f32.mxu0 0.0
      %5306 = vmatmul.mubr.f32.gmra.mrb[0].mxu0 %v5132
      %v5307 = vpop.f32.mrb[0].mxu0
      %v5308 = vadd.f32 0.0, %v5307
      %v5309 = vpop.f32.mrb[0].mxu0
      %5310 = vmatprep.mubr.f32.mxu0 0.0
      %5311 = vmatmul.mubr.f32.gmra.mrb[0].mxu0 %v5133
      %v5312 = vpop.f32.mrb[0].mxu0
      %v5313 = vadd.f32 0.0, %v5312
      %v5314 = vpop.f32.mrb[0].mxu0
      %5315 = vmatprep.mubr.f32.mxu0 0.0
      %5316 = vmatmul.mubr.f32.gmra.mrb[0].mxu0 %v5134
      %v5317 = vpop.f32.mrb[0].mxu0
      %v5318 = vadd.f32 0.0, %v5317
      %v5319 = vpop.f32.mrb[0].mxu0
      %5320 = vmatprep.mubr.f32.mxu0 0.0
      %5321 = vmatmul.mubr.f32.gmra.mrb[0].mxu0 %v5135
      %v5322 = vpop.f32.mrb[0].mxu0
      %v5323 = vadd.f32 0.0, %v5322
      %v5324 = vpop.f32.mrb[0].mxu0
      %5325 = vmatprep.mubr.f32.mxu0 0.0
      %5326 = vmatmul.mubr.f32.gmra.mrb[0].mxu0 %v5136
      %v5327 = vpop.f32.mrb[0].mxu0
      %v5328 = vadd.f32 0.0, %v5327
      %v5329 = vpop.f32.mrb[0].mxu0
      %5330 = vmatprep.mubr.f32.mxu0 0.0
      %5331 = vmatmul.mubr.f32.gmra.mrb[0].mxu0 %v5137
      %v5332 = vpop.f32.mrb[0].mxu0
      %v5333 = vadd.f32 0.0, %v5332
      %v5334 = vpop.f32.mrb[0].mxu0
      %5335 = vmatprep.mubr.f32.mxu0 0.0
      %5336 = vmatmul.mubr.f32.gmra.mrb[0].mxu0 %v5138
      %v5337 = vpop.f32.mrb[0].mxu0
      %v5338 = vadd.f32 0.0, %v5337
      %v5339 = vpop.f32.mrb[0].mxu0
      %5340 = vmatprep.mubr.f32.mxu0 0.0
      %5341 = vmatmul.mubr.f32.gmra.mrb[0].mxu0 %v5139
      %v5342 = vpop.f32.mrb[0].mxu0
      %v5343 = vadd.f32 0.0, %v5342
      %v5344 = vpop.f32.mrb[0].mxu0
      %5345 = vmatprep.mubr.f32.mxu0 0.0
      %5346 = vmatmul.mubr.f32.gmra.mrb[0].mxu0 %v5140
      %v5347 = vpop.f32.mrb[0].mxu0
      %v5348 = vadd.f32 0.0, %v5347
      %v5349 = vpop.f32.mrb[0].mxu0
      %5350 = vmatprep.mubr.f32.mxu0 0.0
      %5351 = vmatmul.mubr.f32.gmra.mrb[0].mxu0 %v5141
      %v5352 = vpop.f32.mrb[0].mxu0
      %v5353 = vadd.f32 0.0, %v5352
      %v5354 = vpop.f32.mrb[0].mxu0
      %5355 = vmatprep.mubr.f32.mxu0 0.0
      %5356 = vmatmul.mubr.f32.gmra.mrb[0].mxu0 %v5142
      %v5357 = vpop.f32.mrb[0].mxu0
      %v5358 = vadd.f32 0.0, %v5357
      %v5359 = vpop.f32.mrb[0].mxu0
      %5360 = vmatprep.mubr.f32.mxu0 0.0
      %5361 = vmatmul.mubr.f32.gmra.mrb[0].mxu0 %v5143
      %v5362 = vpop.f32.mrb[0].mxu0
      %v5363 = vadd.f32 0.0, %v5362
      %v5364 = vpop.f32.mrb[0].mxu0
      %5365 = vmatprep.mubr.f32.mxu0 0.0
      %5366 = vmatmul.mubr.f32.gmra.mrb[0].mxu0 %v5144
      %v5367 = vpop.f32.mrb[0].mxu0
      %v5368 = vadd.f32 0.0, %v5367
      %v5369 = vpop.f32.mrb[0].mxu0
      %5370 = vmatprep.mubr.f32.mxu0 0.0
      %5371 = vmatmul.mubr.f32.gmra.mrb[0].mxu0 %v5145
      %v5372 = vpop.f32.mrb[0].mxu0
      %v5373 = vadd.f32 0.0, %v5372
      %v5374 = vpop.f32.mrb[0].mxu0
      %5375 = vmatprep.mubr.f32.mxu0 0.0
      %5376 = vmatmul.mubr.f32.gmra.mrb[0].mxu0 %v5146
      %v5377 = vpop.f32.mrb[0].mxu0
      %v5378 = vadd.f32 0.0, %v5377
      %v5379 = vpop.f32.mrb[0].mxu0
      %5380 = vmatprep.mubr.f32.mxu0 0.0
      %5381 = vmatmul.mubr.f32.gmra.mrb[0].mxu0 %v5147
      %v5382 = vpop.f32.mrb[0].mxu0
      %v5383 = vadd.f32 0.0, %v5382
      %v5384 = vpop.f32.mrb[0].mxu0
      %5385 = vmatprep.mubr.f32.mxu0 0.0
      %5386 = vmatmul.mubr.f32.gmra.mrb[0].mxu0 %v5148
      %v5387 = vpop.f32.mrb[0].mxu0
      %v5388 = vadd.f32 0.0, %v5387
      %v5389 = vpop.f32.mrb[0].mxu0
      %5390 = vdwg.mxu0
      %v5391 = vadd.f32 %v5085, %v5233
      %v5392 = vadd.f32 %v5086, %v5238
      %v5393 = vadd.f32 %v5087, %v5243
      %v5394 = vadd.f32 %v5088, %v5248
      %v5395 = vadd.f32 %v5089, %v5253
      %v5396 = vadd.f32 %v5090, %v5258
      %v5397 = vadd.f32 %v5091, %v5263
      %v5398 = vadd.f32 %v5092, %v5268
      %v5399 = vadd.f32 %v5093, %v5273
      %v5400 = vadd.f32 %v5094, %v5278
      %v5401 = vadd.f32 %v5095, %v5283
      %v5402 = vadd.f32 %v5096, %v5288
      %v5403 = vadd.f32 %v5097, %v5293
      %v5404 = vadd.f32 %v5098, %v5298
      %v5405 = vadd.f32 %v5099, %v5303
      %v5406 = vadd.f32 %v5100, %v5308
      %v5407 = vadd.f32 %v5101, %v5313
      %v5408 = vadd.f32 %v5102, %v5318
      %v5409 = vadd.f32 %v5103, %v5323
      %v5410 = vadd.f32 %v5104, %v5328
      %v5411 = vadd.f32 %v5105, %v5333
      %v5412 = vadd.f32 %v5106, %v5338
      %v5413 = vadd.f32 %v5107, %v5343
      %v5414 = vadd.f32 %v5108, %v5348
      %v5415 = vadd.f32 %v5109, %v5353
      %v5416 = vadd.f32 %v5110, %v5358
      %v5417 = vadd.f32 %v5111, %v5363
      %v5418 = vadd.f32 %v5112, %v5368
      %v5419 = vadd.f32 %v5113, %v5373
      %v5420 = vadd.f32 %v5114, %v5378
      %v5421 = vadd.f32 %v5115, %v5383
      %v5422 = vadd.f32 %v5116, %v5388
      %v5423 = vld [vmem:[%s4810 + $0x2] sm:$0xff]
      %v5424 = vld [vmem:[%s4810 + $0xa] sm:$0xff]
      %v5425 = vld [vmem:[%s4810 + $0x1a] sm:$0xff]
      %v5426 = vld [vmem:[%s4810 + $0x22] sm:$0xff]
      %v5427 = vld [vmem:[%s4810 + $0x32] sm:$0xff]
      %v5428 = vld [vmem:[%s4810 + $0x3a] sm:$0xff]
      %v5429 = vld [vmem:[%s4810 + $0x4a] sm:$0xff]
      %v5430 = vld [vmem:[%s4810 + $0x52] sm:$0xff]
      %v5431 = vld [vmem:[%s4810 + $0x62] sm:$0xff]
      %v5432 = vld [vmem:[%s4810 + $0x6a] sm:$0xff]
      %v5433 = vld [vmem:[%s4810 + $0x7a] sm:$0xff]
      %v5434 = vld [vmem:[%s4810 + $0x82] sm:$0xff]
      %v5435 = vld [vmem:[%s4810 + $0x92] sm:$0xff]
      %v5436 = vld [vmem:[%s4810 + $0x9a] sm:$0xff]
      %v5437 = vld [vmem:[%s4810 + $0xaa] sm:$0xff]
      %v5438 = vld [vmem:[%s4810 + $0xb2] sm:$0xff]
      %v5439 = vld [vmem:[%s4810 + $0xc2] sm:$0xff]
      %v5440 = vld [vmem:[%s4810 + $0xca] sm:$0xff]
      %v5441 = vld [vmem:[%s4810 + $0xda] sm:$0xff]
      %v5442 = vld [vmem:[%s4810 + $0xe2] sm:$0xff]
      %v5443 = vld [vmem:[%s4810 + $0xf2] sm:$0xff]
      %v5444 = vld [vmem:[%s4810 + $0xfa] sm:$0xff]
      %v5445 = vld [vmem:[%s4810 + $0x10a] sm:$0xff]
      %v5446 = vld [vmem:[%s4810 + $0x112] sm:$0xff]
      %v5447 = vld [vmem:[%s4810 + $0x122] sm:$0xff]
      %v5448 = vld [vmem:[%s4810 + $0x12a] sm:$0xff]
      %v5449 = vld [vmem:[%s4810 + $0x13a] sm:$0xff]
      %v5450 = vld [vmem:[%s4810 + $0x142] sm:$0xff]
      %v5451 = vld [vmem:[%s4810 + $0x152] sm:$0xff]
      %v5452 = vld [vmem:[%s4810 + $0x15a] sm:$0xff]
      %v5453 = vld [vmem:[%s4810 + $0x16a] sm:$0xff]
      %v5454 = vld [vmem:[%s4810 + $0x172] sm:$0xff]
      %s5455 = scalar_lea.vmem %s1, 2176
      %v5456 = vld [vmem:[%s5455] sm:$0xff]
      %v5457 = vld [vmem:[%s5455 + $0x8] sm:$0xff]
      %v5458 = vld [vmem:[%s5455 + $0x10] sm:$0xff]
      %v5459 = vld [vmem:[%s5455 + $0x18] sm:$0xff]
      %v5460 = vld [vmem:[%s5455 + $0x20] sm:$0xff]
      %v5461 = vld [vmem:[%s5455 + $0x28] sm:$0xff]
      %v5462 = vld [vmem:[%s5455 + $0x30] sm:$0xff]
      %v5463 = vld [vmem:[%s5455 + $0x38] sm:$0xff]
      %v5464 = vld [vmem:[%s5455 + $0x40] sm:$0xff]
      %v5465 = vld [vmem:[%s5455 + $0x48] sm:$0xff]
      %v5466 = vld [vmem:[%s5455 + $0x50] sm:$0xff]
      %v5467 = vld [vmem:[%s5455 + $0x58] sm:$0xff]
      %v5468 = vld [vmem:[%s5455 + $0x60] sm:$0xff]
      %v5469 = vld [vmem:[%s5455 + $0x68] sm:$0xff]
      %v5470 = vld [vmem:[%s5455 + $0x70] sm:$0xff]
      %v5471 = vld [vmem:[%s5455 + $0x78] sm:$0xff]
      %5472 = vmatprep.subr.mxu0 0.0
      %5473 = vmatpush1.msra.mxu0 %v5456
      %5474 = vmatprep.subr.mxu0 0.0
      %5475 = vmatpush1.msra.mxu0 %v5457
      %5476 = vmatprep.subr.mxu0 0.0
      %5477 = vmatpush1.msra.mxu0 %v5458
      %5478 = vmatprep.subr.mxu0 0.0
      %5479 = vmatpush1.msra.mxu0 %v5459
      %5480 = vmatprep.subr.mxu0 0.0
      %5481 = vmatpush1.msra.mxu0 %v5460
      %5482 = vmatprep.subr.mxu0 0.0
      %5483 = vmatpush1.msra.mxu0 %v5461
      %5484 = vmatprep.subr.mxu0 0.0
      %5485 = vmatpush1.msra.mxu0 %v5462
      %5486 = vmatprep.subr.mxu0 0.0
      %5487 = vmatpush1.msra.mxu0 %v5463
      %5488 = vmatprep.subr.mxu0 0.0
      %5489 = vmatpush1.msra.mxu0 %v5464
      %5490 = vmatprep.subr.mxu0 0.0
      %5491 = vmatpush1.msra.mxu0 %v5465
      %5492 = vmatprep.subr.mxu0 0.0
      %5493 = vmatpush1.msra.mxu0 %v5466
      %5494 = vmatprep.subr.mxu0 0.0
      %5495 = vmatpush1.msra.mxu0 %v5467
      %5496 = vmatprep.subr.mxu0 0.0
      %5497 = vmatpush1.msra.mxu0 %v5468
      %5498 = vmatprep.subr.mxu0 0.0
      %5499 = vmatpush1.msra.mxu0 %v5469
      %5500 = vmatprep.subr.mxu0 0.0
      %5501 = vmatpush1.msra.mxu0 %v5470
      %5502 = vmatprep.subr.mxu0 0.0
      %5503 = vmatpush1.msra.mxu0 %v5471
      %5504 = vmatprep.subr.mxu0 0.0
      %5505 = vmatpush1.msra.mxu0 0.0
      %5506 = vmatprep.subr.mxu0 0.0
      %5507 = vmatpush1.msra.mxu0 0.0
      %5508 = vmatprep.subr.mxu0 0.0
      %5509 = vmatpush1.msra.mxu0 0.0
      %5510 = vmatprep.subr.mxu0 0.0
      %5511 = vmatpush1.msra.mxu0 0.0
      %5512 = vmatprep.subr.mxu0 0.0
      %5513 = vmatpush1.msra.mxu0 0.0
      %5514 = vmatprep.subr.mxu0 0.0
      %5515 = vmatpush1.msra.mxu0 0.0
      %5516 = vmatprep.subr.mxu0 0.0
      %5517 = vmatpush1.msra.mxu0 0.0
      %5518 = vmatprep.subr.mxu0 0.0
      %5519 = vmatpush1.msra.mxu0 0.0
      %5520 = vmatprep.subr.mxu0 0.0
      %5521 = vmatpush1.msra.mxu0 0.0
      %5522 = vmatprep.subr.mxu0 0.0
      %5523 = vmatpush1.msra.mxu0 0.0
      %5524 = vmatprep.subr.mxu0 0.0
      %5525 = vmatpush1.msra.mxu0 0.0
      %5526 = vmatprep.subr.mxu0 0.0
      %5527 = vmatpush1.msra.mxu0 0.0
      %5528 = vmatprep.subr.mxu0 0.0
      %5529 = vmatpush1.msra.mxu0 0.0
      %5530 = vmatprep.subr.mxu0 0.0
      %5531 = vmatpush1.msra.mxu0 0.0
      %5532 = vmatprep.subr.mxu0 0.0
      %5533 = vmatpush1.msra.mxu0 0.0
      %5534 = vmatprep.subr.mxu0 0.0
      %5535 = vmatpush1.msra.mxu0 0.0
      %5536 = vmatprep.mubr.f32.mxu0 0.0
      %5537 = vmatmul.mubr.f32.gmra.mrb[0].mxu0 %v5423
      %v5538 = vpop.f32.mrb[0].mxu0
      %v5539 = vadd.f32 0.0, %v5538
      %v5540 = vpop.f32.mrb[0].mxu0
      %5541 = vmatprep.mubr.f32.mxu0 0.0
      %5542 = vmatmul.mubr.f32.gmra.mrb[0].mxu0 %v5424
      %v5543 = vpop.f32.mrb[0].mxu0
      %v5544 = vadd.f32 0.0, %v5543
      %v5545 = vpop.f32.mrb[0].mxu0
      %5546 = vmatprep.mubr.f32.mxu0 0.0
      %5547 = vmatmul.mubr.f32.gmra.mrb[0].mxu0 %v5425
      %v5548 = vpop.f32.mrb[0].mxu0
      %v5549 = vadd.f32 0.0, %v5548
      %v5550 = vpop.f32.mrb[0].mxu0
      %5551 = vmatprep.mubr.f32.mxu0 0.0
      %5552 = vmatmul.mubr.f32.gmra.mrb[0].mxu0 %v5426
      %v5553 = vpop.f32.mrb[0].mxu0
      %v5554 = vadd.f32 0.0, %v5553
      %v5555 = vpop.f32.mrb[0].mxu0
      %5556 = vmatprep.mubr.f32.mxu0 0.0
      %5557 = vmatmul.mubr.f32.gmra.mrb[0].mxu0 %v5427
      %v5558 = vpop.f32.mrb[0].mxu0
      %v5559 = vadd.f32 0.0, %v5558
      %v5560 = vpop.f32.mrb[0].mxu0
      %5561 = vmatprep.mubr.f32.mxu0 0.0
      %5562 = vmatmul.mubr.f32.gmra.mrb[0].mxu0 %v5428
      %v5563 = vpop.f32.mrb[0].mxu0
      %v5564 = vadd.f32 0.0, %v5563
      %v5565 = vpop.f32.mrb[0].mxu0
      %5566 = vmatprep.mubr.f32.mxu0 0.0
      %5567 = vmatmul.mubr.f32.gmra.mrb[0].mxu0 %v5429
      %v5568 = vpop.f32.mrb[0].mxu0
      %v5569 = vadd.f32 0.0, %v5568
      %v5570 = vpop.f32.mrb[0].mxu0
      %5571 = vmatprep.mubr.f32.mxu0 0.0
      %5572 = vmatmul.mubr.f32.gmra.mrb[0].mxu0 %v5430
      %v5573 = vpop.f32.mrb[0].mxu0
      %v5574 = vadd.f32 0.0, %v5573
      %v5575 = vpop.f32.mrb[0].mxu0
      %5576 = vmatprep.mubr.f32.mxu0 0.0
      %5577 = vmatmul.mubr.f32.gmra.mrb[0].mxu0 %v5431
      %v5578 = vpop.f32.mrb[0].mxu0
      %v5579 = vadd.f32 0.0, %v5578
      %v5580 = vpop.f32.mrb[0].mxu0
      %5581 = vmatprep.mubr.f32.mxu0 0.0
      %5582 = vmatmul.mubr.f32.gmra.mrb[0].mxu0 %v5432
      %v5583 = vpop.f32.mrb[0].mxu0
      %v5584 = vadd.f32 0.0, %v5583
      %v5585 = vpop.f32.mrb[0].mxu0
      %5586 = vmatprep.mubr.f32.mxu0 0.0
      %5587 = vmatmul.mubr.f32.gmra.mrb[0].mxu0 %v5433
      %v5588 = vpop.f32.mrb[0].mxu0
      %v5589 = vadd.f32 0.0, %v5588
      %v5590 = vpop.f32.mrb[0].mxu0
      %5591 = vmatprep.mubr.f32.mxu0 0.0
      %5592 = vmatmul.mubr.f32.gmra.mrb[0].mxu0 %v5434
      %v5593 = vpop.f32.mrb[0].mxu0
      %v5594 = vadd.f32 0.0, %v5593
      %v5595 = vpop.f32.mrb[0].mxu0
      %5596 = vmatprep.mubr.f32.mxu0 0.0
      %5597 = vmatmul.mubr.f32.gmra.mrb[0].mxu0 %v5435
      %v5598 = vpop.f32.mrb[0].mxu0
      %v5599 = vadd.f32 0.0, %v5598
      %v5600 = vpop.f32.mrb[0].mxu0
      %5601 = vmatprep.mubr.f32.mxu0 0.0
      %5602 = vmatmul.mubr.f32.gmra.mrb[0].mxu0 %v5436
      %v5603 = vpop.f32.mrb[0].mxu0
      %v5604 = vadd.f32 0.0, %v5603
      %v5605 = vpop.f32.mrb[0].mxu0
      %5606 = vmatprep.mubr.f32.mxu0 0.0
      %5607 = vmatmul.mubr.f32.gmra.mrb[0].mxu0 %v5437
      %v5608 = vpop.f32.mrb[0].mxu0
      %v5609 = vadd.f32 0.0, %v5608
      %v5610 = vpop.f32.mrb[0].mxu0
      %5611 = vmatprep.mubr.f32.mxu0 0.0
      %5612 = vmatmul.mubr.f32.gmra.mrb[0].mxu0 %v5438
      %v5613 = vpop.f32.mrb[0].mxu0
      %v5614 = vadd.f32 0.0, %v5613
      %v5615 = vpop.f32.mrb[0].mxu0
      %5616 = vmatprep.mubr.f32.mxu0 0.0
      %5617 = vmatmul.mubr.f32.gmra.mrb[0].mxu0 %v5439
      %v5618 = vpop.f32.mrb[0].mxu0
      %v5619 = vadd.f32 0.0, %v5618
      %v5620 = vpop.f32.mrb[0].mxu0
      %5621 = vmatprep.mubr.f32.mxu0 0.0
      %5622 = vmatmul.mubr.f32.gmra.mrb[0].mxu0 %v5440
      %v5623 = vpop.f32.mrb[0].mxu0
      %v5624 = vadd.f32 0.0, %v5623
      %v5625 = vpop.f32.mrb[0].mxu0
      %5626 = vmatprep.mubr.f32.mxu0 0.0
      %5627 = vmatmul.mubr.f32.gmra.mrb[0].mxu0 %v5441
      %v5628 = vpop.f32.mrb[0].mxu0
      %v5629 = vadd.f32 0.0, %v5628
      %v5630 = vpop.f32.mrb[0].mxu0
      %5631 = vmatprep.mubr.f32.mxu0 0.0
      %5632 = vmatmul.mubr.f32.gmra.mrb[0].mxu0 %v5442
      %v5633 = vpop.f32.mrb[0].mxu0
      %v5634 = vadd.f32 0.0, %v5633
      %v5635 = vpop.f32.mrb[0].mxu0
      %5636 = vmatprep.mubr.f32.mxu0 0.0
      %5637 = vmatmul.mubr.f32.gmra.mrb[0].mxu0 %v5443
      %v5638 = vpop.f32.mrb[0].mxu0
      %v5639 = vadd.f32 0.0, %v5638
      %v5640 = vpop.f32.mrb[0].mxu0
      %5641 = vmatprep.mubr.f32.mxu0 0.0
      %5642 = vmatmul.mubr.f32.gmra.mrb[0].mxu0 %v5444
      %v5643 = vpop.f32.mrb[0].mxu0
      %v5644 = vadd.f32 0.0, %v5643
      %v5645 = vpop.f32.mrb[0].mxu0
      %5646 = vmatprep.mubr.f32.mxu0 0.0
      %5647 = vmatmul.mubr.f32.gmra.mrb[0].mxu0 %v5445
      %v5648 = vpop.f32.mrb[0].mxu0
      %v5649 = vadd.f32 0.0, %v5648
      %v5650 = vpop.f32.mrb[0].mxu0
      %5651 = vmatprep.mubr.f32.mxu0 0.0
      %5652 = vmatmul.mubr.f32.gmra.mrb[0].mxu0 %v5446
      %v5653 = vpop.f32.mrb[0].mxu0
      %v5654 = vadd.f32 0.0, %v5653
      %v5655 = vpop.f32.mrb[0].mxu0
      %5656 = vmatprep.mubr.f32.mxu0 0.0
      %5657 = vmatmul.mubr.f32.gmra.mrb[0].mxu0 %v5447
      %v5658 = vpop.f32.mrb[0].mxu0
      %v5659 = vadd.f32 0.0, %v5658
      %v5660 = vpop.f32.mrb[0].mxu0
      %5661 = vmatprep.mubr.f32.mxu0 0.0
      %5662 = vmatmul.mubr.f32.gmra.mrb[0].mxu0 %v5448
      %v5663 = vpop.f32.mrb[0].mxu0
      %v5664 = vadd.f32 0.0, %v5663
      %v5665 = vpop.f32.mrb[0].mxu0
      %5666 = vmatprep.mubr.f32.mxu0 0.0
      %5667 = vmatmul.mubr.f32.gmra.mrb[0].mxu0 %v5449
      %v5668 = vpop.f32.mrb[0].mxu0
      %v5669 = vadd.f32 0.0, %v5668
      %v5670 = vpop.f32.mrb[0].mxu0
      %5671 = vmatprep.mubr.f32.mxu0 0.0
      %5672 = vmatmul.mubr.f32.gmra.mrb[0].mxu0 %v5450
      %v5673 = vpop.f32.mrb[0].mxu0
      %v5674 = vadd.f32 0.0, %v5673
      %v5675 = vpop.f32.mrb[0].mxu0
      %5676 = vmatprep.mubr.f32.mxu0 0.0
      %5677 = vmatmul.mubr.f32.gmra.mrb[0].mxu0 %v5451
      %v5678 = vpop.f32.mrb[0].mxu0
      %v5679 = vadd.f32 0.0, %v5678
      %v5680 = vpop.f32.mrb[0].mxu0
      %5681 = vmatprep.mubr.f32.mxu0 0.0
      %5682 = vmatmul.mubr.f32.gmra.mrb[0].mxu0 %v5452
      %v5683 = vpop.f32.mrb[0].mxu0
      %v5684 = vadd.f32 0.0, %v5683
      %v5685 = vpop.f32.mrb[0].mxu0
      %5686 = vmatprep.mubr.f32.mxu0 0.0
      %5687 = vmatmul.mubr.f32.gmra.mrb[0].mxu0 %v5453
      %v5688 = vpop.f32.mrb[0].mxu0
      %v5689 = vadd.f32 0.0, %v5688
      %v5690 = vpop.f32.mrb[0].mxu0
      %5691 = vmatprep.mubr.f32.mxu0 0.0
      %5692 = vmatmul.mubr.f32.gmra.mrb[0].mxu0 %v5454
      %v5693 = vpop.f32.mrb[0].mxu0
      %v5694 = vadd.f32 0.0, %v5693
      %v5695 = vpop.f32.mrb[0].mxu0
      %5696 = vdwg.mxu0
      %v5697 = vadd.f32 %v5391, %v5539
      %v5698 = vadd.f32 %v5392, %v5544
      %v5699 = vadd.f32 %v5393, %v5549
      %v5700 = vadd.f32 %v5394, %v5554
      %v5701 = vadd.f32 %v5395, %v5559
      %v5702 = vadd.f32 %v5396, %v5564
      %v5703 = vadd.f32 %v5397, %v5569
      %v5704 = vadd.f32 %v5398, %v5574
      %v5705 = vadd.f32 %v5399, %v5579
      %v5706 = vadd.f32 %v5400, %v5584
      %v5707 = vadd.f32 %v5401, %v5589
      %v5708 = vadd.f32 %v5402, %v5594
      %v5709 = vadd.f32 %v5403, %v5599
      %v5710 = vadd.f32 %v5404, %v5604
      %v5711 = vadd.f32 %v5405, %v5609
      %v5712 = vadd.f32 %v5406, %v5614
      %v5713 = vadd.f32 %v5407, %v5619
      %v5714 = vadd.f32 %v5408, %v5624
      %v5715 = vadd.f32 %v5409, %v5629
      %v5716 = vadd.f32 %v5410, %v5634
      %v5717 = vadd.f32 %v5411, %v5639
      %v5718 = vadd.f32 %v5412, %v5644
      %v5719 = vadd.f32 %v5413, %v5649
      %v5720 = vadd.f32 %v5414, %v5654
      %v5721 = vadd.f32 %v5415, %v5659
      %v5722 = vadd.f32 %v5416, %v5664
      %v5723 = vadd.f32 %v5417, %v5669
      %v5724 = vadd.f32 %v5418, %v5674
      %v5725 = vadd.f32 %v5419, %v5679
      %v5726 = vadd.f32 %v5420, %v5684
      %v5727 = vadd.f32 %v5421, %v5689
      %v5728 = vadd.f32 %v5422, %v5694
      %v5729 = vmax.f32 %v5697, 0.0
      %v5730 = vmax.f32 %v5698, 0.0
      %v5731 = vmax.f32 %v5699, 0.0
      %v5732 = vmax.f32 %v5700, 0.0
      %v5733 = vmax.f32 %v5701, 0.0
      %v5734 = vmax.f32 %v5702, 0.0
      %v5735 = vmax.f32 %v5703, 0.0
      %v5736 = vmax.f32 %v5704, 0.0
      %v5737 = vmax.f32 %v5705, 0.0
      %v5738 = vmax.f32 %v5706, 0.0
      %v5739 = vmax.f32 %v5707, 0.0
      %v5740 = vmax.f32 %v5708, 0.0
      %v5741 = vmax.f32 %v5709, 0.0
      %v5742 = vmax.f32 %v5710, 0.0
      %v5743 = vmax.f32 %v5711, 0.0
      %v5744 = vmax.f32 %v5712, 0.0
      %v5745 = vmax.f32 %v5713, 0.0
      %v5746 = vmax.f32 %v5714, 0.0
      %v5747 = vmax.f32 %v5715, 0.0
      %v5748 = vmax.f32 %v5716, 0.0
      %v5749 = vmax.f32 %v5717, 0.0
      %v5750 = vmax.f32 %v5718, 0.0
      %v5751 = vmax.f32 %v5719, 0.0
      %v5752 = vmax.f32 %v5720, 0.0
      %v5753 = vmax.f32 %v5721, 0.0
      %v5754 = vmax.f32 %v5722, 0.0
      %v5755 = vmax.f32 %v5723, 0.0
      %v5756 = vmax.f32 %v5724, 0.0
      %v5757 = vmax.f32 %v5725, 0.0
      %v5758 = vmax.f32 %v5726, 0.0
      %v5759 = vmax.f32 %v5727, 0.0
      %v5760 = vmax.f32 %v5728, 0.0
      %v5761 = vadd.f32 %v5729, %v249
      %v5762 = vadd.f32 %v5730, %v249
      %v5763 = vadd.f32 %v5731, %v249
      %v5764 = vadd.f32 %v5732, %v249
      %v5765 = vadd.f32 %v5733, %v249
      %v5766 = vadd.f32 %v5734, %v249
      %v5767 = vadd.f32 %v5735, %v249
      %v5768 = vadd.f32 %v5736, %v249
      %v5769 = vadd.f32 %v5737, %v249
      %v5770 = vadd.f32 %v5738, %v249
      %v5771 = vadd.f32 %v5739, %v249
      %v5772 = vadd.f32 %v5740, %v249
      %v5773 = vadd.f32 %v5741, %v249
      %v5774 = vadd.f32 %v5742, %v249
      %v5775 = vadd.f32 %v5743, %v249
      %v5776 = vadd.f32 %v5744, %v249
      %v5777 = vadd.f32 %v5745, %v249
      %v5778 = vadd.f32 %v5746, %v249
      %v5779 = vadd.f32 %v5747, %v249
      %v5780 = vadd.f32 %v5748, %v249
      %v5781 = vadd.f32 %v5749, %v249
      %v5782 = vadd.f32 %v5750, %v249
      %v5783 = vadd.f32 %v5751, %v249
      %v5784 = vadd.f32 %v5752, %v249
      %v5785 = vadd.f32 %v5753, %v249
      %v5786 = vadd.f32 %v5754, %v249
      %v5787 = vadd.f32 %v5755, %v249
      %v5788 = vadd.f32 %v5756, %v249
      %v5789 = vadd.f32 %v5757, %v249
      %v5790 = vadd.f32 %v5758, %v249
      %v5791 = vadd.f32 %v5759, %v249
      %v5792 = vadd.f32 %v5760, %v249
      %5793 = vst [vmem:[%s3005 + $0x1] sm:$0xff] %v5761
      %5794 = vst [vmem:[%s3005 + $0x9] sm:$0xff] %v5762
      %5795 = vst [vmem:[%s3005 + $0x19] sm:$0xff] %v5763
      %5796 = vst [vmem:[%s3005 + $0x21] sm:$0xff] %v5764
      %5797 = vst [vmem:[%s3005 + $0x31] sm:$0xff] %v5765
      %5798 = vst [vmem:[%s3005 + $0x39] sm:$0xff] %v5766
      %5799 = vst [vmem:[%s3005 + $0x49] sm:$0xff] %v5767
      %5800 = vst [vmem:[%s3005 + $0x51] sm:$0xff] %v5768
      %5801 = vst [vmem:[%s3005 + $0x61] sm:$0xff] %v5769
      %5802 = vst [vmem:[%s3005 + $0x69] sm:$0xff] %v5770
      %5803 = vst [vmem:[%s3005 + $0x79] sm:$0xff] %v5771
      %5804 = vst [vmem:[%s3005 + $0x81] sm:$0xff] %v5772
      %5805 = vst [vmem:[%s3005 + $0x91] sm:$0xff] %v5773
      %5806 = vst [vmem:[%s3005 + $0x99] sm:$0xff] %v5774
      %5807 = vst [vmem:[%s3005 + $0xa9] sm:$0xff] %v5775
      %5808 = vst [vmem:[%s3005 + $0xb1] sm:$0xff] %v5776
      %5809 = vst [vmem:[%s3005 + $0xc1] sm:$0xff] %v5777
      %5810 = vst [vmem:[%s3005 + $0xc9] sm:$0xff] %v5778
      %5811 = vst [vmem:[%s3005 + $0xd9] sm:$0xff] %v5779
      %5812 = vst [vmem:[%s3005 + $0xe1] sm:$0xff] %v5780
      %5813 = vst [vmem:[%s3005 + $0xf1] sm:$0xff] %v5781
      %5814 = vst [vmem:[%s3005 + $0xf9] sm:$0xff] %v5782
      %5815 = vst [vmem:[%s3005 + $0x109] sm:$0xff] %v5783
      %5816 = vst [vmem:[%s3005 + $0x111] sm:$0xff] %v5784
      %5817 = vst [vmem:[%s3005 + $0x121] sm:$0xff] %v5785
      %5818 = vst [vmem:[%s3005 + $0x129] sm:$0xff] %v5786
      %5819 = vst [vmem:[%s3005 + $0x139] sm:$0xff] %v5787
      %5820 = vst [vmem:[%s3005 + $0x141] sm:$0xff] %v5788
      %5821 = vst [vmem:[%s3005 + $0x151] sm:$0xff] %v5789
      %5822 = vst [vmem:[%s3005 + $0x159] sm:$0xff] %v5790
      %5823 = vst [vmem:[%s3005 + $0x169] sm:$0xff] %v5791
      %5824 = vst [vmem:[%s3005 + $0x171] sm:$0xff] %v5792
      %v5825 = vld [vmem:[#allocation2] sm:$0xff]
      %v5826 = vld [vmem:[#allocation2 + $0x8] sm:$0xff]
      %v5827 = vld [vmem:[#allocation2 + $0x18] sm:$0xff]
      %v5828 = vld [vmem:[#allocation2 + $0x20] sm:$0xff]
      %v5829 = vld [vmem:[#allocation2 + $0x30] sm:$0xff]
      %v5830 = vld [vmem:[#allocation2 + $0x38] sm:$0xff]
      %v5831 = vld [vmem:[#allocation2 + $0x48] sm:$0xff]
      %v5832 = vld [vmem:[#allocation2 + $0x50] sm:$0xff]
      %v5833 = vld [vmem:[#allocation2 + $0x60] sm:$0xff]
      %v5834 = vld [vmem:[#allocation2 + $0x68] sm:$0xff]
      %v5835 = vld [vmem:[#allocation2 + $0x78] sm:$0xff]
      %v5836 = vld [vmem:[#allocation2 + $0x80] sm:$0xff]
      %v5837 = vld [vmem:[#allocation2 + $0x90] sm:$0xff]
      %v5838 = vld [vmem:[#allocation2 + $0x98] sm:$0xff]
      %v5839 = vld [vmem:[#allocation2 + $0xa8] sm:$0xff]
      %v5840 = vld [vmem:[#allocation2 + $0xb0] sm:$0xff]
      %v5841 = vld [vmem:[#allocation2 + $0xc0] sm:$0xff]
      %v5842 = vld [vmem:[#allocation2 + $0xc8] sm:$0xff]
      %v5843 = vld [vmem:[#allocation2 + $0xd8] sm:$0xff]
      %v5844 = vld [vmem:[#allocation2 + $0xe0] sm:$0xff]
      %v5845 = vld [vmem:[#allocation2 + $0xf0] sm:$0xff]
      %v5846 = vld [vmem:[#allocation2 + $0xf8] sm:$0xff]
      %v5847 = vld [vmem:[#allocation2 + $0x108] sm:$0xff]
      %v5848 = vld [vmem:[#allocation2 + $0x110] sm:$0xff]
      %v5849 = vld [vmem:[#allocation2 + $0x120] sm:$0xff]
      %v5850 = vld [vmem:[#allocation2 + $0x128] sm:$0xff]
      %v5851 = vld [vmem:[#allocation2 + $0x138] sm:$0xff]
      %v5852 = vld [vmem:[#allocation2 + $0x140] sm:$0xff]
      %v5853 = vld [vmem:[#allocation2 + $0x150] sm:$0xff]
      %v5854 = vld [vmem:[#allocation2 + $0x158] sm:$0xff]
      %v5855 = vld [vmem:[#allocation2 + $0x168] sm:$0xff]
      %v5856 = vld [vmem:[#allocation2 + $0x170] sm:$0xff]
      %s5857 = scalar_lea.vmem %s1, 2304
      %v5858 = vld [vmem:[%s5857] sm:$0xff]
      %v5859 = vld [vmem:[%s5857 + $0x8] sm:$0xff]
      %v5860 = vld [vmem:[%s5857 + $0x10] sm:$0xff]
      %v5861 = vld [vmem:[%s5857 + $0x18] sm:$0xff]
      %v5862 = vld [vmem:[%s5857 + $0x20] sm:$0xff]
      %v5863 = vld [vmem:[%s5857 + $0x28] sm:$0xff]
      %v5864 = vld [vmem:[%s5857 + $0x30] sm:$0xff]
      %v5865 = vld [vmem:[%s5857 + $0x38] sm:$0xff]
      %v5866 = vld [vmem:[%s5857 + $0x40] sm:$0xff]
      %v5867 = vld [vmem:[%s5857 + $0x48] sm:$0xff]
      %v5868 = vld [vmem:[%s5857 + $0x50] sm:$0xff]
      %v5869 = vld [vmem:[%s5857 + $0x58] sm:$0xff]
      %v5870 = vld [vmem:[%s5857 + $0x60] sm:$0xff]
      %v5871 = vld [vmem:[%s5857 + $0x68] sm:$0xff]
      %v5872 = vld [vmem:[%s5857 + $0x70] sm:$0xff]
      %v5873 = vld [vmem:[%s5857 + $0x78] sm:$0xff]
      %v5874 = vld [vmem:[#allocation2 + $0x1] sm:$0xff]
      %v5875 = vld [vmem:[#allocation2 + $0x9] sm:$0xff]
      %v5876 = vld [vmem:[#allocation2 + $0x19] sm:$0xff]
      %v5877 = vld [vmem:[#allocation2 + $0x21] sm:$0xff]
      %v5878 = vld [vmem:[#allocation2 + $0x31] sm:$0xff]
      %v5879 = vld [vmem:[#allocation2 + $0x39] sm:$0xff]
      %v5880 = vld [vmem:[#allocation2 + $0x49] sm:$0xff]
      %v5881 = vld [vmem:[#allocation2 + $0x51] sm:$0xff]
      %v5882 = vld [vmem:[#allocation2 + $0x61] sm:$0xff]
      %v5883 = vld [vmem:[#allocation2 + $0x69] sm:$0xff]
      %v5884 = vld [vmem:[#allocation2 + $0x79] sm:$0xff]
      %v5885 = vld [vmem:[#allocation2 + $0x81] sm:$0xff]
      %v5886 = vld [vmem:[#allocation2 + $0x91] sm:$0xff]
      %v5887 = vld [vmem:[#allocation2 + $0x99] sm:$0xff]
      %v5888 = vld [vmem:[#allocation2 + $0xa9] sm:$0xff]
      %v5889 = vld [vmem:[#allocation2 + $0xb1] sm:$0xff]
      %v5890 = vld [vmem:[#allocation2 + $0xc1] sm:$0xff]
      %v5891 = vld [vmem:[#allocation2 + $0xc9] sm:$0xff]
      %v5892 = vld [vmem:[#allocation2 + $0xd9] sm:$0xff]
      %v5893 = vld [vmem:[#allocation2 + $0xe1] sm:$0xff]
      %v5894 = vld [vmem:[#allocation2 + $0xf1] sm:$0xff]
      %v5895 = vld [vmem:[#allocation2 + $0xf9] sm:$0xff]
      %v5896 = vld [vmem:[#allocation2 + $0x109] sm:$0xff]
      %v5897 = vld [vmem:[#allocation2 + $0x111] sm:$0xff]
      %v5898 = vld [vmem:[#allocation2 + $0x121] sm:$0xff]
      %v5899 = vld [vmem:[#allocation2 + $0x129] sm:$0xff]
      %v5900 = vld [vmem:[#allocation2 + $0x139] sm:$0xff]
      %v5901 = vld [vmem:[#allocation2 + $0x141] sm:$0xff]
      %v5902 = vld [vmem:[#allocation2 + $0x151] sm:$0xff]
      %v5903 = vld [vmem:[#allocation2 + $0x159] sm:$0xff]
      %v5904 = vld [vmem:[#allocation2 + $0x169] sm:$0xff]
      %v5905 = vld [vmem:[#allocation2 + $0x171] sm:$0xff]
      %s5906 = scalar_lea.vmem %s1, 2432
      %v5907 = vld [vmem:[%s5906] sm:$0xff]
      %v5908 = vld [vmem:[%s5906 + $0x8] sm:$0xff]
      %v5909 = vld [vmem:[%s5906 + $0x10] sm:$0xff]
      %v5910 = vld [vmem:[%s5906 + $0x18] sm:$0xff]
      %v5911 = vld [vmem:[%s5906 + $0x20] sm:$0xff]
      %v5912 = vld [vmem:[%s5906 + $0x28] sm:$0xff]
      %v5913 = vld [vmem:[%s5906 + $0x30] sm:$0xff]
      %v5914 = vld [vmem:[%s5906 + $0x38] sm:$0xff]
      %v5915 = vld [vmem:[%s5906 + $0x40] sm:$0xff]
      %v5916 = vld [vmem:[%s5906 + $0x48] sm:$0xff]
      %v5917 = vld [vmem:[%s5906 + $0x50] sm:$0xff]
      %v5918 = vld [vmem:[%s5906 + $0x58] sm:$0xff]
      %v5919 = vld [vmem:[%s5906 + $0x60] sm:$0xff]
      %v5920 = vld [vmem:[%s5906 + $0x68] sm:$0xff]
      %v5921 = vld [vmem:[%s5906 + $0x70] sm:$0xff]
      %v5922 = vld [vmem:[%s5906 + $0x78] sm:$0xff]
      %5923 = vmatprep.subr.mxu0 0.0
      %5924 = vmatpush1.msra.mxu0 %v5907
      %5925 = vmatprep.subr.mxu0 0.0
      %5926 = vmatpush1.msra.mxu0 %v5908
      %5927 = vmatprep.subr.mxu0 0.0
      %5928 = vmatpush1.msra.mxu0 %v5909
      %5929 = vmatprep.subr.mxu0 0.0
      %5930 = vmatpush1.msra.mxu0 %v5910
      %5931 = vmatprep.subr.mxu0 0.0
      %5932 = vmatpush1.msra.mxu0 %v5911
      %5933 = vmatprep.subr.mxu0 0.0
      %5934 = vmatpush1.msra.mxu0 %v5912
      %5935 = vmatprep.subr.mxu0 0.0
      %5936 = vmatpush1.msra.mxu0 %v5913
      %5937 = vmatprep.subr.mxu0 0.0
      %5938 = vmatpush1.msra.mxu0 %v5914
      %5939 = vmatprep.subr.mxu0 0.0
      %5940 = vmatpush1.msra.mxu0 %v5915
      %5941 = vmatprep.subr.mxu0 0.0
      %5942 = vmatpush1.msra.mxu0 %v5916
      %5943 = vmatprep.subr.mxu0 0.0
      %5944 = vmatpush1.msra.mxu0 %v5917
      %5945 = vmatprep.subr.mxu0 0.0
      %5946 = vmatpush1.msra.mxu0 %v5918
      %5947 = vmatprep.subr.mxu0 0.0
      %5948 = vmatpush1.msra.mxu0 %v5919
      %5949 = vmatprep.subr.mxu0 0.0
      %5950 = vmatpush1.msra.mxu0 %v5920
      %5951 = vmatprep.subr.mxu0 0.0
      %5952 = vmatpush1.msra.mxu0 %v5921
      %5953 = vmatprep.subr.mxu0 0.0
      %5954 = vmatpush1.msra.mxu0 %v5922
      %5955 = vmatprep.subr.mxu0 0.0
      %5956 = vmatpush1.msra.mxu0 0.0
      %5957 = vmatprep.subr.mxu0 0.0
      %5958 = vmatpush1.msra.mxu0 0.0
      %5959 = vmatprep.subr.mxu0 0.0
      %5960 = vmatpush1.msra.mxu0 0.0
      %5961 = vmatprep.subr.mxu0 0.0
      %5962 = vmatpush1.msra.mxu0 0.0
      %5963 = vmatprep.subr.mxu0 0.0
      %5964 = vmatpush1.msra.mxu0 0.0
      %5965 = vmatprep.subr.mxu0 0.0
      %5966 = vmatpush1.msra.mxu0 0.0
      %5967 = vmatprep.subr.mxu0 0.0
      %5968 = vmatpush1.msra.mxu0 0.0
      %5969 = vmatprep.subr.mxu0 0.0
      %5970 = vmatpush1.msra.mxu0 0.0
      %5971 = vmatprep.subr.mxu0 0.0
      %5972 = vmatpush1.msra.mxu0 0.0
      %5973 = vmatprep.subr.mxu0 0.0
      %5974 = vmatpush1.msra.mxu0 0.0
      %5975 = vmatprep.subr.mxu0 0.0
      %5976 = vmatpush1.msra.mxu0 0.0
      %5977 = vmatprep.subr.mxu0 0.0
      %5978 = vmatpush1.msra.mxu0 0.0
      %5979 = vmatprep.subr.mxu0 0.0
      %5980 = vmatpush1.msra.mxu0 0.0
      %5981 = vmatprep.subr.mxu0 0.0
      %5982 = vmatpush1.msra.mxu0 0.0
      %5983 = vmatprep.subr.mxu0 0.0
      %5984 = vmatpush1.msra.mxu0 0.0
      %5985 = vmatprep.subr.mxu0 0.0
      %5986 = vmatpush1.msra.mxu0 0.0
      %5987 = vmatprep.mubr.f32.mxu0 0.0
      %5988 = vmatmul.mubr.f32.gmra.mrb[0].mxu0 %v5874
      %v5989 = vpop.f32.mrb[0].mxu0
      %v5990 = vadd.f32 0.0, %v5989
      %v5991 = vpop.f32.mrb[0].mxu0
      %5992 = vmatprep.mubr.f32.mxu0 0.0
      %5993 = vmatmul.mubr.f32.gmra.mrb[0].mxu0 %v5875
      %v5994 = vpop.f32.mrb[0].mxu0
      %v5995 = vadd.f32 0.0, %v5994
      %v5996 = vpop.f32.mrb[0].mxu0
      %5997 = vmatprep.mubr.f32.mxu0 0.0
      %5998 = vmatmul.mubr.f32.gmra.mrb[0].mxu0 %v5876
      %v5999 = vpop.f32.mrb[0].mxu0
      %v6000 = vadd.f32 0.0, %v5999
      %v6001 = vpop.f32.mrb[0].mxu0
      %6002 = vmatprep.mubr.f32.mxu0 0.0
      %6003 = vmatmul.mubr.f32.gmra.mrb[0].mxu0 %v5877
      %v6004 = vpop.f32.mrb[0].mxu0
      %v6005 = vadd.f32 0.0, %v6004
      %v6006 = vpop.f32.mrb[0].mxu0
      %6007 = vmatprep.mubr.f32.mxu0 0.0
      %6008 = vmatmul.mubr.f32.gmra.mrb[0].mxu0 %v5878
      %v6009 = vpop.f32.mrb[0].mxu0
      %v6010 = vadd.f32 0.0, %v6009
      %v6011 = vpop.f32.mrb[0].mxu0
      %6012 = vmatprep.mubr.f32.mxu0 0.0
      %6013 = vmatmul.mubr.f32.gmra.mrb[0].mxu0 %v5879
      %v6014 = vpop.f32.mrb[0].mxu0
      %v6015 = vadd.f32 0.0, %v6014
      %v6016 = vpop.f32.mrb[0].mxu0
      %6017 = vmatprep.mubr.f32.mxu0 0.0
      %6018 = vmatmul.mubr.f32.gmra.mrb[0].mxu0 %v5880
      %v6019 = vpop.f32.mrb[0].mxu0
      %v6020 = vadd.f32 0.0, %v6019
      %v6021 = vpop.f32.mrb[0].mxu0
      %6022 = vmatprep.mubr.f32.mxu0 0.0
      %6023 = vmatmul.mubr.f32.gmra.mrb[0].mxu0 %v5881
      %v6024 = vpop.f32.mrb[0].mxu0
      %v6025 = vadd.f32 0.0, %v6024
      %v6026 = vpop.f32.mrb[0].mxu0
      %6027 = vmatprep.mubr.f32.mxu0 0.0
      %6028 = vmatmul.mubr.f32.gmra.mrb[0].mxu0 %v5882
      %v6029 = vpop.f32.mrb[0].mxu0
      %v6030 = vadd.f32 0.0, %v6029
      %v6031 = vpop.f32.mrb[0].mxu0
      %6032 = vmatprep.mubr.f32.mxu0 0.0
      %6033 = vmatmul.mubr.f32.gmra.mrb[0].mxu0 %v5883
      %v6034 = vpop.f32.mrb[0].mxu0
      %v6035 = vadd.f32 0.0, %v6034
      %v6036 = vpop.f32.mrb[0].mxu0
      %6037 = vmatprep.mubr.f32.mxu0 0.0
      %6038 = vmatmul.mubr.f32.gmra.mrb[0].mxu0 %v5884
      %v6039 = vpop.f32.mrb[0].mxu0
      %v6040 = vadd.f32 0.0, %v6039
      %v6041 = vpop.f32.mrb[0].mxu0
      %6042 = vmatprep.mubr.f32.mxu0 0.0
      %6043 = vmatmul.mubr.f32.gmra.mrb[0].mxu0 %v5885
      %v6044 = vpop.f32.mrb[0].mxu0
      %v6045 = vadd.f32 0.0, %v6044
      %v6046 = vpop.f32.mrb[0].mxu0
      %6047 = vmatprep.mubr.f32.mxu0 0.0
      %6048 = vmatmul.mubr.f32.gmra.mrb[0].mxu0 %v5886
      %v6049 = vpop.f32.mrb[0].mxu0
      %v6050 = vadd.f32 0.0, %v6049
      %v6051 = vpop.f32.mrb[0].mxu0
      %6052 = vmatprep.mubr.f32.mxu0 0.0
      %6053 = vmatmul.mubr.f32.gmra.mrb[0].mxu0 %v5887
      %v6054 = vpop.f32.mrb[0].mxu0
      %v6055 = vadd.f32 0.0, %v6054
      %v6056 = vpop.f32.mrb[0].mxu0
      %6057 = vmatprep.mubr.f32.mxu0 0.0
      %6058 = vmatmul.mubr.f32.gmra.mrb[0].mxu0 %v5888
      %v6059 = vpop.f32.mrb[0].mxu0
      %v6060 = vadd.f32 0.0, %v6059
      %v6061 = vpop.f32.mrb[0].mxu0
      %6062 = vmatprep.mubr.f32.mxu0 0.0
      %6063 = vmatmul.mubr.f32.gmra.mrb[0].mxu0 %v5889
      %v6064 = vpop.f32.mrb[0].mxu0
      %v6065 = vadd.f32 0.0, %v6064
      %v6066 = vpop.f32.mrb[0].mxu0
      %6067 = vmatprep.mubr.f32.mxu0 0.0
      %6068 = vmatmul.mubr.f32.gmra.mrb[0].mxu0 %v5890
      %v6069 = vpop.f32.mrb[0].mxu0
      %v6070 = vadd.f32 0.0, %v6069
      %v6071 = vpop.f32.mrb[0].mxu0
      %6072 = vmatprep.mubr.f32.mxu0 0.0
      %6073 = vmatmul.mubr.f32.gmra.mrb[0].mxu0 %v5891
      %v6074 = vpop.f32.mrb[0].mxu0
      %v6075 = vadd.f32 0.0, %v6074
      %v6076 = vpop.f32.mrb[0].mxu0
      %6077 = vmatprep.mubr.f32.mxu0 0.0
      %6078 = vmatmul.mubr.f32.gmra.mrb[0].mxu0 %v5892
      %v6079 = vpop.f32.mrb[0].mxu0
      %v6080 = vadd.f32 0.0, %v6079
      %v6081 = vpop.f32.mrb[0].mxu0
      %6082 = vmatprep.mubr.f32.mxu0 0.0
      %6083 = vmatmul.mubr.f32.gmra.mrb[0].mxu0 %v5893
      %v6084 = vpop.f32.mrb[0].mxu0
      %v6085 = vadd.f32 0.0, %v6084
      %v6086 = vpop.f32.mrb[0].mxu0
      %6087 = vmatprep.mubr.f32.mxu0 0.0
      %6088 = vmatmul.mubr.f32.gmra.mrb[0].mxu0 %v5894
      %v6089 = vpop.f32.mrb[0].mxu0
      %v6090 = vadd.f32 0.0, %v6089
      %v6091 = vpop.f32.mrb[0].mxu0
      %6092 = vmatprep.mubr.f32.mxu0 0.0
      %6093 = vmatmul.mubr.f32.gmra.mrb[0].mxu0 %v5895
      %v6094 = vpop.f32.mrb[0].mxu0
      %v6095 = vadd.f32 0.0, %v6094
      %v6096 = vpop.f32.mrb[0].mxu0
      %6097 = vmatprep.mubr.f32.mxu0 0.0
      %6098 = vmatmul.mubr.f32.gmra.mrb[0].mxu0 %v5896
      %v6099 = vpop.f32.mrb[0].mxu0
      %v6100 = vadd.f32 0.0, %v6099
      %v6101 = vpop.f32.mrb[0].mxu0
      %6102 = vmatprep.mubr.f32.mxu0 0.0
      %6103 = vmatmul.mubr.f32.gmra.mrb[0].mxu0 %v5897
      %v6104 = vpop.f32.mrb[0].mxu0
      %v6105 = vadd.f32 0.0, %v6104
      %v6106 = vpop.f32.mrb[0].mxu0
      %6107 = vmatprep.mubr.f32.mxu0 0.0
      %6108 = vmatmul.mubr.f32.gmra.mrb[0].mxu0 %v5898
      %v6109 = vpop.f32.mrb[0].mxu0
      %v6110 = vadd.f32 0.0, %v6109
      %v6111 = vpop.f32.mrb[0].mxu0
      %6112 = vmatprep.mubr.f32.mxu0 0.0
      %6113 = vmatmul.mubr.f32.gmra.mrb[0].mxu0 %v5899
      %v6114 = vpop.f32.mrb[0].mxu0
      %v6115 = vadd.f32 0.0, %v6114
      %v6116 = vpop.f32.mrb[0].mxu0
      %6117 = vmatprep.mubr.f32.mxu0 0.0
      %6118 = vmatmul.mubr.f32.gmra.mrb[0].mxu0 %v5900
      %v6119 = vpop.f32.mrb[0].mxu0
      %v6120 = vadd.f32 0.0, %v6119
      %v6121 = vpop.f32.mrb[0].mxu0
      %6122 = vmatprep.mubr.f32.mxu0 0.0
      %6123 = vmatmul.mubr.f32.gmra.mrb[0].mxu0 %v5901
      %v6124 = vpop.f32.mrb[0].mxu0
      %v6125 = vadd.f32 0.0, %v6124
      %v6126 = vpop.f32.mrb[0].mxu0
      %6127 = vmatprep.mubr.f32.mxu0 0.0
      %6128 = vmatmul.mubr.f32.gmra.mrb[0].mxu0 %v5902
      %v6129 = vpop.f32.mrb[0].mxu0
      %v6130 = vadd.f32 0.0, %v6129
      %v6131 = vpop.f32.mrb[0].mxu0
      %6132 = vmatprep.mubr.f32.mxu0 0.0
      %6133 = vmatmul.mubr.f32.gmra.mrb[0].mxu0 %v5903
      %v6134 = vpop.f32.mrb[0].mxu0
      %v6135 = vadd.f32 0.0, %v6134
      %v6136 = vpop.f32.mrb[0].mxu0
      %6137 = vmatprep.mubr.f32.mxu0 0.0
      %6138 = vmatmul.mubr.f32.gmra.mrb[0].mxu0 %v5904
      %v6139 = vpop.f32.mrb[0].mxu0
      %v6140 = vadd.f32 0.0, %v6139
      %v6141 = vpop.f32.mrb[0].mxu0
      %6142 = vmatprep.mubr.f32.mxu0 0.0
      %6143 = vmatmul.mubr.f32.gmra.mrb[0].mxu0 %v5905
      %v6144 = vpop.f32.mrb[0].mxu0
      %v6145 = vadd.f32 0.0, %v6144
      %v6146 = vpop.f32.mrb[0].mxu0
      %6147 = vdwg.mxu0
      %6148 = vmatprep.subr.mxu0 0.0
      %6149 = vmatpush1.msra.mxu0 %v5858
      %6150 = vmatprep.subr.mxu0 0.0
      %6151 = vmatpush1.msra.mxu0 %v5859
      %6152 = vmatprep.subr.mxu0 0.0
      %6153 = vmatpush1.msra.mxu0 %v5860
      %6154 = vmatprep.subr.mxu0 0.0
      %6155 = vmatpush1.msra.mxu0 %v5861
      %6156 = vmatprep.subr.mxu0 0.0
      %6157 = vmatpush1.msra.mxu0 %v5862
      %6158 = vmatprep.subr.mxu0 0.0
      %6159 = vmatpush1.msra.mxu0 %v5863
      %6160 = vmatprep.subr.mxu0 0.0
      %6161 = vmatpush1.msra.mxu0 %v5864
      %6162 = vmatprep.subr.mxu0 0.0
      %6163 = vmatpush1.msra.mxu0 %v5865
      %6164 = vmatprep.subr.mxu0 0.0
      %6165 = vmatpush1.msra.mxu0 %v5866
      %6166 = vmatprep.subr.mxu0 0.0
      %6167 = vmatpush1.msra.mxu0 %v5867
      %6168 = vmatprep.subr.mxu0 0.0
      %6169 = vmatpush1.msra.mxu0 %v5868
      %6170 = vmatprep.subr.mxu0 0.0
      %6171 = vmatpush1.msra.mxu0 %v5869
      %6172 = vmatprep.subr.mxu0 0.0
      %6173 = vmatpush1.msra.mxu0 %v5870
      %6174 = vmatprep.subr.mxu0 0.0
      %6175 = vmatpush1.msra.mxu0 %v5871
      %6176 = vmatprep.subr.mxu0 0.0
      %6177 = vmatpush1.msra.mxu0 %v5872
      %6178 = vmatprep.subr.mxu0 0.0
      %6179 = vmatpush1.msra.mxu0 %v5873
      %6180 = vmatprep.subr.mxu0 0.0
      %6181 = vmatpush1.msra.mxu0 0.0
      %6182 = vmatprep.subr.mxu0 0.0
      %6183 = vmatpush1.msra.mxu0 0.0
      %6184 = vmatprep.subr.mxu0 0.0
      %6185 = vmatpush1.msra.mxu0 0.0
      %6186 = vmatprep.subr.mxu0 0.0
      %6187 = vmatpush1.msra.mxu0 0.0
      %6188 = vmatprep.subr.mxu0 0.0
      %6189 = vmatpush1.msra.mxu0 0.0
      %6190 = vmatprep.subr.mxu0 0.0
      %6191 = vmatpush1.msra.mxu0 0.0
      %6192 = vmatprep.subr.mxu0 0.0
      %6193 = vmatpush1.msra.mxu0 0.0
      %6194 = vmatprep.subr.mxu0 0.0
      %6195 = vmatpush1.msra.mxu0 0.0
      %6196 = vmatprep.subr.mxu0 0.0
      %6197 = vmatpush1.msra.mxu0 0.0
      %6198 = vmatprep.subr.mxu0 0.0
      %6199 = vmatpush1.msra.mxu0 0.0
      %6200 = vmatprep.subr.mxu0 0.0
      %6201 = vmatpush1.msra.mxu0 0.0
      %6202 = vmatprep.subr.mxu0 0.0
      %6203 = vmatpush1.msra.mxu0 0.0
      %6204 = vmatprep.subr.mxu0 0.0
      %6205 = vmatpush1.msra.mxu0 0.0
      %6206 = vmatprep.subr.mxu0 0.0
      %6207 = vmatpush1.msra.mxu0 0.0
      %6208 = vmatprep.subr.mxu0 0.0
      %6209 = vmatpush1.msra.mxu0 0.0
      %6210 = vmatprep.subr.mxu0 0.0
      %6211 = vmatpush1.msra.mxu0 0.0
      %6212 = vmatprep.mubr.f32.mxu0 0.0
      %6213 = vmatmul.mubr.f32.gmra.mrb[0].mxu0 %v5825
      %v6214 = vpop.f32.mrb[0].mxu0
      %v6215 = vadd.f32 %v5990, %v6214
      %v6216 = vpop.f32.mrb[0].mxu0
      %6217 = vmatprep.mubr.f32.mxu0 0.0
      %6218 = vmatmul.mubr.f32.gmra.mrb[0].mxu0 %v5826
      %v6219 = vpop.f32.mrb[0].mxu0
      %v6220 = vadd.f32 %v5995, %v6219
      %v6221 = vpop.f32.mrb[0].mxu0
      %6222 = vmatprep.mubr.f32.mxu0 0.0
      %6223 = vmatmul.mubr.f32.gmra.mrb[0].mxu0 %v5827
      %v6224 = vpop.f32.mrb[0].mxu0
      %v6225 = vadd.f32 %v6000, %v6224
      %v6226 = vpop.f32.mrb[0].mxu0
      %6227 = vmatprep.mubr.f32.mxu0 0.0
      %6228 = vmatmul.mubr.f32.gmra.mrb[0].mxu0 %v5828
      %v6229 = vpop.f32.mrb[0].mxu0
      %v6230 = vadd.f32 %v6005, %v6229
      %v6231 = vpop.f32.mrb[0].mxu0
      %6232 = vmatprep.mubr.f32.mxu0 0.0
      %6233 = vmatmul.mubr.f32.gmra.mrb[0].mxu0 %v5829
      %v6234 = vpop.f32.mrb[0].mxu0
      %v6235 = vadd.f32 %v6010, %v6234
      %v6236 = vpop.f32.mrb[0].mxu0
      %6237 = vmatprep.mubr.f32.mxu0 0.0
      %6238 = vmatmul.mubr.f32.gmra.mrb[0].mxu0 %v5830
      %v6239 = vpop.f32.mrb[0].mxu0
      %v6240 = vadd.f32 %v6015, %v6239
      %v6241 = vpop.f32.mrb[0].mxu0
      %6242 = vmatprep.mubr.f32.mxu0 0.0
      %6243 = vmatmul.mubr.f32.gmra.mrb[0].mxu0 %v5831
      %v6244 = vpop.f32.mrb[0].mxu0
      %v6245 = vadd.f32 %v6020, %v6244
      %v6246 = vpop.f32.mrb[0].mxu0
      %6247 = vmatprep.mubr.f32.mxu0 0.0
      %6248 = vmatmul.mubr.f32.gmra.mrb[0].mxu0 %v5832
      %v6249 = vpop.f32.mrb[0].mxu0
      %v6250 = vadd.f32 %v6025, %v6249
      %v6251 = vpop.f32.mrb[0].mxu0
      %6252 = vmatprep.mubr.f32.mxu0 0.0
      %6253 = vmatmul.mubr.f32.gmra.mrb[0].mxu0 %v5833
      %v6254 = vpop.f32.mrb[0].mxu0
      %v6255 = vadd.f32 %v6030, %v6254
      %v6256 = vpop.f32.mrb[0].mxu0
      %6257 = vmatprep.mubr.f32.mxu0 0.0
      %6258 = vmatmul.mubr.f32.gmra.mrb[0].mxu0 %v5834
      %v6259 = vpop.f32.mrb[0].mxu0
      %v6260 = vadd.f32 %v6035, %v6259
      %v6261 = vpop.f32.mrb[0].mxu0
      %6262 = vmatprep.mubr.f32.mxu0 0.0
      %6263 = vmatmul.mubr.f32.gmra.mrb[0].mxu0 %v5835
      %v6264 = vpop.f32.mrb[0].mxu0
      %v6265 = vadd.f32 %v6040, %v6264
      %v6266 = vpop.f32.mrb[0].mxu0
      %6267 = vmatprep.mubr.f32.mxu0 0.0
      %6268 = vmatmul.mubr.f32.gmra.mrb[0].mxu0 %v5836
      %v6269 = vpop.f32.mrb[0].mxu0
      %v6270 = vadd.f32 %v6045, %v6269
      %v6271 = vpop.f32.mrb[0].mxu0
      %6272 = vmatprep.mubr.f32.mxu0 0.0
      %6273 = vmatmul.mubr.f32.gmra.mrb[0].mxu0 %v5837
      %v6274 = vpop.f32.mrb[0].mxu0
      %v6275 = vadd.f32 %v6050, %v6274
      %v6276 = vpop.f32.mrb[0].mxu0
      %6277 = vmatprep.mubr.f32.mxu0 0.0
      %6278 = vmatmul.mubr.f32.gmra.mrb[0].mxu0 %v5838
      %v6279 = vpop.f32.mrb[0].mxu0
      %v6280 = vadd.f32 %v6055, %v6279
      %v6281 = vpop.f32.mrb[0].mxu0
      %6282 = vmatprep.mubr.f32.mxu0 0.0
      %6283 = vmatmul.mubr.f32.gmra.mrb[0].mxu0 %v5839
      %v6284 = vpop.f32.mrb[0].mxu0
      %v6285 = vadd.f32 %v6060, %v6284
      %v6286 = vpop.f32.mrb[0].mxu0
      %6287 = vmatprep.mubr.f32.mxu0 0.0
      %6288 = vmatmul.mubr.f32.gmra.mrb[0].mxu0 %v5840
      %v6289 = vpop.f32.mrb[0].mxu0
      %v6290 = vadd.f32 %v6065, %v6289
      %v6291 = vpop.f32.mrb[0].mxu0
      %6292 = vmatprep.mubr.f32.mxu0 0.0
      %6293 = vmatmul.mubr.f32.gmra.mrb[0].mxu0 %v5841
      %v6294 = vpop.f32.mrb[0].mxu0
      %v6295 = vadd.f32 %v6070, %v6294
      %v6296 = vpop.f32.mrb[0].mxu0
      %6297 = vmatprep.mubr.f32.mxu0 0.0
      %6298 = vmatmul.mubr.f32.gmra.mrb[0].mxu0 %v5842
      %v6299 = vpop.f32.mrb[0].mxu0
      %v6300 = vadd.f32 %v6075, %v6299
      %v6301 = vpop.f32.mrb[0].mxu0
      %6302 = vmatprep.mubr.f32.mxu0 0.0
      %6303 = vmatmul.mubr.f32.gmra.mrb[0].mxu0 %v5843
      %v6304 = vpop.f32.mrb[0].mxu0
      %v6305 = vadd.f32 %v6080, %v6304
      %v6306 = vpop.f32.mrb[0].mxu0
      %6307 = vmatprep.mubr.f32.mxu0 0.0
      %6308 = vmatmul.mubr.f32.gmra.mrb[0].mxu0 %v5844
      %v6309 = vpop.f32.mrb[0].mxu0
      %v6310 = vadd.f32 %v6085, %v6309
      %v6311 = vpop.f32.mrb[0].mxu0
      %6312 = vmatprep.mubr.f32.mxu0 0.0
      %6313 = vmatmul.mubr.f32.gmra.mrb[0].mxu0 %v5845
      %v6314 = vpop.f32.mrb[0].mxu0
      %v6315 = vadd.f32 %v6090, %v6314
      %v6316 = vpop.f32.mrb[0].mxu0
      %6317 = vmatprep.mubr.f32.mxu0 0.0
      %6318 = vmatmul.mubr.f32.gmra.mrb[0].mxu0 %v5846
      %v6319 = vpop.f32.mrb[0].mxu0
      %v6320 = vadd.f32 %v6095, %v6319
      %v6321 = vpop.f32.mrb[0].mxu0
      %6322 = vmatprep.mubr.f32.mxu0 0.0
      %6323 = vmatmul.mubr.f32.gmra.mrb[0].mxu0 %v5847
      %v6324 = vpop.f32.mrb[0].mxu0
      %v6325 = vadd.f32 %v6100, %v6324
      %v6326 = vpop.f32.mrb[0].mxu0
      %6327 = vmatprep.mubr.f32.mxu0 0.0
      %6328 = vmatmul.mubr.f32.gmra.mrb[0].mxu0 %v5848
      %v6329 = vpop.f32.mrb[0].mxu0
      %v6330 = vadd.f32 %v6105, %v6329
      %v6331 = vpop.f32.mrb[0].mxu0
      %6332 = vmatprep.mubr.f32.mxu0 0.0
      %6333 = vmatmul.mubr.f32.gmra.mrb[0].mxu0 %v5849
      %v6334 = vpop.f32.mrb[0].mxu0
      %v6335 = vadd.f32 %v6110, %v6334
      %v6336 = vpop.f32.mrb[0].mxu0
      %6337 = vmatprep.mubr.f32.mxu0 0.0
      %6338 = vmatmul.mubr.f32.gmra.mrb[0].mxu0 %v5850
      %v6339 = vpop.f32.mrb[0].mxu0
      %v6340 = vadd.f32 %v6115, %v6339
      %v6341 = vpop.f32.mrb[0].mxu0
      %6342 = vmatprep.mubr.f32.mxu0 0.0
      %6343 = vmatmul.mubr.f32.gmra.mrb[0].mxu0 %v5851
      %v6344 = vpop.f32.mrb[0].mxu0
      %v6345 = vadd.f32 %v6120, %v6344
      %v6346 = vpop.f32.mrb[0].mxu0
      %6347 = vmatprep.mubr.f32.mxu0 0.0
      %6348 = vmatmul.mubr.f32.gmra.mrb[0].mxu0 %v5852
      %v6349 = vpop.f32.mrb[0].mxu0
      %v6350 = vadd.f32 %v6125, %v6349
      %v6351 = vpop.f32.mrb[0].mxu0
      %6352 = vmatprep.mubr.f32.mxu0 0.0
      %6353 = vmatmul.mubr.f32.gmra.mrb[0].mxu0 %v5853
      %v6354 = vpop.f32.mrb[0].mxu0
      %v6355 = vadd.f32 %v6130, %v6354
      %v6356 = vpop.f32.mrb[0].mxu0
      %6357 = vmatprep.mubr.f32.mxu0 0.0
      %6358 = vmatmul.mubr.f32.gmra.mrb[0].mxu0 %v5854
      %v6359 = vpop.f32.mrb[0].mxu0
      %v6360 = vadd.f32 %v6135, %v6359
      %v6361 = vpop.f32.mrb[0].mxu0
      %6362 = vmatprep.mubr.f32.mxu0 0.0
      %6363 = vmatmul.mubr.f32.gmra.mrb[0].mxu0 %v5855
      %v6364 = vpop.f32.mrb[0].mxu0
      %v6365 = vadd.f32 %v6140, %v6364
      %v6366 = vpop.f32.mrb[0].mxu0
      %6367 = vmatprep.mubr.f32.mxu0 0.0
      %6368 = vmatmul.mubr.f32.gmra.mrb[0].mxu0 %v5856
      %v6369 = vpop.f32.mrb[0].mxu0
      %v6370 = vadd.f32 %v6145, %v6369
      %v6371 = vpop.f32.mrb[0].mxu0
      %6372 = vdwg.mxu0
      %v6373 = vld [vmem:[#allocation2 + $0x2] sm:$0xff]
      %v6374 = vld [vmem:[#allocation2 + $0xa] sm:$0xff]
      %v6375 = vld [vmem:[#allocation2 + $0x1a] sm:$0xff]
      %v6376 = vld [vmem:[#allocation2 + $0x22] sm:$0xff]
      %v6377 = vld [vmem:[#allocation2 + $0x32] sm:$0xff]
      %v6378 = vld [vmem:[#allocation2 + $0x3a] sm:$0xff]
      %v6379 = vld [vmem:[#allocation2 + $0x4a] sm:$0xff]
      %v6380 = vld [vmem:[#allocation2 + $0x52] sm:$0xff]
      %v6381 = vld [vmem:[#allocation2 + $0x62] sm:$0xff]
      %v6382 = vld [vmem:[#allocation2 + $0x6a] sm:$0xff]
      %v6383 = vld [vmem:[#allocation2 + $0x7a] sm:$0xff]
      %v6384 = vld [vmem:[#allocation2 + $0x82] sm:$0xff]
      %v6385 = vld [vmem:[#allocation2 + $0x92] sm:$0xff]
      %v6386 = vld [vmem:[#allocation2 + $0x9a] sm:$0xff]
      %v6387 = vld [vmem:[#allocation2 + $0xaa] sm:$0xff]
      %v6388 = vld [vmem:[#allocation2 + $0xb2] sm:$0xff]
      %v6389 = vld [vmem:[#allocation2 + $0xc2] sm:$0xff]
      %v6390 = vld [vmem:[#allocation2 + $0xca] sm:$0xff]
      %v6391 = vld [vmem:[#allocation2 + $0xda] sm:$0xff]
      %v6392 = vld [vmem:[#allocation2 + $0xe2] sm:$0xff]
      %v6393 = vld [vmem:[#allocation2 + $0xf2] sm:$0xff]
      %v6394 = vld [vmem:[#allocation2 + $0xfa] sm:$0xff]
      %v6395 = vld [vmem:[#allocation2 + $0x10a] sm:$0xff]
      %v6396 = vld [vmem:[#allocation2 + $0x112] sm:$0xff]
      %v6397 = vld [vmem:[#allocation2 + $0x122] sm:$0xff]
      %v6398 = vld [vmem:[#allocation2 + $0x12a] sm:$0xff]
      %v6399 = vld [vmem:[#allocation2 + $0x13a] sm:$0xff]
      %v6400 = vld [vmem:[#allocation2 + $0x142] sm:$0xff]
      %v6401 = vld [vmem:[#allocation2 + $0x152] sm:$0xff]
      %v6402 = vld [vmem:[#allocation2 + $0x15a] sm:$0xff]
      %v6403 = vld [vmem:[#allocation2 + $0x16a] sm:$0xff]
      %v6404 = vld [vmem:[#allocation2 + $0x172] sm:$0xff]
      %s6405 = scalar_lea.vmem %s1, 2560
      %v6406 = vld [vmem:[%s6405] sm:$0xff]
      %v6407 = vld [vmem:[%s6405 + $0x8] sm:$0xff]
      %v6408 = vld [vmem:[%s6405 + $0x10] sm:$0xff]
      %v6409 = vld [vmem:[%s6405 + $0x18] sm:$0xff]
      %v6410 = vld [vmem:[%s6405 + $0x20] sm:$0xff]
      %v6411 = vld [vmem:[%s6405 + $0x28] sm:$0xff]
      %v6412 = vld [vmem:[%s6405 + $0x30] sm:$0xff]
      %v6413 = vld [vmem:[%s6405 + $0x38] sm:$0xff]
      %v6414 = vld [vmem:[%s6405 + $0x40] sm:$0xff]
      %v6415 = vld [vmem:[%s6405 + $0x48] sm:$0xff]
      %v6416 = vld [vmem:[%s6405 + $0x50] sm:$0xff]
      %v6417 = vld [vmem:[%s6405 + $0x58] sm:$0xff]
      %v6418 = vld [vmem:[%s6405 + $0x60] sm:$0xff]
      %v6419 = vld [vmem:[%s6405 + $0x68] sm:$0xff]
      %v6420 = vld [vmem:[%s6405 + $0x70] sm:$0xff]
      %v6421 = vld [vmem:[%s6405 + $0x78] sm:$0xff]
      %6422 = vmatprep.subr.mxu0 0.0
      %6423 = vmatpush1.msra.mxu0 %v6406
      %6424 = vmatprep.subr.mxu0 0.0
      %6425 = vmatpush1.msra.mxu0 %v6407
      %6426 = vmatprep.subr.mxu0 0.0
      %6427 = vmatpush1.msra.mxu0 %v6408
      %6428 = vmatprep.subr.mxu0 0.0
      %6429 = vmatpush1.msra.mxu0 %v6409
      %6430 = vmatprep.subr.mxu0 0.0
      %6431 = vmatpush1.msra.mxu0 %v6410
      %6432 = vmatprep.subr.mxu0 0.0
      %6433 = vmatpush1.msra.mxu0 %v6411
      %6434 = vmatprep.subr.mxu0 0.0
      %6435 = vmatpush1.msra.mxu0 %v6412
      %6436 = vmatprep.subr.mxu0 0.0
      %6437 = vmatpush1.msra.mxu0 %v6413
      %6438 = vmatprep.subr.mxu0 0.0
      %6439 = vmatpush1.msra.mxu0 %v6414
      %6440 = vmatprep.subr.mxu0 0.0
      %6441 = vmatpush1.msra.mxu0 %v6415
      %6442 = vmatprep.subr.mxu0 0.0
      %6443 = vmatpush1.msra.mxu0 %v6416
      %6444 = vmatprep.subr.mxu0 0.0
      %6445 = vmatpush1.msra.mxu0 %v6417
      %6446 = vmatprep.subr.mxu0 0.0
      %6447 = vmatpush1.msra.mxu0 %v6418
      %6448 = vmatprep.subr.mxu0 0.0
      %6449 = vmatpush1.msra.mxu0 %v6419
      %6450 = vmatprep.subr.mxu0 0.0
      %6451 = vmatpush1.msra.mxu0 %v6420
      %6452 = vmatprep.subr.mxu0 0.0
      %6453 = vmatpush1.msra.mxu0 %v6421
      %6454 = vmatprep.subr.mxu0 0.0
      %6455 = vmatpush1.msra.mxu0 0.0
      %6456 = vmatprep.subr.mxu0 0.0
      %6457 = vmatpush1.msra.mxu0 0.0
      %6458 = vmatprep.subr.mxu0 0.0
      %6459 = vmatpush1.msra.mxu0 0.0
      %6460 = vmatprep.subr.mxu0 0.0
      %6461 = vmatpush1.msra.mxu0 0.0
      %6462 = vmatprep.subr.mxu0 0.0
      %6463 = vmatpush1.msra.mxu0 0.0
      %6464 = vmatprep.subr.mxu0 0.0
      %6465 = vmatpush1.msra.mxu0 0.0
      %6466 = vmatprep.subr.mxu0 0.0
      %6467 = vmatpush1.msra.mxu0 0.0
      %6468 = vmatprep.subr.mxu0 0.0
      %6469 = vmatpush1.msra.mxu0 0.0
      %6470 = vmatprep.subr.mxu0 0.0
      %6471 = vmatpush1.msra.mxu0 0.0
      %6472 = vmatprep.subr.mxu0 0.0
      %6473 = vmatpush1.msra.mxu0 0.0
      %6474 = vmatprep.subr.mxu0 0.0
      %6475 = vmatpush1.msra.mxu0 0.0
      %6476 = vmatprep.subr.mxu0 0.0
      %6477 = vmatpush1.msra.mxu0 0.0
      %6478 = vmatprep.subr.mxu0 0.0
      %6479 = vmatpush1.msra.mxu0 0.0
      %6480 = vmatprep.subr.mxu0 0.0
      %6481 = vmatpush1.msra.mxu0 0.0
      %6482 = vmatprep.subr.mxu0 0.0
      %6483 = vmatpush1.msra.mxu0 0.0
      %6484 = vmatprep.subr.mxu0 0.0
      %6485 = vmatpush1.msra.mxu0 0.0
      %6486 = vmatprep.mubr.f32.mxu0 0.0
      %6487 = vmatmul.mubr.f32.gmra.mrb[0].mxu0 %v6373
      %v6488 = vpop.f32.mrb[0].mxu0
      %v6489 = vadd.f32 0.0, %v6488
      %v6490 = vpop.f32.mrb[0].mxu0
      %6491 = vmatprep.mubr.f32.mxu0 0.0
      %6492 = vmatmul.mubr.f32.gmra.mrb[0].mxu0 %v6374
      %v6493 = vpop.f32.mrb[0].mxu0
      %v6494 = vadd.f32 0.0, %v6493
      %v6495 = vpop.f32.mrb[0].mxu0
      %6496 = vmatprep.mubr.f32.mxu0 0.0
      %6497 = vmatmul.mubr.f32.gmra.mrb[0].mxu0 %v6375
      %v6498 = vpop.f32.mrb[0].mxu0
      %v6499 = vadd.f32 0.0, %v6498
      %v6500 = vpop.f32.mrb[0].mxu0
      %6501 = vmatprep.mubr.f32.mxu0 0.0
      %6502 = vmatmul.mubr.f32.gmra.mrb[0].mxu0 %v6376
      %v6503 = vpop.f32.mrb[0].mxu0
      %v6504 = vadd.f32 0.0, %v6503
      %v6505 = vpop.f32.mrb[0].mxu0
      %6506 = vmatprep.mubr.f32.mxu0 0.0
      %6507 = vmatmul.mubr.f32.gmra.mrb[0].mxu0 %v6377
      %v6508 = vpop.f32.mrb[0].mxu0
      %v6509 = vadd.f32 0.0, %v6508
      %v6510 = vpop.f32.mrb[0].mxu0
      %6511 = vmatprep.mubr.f32.mxu0 0.0
      %6512 = vmatmul.mubr.f32.gmra.mrb[0].mxu0 %v6378
      %v6513 = vpop.f32.mrb[0].mxu0
      %v6514 = vadd.f32 0.0, %v6513
      %v6515 = vpop.f32.mrb[0].mxu0
      %6516 = vmatprep.mubr.f32.mxu0 0.0
      %6517 = vmatmul.mubr.f32.gmra.mrb[0].mxu0 %v6379
      %v6518 = vpop.f32.mrb[0].mxu0
      %v6519 = vadd.f32 0.0, %v6518
      %v6520 = vpop.f32.mrb[0].mxu0
      %6521 = vmatprep.mubr.f32.mxu0 0.0
      %6522 = vmatmul.mubr.f32.gmra.mrb[0].mxu0 %v6380
      %v6523 = vpop.f32.mrb[0].mxu0
      %v6524 = vadd.f32 0.0, %v6523
      %v6525 = vpop.f32.mrb[0].mxu0
      %6526 = vmatprep.mubr.f32.mxu0 0.0
      %6527 = vmatmul.mubr.f32.gmra.mrb[0].mxu0 %v6381
      %v6528 = vpop.f32.mrb[0].mxu0
      %v6529 = vadd.f32 0.0, %v6528
      %v6530 = vpop.f32.mrb[0].mxu0
      %6531 = vmatprep.mubr.f32.mxu0 0.0
      %6532 = vmatmul.mubr.f32.gmra.mrb[0].mxu0 %v6382
      %v6533 = vpop.f32.mrb[0].mxu0
      %v6534 = vadd.f32 0.0, %v6533
      %v6535 = vpop.f32.mrb[0].mxu0
      %6536 = vmatprep.mubr.f32.mxu0 0.0
      %6537 = vmatmul.mubr.f32.gmra.mrb[0].mxu0 %v6383
      %v6538 = vpop.f32.mrb[0].mxu0
      %v6539 = vadd.f32 0.0, %v6538
      %v6540 = vpop.f32.mrb[0].mxu0
      %6541 = vmatprep.mubr.f32.mxu0 0.0
      %6542 = vmatmul.mubr.f32.gmra.mrb[0].mxu0 %v6384
      %v6543 = vpop.f32.mrb[0].mxu0
      %v6544 = vadd.f32 0.0, %v6543
      %v6545 = vpop.f32.mrb[0].mxu0
      %6546 = vmatprep.mubr.f32.mxu0 0.0
      %6547 = vmatmul.mubr.f32.gmra.mrb[0].mxu0 %v6385
      %v6548 = vpop.f32.mrb[0].mxu0
      %v6549 = vadd.f32 0.0, %v6548
      %v6550 = vpop.f32.mrb[0].mxu0
      %6551 = vmatprep.mubr.f32.mxu0 0.0
      %6552 = vmatmul.mubr.f32.gmra.mrb[0].mxu0 %v6386
      %v6553 = vpop.f32.mrb[0].mxu0
      %v6554 = vadd.f32 0.0, %v6553
      %v6555 = vpop.f32.mrb[0].mxu0
      %6556 = vmatprep.mubr.f32.mxu0 0.0
      %6557 = vmatmul.mubr.f32.gmra.mrb[0].mxu0 %v6387
      %v6558 = vpop.f32.mrb[0].mxu0
      %v6559 = vadd.f32 0.0, %v6558
      %v6560 = vpop.f32.mrb[0].mxu0
      %6561 = vmatprep.mubr.f32.mxu0 0.0
      %6562 = vmatmul.mubr.f32.gmra.mrb[0].mxu0 %v6388
      %v6563 = vpop.f32.mrb[0].mxu0
      %v6564 = vadd.f32 0.0, %v6563
      %v6565 = vpop.f32.mrb[0].mxu0
      %6566 = vmatprep.mubr.f32.mxu0 0.0
      %6567 = vmatmul.mubr.f32.gmra.mrb[0].mxu0 %v6389
      %v6568 = vpop.f32.mrb[0].mxu0
      %v6569 = vadd.f32 0.0, %v6568
      %v6570 = vpop.f32.mrb[0].mxu0
      %6571 = vmatprep.mubr.f32.mxu0 0.0
      %6572 = vmatmul.mubr.f32.gmra.mrb[0].mxu0 %v6390
      %v6573 = vpop.f32.mrb[0].mxu0
      %v6574 = vadd.f32 0.0, %v6573
      %v6575 = vpop.f32.mrb[0].mxu0
      %6576 = vmatprep.mubr.f32.mxu0 0.0
      %6577 = vmatmul.mubr.f32.gmra.mrb[0].mxu0 %v6391
      %v6578 = vpop.f32.mrb[0].mxu0
      %v6579 = vadd.f32 0.0, %v6578
      %v6580 = vpop.f32.mrb[0].mxu0
      %6581 = vmatprep.mubr.f32.mxu0 0.0
      %6582 = vmatmul.mubr.f32.gmra.mrb[0].mxu0 %v6392
      %v6583 = vpop.f32.mrb[0].mxu0
      %v6584 = vadd.f32 0.0, %v6583
      %v6585 = vpop.f32.mrb[0].mxu0
      %6586 = vmatprep.mubr.f32.mxu0 0.0
      %6587 = vmatmul.mubr.f32.gmra.mrb[0].mxu0 %v6393
      %v6588 = vpop.f32.mrb[0].mxu0
      %v6589 = vadd.f32 0.0, %v6588
      %v6590 = vpop.f32.mrb[0].mxu0
      %6591 = vmatprep.mubr.f32.mxu0 0.0
      %6592 = vmatmul.mubr.f32.gmra.mrb[0].mxu0 %v6394
      %v6593 = vpop.f32.mrb[0].mxu0
      %v6594 = vadd.f32 0.0, %v6593
      %v6595 = vpop.f32.mrb[0].mxu0
      %6596 = vmatprep.mubr.f32.mxu0 0.0
      %6597 = vmatmul.mubr.f32.gmra.mrb[0].mxu0 %v6395
      %v6598 = vpop.f32.mrb[0].mxu0
      %v6599 = vadd.f32 0.0, %v6598
      %v6600 = vpop.f32.mrb[0].mxu0
      %6601 = vmatprep.mubr.f32.mxu0 0.0
      %6602 = vmatmul.mubr.f32.gmra.mrb[0].mxu0 %v6396
      %v6603 = vpop.f32.mrb[0].mxu0
      %v6604 = vadd.f32 0.0, %v6603
      %v6605 = vpop.f32.mrb[0].mxu0
      %6606 = vmatprep.mubr.f32.mxu0 0.0
      %6607 = vmatmul.mubr.f32.gmra.mrb[0].mxu0 %v6397
      %v6608 = vpop.f32.mrb[0].mxu0
      %v6609 = vadd.f32 0.0, %v6608
      %v6610 = vpop.f32.mrb[0].mxu0
      %6611 = vmatprep.mubr.f32.mxu0 0.0
      %6612 = vmatmul.mubr.f32.gmra.mrb[0].mxu0 %v6398
      %v6613 = vpop.f32.mrb[0].mxu0
      %v6614 = vadd.f32 0.0, %v6613
      %v6615 = vpop.f32.mrb[0].mxu0
      %6616 = vmatprep.mubr.f32.mxu0 0.0
      %6617 = vmatmul.mubr.f32.gmra.mrb[0].mxu0 %v6399
      %v6618 = vpop.f32.mrb[0].mxu0
      %v6619 = vadd.f32 0.0, %v6618
      %v6620 = vpop.f32.mrb[0].mxu0
      %6621 = vmatprep.mubr.f32.mxu0 0.0
      %6622 = vmatmul.mubr.f32.gmra.mrb[0].mxu0 %v6400
      %v6623 = vpop.f32.mrb[0].mxu0
      %v6624 = vadd.f32 0.0, %v6623
      %v6625 = vpop.f32.mrb[0].mxu0
      %6626 = vmatprep.mubr.f32.mxu0 0.0
      %6627 = vmatmul.mubr.f32.gmra.mrb[0].mxu0 %v6401
      %v6628 = vpop.f32.mrb[0].mxu0
      %v6629 = vadd.f32 0.0, %v6628
      %v6630 = vpop.f32.mrb[0].mxu0
      %6631 = vmatprep.mubr.f32.mxu0 0.0
      %6632 = vmatmul.mubr.f32.gmra.mrb[0].mxu0 %v6402
      %v6633 = vpop.f32.mrb[0].mxu0
      %v6634 = vadd.f32 0.0, %v6633
      %v6635 = vpop.f32.mrb[0].mxu0
      %6636 = vmatprep.mubr.f32.mxu0 0.0
      %6637 = vmatmul.mubr.f32.gmra.mrb[0].mxu0 %v6403
      %v6638 = vpop.f32.mrb[0].mxu0
      %v6639 = vadd.f32 0.0, %v6638
      %v6640 = vpop.f32.mrb[0].mxu0
      %6641 = vmatprep.mubr.f32.mxu0 0.0
      %6642 = vmatmul.mubr.f32.gmra.mrb[0].mxu0 %v6404
      %v6643 = vpop.f32.mrb[0].mxu0
      %v6644 = vadd.f32 0.0, %v6643
      %v6645 = vpop.f32.mrb[0].mxu0
      %6646 = vdwg.mxu0
      %v6647 = vadd.f32 %v6215, %v6489
      %v6648 = vadd.f32 %v6220, %v6494
      %v6649 = vadd.f32 %v6225, %v6499
      %v6650 = vadd.f32 %v6230, %v6504
      %v6651 = vadd.f32 %v6235, %v6509
      %v6652 = vadd.f32 %v6240, %v6514
      %v6653 = vadd.f32 %v6245, %v6519
      %v6654 = vadd.f32 %v6250, %v6524
      %v6655 = vadd.f32 %v6255, %v6529
      %v6656 = vadd.f32 %v6260, %v6534
      %v6657 = vadd.f32 %v6265, %v6539
      %v6658 = vadd.f32 %v6270, %v6544
      %v6659 = vadd.f32 %v6275, %v6549
      %v6660 = vadd.f32 %v6280, %v6554
      %v6661 = vadd.f32 %v6285, %v6559
      %v6662 = vadd.f32 %v6290, %v6564
      %v6663 = vadd.f32 %v6295, %v6569
      %v6664 = vadd.f32 %v6300, %v6574
      %v6665 = vadd.f32 %v6305, %v6579
      %v6666 = vadd.f32 %v6310, %v6584
      %v6667 = vadd.f32 %v6315, %v6589
      %v6668 = vadd.f32 %v6320, %v6594
      %v6669 = vadd.f32 %v6325, %v6599
      %v6670 = vadd.f32 %v6330, %v6604
      %v6671 = vadd.f32 %v6335, %v6609
      %v6672 = vadd.f32 %v6340, %v6614
      %v6673 = vadd.f32 %v6345, %v6619
      %v6674 = vadd.f32 %v6350, %v6624
      %v6675 = vadd.f32 %v6355, %v6629
      %v6676 = vadd.f32 %v6360, %v6634
      %v6677 = vadd.f32 %v6365, %v6639
      %v6678 = vadd.f32 %v6370, %v6644
      %v6679 = vld [vmem:[%s3005] sm:$0xff]
      %v6680 = vld [vmem:[%s3005 + $0x8] sm:$0xff]
      %v6681 = vld [vmem:[%s3005 + $0x18] sm:$0xff]
      %v6682 = vld [vmem:[%s3005 + $0x20] sm:$0xff]
      %v6683 = vld [vmem:[%s3005 + $0x30] sm:$0xff]
      %v6684 = vld [vmem:[%s3005 + $0x38] sm:$0xff]
      %v6685 = vld [vmem:[%s3005 + $0x48] sm:$0xff]
      %v6686 = vld [vmem:[%s3005 + $0x50] sm:$0xff]
      %v6687 = vld [vmem:[%s3005 + $0x60] sm:$0xff]
      %v6688 = vld [vmem:[%s3005 + $0x68] sm:$0xff]
      %v6689 = vld [vmem:[%s3005 + $0x78] sm:$0xff]
      %v6690 = vld [vmem:[%s3005 + $0x80] sm:$0xff]
      %v6691 = vld [vmem:[%s3005 + $0x90] sm:$0xff]
      %v6692 = vld [vmem:[%s3005 + $0x98] sm:$0xff]
      %v6693 = vld [vmem:[%s3005 + $0xa8] sm:$0xff]
      %v6694 = vld [vmem:[%s3005 + $0xb0] sm:$0xff]
      %v6695 = vld [vmem:[%s3005 + $0xc0] sm:$0xff]
      %v6696 = vld [vmem:[%s3005 + $0xc8] sm:$0xff]
      %v6697 = vld [vmem:[%s3005 + $0xd8] sm:$0xff]
      %v6698 = vld [vmem:[%s3005 + $0xe0] sm:$0xff]
      %v6699 = vld [vmem:[%s3005 + $0xf0] sm:$0xff]
      %v6700 = vld [vmem:[%s3005 + $0xf8] sm:$0xff]
      %v6701 = vld [vmem:[%s3005 + $0x108] sm:$0xff]
      %v6702 = vld [vmem:[%s3005 + $0x110] sm:$0xff]
      %v6703 = vld [vmem:[%s3005 + $0x120] sm:$0xff]
      %v6704 = vld [vmem:[%s3005 + $0x128] sm:$0xff]
      %v6705 = vld [vmem:[%s3005 + $0x138] sm:$0xff]
      %v6706 = vld [vmem:[%s3005 + $0x140] sm:$0xff]
      %v6707 = vld [vmem:[%s3005 + $0x150] sm:$0xff]
      %v6708 = vld [vmem:[%s3005 + $0x158] sm:$0xff]
      %v6709 = vld [vmem:[%s3005 + $0x168] sm:$0xff]
      %v6710 = vld [vmem:[%s3005 + $0x170] sm:$0xff]
      %s6711 = scalar_lea.vmem %s1, 2688
      %v6712 = vld [vmem:[%s6711] sm:$0xff]
      %v6713 = vld [vmem:[%s6711 + $0x8] sm:$0xff]
      %v6714 = vld [vmem:[%s6711 + $0x10] sm:$0xff]
      %v6715 = vld [vmem:[%s6711 + $0x18] sm:$0xff]
      %v6716 = vld [vmem:[%s6711 + $0x20] sm:$0xff]
      %v6717 = vld [vmem:[%s6711 + $0x28] sm:$0xff]
      %v6718 = vld [vmem:[%s6711 + $0x30] sm:$0xff]
      %v6719 = vld [vmem:[%s6711 + $0x38] sm:$0xff]
      %v6720 = vld [vmem:[%s6711 + $0x40] sm:$0xff]
      %v6721 = vld [vmem:[%s6711 + $0x48] sm:$0xff]
      %v6722 = vld [vmem:[%s6711 + $0x50] sm:$0xff]
      %v6723 = vld [vmem:[%s6711 + $0x58] sm:$0xff]
      %v6724 = vld [vmem:[%s6711 + $0x60] sm:$0xff]
      %v6725 = vld [vmem:[%s6711 + $0x68] sm:$0xff]
      %v6726 = vld [vmem:[%s6711 + $0x70] sm:$0xff]
      %v6727 = vld [vmem:[%s6711 + $0x78] sm:$0xff]
      %6728 = vmatprep.subr.mxu0 0.0
      %6729 = vmatpush1.msra.mxu0 %v6712
      %6730 = vmatprep.subr.mxu0 0.0
      %6731 = vmatpush1.msra.mxu0 %v6713
      %6732 = vmatprep.subr.mxu0 0.0
      %6733 = vmatpush1.msra.mxu0 %v6714
      %6734 = vmatprep.subr.mxu0 0.0
      %6735 = vmatpush1.msra.mxu0 %v6715
      %6736 = vmatprep.subr.mxu0 0.0
      %6737 = vmatpush1.msra.mxu0 %v6716
      %6738 = vmatprep.subr.mxu0 0.0
      %6739 = vmatpush1.msra.mxu0 %v6717
      %6740 = vmatprep.subr.mxu0 0.0
      %6741 = vmatpush1.msra.mxu0 %v6718
      %6742 = vmatprep.subr.mxu0 0.0
      %6743 = vmatpush1.msra.mxu0 %v6719
      %6744 = vmatprep.subr.mxu0 0.0
      %6745 = vmatpush1.msra.mxu0 %v6720
      %6746 = vmatprep.subr.mxu0 0.0
      %6747 = vmatpush1.msra.mxu0 %v6721
      %6748 = vmatprep.subr.mxu0 0.0
      %6749 = vmatpush1.msra.mxu0 %v6722
      %6750 = vmatprep.subr.mxu0 0.0
      %6751 = vmatpush1.msra.mxu0 %v6723
      %6752 = vmatprep.subr.mxu0 0.0
      %6753 = vmatpush1.msra.mxu0 %v6724
      %6754 = vmatprep.subr.mxu0 0.0
      %6755 = vmatpush1.msra.mxu0 %v6725
      %6756 = vmatprep.subr.mxu0 0.0
      %6757 = vmatpush1.msra.mxu0 %v6726
      %6758 = vmatprep.subr.mxu0 0.0
      %6759 = vmatpush1.msra.mxu0 %v6727
      %6760 = vmatprep.subr.mxu0 0.0
      %6761 = vmatpush1.msra.mxu0 0.0
      %6762 = vmatprep.subr.mxu0 0.0
      %6763 = vmatpush1.msra.mxu0 0.0
      %6764 = vmatprep.subr.mxu0 0.0
      %6765 = vmatpush1.msra.mxu0 0.0
      %6766 = vmatprep.subr.mxu0 0.0
      %6767 = vmatpush1.msra.mxu0 0.0
      %6768 = vmatprep.subr.mxu0 0.0
      %6769 = vmatpush1.msra.mxu0 0.0
      %6770 = vmatprep.subr.mxu0 0.0
      %6771 = vmatpush1.msra.mxu0 0.0
      %6772 = vmatprep.subr.mxu0 0.0
      %6773 = vmatpush1.msra.mxu0 0.0
      %6774 = vmatprep.subr.mxu0 0.0
      %6775 = vmatpush1.msra.mxu0 0.0
      %6776 = vmatprep.subr.mxu0 0.0
      %6777 = vmatpush1.msra.mxu0 0.0
      %6778 = vmatprep.subr.mxu0 0.0
      %6779 = vmatpush1.msra.mxu0 0.0
      %6780 = vmatprep.subr.mxu0 0.0
      %6781 = vmatpush1.msra.mxu0 0.0
      %6782 = vmatprep.subr.mxu0 0.0
      %6783 = vmatpush1.msra.mxu0 0.0
      %6784 = vmatprep.subr.mxu0 0.0
      %6785 = vmatpush1.msra.mxu0 0.0
      %6786 = vmatprep.subr.mxu0 0.0
      %6787 = vmatpush1.msra.mxu0 0.0
      %6788 = vmatprep.subr.mxu0 0.0
      %6789 = vmatpush1.msra.mxu0 0.0
      %6790 = vmatprep.subr.mxu0 0.0
      %6791 = vmatpush1.msra.mxu0 0.0
      %6792 = vmatprep.mubr.f32.mxu0 0.0
      %6793 = vmatmul.mubr.f32.gmra.mrb[0].mxu0 %v6679
      %v6794 = vpop.f32.mrb[0].mxu0
      %v6795 = vadd.f32 0.0, %v6794
      %v6796 = vpop.f32.mrb[0].mxu0
      %6797 = vmatprep.mubr.f32.mxu0 0.0
      %6798 = vmatmul.mubr.f32.gmra.mrb[0].mxu0 %v6680
      %v6799 = vpop.f32.mrb[0].mxu0
      %v6800 = vadd.f32 0.0, %v6799
      %v6801 = vpop.f32.mrb[0].mxu0
      %6802 = vmatprep.mubr.f32.mxu0 0.0
      %6803 = vmatmul.mubr.f32.gmra.mrb[0].mxu0 %v6681
      %v6804 = vpop.f32.mrb[0].mxu0
      %v6805 = vadd.f32 0.0, %v6804
      %v6806 = vpop.f32.mrb[0].mxu0
      %6807 = vmatprep.mubr.f32.mxu0 0.0
      %6808 = vmatmul.mubr.f32.gmra.mrb[0].mxu0 %v6682
      %v6809 = vpop.f32.mrb[0].mxu0
      %v6810 = vadd.f32 0.0, %v6809
      %v6811 = vpop.f32.mrb[0].mxu0
      %6812 = vmatprep.mubr.f32.mxu0 0.0
      %6813 = vmatmul.mubr.f32.gmra.mrb[0].mxu0 %v6683
      %v6814 = vpop.f32.mrb[0].mxu0
      %v6815 = vadd.f32 0.0, %v6814
      %v6816 = vpop.f32.mrb[0].mxu0
      %6817 = vmatprep.mubr.f32.mxu0 0.0
      %6818 = vmatmul.mubr.f32.gmra.mrb[0].mxu0 %v6684
      %v6819 = vpop.f32.mrb[0].mxu0
      %v6820 = vadd.f32 0.0, %v6819
      %v6821 = vpop.f32.mrb[0].mxu0
      %6822 = vmatprep.mubr.f32.mxu0 0.0
      %6823 = vmatmul.mubr.f32.gmra.mrb[0].mxu0 %v6685
      %v6824 = vpop.f32.mrb[0].mxu0
      %v6825 = vadd.f32 0.0, %v6824
      %v6826 = vpop.f32.mrb[0].mxu0
      %6827 = vmatprep.mubr.f32.mxu0 0.0
      %6828 = vmatmul.mubr.f32.gmra.mrb[0].mxu0 %v6686
      %v6829 = vpop.f32.mrb[0].mxu0
      %v6830 = vadd.f32 0.0, %v6829
      %v6831 = vpop.f32.mrb[0].mxu0
      %6832 = vmatprep.mubr.f32.mxu0 0.0
      %6833 = vmatmul.mubr.f32.gmra.mrb[0].mxu0 %v6687
      %v6834 = vpop.f32.mrb[0].mxu0
      %v6835 = vadd.f32 0.0, %v6834
      %v6836 = vpop.f32.mrb[0].mxu0
      %6837 = vmatprep.mubr.f32.mxu0 0.0
      %6838 = vmatmul.mubr.f32.gmra.mrb[0].mxu0 %v6688
      %v6839 = vpop.f32.mrb[0].mxu0
      %v6840 = vadd.f32 0.0, %v6839
      %v6841 = vpop.f32.mrb[0].mxu0
      %6842 = vmatprep.mubr.f32.mxu0 0.0
      %6843 = vmatmul.mubr.f32.gmra.mrb[0].mxu0 %v6689
      %v6844 = vpop.f32.mrb[0].mxu0
      %v6845 = vadd.f32 0.0, %v6844
      %v6846 = vpop.f32.mrb[0].mxu0
      %6847 = vmatprep.mubr.f32.mxu0 0.0
      %6848 = vmatmul.mubr.f32.gmra.mrb[0].mxu0 %v6690
      %v6849 = vpop.f32.mrb[0].mxu0
      %v6850 = vadd.f32 0.0, %v6849
      %v6851 = vpop.f32.mrb[0].mxu0
      %6852 = vmatprep.mubr.f32.mxu0 0.0
      %6853 = vmatmul.mubr.f32.gmra.mrb[0].mxu0 %v6691
      %v6854 = vpop.f32.mrb[0].mxu0
      %v6855 = vadd.f32 0.0, %v6854
      %v6856 = vpop.f32.mrb[0].mxu0
      %6857 = vmatprep.mubr.f32.mxu0 0.0
      %6858 = vmatmul.mubr.f32.gmra.mrb[0].mxu0 %v6692
      %v6859 = vpop.f32.mrb[0].mxu0
      %v6860 = vadd.f32 0.0, %v6859
      %v6861 = vpop.f32.mrb[0].mxu0
      %6862 = vmatprep.mubr.f32.mxu0 0.0
      %6863 = vmatmul.mubr.f32.gmra.mrb[0].mxu0 %v6693
      %v6864 = vpop.f32.mrb[0].mxu0
      %v6865 = vadd.f32 0.0, %v6864
      %v6866 = vpop.f32.mrb[0].mxu0
      %6867 = vmatprep.mubr.f32.mxu0 0.0
      %6868 = vmatmul.mubr.f32.gmra.mrb[0].mxu0 %v6694
      %v6869 = vpop.f32.mrb[0].mxu0
      %v6870 = vadd.f32 0.0, %v6869
      %v6871 = vpop.f32.mrb[0].mxu0
      %6872 = vmatprep.mubr.f32.mxu0 0.0
      %6873 = vmatmul.mubr.f32.gmra.mrb[0].mxu0 %v6695
      %v6874 = vpop.f32.mrb[0].mxu0
      %v6875 = vadd.f32 0.0, %v6874
      %v6876 = vpop.f32.mrb[0].mxu0
      %6877 = vmatprep.mubr.f32.mxu0 0.0
      %6878 = vmatmul.mubr.f32.gmra.mrb[0].mxu0 %v6696
      %v6879 = vpop.f32.mrb[0].mxu0
      %v6880 = vadd.f32 0.0, %v6879
      %v6881 = vpop.f32.mrb[0].mxu0
      %6882 = vmatprep.mubr.f32.mxu0 0.0
      %6883 = vmatmul.mubr.f32.gmra.mrb[0].mxu0 %v6697
      %v6884 = vpop.f32.mrb[0].mxu0
      %v6885 = vadd.f32 0.0, %v6884
      %v6886 = vpop.f32.mrb[0].mxu0
      %6887 = vmatprep.mubr.f32.mxu0 0.0
      %6888 = vmatmul.mubr.f32.gmra.mrb[0].mxu0 %v6698
      %v6889 = vpop.f32.mrb[0].mxu0
      %v6890 = vadd.f32 0.0, %v6889
      %v6891 = vpop.f32.mrb[0].mxu0
      %6892 = vmatprep.mubr.f32.mxu0 0.0
      %6893 = vmatmul.mubr.f32.gmra.mrb[0].mxu0 %v6699
      %v6894 = vpop.f32.mrb[0].mxu0
      %v6895 = vadd.f32 0.0, %v6894
      %v6896 = vpop.f32.mrb[0].mxu0
      %6897 = vmatprep.mubr.f32.mxu0 0.0
      %6898 = vmatmul.mubr.f32.gmra.mrb[0].mxu0 %v6700
      %v6899 = vpop.f32.mrb[0].mxu0
      %v6900 = vadd.f32 0.0, %v6899
      %v6901 = vpop.f32.mrb[0].mxu0
      %6902 = vmatprep.mubr.f32.mxu0 0.0
      %6903 = vmatmul.mubr.f32.gmra.mrb[0].mxu0 %v6701
      %v6904 = vpop.f32.mrb[0].mxu0
      %v6905 = vadd.f32 0.0, %v6904
      %v6906 = vpop.f32.mrb[0].mxu0
      %6907 = vmatprep.mubr.f32.mxu0 0.0
      %6908 = vmatmul.mubr.f32.gmra.mrb[0].mxu0 %v6702
      %v6909 = vpop.f32.mrb[0].mxu0
      %v6910 = vadd.f32 0.0, %v6909
      %v6911 = vpop.f32.mrb[0].mxu0
      %6912 = vmatprep.mubr.f32.mxu0 0.0
      %6913 = vmatmul.mubr.f32.gmra.mrb[0].mxu0 %v6703
      %v6914 = vpop.f32.mrb[0].mxu0
      %v6915 = vadd.f32 0.0, %v6914
      %v6916 = vpop.f32.mrb[0].mxu0
      %6917 = vmatprep.mubr.f32.mxu0 0.0
      %6918 = vmatmul.mubr.f32.gmra.mrb[0].mxu0 %v6704
      %v6919 = vpop.f32.mrb[0].mxu0
      %v6920 = vadd.f32 0.0, %v6919
      %v6921 = vpop.f32.mrb[0].mxu0
      %6922 = vmatprep.mubr.f32.mxu0 0.0
      %6923 = vmatmul.mubr.f32.gmra.mrb[0].mxu0 %v6705
      %v6924 = vpop.f32.mrb[0].mxu0
      %v6925 = vadd.f32 0.0, %v6924
      %v6926 = vpop.f32.mrb[0].mxu0
      %6927 = vmatprep.mubr.f32.mxu0 0.0
      %6928 = vmatmul.mubr.f32.gmra.mrb[0].mxu0 %v6706
      %v6929 = vpop.f32.mrb[0].mxu0
      %v6930 = vadd.f32 0.0, %v6929
      %v6931 = vpop.f32.mrb[0].mxu0
      %6932 = vmatprep.mubr.f32.mxu0 0.0
      %6933 = vmatmul.mubr.f32.gmra.mrb[0].mxu0 %v6707
      %v6934 = vpop.f32.mrb[0].mxu0
      %v6935 = vadd.f32 0.0, %v6934
      %v6936 = vpop.f32.mrb[0].mxu0
      %6937 = vmatprep.mubr.f32.mxu0 0.0
      %6938 = vmatmul.mubr.f32.gmra.mrb[0].mxu0 %v6708
      %v6939 = vpop.f32.mrb[0].mxu0
      %v6940 = vadd.f32 0.0, %v6939
      %v6941 = vpop.f32.mrb[0].mxu0
      %6942 = vmatprep.mubr.f32.mxu0 0.0
      %6943 = vmatmul.mubr.f32.gmra.mrb[0].mxu0 %v6709
      %v6944 = vpop.f32.mrb[0].mxu0
      %v6945 = vadd.f32 0.0, %v6944
      %v6946 = vpop.f32.mrb[0].mxu0
      %6947 = vmatprep.mubr.f32.mxu0 0.0
      %6948 = vmatmul.mubr.f32.gmra.mrb[0].mxu0 %v6710
      %v6949 = vpop.f32.mrb[0].mxu0
      %v6950 = vadd.f32 0.0, %v6949
      %v6951 = vpop.f32.mrb[0].mxu0
      %6952 = vdwg.mxu0
      %v6953 = vadd.f32 %v6647, %v6795
      %v6954 = vadd.f32 %v6648, %v6800
      %v6955 = vadd.f32 %v6649, %v6805
      %v6956 = vadd.f32 %v6650, %v6810
      %v6957 = vadd.f32 %v6651, %v6815
      %v6958 = vadd.f32 %v6652, %v6820
      %v6959 = vadd.f32 %v6653, %v6825
      %v6960 = vadd.f32 %v6654, %v6830
      %v6961 = vadd.f32 %v6655, %v6835
      %v6962 = vadd.f32 %v6656, %v6840
      %v6963 = vadd.f32 %v6657, %v6845
      %v6964 = vadd.f32 %v6658, %v6850
      %v6965 = vadd.f32 %v6659, %v6855
      %v6966 = vadd.f32 %v6660, %v6860
      %v6967 = vadd.f32 %v6661, %v6865
      %v6968 = vadd.f32 %v6662, %v6870
      %v6969 = vadd.f32 %v6663, %v6875
      %v6970 = vadd.f32 %v6664, %v6880
      %v6971 = vadd.f32 %v6665, %v6885
      %v6972 = vadd.f32 %v6666, %v6890
      %v6973 = vadd.f32 %v6667, %v6895
      %v6974 = vadd.f32 %v6668, %v6900
      %v6975 = vadd.f32 %v6669, %v6905
      %v6976 = vadd.f32 %v6670, %v6910
      %v6977 = vadd.f32 %v6671, %v6915
      %v6978 = vadd.f32 %v6672, %v6920
      %v6979 = vadd.f32 %v6673, %v6925
      %v6980 = vadd.f32 %v6674, %v6930
      %v6981 = vadd.f32 %v6675, %v6935
      %v6982 = vadd.f32 %v6676, %v6940
      %v6983 = vadd.f32 %v6677, %v6945
      %v6984 = vadd.f32 %v6678, %v6950
      %v6985 = vld [vmem:[%s3005 + $0x1] sm:$0xff]
      %v6986 = vld [vmem:[%s3005 + $0x9] sm:$0xff]
      %v6987 = vld [vmem:[%s3005 + $0x19] sm:$0xff]
      %v6988 = vld [vmem:[%s3005 + $0x21] sm:$0xff]
      %v6989 = vld [vmem:[%s3005 + $0x31] sm:$0xff]
      %v6990 = vld [vmem:[%s3005 + $0x39] sm:$0xff]
      %v6991 = vld [vmem:[%s3005 + $0x49] sm:$0xff]
      %v6992 = vld [vmem:[%s3005 + $0x51] sm:$0xff]
      %v6993 = vld [vmem:[%s3005 + $0x61] sm:$0xff]
      %v6994 = vld [vmem:[%s3005 + $0x69] sm:$0xff]
      %v6995 = vld [vmem:[%s3005 + $0x79] sm:$0xff]
      %v6996 = vld [vmem:[%s3005 + $0x81] sm:$0xff]
      %v6997 = vld [vmem:[%s3005 + $0x91] sm:$0xff]
      %v6998 = vld [vmem:[%s3005 + $0x99] sm:$0xff]
      %v6999 = vld [vmem:[%s3005 + $0xa9] sm:$0xff]
      %v7000 = vld [vmem:[%s3005 + $0xb1] sm:$0xff]
      %v7001 = vld [vmem:[%s3005 + $0xc1] sm:$0xff]
      %v7002 = vld [vmem:[%s3005 + $0xc9] sm:$0xff]
      %v7003 = vld [vmem:[%s3005 + $0xd9] sm:$0xff]
      %v7004 = vld [vmem:[%s3005 + $0xe1] sm:$0xff]
      %v7005 = vld [vmem:[%s3005 + $0xf1] sm:$0xff]
      %v7006 = vld [vmem:[%s3005 + $0xf9] sm:$0xff]
      %v7007 = vld [vmem:[%s3005 + $0x109] sm:$0xff]
      %v7008 = vld [vmem:[%s3005 + $0x111] sm:$0xff]
      %v7009 = vld [vmem:[%s3005 + $0x121] sm:$0xff]
      %v7010 = vld [vmem:[%s3005 + $0x129] sm:$0xff]
      %v7011 = vld [vmem:[%s3005 + $0x139] sm:$0xff]
      %v7012 = vld [vmem:[%s3005 + $0x141] sm:$0xff]
      %v7013 = vld [vmem:[%s3005 + $0x151] sm:$0xff]
      %v7014 = vld [vmem:[%s3005 + $0x159] sm:$0xff]
      %v7015 = vld [vmem:[%s3005 + $0x169] sm:$0xff]
      %v7016 = vld [vmem:[%s3005 + $0x171] sm:$0xff]
      %s7017 = scalar_lea.vmem %s1, 2816
      %v7018 = vld [vmem:[%s7017] sm:$0xff]
      %v7019 = vld [vmem:[%s7017 + $0x8] sm:$0xff]
      %v7020 = vld [vmem:[%s7017 + $0x10] sm:$0xff]
      %v7021 = vld [vmem:[%s7017 + $0x18] sm:$0xff]
      %v7022 = vld [vmem:[%s7017 + $0x20] sm:$0xff]
      %v7023 = vld [vmem:[%s7017 + $0x28] sm:$0xff]
      %v7024 = vld [vmem:[%s7017 + $0x30] sm:$0xff]
      %v7025 = vld [vmem:[%s7017 + $0x38] sm:$0xff]
      %v7026 = vld [vmem:[%s7017 + $0x40] sm:$0xff]
      %v7027 = vld [vmem:[%s7017 + $0x48] sm:$0xff]
      %v7028 = vld [vmem:[%s7017 + $0x50] sm:$0xff]
      %v7029 = vld [vmem:[%s7017 + $0x58] sm:$0xff]
      %v7030 = vld [vmem:[%s7017 + $0x60] sm:$0xff]
      %v7031 = vld [vmem:[%s7017 + $0x68] sm:$0xff]
      %v7032 = vld [vmem:[%s7017 + $0x70] sm:$0xff]
      %v7033 = vld [vmem:[%s7017 + $0x78] sm:$0xff]
      %7034 = vmatprep.subr.mxu0 0.0
      %7035 = vmatpush1.msra.mxu0 %v7018
      %7036 = vmatprep.subr.mxu0 0.0
      %7037 = vmatpush1.msra.mxu0 %v7019
      %7038 = vmatprep.subr.mxu0 0.0
      %7039 = vmatpush1.msra.mxu0 %v7020
      %7040 = vmatprep.subr.mxu0 0.0
      %7041 = vmatpush1.msra.mxu0 %v7021
      %7042 = vmatprep.subr.mxu0 0.0
      %7043 = vmatpush1.msra.mxu0 %v7022
      %7044 = vmatprep.subr.mxu0 0.0
      %7045 = vmatpush1.msra.mxu0 %v7023
      %7046 = vmatprep.subr.mxu0 0.0
      %7047 = vmatpush1.msra.mxu0 %v7024
      %7048 = vmatprep.subr.mxu0 0.0
      %7049 = vmatpush1.msra.mxu0 %v7025
      %7050 = vmatprep.subr.mxu0 0.0
      %7051 = vmatpush1.msra.mxu0 %v7026
      %7052 = vmatprep.subr.mxu0 0.0
      %7053 = vmatpush1.msra.mxu0 %v7027
      %7054 = vmatprep.subr.mxu0 0.0
      %7055 = vmatpush1.msra.mxu0 %v7028
      %7056 = vmatprep.subr.mxu0 0.0
      %7057 = vmatpush1.msra.mxu0 %v7029
      %7058 = vmatprep.subr.mxu0 0.0
      %7059 = vmatpush1.msra.mxu0 %v7030
      %7060 = vmatprep.subr.mxu0 0.0
      %7061 = vmatpush1.msra.mxu0 %v7031
      %7062 = vmatprep.subr.mxu0 0.0
      %7063 = vmatpush1.msra.mxu0 %v7032
      %7064 = vmatprep.subr.mxu0 0.0
      %7065 = vmatpush1.msra.mxu0 %v7033
      %7066 = vmatprep.subr.mxu0 0.0
      %7067 = vmatpush1.msra.mxu0 0.0
      %7068 = vmatprep.subr.mxu0 0.0
      %7069 = vmatpush1.msra.mxu0 0.0
      %7070 = vmatprep.subr.mxu0 0.0
      %7071 = vmatpush1.msra.mxu0 0.0
      %7072 = vmatprep.subr.mxu0 0.0
      %7073 = vmatpush1.msra.mxu0 0.0
      %7074 = vmatprep.subr.mxu0 0.0
      %7075 = vmatpush1.msra.mxu0 0.0
      %7076 = vmatprep.subr.mxu0 0.0
      %7077 = vmatpush1.msra.mxu0 0.0
      %7078 = vmatprep.subr.mxu0 0.0
      %7079 = vmatpush1.msra.mxu0 0.0
      %7080 = vmatprep.subr.mxu0 0.0
      %7081 = vmatpush1.msra.mxu0 0.0
      %7082 = vmatprep.subr.mxu0 0.0
      %7083 = vmatpush1.msra.mxu0 0.0
      %7084 = vmatprep.subr.mxu0 0.0
      %7085 = vmatpush1.msra.mxu0 0.0
      %7086 = vmatprep.subr.mxu0 0.0
      %7087 = vmatpush1.msra.mxu0 0.0
      %7088 = vmatprep.subr.mxu0 0.0
      %7089 = vmatpush1.msra.mxu0 0.0
      %7090 = vmatprep.subr.mxu0 0.0
      %7091 = vmatpush1.msra.mxu0 0.0
      %7092 = vmatprep.subr.mxu0 0.0
      %7093 = vmatpush1.msra.mxu0 0.0
      %7094 = vmatprep.subr.mxu0 0.0
      %7095 = vmatpush1.msra.mxu0 0.0
      %7096 = vmatprep.subr.mxu0 0.0
      %7097 = vmatpush1.msra.mxu0 0.0
      %7098 = vmatprep.mubr.f32.mxu0 0.0
      %7099 = vmatmul.mubr.f32.gmra.mrb[0].mxu0 %v6985
      %v7100 = vpop.f32.mrb[0].mxu0
      %v7101 = vadd.f32 0.0, %v7100
      %v7102 = vpop.f32.mrb[0].mxu0
      %7103 = vmatprep.mubr.f32.mxu0 0.0
      %7104 = vmatmul.mubr.f32.gmra.mrb[0].mxu0 %v6986
      %v7105 = vpop.f32.mrb[0].mxu0
      %v7106 = vadd.f32 0.0, %v7105
      %v7107 = vpop.f32.mrb[0].mxu0
      %7108 = vmatprep.mubr.f32.mxu0 0.0
      %7109 = vmatmul.mubr.f32.gmra.mrb[0].mxu0 %v6987
      %v7110 = vpop.f32.mrb[0].mxu0
      %v7111 = vadd.f32 0.0, %v7110
      %v7112 = vpop.f32.mrb[0].mxu0
      %7113 = vmatprep.mubr.f32.mxu0 0.0
      %7114 = vmatmul.mubr.f32.gmra.mrb[0].mxu0 %v6988
      %v7115 = vpop.f32.mrb[0].mxu0
      %v7116 = vadd.f32 0.0, %v7115
      %v7117 = vpop.f32.mrb[0].mxu0
      %7118 = vmatprep.mubr.f32.mxu0 0.0
      %7119 = vmatmul.mubr.f32.gmra.mrb[0].mxu0 %v6989
      %v7120 = vpop.f32.mrb[0].mxu0
      %v7121 = vadd.f32 0.0, %v7120
      %v7122 = vpop.f32.mrb[0].mxu0
      %7123 = vmatprep.mubr.f32.mxu0 0.0
      %7124 = vmatmul.mubr.f32.gmra.mrb[0].mxu0 %v6990
      %v7125 = vpop.f32.mrb[0].mxu0
      %v7126 = vadd.f32 0.0, %v7125
      %v7127 = vpop.f32.mrb[0].mxu0
      %7128 = vmatprep.mubr.f32.mxu0 0.0
      %7129 = vmatmul.mubr.f32.gmra.mrb[0].mxu0 %v6991
      %v7130 = vpop.f32.mrb[0].mxu0
      %v7131 = vadd.f32 0.0, %v7130
      %v7132 = vpop.f32.mrb[0].mxu0
      %7133 = vmatprep.mubr.f32.mxu0 0.0
      %7134 = vmatmul.mubr.f32.gmra.mrb[0].mxu0 %v6992
      %v7135 = vpop.f32.mrb[0].mxu0
      %v7136 = vadd.f32 0.0, %v7135
      %v7137 = vpop.f32.mrb[0].mxu0
      %7138 = vmatprep.mubr.f32.mxu0 0.0
      %7139 = vmatmul.mubr.f32.gmra.mrb[0].mxu0 %v6993
      %v7140 = vpop.f32.mrb[0].mxu0
      %v7141 = vadd.f32 0.0, %v7140
      %v7142 = vpop.f32.mrb[0].mxu0
      %7143 = vmatprep.mubr.f32.mxu0 0.0
      %7144 = vmatmul.mubr.f32.gmra.mrb[0].mxu0 %v6994
      %v7145 = vpop.f32.mrb[0].mxu0
      %v7146 = vadd.f32 0.0, %v7145
      %v7147 = vpop.f32.mrb[0].mxu0
      %7148 = vmatprep.mubr.f32.mxu0 0.0
      %7149 = vmatmul.mubr.f32.gmra.mrb[0].mxu0 %v6995
      %v7150 = vpop.f32.mrb[0].mxu0
      %v7151 = vadd.f32 0.0, %v7150
      %v7152 = vpop.f32.mrb[0].mxu0
      %7153 = vmatprep.mubr.f32.mxu0 0.0
      %7154 = vmatmul.mubr.f32.gmra.mrb[0].mxu0 %v6996
      %v7155 = vpop.f32.mrb[0].mxu0
      %v7156 = vadd.f32 0.0, %v7155
      %v7157 = vpop.f32.mrb[0].mxu0
      %7158 = vmatprep.mubr.f32.mxu0 0.0
      %7159 = vmatmul.mubr.f32.gmra.mrb[0].mxu0 %v6997
      %v7160 = vpop.f32.mrb[0].mxu0
      %v7161 = vadd.f32 0.0, %v7160
      %v7162 = vpop.f32.mrb[0].mxu0
      %7163 = vmatprep.mubr.f32.mxu0 0.0
      %7164 = vmatmul.mubr.f32.gmra.mrb[0].mxu0 %v6998
      %v7165 = vpop.f32.mrb[0].mxu0
      %v7166 = vadd.f32 0.0, %v7165
      %v7167 = vpop.f32.mrb[0].mxu0
      %7168 = vmatprep.mubr.f32.mxu0 0.0
      %7169 = vmatmul.mubr.f32.gmra.mrb[0].mxu0 %v6999
      %v7170 = vpop.f32.mrb[0].mxu0
      %v7171 = vadd.f32 0.0, %v7170
      %v7172 = vpop.f32.mrb[0].mxu0
      %7173 = vmatprep.mubr.f32.mxu0 0.0
      %7174 = vmatmul.mubr.f32.gmra.mrb[0].mxu0 %v7000
      %v7175 = vpop.f32.mrb[0].mxu0
      %v7176 = vadd.f32 0.0, %v7175
      %v7177 = vpop.f32.mrb[0].mxu0
      %7178 = vmatprep.mubr.f32.mxu0 0.0
      %7179 = vmatmul.mubr.f32.gmra.mrb[0].mxu0 %v7001
      %v7180 = vpop.f32.mrb[0].mxu0
      %v7181 = vadd.f32 0.0, %v7180
      %v7182 = vpop.f32.mrb[0].mxu0
      %7183 = vmatprep.mubr.f32.mxu0 0.0
      %7184 = vmatmul.mubr.f32.gmra.mrb[0].mxu0 %v7002
      %v7185 = vpop.f32.mrb[0].mxu0
      %v7186 = vadd.f32 0.0, %v7185
      %v7187 = vpop.f32.mrb[0].mxu0
      %7188 = vmatprep.mubr.f32.mxu0 0.0
      %7189 = vmatmul.mubr.f32.gmra.mrb[0].mxu0 %v7003
      %v7190 = vpop.f32.mrb[0].mxu0
      %v7191 = vadd.f32 0.0, %v7190
      %v7192 = vpop.f32.mrb[0].mxu0
      %7193 = vmatprep.mubr.f32.mxu0 0.0
      %7194 = vmatmul.mubr.f32.gmra.mrb[0].mxu0 %v7004
      %v7195 = vpop.f32.mrb[0].mxu0
      %v7196 = vadd.f32 0.0, %v7195
      %v7197 = vpop.f32.mrb[0].mxu0
      %7198 = vmatprep.mubr.f32.mxu0 0.0
      %7199 = vmatmul.mubr.f32.gmra.mrb[0].mxu0 %v7005
      %v7200 = vpop.f32.mrb[0].mxu0
      %v7201 = vadd.f32 0.0, %v7200
      %v7202 = vpop.f32.mrb[0].mxu0
      %7203 = vmatprep.mubr.f32.mxu0 0.0
      %7204 = vmatmul.mubr.f32.gmra.mrb[0].mxu0 %v7006
      %v7205 = vpop.f32.mrb[0].mxu0
      %v7206 = vadd.f32 0.0, %v7205
      %v7207 = vpop.f32.mrb[0].mxu0
      %7208 = vmatprep.mubr.f32.mxu0 0.0
      %7209 = vmatmul.mubr.f32.gmra.mrb[0].mxu0 %v7007
      %v7210 = vpop.f32.mrb[0].mxu0
      %v7211 = vadd.f32 0.0, %v7210
      %v7212 = vpop.f32.mrb[0].mxu0
      %7213 = vmatprep.mubr.f32.mxu0 0.0
      %7214 = vmatmul.mubr.f32.gmra.mrb[0].mxu0 %v7008
      %v7215 = vpop.f32.mrb[0].mxu0
      %v7216 = vadd.f32 0.0, %v7215
      %v7217 = vpop.f32.mrb[0].mxu0
      %7218 = vmatprep.mubr.f32.mxu0 0.0
      %7219 = vmatmul.mubr.f32.gmra.mrb[0].mxu0 %v7009
      %v7220 = vpop.f32.mrb[0].mxu0
      %v7221 = vadd.f32 0.0, %v7220
      %v7222 = vpop.f32.mrb[0].mxu0
      %7223 = vmatprep.mubr.f32.mxu0 0.0
      %7224 = vmatmul.mubr.f32.gmra.mrb[0].mxu0 %v7010
      %v7225 = vpop.f32.mrb[0].mxu0
      %v7226 = vadd.f32 0.0, %v7225
      %v7227 = vpop.f32.mrb[0].mxu0
      %7228 = vmatprep.mubr.f32.mxu0 0.0
      %7229 = vmatmul.mubr.f32.gmra.mrb[0].mxu0 %v7011
      %v7230 = vpop.f32.mrb[0].mxu0
      %v7231 = vadd.f32 0.0, %v7230
      %v7232 = vpop.f32.mrb[0].mxu0
      %7233 = vmatprep.mubr.f32.mxu0 0.0
      %7234 = vmatmul.mubr.f32.gmra.mrb[0].mxu0 %v7012
      %v7235 = vpop.f32.mrb[0].mxu0
      %v7236 = vadd.f32 0.0, %v7235
      %v7237 = vpop.f32.mrb[0].mxu0
      %7238 = vmatprep.mubr.f32.mxu0 0.0
      %7239 = vmatmul.mubr.f32.gmra.mrb[0].mxu0 %v7013
      %v7240 = vpop.f32.mrb[0].mxu0
      %v7241 = vadd.f32 0.0, %v7240
      %v7242 = vpop.f32.mrb[0].mxu0
      %7243 = vmatprep.mubr.f32.mxu0 0.0
      %7244 = vmatmul.mubr.f32.gmra.mrb[0].mxu0 %v7014
      %v7245 = vpop.f32.mrb[0].mxu0
      %v7246 = vadd.f32 0.0, %v7245
      %v7247 = vpop.f32.mrb[0].mxu0
      %7248 = vmatprep.mubr.f32.mxu0 0.0
      %7249 = vmatmul.mubr.f32.gmra.mrb[0].mxu0 %v7015
      %v7250 = vpop.f32.mrb[0].mxu0
      %v7251 = vadd.f32 0.0, %v7250
      %v7252 = vpop.f32.mrb[0].mxu0
      %7253 = vmatprep.mubr.f32.mxu0 0.0
      %7254 = vmatmul.mubr.f32.gmra.mrb[0].mxu0 %v7016
      %v7255 = vpop.f32.mrb[0].mxu0
      %v7256 = vadd.f32 0.0, %v7255
      %v7257 = vpop.f32.mrb[0].mxu0
      %7258 = vdwg.mxu0
      %v7259 = vadd.f32 %v6953, %v7101
      %v7260 = vadd.f32 %v6954, %v7106
      %v7261 = vadd.f32 %v6955, %v7111
      %v7262 = vadd.f32 %v6956, %v7116
      %v7263 = vadd.f32 %v6957, %v7121
      %v7264 = vadd.f32 %v6958, %v7126
      %v7265 = vadd.f32 %v6959, %v7131
      %v7266 = vadd.f32 %v6960, %v7136
      %v7267 = vadd.f32 %v6961, %v7141
      %v7268 = vadd.f32 %v6962, %v7146
      %v7269 = vadd.f32 %v6963, %v7151
      %v7270 = vadd.f32 %v6964, %v7156
      %v7271 = vadd.f32 %v6965, %v7161
      %v7272 = vadd.f32 %v6966, %v7166
      %v7273 = vadd.f32 %v6967, %v7171
      %v7274 = vadd.f32 %v6968, %v7176
      %v7275 = vadd.f32 %v6969, %v7181
      %v7276 = vadd.f32 %v6970, %v7186
      %v7277 = vadd.f32 %v6971, %v7191
      %v7278 = vadd.f32 %v6972, %v7196
      %v7279 = vadd.f32 %v6973, %v7201
      %v7280 = vadd.f32 %v6974, %v7206
      %v7281 = vadd.f32 %v6975, %v7211
      %v7282 = vadd.f32 %v6976, %v7216
      %v7283 = vadd.f32 %v6977, %v7221
      %v7284 = vadd.f32 %v6978, %v7226
      %v7285 = vadd.f32 %v6979, %v7231
      %v7286 = vadd.f32 %v6980, %v7236
      %v7287 = vadd.f32 %v6981, %v7241
      %v7288 = vadd.f32 %v6982, %v7246
      %v7289 = vadd.f32 %v6983, %v7251
      %v7290 = vadd.f32 %v6984, %v7256
      %v7291 = vld [vmem:[%s3005 + $0x2] sm:$0xff]
      %v7292 = vld [vmem:[%s3005 + $0xa] sm:$0xff]
      %v7293 = vld [vmem:[%s3005 + $0x1a] sm:$0xff]
      %v7294 = vld [vmem:[%s3005 + $0x22] sm:$0xff]
      %v7295 = vld [vmem:[%s3005 + $0x32] sm:$0xff]
      %v7296 = vld [vmem:[%s3005 + $0x3a] sm:$0xff]
      %v7297 = vld [vmem:[%s3005 + $0x4a] sm:$0xff]
      %v7298 = vld [vmem:[%s3005 + $0x52] sm:$0xff]
      %v7299 = vld [vmem:[%s3005 + $0x62] sm:$0xff]
      %v7300 = vld [vmem:[%s3005 + $0x6a] sm:$0xff]
      %v7301 = vld [vmem:[%s3005 + $0x7a] sm:$0xff]
      %v7302 = vld [vmem:[%s3005 + $0x82] sm:$0xff]
      %v7303 = vld [vmem:[%s3005 + $0x92] sm:$0xff]
      %v7304 = vld [vmem:[%s3005 + $0x9a] sm:$0xff]
      %v7305 = vld [vmem:[%s3005 + $0xaa] sm:$0xff]
      %v7306 = vld [vmem:[%s3005 + $0xb2] sm:$0xff]
      %v7307 = vld [vmem:[%s3005 + $0xc2] sm:$0xff]
      %v7308 = vld [vmem:[%s3005 + $0xca] sm:$0xff]
      %v7309 = vld [vmem:[%s3005 + $0xda] sm:$0xff]
      %v7310 = vld [vmem:[%s3005 + $0xe2] sm:$0xff]
      %v7311 = vld [vmem:[%s3005 + $0xf2] sm:$0xff]
      %v7312 = vld [vmem:[%s3005 + $0xfa] sm:$0xff]
      %v7313 = vld [vmem:[%s3005 + $0x10a] sm:$0xff]
      %v7314 = vld [vmem:[%s3005 + $0x112] sm:$0xff]
      %v7315 = vld [vmem:[%s3005 + $0x122] sm:$0xff]
      %v7316 = vld [vmem:[%s3005 + $0x12a] sm:$0xff]
      %v7317 = vld [vmem:[%s3005 + $0x13a] sm:$0xff]
      %v7318 = vld [vmem:[%s3005 + $0x142] sm:$0xff]
      %v7319 = vld [vmem:[%s3005 + $0x152] sm:$0xff]
      %v7320 = vld [vmem:[%s3005 + $0x15a] sm:$0xff]
      %v7321 = vld [vmem:[%s3005 + $0x16a] sm:$0xff]
      %v7322 = vld [vmem:[%s3005 + $0x172] sm:$0xff]
      %s7323 = scalar_lea.vmem %s1, 2944
      %v7324 = vld [vmem:[%s7323] sm:$0xff]
      %v7325 = vld [vmem:[%s7323 + $0x8] sm:$0xff]
      %v7326 = vld [vmem:[%s7323 + $0x10] sm:$0xff]
      %v7327 = vld [vmem:[%s7323 + $0x18] sm:$0xff]
      %v7328 = vld [vmem:[%s7323 + $0x20] sm:$0xff]
      %v7329 = vld [vmem:[%s7323 + $0x28] sm:$0xff]
      %v7330 = vld [vmem:[%s7323 + $0x30] sm:$0xff]
      %v7331 = vld [vmem:[%s7323 + $0x38] sm:$0xff]
      %v7332 = vld [vmem:[%s7323 + $0x40] sm:$0xff]
      %v7333 = vld [vmem:[%s7323 + $0x48] sm:$0xff]
      %v7334 = vld [vmem:[%s7323 + $0x50] sm:$0xff]
      %v7335 = vld [vmem:[%s7323 + $0x58] sm:$0xff]
      %v7336 = vld [vmem:[%s7323 + $0x60] sm:$0xff]
      %v7337 = vld [vmem:[%s7323 + $0x68] sm:$0xff]
      %v7338 = vld [vmem:[%s7323 + $0x70] sm:$0xff]
      %v7339 = vld [vmem:[%s7323 + $0x78] sm:$0xff]
      %7340 = vmatprep.subr.mxu0 0.0
      %7341 = vmatpush1.msra.mxu0 %v7324
      %7342 = vmatprep.subr.mxu0 0.0
      %7343 = vmatpush1.msra.mxu0 %v7325
      %7344 = vmatprep.subr.mxu0 0.0
      %7345 = vmatpush1.msra.mxu0 %v7326
      %7346 = vmatprep.subr.mxu0 0.0
      %7347 = vmatpush1.msra.mxu0 %v7327
      %7348 = vmatprep.subr.mxu0 0.0
      %7349 = vmatpush1.msra.mxu0 %v7328
      %7350 = vmatprep.subr.mxu0 0.0
      %7351 = vmatpush1.msra.mxu0 %v7329
      %7352 = vmatprep.subr.mxu0 0.0
      %7353 = vmatpush1.msra.mxu0 %v7330
      %7354 = vmatprep.subr.mxu0 0.0
      %7355 = vmatpush1.msra.mxu0 %v7331
      %7356 = vmatprep.subr.mxu0 0.0
      %7357 = vmatpush1.msra.mxu0 %v7332
      %7358 = vmatprep.subr.mxu0 0.0
      %7359 = vmatpush1.msra.mxu0 %v7333
      %7360 = vmatprep.subr.mxu0 0.0
      %7361 = vmatpush1.msra.mxu0 %v7334
      %7362 = vmatprep.subr.mxu0 0.0
      %7363 = vmatpush1.msra.mxu0 %v7335
      %7364 = vmatprep.subr.mxu0 0.0
      %7365 = vmatpush1.msra.mxu0 %v7336
      %7366 = vmatprep.subr.mxu0 0.0
      %7367 = vmatpush1.msra.mxu0 %v7337
      %7368 = vmatprep.subr.mxu0 0.0
      %7369 = vmatpush1.msra.mxu0 %v7338
      %7370 = vmatprep.subr.mxu0 0.0
      %7371 = vmatpush1.msra.mxu0 %v7339
      %7372 = vmatprep.subr.mxu0 0.0
      %7373 = vmatpush1.msra.mxu0 0.0
      %7374 = vmatprep.subr.mxu0 0.0
      %7375 = vmatpush1.msra.mxu0 0.0
      %7376 = vmatprep.subr.mxu0 0.0
      %7377 = vmatpush1.msra.mxu0 0.0
      %7378 = vmatprep.subr.mxu0 0.0
      %7379 = vmatpush1.msra.mxu0 0.0
      %7380 = vmatprep.subr.mxu0 0.0
      %7381 = vmatpush1.msra.mxu0 0.0
      %7382 = vmatprep.subr.mxu0 0.0
      %7383 = vmatpush1.msra.mxu0 0.0
      %7384 = vmatprep.subr.mxu0 0.0
      %7385 = vmatpush1.msra.mxu0 0.0
      %7386 = vmatprep.subr.mxu0 0.0
      %7387 = vmatpush1.msra.mxu0 0.0
      %7388 = vmatprep.subr.mxu0 0.0
      %7389 = vmatpush1.msra.mxu0 0.0
      %7390 = vmatprep.subr.mxu0 0.0
      %7391 = vmatpush1.msra.mxu0 0.0
      %7392 = vmatprep.subr.mxu0 0.0
      %7393 = vmatpush1.msra.mxu0 0.0
      %7394 = vmatprep.subr.mxu0 0.0
      %7395 = vmatpush1.msra.mxu0 0.0
      %7396 = vmatprep.subr.mxu0 0.0
      %7397 = vmatpush1.msra.mxu0 0.0
      %7398 = vmatprep.subr.mxu0 0.0
      %7399 = vmatpush1.msra.mxu0 0.0
      %7400 = vmatprep.subr.mxu0 0.0
      %7401 = vmatpush1.msra.mxu0 0.0
      %7402 = vmatprep.subr.mxu0 0.0
      %7403 = vmatpush1.msra.mxu0 0.0
      %7404 = vmatprep.mubr.f32.mxu0 0.0
      %7405 = vmatmul.mubr.f32.gmra.mrb[0].mxu0 %v7291
      %v7406 = vpop.f32.mrb[0].mxu0
      %v7407 = vadd.f32 0.0, %v7406
      %v7408 = vpop.f32.mrb[0].mxu0
      %7409 = vmatprep.mubr.f32.mxu0 0.0
      %7410 = vmatmul.mubr.f32.gmra.mrb[0].mxu0 %v7292
      %v7411 = vpop.f32.mrb[0].mxu0
      %v7412 = vadd.f32 0.0, %v7411
      %v7413 = vpop.f32.mrb[0].mxu0
      %7414 = vmatprep.mubr.f32.mxu0 0.0
      %7415 = vmatmul.mubr.f32.gmra.mrb[0].mxu0 %v7293
      %v7416 = vpop.f32.mrb[0].mxu0
      %v7417 = vadd.f32 0.0, %v7416
      %v7418 = vpop.f32.mrb[0].mxu0
      %7419 = vmatprep.mubr.f32.mxu0 0.0
      %7420 = vmatmul.mubr.f32.gmra.mrb[0].mxu0 %v7294
      %v7421 = vpop.f32.mrb[0].mxu0
      %v7422 = vadd.f32 0.0, %v7421
      %v7423 = vpop.f32.mrb[0].mxu0
      %7424 = vmatprep.mubr.f32.mxu0 0.0
      %7425 = vmatmul.mubr.f32.gmra.mrb[0].mxu0 %v7295
      %v7426 = vpop.f32.mrb[0].mxu0
      %v7427 = vadd.f32 0.0, %v7426
      %v7428 = vpop.f32.mrb[0].mxu0
      %7429 = vmatprep.mubr.f32.mxu0 0.0
      %7430 = vmatmul.mubr.f32.gmra.mrb[0].mxu0 %v7296
      %v7431 = vpop.f32.mrb[0].mxu0
      %v7432 = vadd.f32 0.0, %v7431
      %v7433 = vpop.f32.mrb[0].mxu0
      %7434 = vmatprep.mubr.f32.mxu0 0.0
      %7435 = vmatmul.mubr.f32.gmra.mrb[0].mxu0 %v7297
      %v7436 = vpop.f32.mrb[0].mxu0
      %v7437 = vadd.f32 0.0, %v7436
      %v7438 = vpop.f32.mrb[0].mxu0
      %7439 = vmatprep.mubr.f32.mxu0 0.0
      %7440 = vmatmul.mubr.f32.gmra.mrb[0].mxu0 %v7298
      %v7441 = vpop.f32.mrb[0].mxu0
      %v7442 = vadd.f32 0.0, %v7441
      %v7443 = vpop.f32.mrb[0].mxu0
      %7444 = vmatprep.mubr.f32.mxu0 0.0
      %7445 = vmatmul.mubr.f32.gmra.mrb[0].mxu0 %v7299
      %v7446 = vpop.f32.mrb[0].mxu0
      %v7447 = vadd.f32 0.0, %v7446
      %v7448 = vpop.f32.mrb[0].mxu0
      %7449 = vmatprep.mubr.f32.mxu0 0.0
      %7450 = vmatmul.mubr.f32.gmra.mrb[0].mxu0 %v7300
      %v7451 = vpop.f32.mrb[0].mxu0
      %v7452 = vadd.f32 0.0, %v7451
      %v7453 = vpop.f32.mrb[0].mxu0
      %7454 = vmatprep.mubr.f32.mxu0 0.0
      %7455 = vmatmul.mubr.f32.gmra.mrb[0].mxu0 %v7301
      %v7456 = vpop.f32.mrb[0].mxu0
      %v7457 = vadd.f32 0.0, %v7456
      %v7458 = vpop.f32.mrb[0].mxu0
      %7459 = vmatprep.mubr.f32.mxu0 0.0
      %7460 = vmatmul.mubr.f32.gmra.mrb[0].mxu0 %v7302
      %v7461 = vpop.f32.mrb[0].mxu0
      %v7462 = vadd.f32 0.0, %v7461
      %v7463 = vpop.f32.mrb[0].mxu0
      %7464 = vmatprep.mubr.f32.mxu0 0.0
      %7465 = vmatmul.mubr.f32.gmra.mrb[0].mxu0 %v7303
      %v7466 = vpop.f32.mrb[0].mxu0
      %v7467 = vadd.f32 0.0, %v7466
      %v7468 = vpop.f32.mrb[0].mxu0
      %7469 = vmatprep.mubr.f32.mxu0 0.0
      %7470 = vmatmul.mubr.f32.gmra.mrb[0].mxu0 %v7304
      %v7471 = vpop.f32.mrb[0].mxu0
      %v7472 = vadd.f32 0.0, %v7471
      %v7473 = vpop.f32.mrb[0].mxu0
      %7474 = vmatprep.mubr.f32.mxu0 0.0
      %7475 = vmatmul.mubr.f32.gmra.mrb[0].mxu0 %v7305
      %v7476 = vpop.f32.mrb[0].mxu0
      %v7477 = vadd.f32 0.0, %v7476
      %v7478 = vpop.f32.mrb[0].mxu0
      %7479 = vmatprep.mubr.f32.mxu0 0.0
      %7480 = vmatmul.mubr.f32.gmra.mrb[0].mxu0 %v7306
      %v7481 = vpop.f32.mrb[0].mxu0
      %v7482 = vadd.f32 0.0, %v7481
      %v7483 = vpop.f32.mrb[0].mxu0
      %7484 = vmatprep.mubr.f32.mxu0 0.0
      %7485 = vmatmul.mubr.f32.gmra.mrb[0].mxu0 %v7307
      %v7486 = vpop.f32.mrb[0].mxu0
      %v7487 = vadd.f32 0.0, %v7486
      %v7488 = vpop.f32.mrb[0].mxu0
      %7489 = vmatprep.mubr.f32.mxu0 0.0
      %7490 = vmatmul.mubr.f32.gmra.mrb[0].mxu0 %v7308
      %v7491 = vpop.f32.mrb[0].mxu0
      %v7492 = vadd.f32 0.0, %v7491
      %v7493 = vpop.f32.mrb[0].mxu0
      %7494 = vmatprep.mubr.f32.mxu0 0.0
      %7495 = vmatmul.mubr.f32.gmra.mrb[0].mxu0 %v7309
      %v7496 = vpop.f32.mrb[0].mxu0
      %v7497 = vadd.f32 0.0, %v7496
      %v7498 = vpop.f32.mrb[0].mxu0
      %7499 = vmatprep.mubr.f32.mxu0 0.0
      %7500 = vmatmul.mubr.f32.gmra.mrb[0].mxu0 %v7310
      %v7501 = vpop.f32.mrb[0].mxu0
      %v7502 = vadd.f32 0.0, %v7501
      %v7503 = vpop.f32.mrb[0].mxu0
      %7504 = vmatprep.mubr.f32.mxu0 0.0
      %7505 = vmatmul.mubr.f32.gmra.mrb[0].mxu0 %v7311
      %v7506 = vpop.f32.mrb[0].mxu0
      %v7507 = vadd.f32 0.0, %v7506
      %v7508 = vpop.f32.mrb[0].mxu0
      %7509 = vmatprep.mubr.f32.mxu0 0.0
      %7510 = vmatmul.mubr.f32.gmra.mrb[0].mxu0 %v7312
      %v7511 = vpop.f32.mrb[0].mxu0
      %v7512 = vadd.f32 0.0, %v7511
      %v7513 = vpop.f32.mrb[0].mxu0
      %7514 = vmatprep.mubr.f32.mxu0 0.0
      %7515 = vmatmul.mubr.f32.gmra.mrb[0].mxu0 %v7313
      %v7516 = vpop.f32.mrb[0].mxu0
      %v7517 = vadd.f32 0.0, %v7516
      %v7518 = vpop.f32.mrb[0].mxu0
      %7519 = vmatprep.mubr.f32.mxu0 0.0
      %7520 = vmatmul.mubr.f32.gmra.mrb[0].mxu0 %v7314
      %v7521 = vpop.f32.mrb[0].mxu0
      %v7522 = vadd.f32 0.0, %v7521
      %v7523 = vpop.f32.mrb[0].mxu0
      %7524 = vmatprep.mubr.f32.mxu0 0.0
      %7525 = vmatmul.mubr.f32.gmra.mrb[0].mxu0 %v7315
      %v7526 = vpop.f32.mrb[0].mxu0
      %v7527 = vadd.f32 0.0, %v7526
      %v7528 = vpop.f32.mrb[0].mxu0
      %7529 = vmatprep.mubr.f32.mxu0 0.0
      %7530 = vmatmul.mubr.f32.gmra.mrb[0].mxu0 %v7316
      %v7531 = vpop.f32.mrb[0].mxu0
      %v7532 = vadd.f32 0.0, %v7531
      %v7533 = vpop.f32.mrb[0].mxu0
      %7534 = vmatprep.mubr.f32.mxu0 0.0
      %7535 = vmatmul.mubr.f32.gmra.mrb[0].mxu0 %v7317
      %v7536 = vpop.f32.mrb[0].mxu0
      %v7537 = vadd.f32 0.0, %v7536
      %v7538 = vpop.f32.mrb[0].mxu0
      %7539 = vmatprep.mubr.f32.mxu0 0.0
      %7540 = vmatmul.mubr.f32.gmra.mrb[0].mxu0 %v7318
      %v7541 = vpop.f32.mrb[0].mxu0
      %v7542 = vadd.f32 0.0, %v7541
      %v7543 = vpop.f32.mrb[0].mxu0
      %7544 = vmatprep.mubr.f32.mxu0 0.0
      %7545 = vmatmul.mubr.f32.gmra.mrb[0].mxu0 %v7319
      %v7546 = vpop.f32.mrb[0].mxu0
      %v7547 = vadd.f32 0.0, %v7546
      %v7548 = vpop.f32.mrb[0].mxu0
      %7549 = vmatprep.mubr.f32.mxu0 0.0
      %7550 = vmatmul.mubr.f32.gmra.mrb[0].mxu0 %v7320
      %v7551 = vpop.f32.mrb[0].mxu0
      %v7552 = vadd.f32 0.0, %v7551
      %v7553 = vpop.f32.mrb[0].mxu0
      %7554 = vmatprep.mubr.f32.mxu0 0.0
      %7555 = vmatmul.mubr.f32.gmra.mrb[0].mxu0 %v7321
      %v7556 = vpop.f32.mrb[0].mxu0
      %v7557 = vadd.f32 0.0, %v7556
      %v7558 = vpop.f32.mrb[0].mxu0
      %7559 = vmatprep.mubr.f32.mxu0 0.0
      %7560 = vmatmul.mubr.f32.gmra.mrb[0].mxu0 %v7322
      %v7561 = vpop.f32.mrb[0].mxu0
      %v7562 = vadd.f32 0.0, %v7561
      %v7563 = vpop.f32.mrb[0].mxu0
      %7564 = vdwg.mxu0
      %v7565 = vadd.f32 %v7259, %v7407
      %v7566 = vadd.f32 %v7260, %v7412
      %v7567 = vadd.f32 %v7261, %v7417
      %v7568 = vadd.f32 %v7262, %v7422
      %v7569 = vadd.f32 %v7263, %v7427
      %v7570 = vadd.f32 %v7264, %v7432
      %v7571 = vadd.f32 %v7265, %v7437
      %v7572 = vadd.f32 %v7266, %v7442
      %v7573 = vadd.f32 %v7267, %v7447
      %v7574 = vadd.f32 %v7268, %v7452
      %v7575 = vadd.f32 %v7269, %v7457
      %v7576 = vadd.f32 %v7270, %v7462
      %v7577 = vadd.f32 %v7271, %v7467
      %v7578 = vadd.f32 %v7272, %v7472
      %v7579 = vadd.f32 %v7273, %v7477
      %v7580 = vadd.f32 %v7274, %v7482
      %v7581 = vadd.f32 %v7275, %v7487
      %v7582 = vadd.f32 %v7276, %v7492
      %v7583 = vadd.f32 %v7277, %v7497
      %v7584 = vadd.f32 %v7278, %v7502
      %v7585 = vadd.f32 %v7279, %v7507
      %v7586 = vadd.f32 %v7280, %v7512
      %v7587 = vadd.f32 %v7281, %v7517
      %v7588 = vadd.f32 %v7282, %v7522
      %v7589 = vadd.f32 %v7283, %v7527
      %v7590 = vadd.f32 %v7284, %v7532
      %v7591 = vadd.f32 %v7285, %v7537
      %v7592 = vadd.f32 %v7286, %v7542
      %v7593 = vadd.f32 %v7287, %v7547
      %v7594 = vadd.f32 %v7288, %v7552
      %v7595 = vadd.f32 %v7289, %v7557
      %v7596 = vadd.f32 %v7290, %v7562
      %v7597 = vld [vmem:[%s4810] sm:$0xff]
      %v7598 = vld [vmem:[%s4810 + $0x8] sm:$0xff]
      %v7599 = vld [vmem:[%s4810 + $0x18] sm:$0xff]
      %v7600 = vld [vmem:[%s4810 + $0x20] sm:$0xff]
      %v7601 = vld [vmem:[%s4810 + $0x30] sm:$0xff]
      %v7602 = vld [vmem:[%s4810 + $0x38] sm:$0xff]
      %v7603 = vld [vmem:[%s4810 + $0x48] sm:$0xff]
      %v7604 = vld [vmem:[%s4810 + $0x50] sm:$0xff]
      %v7605 = vld [vmem:[%s4810 + $0x60] sm:$0xff]
      %v7606 = vld [vmem:[%s4810 + $0x68] sm:$0xff]
      %v7607 = vld [vmem:[%s4810 + $0x78] sm:$0xff]
      %v7608 = vld [vmem:[%s4810 + $0x80] sm:$0xff]
      %v7609 = vld [vmem:[%s4810 + $0x90] sm:$0xff]
      %v7610 = vld [vmem:[%s4810 + $0x98] sm:$0xff]
      %v7611 = vld [vmem:[%s4810 + $0xa8] sm:$0xff]
      %v7612 = vld [vmem:[%s4810 + $0xb0] sm:$0xff]
      %v7613 = vld [vmem:[%s4810 + $0xc0] sm:$0xff]
      %v7614 = vld [vmem:[%s4810 + $0xc8] sm:$0xff]
      %v7615 = vld [vmem:[%s4810 + $0xd8] sm:$0xff]
      %v7616 = vld [vmem:[%s4810 + $0xe0] sm:$0xff]
      %v7617 = vld [vmem:[%s4810 + $0xf0] sm:$0xff]
      %v7618 = vld [vmem:[%s4810 + $0xf8] sm:$0xff]
      %v7619 = vld [vmem:[%s4810 + $0x108] sm:$0xff]
      %v7620 = vld [vmem:[%s4810 + $0x110] sm:$0xff]
      %v7621 = vld [vmem:[%s4810 + $0x120] sm:$0xff]
      %v7622 = vld [vmem:[%s4810 + $0x128] sm:$0xff]
      %v7623 = vld [vmem:[%s4810 + $0x138] sm:$0xff]
      %v7624 = vld [vmem:[%s4810 + $0x140] sm:$0xff]
      %v7625 = vld [vmem:[%s4810 + $0x150] sm:$0xff]
      %v7626 = vld [vmem:[%s4810 + $0x158] sm:$0xff]
      %v7627 = vld [vmem:[%s4810 + $0x168] sm:$0xff]
      %v7628 = vld [vmem:[%s4810 + $0x170] sm:$0xff]
      %s7629 = scalar_lea.vmem %s1, 3072
      %v7630 = vld [vmem:[%s7629] sm:$0xff]
      %v7631 = vld [vmem:[%s7629 + $0x8] sm:$0xff]
      %v7632 = vld [vmem:[%s7629 + $0x10] sm:$0xff]
      %v7633 = vld [vmem:[%s7629 + $0x18] sm:$0xff]
      %v7634 = vld [vmem:[%s7629 + $0x20] sm:$0xff]
      %v7635 = vld [vmem:[%s7629 + $0x28] sm:$0xff]
      %v7636 = vld [vmem:[%s7629 + $0x30] sm:$0xff]
      %v7637 = vld [vmem:[%s7629 + $0x38] sm:$0xff]
      %v7638 = vld [vmem:[%s7629 + $0x40] sm:$0xff]
      %v7639 = vld [vmem:[%s7629 + $0x48] sm:$0xff]
      %v7640 = vld [vmem:[%s7629 + $0x50] sm:$0xff]
      %v7641 = vld [vmem:[%s7629 + $0x58] sm:$0xff]
      %v7642 = vld [vmem:[%s7629 + $0x60] sm:$0xff]
      %v7643 = vld [vmem:[%s7629 + $0x68] sm:$0xff]
      %v7644 = vld [vmem:[%s7629 + $0x70] sm:$0xff]
      %v7645 = vld [vmem:[%s7629 + $0x78] sm:$0xff]
      %7646 = vmatprep.subr.mxu0 0.0
      %7647 = vmatpush1.msra.mxu0 %v7630
      %7648 = vmatprep.subr.mxu0 0.0
      %7649 = vmatpush1.msra.mxu0 %v7631
      %7650 = vmatprep.subr.mxu0 0.0
      %7651 = vmatpush1.msra.mxu0 %v7632
      %7652 = vmatprep.subr.mxu0 0.0
      %7653 = vmatpush1.msra.mxu0 %v7633
      %7654 = vmatprep.subr.mxu0 0.0
      %7655 = vmatpush1.msra.mxu0 %v7634
      %7656 = vmatprep.subr.mxu0 0.0
      %7657 = vmatpush1.msra.mxu0 %v7635
      %7658 = vmatprep.subr.mxu0 0.0
      %7659 = vmatpush1.msra.mxu0 %v7636
      %7660 = vmatprep.subr.mxu0 0.0
      %7661 = vmatpush1.msra.mxu0 %v7637
      %7662 = vmatprep.subr.mxu0 0.0
      %7663 = vmatpush1.msra.mxu0 %v7638
      %7664 = vmatprep.subr.mxu0 0.0
      %7665 = vmatpush1.msra.mxu0 %v7639
      %7666 = vmatprep.subr.mxu0 0.0
      %7667 = vmatpush1.msra.mxu0 %v7640
      %7668 = vmatprep.subr.mxu0 0.0
      %7669 = vmatpush1.msra.mxu0 %v7641
      %7670 = vmatprep.subr.mxu0 0.0
      %7671 = vmatpush1.msra.mxu0 %v7642
      %7672 = vmatprep.subr.mxu0 0.0
      %7673 = vmatpush1.msra.mxu0 %v7643
      %7674 = vmatprep.subr.mxu0 0.0
      %7675 = vmatpush1.msra.mxu0 %v7644
      %7676 = vmatprep.subr.mxu0 0.0
      %7677 = vmatpush1.msra.mxu0 %v7645
      %7678 = vmatprep.subr.mxu0 0.0
      %7679 = vmatpush1.msra.mxu0 0.0
      %7680 = vmatprep.subr.mxu0 0.0
      %7681 = vmatpush1.msra.mxu0 0.0
      %7682 = vmatprep.subr.mxu0 0.0
      %7683 = vmatpush1.msra.mxu0 0.0
      %7684 = vmatprep.subr.mxu0 0.0
      %7685 = vmatpush1.msra.mxu0 0.0
      %7686 = vmatprep.subr.mxu0 0.0
      %7687 = vmatpush1.msra.mxu0 0.0
      %7688 = vmatprep.subr.mxu0 0.0
      %7689 = vmatpush1.msra.mxu0 0.0
      %7690 = vmatprep.subr.mxu0 0.0
      %7691 = vmatpush1.msra.mxu0 0.0
      %7692 = vmatprep.subr.mxu0 0.0
      %7693 = vmatpush1.msra.mxu0 0.0
      %7694 = vmatprep.subr.mxu0 0.0
      %7695 = vmatpush1.msra.mxu0 0.0
      %7696 = vmatprep.subr.mxu0 0.0
      %7697 = vmatpush1.msra.mxu0 0.0
      %7698 = vmatprep.subr.mxu0 0.0
      %7699 = vmatpush1.msra.mxu0 0.0
      %7700 = vmatprep.subr.mxu0 0.0
      %7701 = vmatpush1.msra.mxu0 0.0
      %7702 = vmatprep.subr.mxu0 0.0
      %7703 = vmatpush1.msra.mxu0 0.0
      %7704 = vmatprep.subr.mxu0 0.0
      %7705 = vmatpush1.msra.mxu0 0.0
      %7706 = vmatprep.subr.mxu0 0.0
      %7707 = vmatpush1.msra.mxu0 0.0
      %7708 = vmatprep.subr.mxu0 0.0
      %7709 = vmatpush1.msra.mxu0 0.0
      %7710 = vmatprep.mubr.f32.mxu0 0.0
      %7711 = vmatmul.mubr.f32.gmra.mrb[0].mxu0 %v7597
      %v7712 = vpop.f32.mrb[0].mxu0
      %v7713 = vadd.f32 0.0, %v7712
      %v7714 = vpop.f32.mrb[0].mxu0
      %7715 = vmatprep.mubr.f32.mxu0 0.0
      %7716 = vmatmul.mubr.f32.gmra.mrb[0].mxu0 %v7598
      %v7717 = vpop.f32.mrb[0].mxu0
      %v7718 = vadd.f32 0.0, %v7717
      %v7719 = vpop.f32.mrb[0].mxu0
      %7720 = vmatprep.mubr.f32.mxu0 0.0
      %7721 = vmatmul.mubr.f32.gmra.mrb[0].mxu0 %v7599
      %v7722 = vpop.f32.mrb[0].mxu0
      %v7723 = vadd.f32 0.0, %v7722
      %v7724 = vpop.f32.mrb[0].mxu0
      %7725 = vmatprep.mubr.f32.mxu0 0.0
      %7726 = vmatmul.mubr.f32.gmra.mrb[0].mxu0 %v7600
      %v7727 = vpop.f32.mrb[0].mxu0
      %v7728 = vadd.f32 0.0, %v7727
      %v7729 = vpop.f32.mrb[0].mxu0
      %7730 = vmatprep.mubr.f32.mxu0 0.0
      %7731 = vmatmul.mubr.f32.gmra.mrb[0].mxu0 %v7601
      %v7732 = vpop.f32.mrb[0].mxu0
      %v7733 = vadd.f32 0.0, %v7732
      %v7734 = vpop.f32.mrb[0].mxu0
      %7735 = vmatprep.mubr.f32.mxu0 0.0
      %7736 = vmatmul.mubr.f32.gmra.mrb[0].mxu0 %v7602
      %v7737 = vpop.f32.mrb[0].mxu0
      %v7738 = vadd.f32 0.0, %v7737
      %v7739 = vpop.f32.mrb[0].mxu0
      %7740 = vmatprep.mubr.f32.mxu0 0.0
      %7741 = vmatmul.mubr.f32.gmra.mrb[0].mxu0 %v7603
      %v7742 = vpop.f32.mrb[0].mxu0
      %v7743 = vadd.f32 0.0, %v7742
      %v7744 = vpop.f32.mrb[0].mxu0
      %7745 = vmatprep.mubr.f32.mxu0 0.0
      %7746 = vmatmul.mubr.f32.gmra.mrb[0].mxu0 %v7604
      %v7747 = vpop.f32.mrb[0].mxu0
      %v7748 = vadd.f32 0.0, %v7747
      %v7749 = vpop.f32.mrb[0].mxu0
      %7750 = vmatprep.mubr.f32.mxu0 0.0
      %7751 = vmatmul.mubr.f32.gmra.mrb[0].mxu0 %v7605
      %v7752 = vpop.f32.mrb[0].mxu0
      %v7753 = vadd.f32 0.0, %v7752
      %v7754 = vpop.f32.mrb[0].mxu0
      %7755 = vmatprep.mubr.f32.mxu0 0.0
      %7756 = vmatmul.mubr.f32.gmra.mrb[0].mxu0 %v7606
      %v7757 = vpop.f32.mrb[0].mxu0
      %v7758 = vadd.f32 0.0, %v7757
      %v7759 = vpop.f32.mrb[0].mxu0
      %7760 = vmatprep.mubr.f32.mxu0 0.0
      %7761 = vmatmul.mubr.f32.gmra.mrb[0].mxu0 %v7607
      %v7762 = vpop.f32.mrb[0].mxu0
      %v7763 = vadd.f32 0.0, %v7762
      %v7764 = vpop.f32.mrb[0].mxu0
      %7765 = vmatprep.mubr.f32.mxu0 0.0
      %7766 = vmatmul.mubr.f32.gmra.mrb[0].mxu0 %v7608
      %v7767 = vpop.f32.mrb[0].mxu0
      %v7768 = vadd.f32 0.0, %v7767
      %v7769 = vpop.f32.mrb[0].mxu0
      %7770 = vmatprep.mubr.f32.mxu0 0.0
      %7771 = vmatmul.mubr.f32.gmra.mrb[0].mxu0 %v7609
      %v7772 = vpop.f32.mrb[0].mxu0
      %v7773 = vadd.f32 0.0, %v7772
      %v7774 = vpop.f32.mrb[0].mxu0
      %7775 = vmatprep.mubr.f32.mxu0 0.0
      %7776 = vmatmul.mubr.f32.gmra.mrb[0].mxu0 %v7610
      %v7777 = vpop.f32.mrb[0].mxu0
      %v7778 = vadd.f32 0.0, %v7777
      %v7779 = vpop.f32.mrb[0].mxu0
      %7780 = vmatprep.mubr.f32.mxu0 0.0
      %7781 = vmatmul.mubr.f32.gmra.mrb[0].mxu0 %v7611
      %v7782 = vpop.f32.mrb[0].mxu0
      %v7783 = vadd.f32 0.0, %v7782
      %v7784 = vpop.f32.mrb[0].mxu0
      %7785 = vmatprep.mubr.f32.mxu0 0.0
      %7786 = vmatmul.mubr.f32.gmra.mrb[0].mxu0 %v7612
      %v7787 = vpop.f32.mrb[0].mxu0
      %v7788 = vadd.f32 0.0, %v7787
      %v7789 = vpop.f32.mrb[0].mxu0
      %7790 = vmatprep.mubr.f32.mxu0 0.0
      %7791 = vmatmul.mubr.f32.gmra.mrb[0].mxu0 %v7613
      %v7792 = vpop.f32.mrb[0].mxu0
      %v7793 = vadd.f32 0.0, %v7792
      %v7794 = vpop.f32.mrb[0].mxu0
      %7795 = vmatprep.mubr.f32.mxu0 0.0
      %7796 = vmatmul.mubr.f32.gmra.mrb[0].mxu0 %v7614
      %v7797 = vpop.f32.mrb[0].mxu0
      %v7798 = vadd.f32 0.0, %v7797
      %v7799 = vpop.f32.mrb[0].mxu0
      %7800 = vmatprep.mubr.f32.mxu0 0.0
      %7801 = vmatmul.mubr.f32.gmra.mrb[0].mxu0 %v7615
      %v7802 = vpop.f32.mrb[0].mxu0
      %v7803 = vadd.f32 0.0, %v7802
      %v7804 = vpop.f32.mrb[0].mxu0
      %7805 = vmatprep.mubr.f32.mxu0 0.0
      %7806 = vmatmul.mubr.f32.gmra.mrb[0].mxu0 %v7616
      %v7807 = vpop.f32.mrb[0].mxu0
      %v7808 = vadd.f32 0.0, %v7807
      %v7809 = vpop.f32.mrb[0].mxu0
      %7810 = vmatprep.mubr.f32.mxu0 0.0
      %7811 = vmatmul.mubr.f32.gmra.mrb[0].mxu0 %v7617
      %v7812 = vpop.f32.mrb[0].mxu0
      %v7813 = vadd.f32 0.0, %v7812
      %v7814 = vpop.f32.mrb[0].mxu0
      %7815 = vmatprep.mubr.f32.mxu0 0.0
      %7816 = vmatmul.mubr.f32.gmra.mrb[0].mxu0 %v7618
      %v7817 = vpop.f32.mrb[0].mxu0
      %v7818 = vadd.f32 0.0, %v7817
      %v7819 = vpop.f32.mrb[0].mxu0
      %7820 = vmatprep.mubr.f32.mxu0 0.0
      %7821 = vmatmul.mubr.f32.gmra.mrb[0].mxu0 %v7619
      %v7822 = vpop.f32.mrb[0].mxu0
      %v7823 = vadd.f32 0.0, %v7822
      %v7824 = vpop.f32.mrb[0].mxu0
      %7825 = vmatprep.mubr.f32.mxu0 0.0
      %7826 = vmatmul.mubr.f32.gmra.mrb[0].mxu0 %v7620
      %v7827 = vpop.f32.mrb[0].mxu0
      %v7828 = vadd.f32 0.0, %v7827
      %v7829 = vpop.f32.mrb[0].mxu0
      %7830 = vmatprep.mubr.f32.mxu0 0.0
      %7831 = vmatmul.mubr.f32.gmra.mrb[0].mxu0 %v7621
      %v7832 = vpop.f32.mrb[0].mxu0
      %v7833 = vadd.f32 0.0, %v7832
      %v7834 = vpop.f32.mrb[0].mxu0
      %7835 = vmatprep.mubr.f32.mxu0 0.0
      %7836 = vmatmul.mubr.f32.gmra.mrb[0].mxu0 %v7622
      %v7837 = vpop.f32.mrb[0].mxu0
      %v7838 = vadd.f32 0.0, %v7837
      %v7839 = vpop.f32.mrb[0].mxu0
      %7840 = vmatprep.mubr.f32.mxu0 0.0
      %7841 = vmatmul.mubr.f32.gmra.mrb[0].mxu0 %v7623
      %v7842 = vpop.f32.mrb[0].mxu0
      %v7843 = vadd.f32 0.0, %v7842
      %v7844 = vpop.f32.mrb[0].mxu0
      %7845 = vmatprep.mubr.f32.mxu0 0.0
      %7846 = vmatmul.mubr.f32.gmra.mrb[0].mxu0 %v7624
      %v7847 = vpop.f32.mrb[0].mxu0
      %v7848 = vadd.f32 0.0, %v7847
      %v7849 = vpop.f32.mrb[0].mxu0
      %7850 = vmatprep.mubr.f32.mxu0 0.0
      %7851 = vmatmul.mubr.f32.gmra.mrb[0].mxu0 %v7625
      %v7852 = vpop.f32.mrb[0].mxu0
      %v7853 = vadd.f32 0.0, %v7852
      %v7854 = vpop.f32.mrb[0].mxu0
      %7855 = vmatprep.mubr.f32.mxu0 0.0
      %7856 = vmatmul.mubr.f32.gmra.mrb[0].mxu0 %v7626
      %v7857 = vpop.f32.mrb[0].mxu0
      %v7858 = vadd.f32 0.0, %v7857
      %v7859 = vpop.f32.mrb[0].mxu0
      %7860 = vmatprep.mubr.f32.mxu0 0.0
      %7861 = vmatmul.mubr.f32.gmra.mrb[0].mxu0 %v7627
      %v7862 = vpop.f32.mrb[0].mxu0
      %v7863 = vadd.f32 0.0, %v7862
      %v7864 = vpop.f32.mrb[0].mxu0
      %7865 = vmatprep.mubr.f32.mxu0 0.0
      %7866 = vmatmul.mubr.f32.gmra.mrb[0].mxu0 %v7628
      %v7867 = vpop.f32.mrb[0].mxu0
      %v7868 = vadd.f32 0.0, %v7867
      %v7869 = vpop.f32.mrb[0].mxu0
      %7870 = vdwg.mxu0
      %v7871 = vadd.f32 %v7565, %v7713
      %v7872 = vadd.f32 %v7566, %v7718
      %v7873 = vadd.f32 %v7567, %v7723
      %v7874 = vadd.f32 %v7568, %v7728
      %v7875 = vadd.f32 %v7569, %v7733
      %v7876 = vadd.f32 %v7570, %v7738
      %v7877 = vadd.f32 %v7571, %v7743
      %v7878 = vadd.f32 %v7572, %v7748
      %v7879 = vadd.f32 %v7573, %v7753
      %v7880 = vadd.f32 %v7574, %v7758
      %v7881 = vadd.f32 %v7575, %v7763
      %v7882 = vadd.f32 %v7576, %v7768
      %v7883 = vadd.f32 %v7577, %v7773
      %v7884 = vadd.f32 %v7578, %v7778
      %v7885 = vadd.f32 %v7579, %v7783
      %v7886 = vadd.f32 %v7580, %v7788
      %v7887 = vadd.f32 %v7581, %v7793
      %v7888 = vadd.f32 %v7582, %v7798
      %v7889 = vadd.f32 %v7583, %v7803
      %v7890 = vadd.f32 %v7584, %v7808
      %v7891 = vadd.f32 %v7585, %v7813
      %v7892 = vadd.f32 %v7586, %v7818
      %v7893 = vadd.f32 %v7587, %v7823
      %v7894 = vadd.f32 %v7588, %v7828
      %v7895 = vadd.f32 %v7589, %v7833
      %v7896 = vadd.f32 %v7590, %v7838
      %v7897 = vadd.f32 %v7591, %v7843
      %v7898 = vadd.f32 %v7592, %v7848
      %v7899 = vadd.f32 %v7593, %v7853
      %v7900 = vadd.f32 %v7594, %v7858
      %v7901 = vadd.f32 %v7595, %v7863
      %v7902 = vadd.f32 %v7596, %v7868
      %v7903 = vld [vmem:[%s4810 + $0x1] sm:$0xff]
      %v7904 = vld [vmem:[%s4810 + $0x9] sm:$0xff]
      %v7905 = vld [vmem:[%s4810 + $0x19] sm:$0xff]
      %v7906 = vld [vmem:[%s4810 + $0x21] sm:$0xff]
      %v7907 = vld [vmem:[%s4810 + $0x31] sm:$0xff]
      %v7908 = vld [vmem:[%s4810 + $0x39] sm:$0xff]
      %v7909 = vld [vmem:[%s4810 + $0x49] sm:$0xff]
      %v7910 = vld [vmem:[%s4810 + $0x51] sm:$0xff]
      %v7911 = vld [vmem:[%s4810 + $0x61] sm:$0xff]
      %v7912 = vld [vmem:[%s4810 + $0x69] sm:$0xff]
      %v7913 = vld [vmem:[%s4810 + $0x79] sm:$0xff]
      %v7914 = vld [vmem:[%s4810 + $0x81] sm:$0xff]
      %v7915 = vld [vmem:[%s4810 + $0x91] sm:$0xff]
      %v7916 = vld [vmem:[%s4810 + $0x99] sm:$0xff]
      %v7917 = vld [vmem:[%s4810 + $0xa9] sm:$0xff]
      %v7918 = vld [vmem:[%s4810 + $0xb1] sm:$0xff]
      %v7919 = vld [vmem:[%s4810 + $0xc1] sm:$0xff]
      %v7920 = vld [vmem:[%s4810 + $0xc9] sm:$0xff]
      %v7921 = vld [vmem:[%s4810 + $0xd9] sm:$0xff]
      %v7922 = vld [vmem:[%s4810 + $0xe1] sm:$0xff]
      %v7923 = vld [vmem:[%s4810 + $0xf1] sm:$0xff]
      %v7924 = vld [vmem:[%s4810 + $0xf9] sm:$0xff]
      %v7925 = vld [vmem:[%s4810 + $0x109] sm:$0xff]
      %v7926 = vld [vmem:[%s4810 + $0x111] sm:$0xff]
      %v7927 = vld [vmem:[%s4810 + $0x121] sm:$0xff]
      %v7928 = vld [vmem:[%s4810 + $0x129] sm:$0xff]
      %v7929 = vld [vmem:[%s4810 + $0x139] sm:$0xff]
      %v7930 = vld [vmem:[%s4810 + $0x141] sm:$0xff]
      %v7931 = vld [vmem:[%s4810 + $0x151] sm:$0xff]
      %v7932 = vld [vmem:[%s4810 + $0x159] sm:$0xff]
      %v7933 = vld [vmem:[%s4810 + $0x169] sm:$0xff]
      %v7934 = vld [vmem:[%s4810 + $0x171] sm:$0xff]
      %s7935 = scalar_lea.vmem %s1, 3200
      %v7936 = vld [vmem:[%s7935] sm:$0xff]
      %v7937 = vld [vmem:[%s7935 + $0x8] sm:$0xff]
      %v7938 = vld [vmem:[%s7935 + $0x10] sm:$0xff]
      %v7939 = vld [vmem:[%s7935 + $0x18] sm:$0xff]
      %v7940 = vld [vmem:[%s7935 + $0x20] sm:$0xff]
      %v7941 = vld [vmem:[%s7935 + $0x28] sm:$0xff]
      %v7942 = vld [vmem:[%s7935 + $0x30] sm:$0xff]
      %v7943 = vld [vmem:[%s7935 + $0x38] sm:$0xff]
      %v7944 = vld [vmem:[%s7935 + $0x40] sm:$0xff]
      %v7945 = vld [vmem:[%s7935 + $0x48] sm:$0xff]
      %v7946 = vld [vmem:[%s7935 + $0x50] sm:$0xff]
      %v7947 = vld [vmem:[%s7935 + $0x58] sm:$0xff]
      %v7948 = vld [vmem:[%s7935 + $0x60] sm:$0xff]
      %v7949 = vld [vmem:[%s7935 + $0x68] sm:$0xff]
      %v7950 = vld [vmem:[%s7935 + $0x70] sm:$0xff]
      %v7951 = vld [vmem:[%s7935 + $0x78] sm:$0xff]
      %7952 = vmatprep.subr.mxu0 0.0
      %7953 = vmatpush1.msra.mxu0 %v7936
      %7954 = vmatprep.subr.mxu0 0.0
      %7955 = vmatpush1.msra.mxu0 %v7937
      %7956 = vmatprep.subr.mxu0 0.0
      %7957 = vmatpush1.msra.mxu0 %v7938
      %7958 = vmatprep.subr.mxu0 0.0
      %7959 = vmatpush1.msra.mxu0 %v7939
      %7960 = vmatprep.subr.mxu0 0.0
      %7961 = vmatpush1.msra.mxu0 %v7940
      %7962 = vmatprep.subr.mxu0 0.0
      %7963 = vmatpush1.msra.mxu0 %v7941
      %7964 = vmatprep.subr.mxu0 0.0
      %7965 = vmatpush1.msra.mxu0 %v7942
      %7966 = vmatprep.subr.mxu0 0.0
      %7967 = vmatpush1.msra.mxu0 %v7943
      %7968 = vmatprep.subr.mxu0 0.0
      %7969 = vmatpush1.msra.mxu0 %v7944
      %7970 = vmatprep.subr.mxu0 0.0
      %7971 = vmatpush1.msra.mxu0 %v7945
      %7972 = vmatprep.subr.mxu0 0.0
      %7973 = vmatpush1.msra.mxu0 %v7946
      %7974 = vmatprep.subr.mxu0 0.0
      %7975 = vmatpush1.msra.mxu0 %v7947
      %7976 = vmatprep.subr.mxu0 0.0
      %7977 = vmatpush1.msra.mxu0 %v7948
      %7978 = vmatprep.subr.mxu0 0.0
      %7979 = vmatpush1.msra.mxu0 %v7949
      %7980 = vmatprep.subr.mxu0 0.0
      %7981 = vmatpush1.msra.mxu0 %v7950
      %7982 = vmatprep.subr.mxu0 0.0
      %7983 = vmatpush1.msra.mxu0 %v7951
      %7984 = vmatprep.subr.mxu0 0.0
      %7985 = vmatpush1.msra.mxu0 0.0
      %7986 = vmatprep.subr.mxu0 0.0
      %7987 = vmatpush1.msra.mxu0 0.0
      %7988 = vmatprep.subr.mxu0 0.0
      %7989 = vmatpush1.msra.mxu0 0.0
      %7990 = vmatprep.subr.mxu0 0.0
      %7991 = vmatpush1.msra.mxu0 0.0
      %7992 = vmatprep.subr.mxu0 0.0
      %7993 = vmatpush1.msra.mxu0 0.0
      %7994 = vmatprep.subr.mxu0 0.0
      %7995 = vmatpush1.msra.mxu0 0.0
      %7996 = vmatprep.subr.mxu0 0.0
      %7997 = vmatpush1.msra.mxu0 0.0
      %7998 = vmatprep.subr.mxu0 0.0
      %7999 = vmatpush1.msra.mxu0 0.0
      %8000 = vmatprep.subr.mxu0 0.0
      %8001 = vmatpush1.msra.mxu0 0.0
      %8002 = vmatprep.subr.mxu0 0.0
      %8003 = vmatpush1.msra.mxu0 0.0
      %8004 = vmatprep.subr.mxu0 0.0
      %8005 = vmatpush1.msra.mxu0 0.0
      %8006 = vmatprep.subr.mxu0 0.0
      %8007 = vmatpush1.msra.mxu0 0.0
      %8008 = vmatprep.subr.mxu0 0.0
      %8009 = vmatpush1.msra.mxu0 0.0
      %8010 = vmatprep.subr.mxu0 0.0
      %8011 = vmatpush1.msra.mxu0 0.0
      %8012 = vmatprep.subr.mxu0 0.0
      %8013 = vmatpush1.msra.mxu0 0.0
      %8014 = vmatprep.subr.mxu0 0.0
      %8015 = vmatpush1.msra.mxu0 0.0
      %8016 = vmatprep.mubr.f32.mxu0 0.0
      %8017 = vmatmul.mubr.f32.gmra.mrb[0].mxu0 %v7903
      %v8018 = vpop.f32.mrb[0].mxu0
      %v8019 = vadd.f32 0.0, %v8018
      %v8020 = vpop.f32.mrb[0].mxu0
      %8021 = vmatprep.mubr.f32.mxu0 0.0
      %8022 = vmatmul.mubr.f32.gmra.mrb[0].mxu0 %v7904
      %v8023 = vpop.f32.mrb[0].mxu0
      %v8024 = vadd.f32 0.0, %v8023
      %v8025 = vpop.f32.mrb[0].mxu0
      %8026 = vmatprep.mubr.f32.mxu0 0.0
      %8027 = vmatmul.mubr.f32.gmra.mrb[0].mxu0 %v7905
      %v8028 = vpop.f32.mrb[0].mxu0
      %v8029 = vadd.f32 0.0, %v8028
      %v8030 = vpop.f32.mrb[0].mxu0
      %8031 = vmatprep.mubr.f32.mxu0 0.0
      %8032 = vmatmul.mubr.f32.gmra.mrb[0].mxu0 %v7906
      %v8033 = vpop.f32.mrb[0].mxu0
      %v8034 = vadd.f32 0.0, %v8033
      %v8035 = vpop.f32.mrb[0].mxu0
      %8036 = vmatprep.mubr.f32.mxu0 0.0
      %8037 = vmatmul.mubr.f32.gmra.mrb[0].mxu0 %v7907
      %v8038 = vpop.f32.mrb[0].mxu0
      %v8039 = vadd.f32 0.0, %v8038
      %v8040 = vpop.f32.mrb[0].mxu0
      %8041 = vmatprep.mubr.f32.mxu0 0.0
      %8042 = vmatmul.mubr.f32.gmra.mrb[0].mxu0 %v7908
      %v8043 = vpop.f32.mrb[0].mxu0
      %v8044 = vadd.f32 0.0, %v8043
      %v8045 = vpop.f32.mrb[0].mxu0
      %8046 = vmatprep.mubr.f32.mxu0 0.0
      %8047 = vmatmul.mubr.f32.gmra.mrb[0].mxu0 %v7909
      %v8048 = vpop.f32.mrb[0].mxu0
      %v8049 = vadd.f32 0.0, %v8048
      %v8050 = vpop.f32.mrb[0].mxu0
      %8051 = vmatprep.mubr.f32.mxu0 0.0
      %8052 = vmatmul.mubr.f32.gmra.mrb[0].mxu0 %v7910
      %v8053 = vpop.f32.mrb[0].mxu0
      %v8054 = vadd.f32 0.0, %v8053
      %v8055 = vpop.f32.mrb[0].mxu0
      %8056 = vmatprep.mubr.f32.mxu0 0.0
      %8057 = vmatmul.mubr.f32.gmra.mrb[0].mxu0 %v7911
      %v8058 = vpop.f32.mrb[0].mxu0
      %v8059 = vadd.f32 0.0, %v8058
      %v8060 = vpop.f32.mrb[0].mxu0
      %8061 = vmatprep.mubr.f32.mxu0 0.0
      %8062 = vmatmul.mubr.f32.gmra.mrb[0].mxu0 %v7912
      %v8063 = vpop.f32.mrb[0].mxu0
      %v8064 = vadd.f32 0.0, %v8063
      %v8065 = vpop.f32.mrb[0].mxu0
      %8066 = vmatprep.mubr.f32.mxu0 0.0
      %8067 = vmatmul.mubr.f32.gmra.mrb[0].mxu0 %v7913
      %v8068 = vpop.f32.mrb[0].mxu0
      %v8069 = vadd.f32 0.0, %v8068
      %v8070 = vpop.f32.mrb[0].mxu0
      %8071 = vmatprep.mubr.f32.mxu0 0.0
      %8072 = vmatmul.mubr.f32.gmra.mrb[0].mxu0 %v7914
      %v8073 = vpop.f32.mrb[0].mxu0
      %v8074 = vadd.f32 0.0, %v8073
      %v8075 = vpop.f32.mrb[0].mxu0
      %8076 = vmatprep.mubr.f32.mxu0 0.0
      %8077 = vmatmul.mubr.f32.gmra.mrb[0].mxu0 %v7915
      %v8078 = vpop.f32.mrb[0].mxu0
      %v8079 = vadd.f32 0.0, %v8078
      %v8080 = vpop.f32.mrb[0].mxu0
      %8081 = vmatprep.mubr.f32.mxu0 0.0
      %8082 = vmatmul.mubr.f32.gmra.mrb[0].mxu0 %v7916
      %v8083 = vpop.f32.mrb[0].mxu0
      %v8084 = vadd.f32 0.0, %v8083
      %v8085 = vpop.f32.mrb[0].mxu0
      %8086 = vmatprep.mubr.f32.mxu0 0.0
      %8087 = vmatmul.mubr.f32.gmra.mrb[0].mxu0 %v7917
      %v8088 = vpop.f32.mrb[0].mxu0
      %v8089 = vadd.f32 0.0, %v8088
      %v8090 = vpop.f32.mrb[0].mxu0
      %8091 = vmatprep.mubr.f32.mxu0 0.0
      %8092 = vmatmul.mubr.f32.gmra.mrb[0].mxu0 %v7918
      %v8093 = vpop.f32.mrb[0].mxu0
      %v8094 = vadd.f32 0.0, %v8093
      %v8095 = vpop.f32.mrb[0].mxu0
      %8096 = vmatprep.mubr.f32.mxu0 0.0
      %8097 = vmatmul.mubr.f32.gmra.mrb[0].mxu0 %v7919
      %v8098 = vpop.f32.mrb[0].mxu0
      %v8099 = vadd.f32 0.0, %v8098
      %v8100 = vpop.f32.mrb[0].mxu0
      %8101 = vmatprep.mubr.f32.mxu0 0.0
      %8102 = vmatmul.mubr.f32.gmra.mrb[0].mxu0 %v7920
      %v8103 = vpop.f32.mrb[0].mxu0
      %v8104 = vadd.f32 0.0, %v8103
      %v8105 = vpop.f32.mrb[0].mxu0
      %8106 = vmatprep.mubr.f32.mxu0 0.0
      %8107 = vmatmul.mubr.f32.gmra.mrb[0].mxu0 %v7921
      %v8108 = vpop.f32.mrb[0].mxu0
      %v8109 = vadd.f32 0.0, %v8108
      %v8110 = vpop.f32.mrb[0].mxu0
      %8111 = vmatprep.mubr.f32.mxu0 0.0
      %8112 = vmatmul.mubr.f32.gmra.mrb[0].mxu0 %v7922
      %v8113 = vpop.f32.mrb[0].mxu0
      %v8114 = vadd.f32 0.0, %v8113
      %v8115 = vpop.f32.mrb[0].mxu0
      %8116 = vmatprep.mubr.f32.mxu0 0.0
      %8117 = vmatmul.mubr.f32.gmra.mrb[0].mxu0 %v7923
      %v8118 = vpop.f32.mrb[0].mxu0
      %v8119 = vadd.f32 0.0, %v8118
      %v8120 = vpop.f32.mrb[0].mxu0
      %8121 = vmatprep.mubr.f32.mxu0 0.0
      %8122 = vmatmul.mubr.f32.gmra.mrb[0].mxu0 %v7924
      %v8123 = vpop.f32.mrb[0].mxu0
      %v8124 = vadd.f32 0.0, %v8123
      %v8125 = vpop.f32.mrb[0].mxu0
      %8126 = vmatprep.mubr.f32.mxu0 0.0
      %8127 = vmatmul.mubr.f32.gmra.mrb[0].mxu0 %v7925
      %v8128 = vpop.f32.mrb[0].mxu0
      %v8129 = vadd.f32 0.0, %v8128
      %v8130 = vpop.f32.mrb[0].mxu0
      %8131 = vmatprep.mubr.f32.mxu0 0.0
      %8132 = vmatmul.mubr.f32.gmra.mrb[0].mxu0 %v7926
      %v8133 = vpop.f32.mrb[0].mxu0
      %v8134 = vadd.f32 0.0, %v8133
      %v8135 = vpop.f32.mrb[0].mxu0
      %8136 = vmatprep.mubr.f32.mxu0 0.0
      %8137 = vmatmul.mubr.f32.gmra.mrb[0].mxu0 %v7927
      %v8138 = vpop.f32.mrb[0].mxu0
      %v8139 = vadd.f32 0.0, %v8138
      %v8140 = vpop.f32.mrb[0].mxu0
      %8141 = vmatprep.mubr.f32.mxu0 0.0
      %8142 = vmatmul.mubr.f32.gmra.mrb[0].mxu0 %v7928
      %v8143 = vpop.f32.mrb[0].mxu0
      %v8144 = vadd.f32 0.0, %v8143
      %v8145 = vpop.f32.mrb[0].mxu0
      %8146 = vmatprep.mubr.f32.mxu0 0.0
      %8147 = vmatmul.mubr.f32.gmra.mrb[0].mxu0 %v7929
      %v8148 = vpop.f32.mrb[0].mxu0
      %v8149 = vadd.f32 0.0, %v8148
      %v8150 = vpop.f32.mrb[0].mxu0
      %8151 = vmatprep.mubr.f32.mxu0 0.0
      %8152 = vmatmul.mubr.f32.gmra.mrb[0].mxu0 %v7930
      %v8153 = vpop.f32.mrb[0].mxu0
      %v8154 = vadd.f32 0.0, %v8153
      %v8155 = vpop.f32.mrb[0].mxu0
      %8156 = vmatprep.mubr.f32.mxu0 0.0
      %8157 = vmatmul.mubr.f32.gmra.mrb[0].mxu0 %v7931
      %v8158 = vpop.f32.mrb[0].mxu0
      %v8159 = vadd.f32 0.0, %v8158
      %v8160 = vpop.f32.mrb[0].mxu0
      %8161 = vmatprep.mubr.f32.mxu0 0.0
      %8162 = vmatmul.mubr.f32.gmra.mrb[0].mxu0 %v7932
      %v8163 = vpop.f32.mrb[0].mxu0
      %v8164 = vadd.f32 0.0, %v8163
      %v8165 = vpop.f32.mrb[0].mxu0
      %8166 = vmatprep.mubr.f32.mxu0 0.0
      %8167 = vmatmul.mubr.f32.gmra.mrb[0].mxu0 %v7933
      %v8168 = vpop.f32.mrb[0].mxu0
      %v8169 = vadd.f32 0.0, %v8168
      %v8170 = vpop.f32.mrb[0].mxu0
      %8171 = vmatprep.mubr.f32.mxu0 0.0
      %8172 = vmatmul.mubr.f32.gmra.mrb[0].mxu0 %v7934
      %v8173 = vpop.f32.mrb[0].mxu0
      %v8174 = vadd.f32 0.0, %v8173
      %v8175 = vpop.f32.mrb[0].mxu0
      %8176 = vdwg.mxu0
      %v8177 = vadd.f32 %v7871, %v8019
      %v8178 = vadd.f32 %v7872, %v8024
      %v8179 = vadd.f32 %v7873, %v8029
      %v8180 = vadd.f32 %v7874, %v8034
      %v8181 = vadd.f32 %v7875, %v8039
      %v8182 = vadd.f32 %v7876, %v8044
      %v8183 = vadd.f32 %v7877, %v8049
      %v8184 = vadd.f32 %v7878, %v8054
      %v8185 = vadd.f32 %v7879, %v8059
      %v8186 = vadd.f32 %v7880, %v8064
      %v8187 = vadd.f32 %v7881, %v8069
      %v8188 = vadd.f32 %v7882, %v8074
      %v8189 = vadd.f32 %v7883, %v8079
      %v8190 = vadd.f32 %v7884, %v8084
      %v8191 = vadd.f32 %v7885, %v8089
      %v8192 = vadd.f32 %v7886, %v8094
      %v8193 = vadd.f32 %v7887, %v8099
      %v8194 = vadd.f32 %v7888, %v8104
      %v8195 = vadd.f32 %v7889, %v8109
      %v8196 = vadd.f32 %v7890, %v8114
      %v8197 = vadd.f32 %v7891, %v8119
      %v8198 = vadd.f32 %v7892, %v8124
      %v8199 = vadd.f32 %v7893, %v8129
      %v8200 = vadd.f32 %v7894, %v8134
      %v8201 = vadd.f32 %v7895, %v8139
      %v8202 = vadd.f32 %v7896, %v8144
      %v8203 = vadd.f32 %v7897, %v8149
      %v8204 = vadd.f32 %v7898, %v8154
      %v8205 = vadd.f32 %v7899, %v8159
      %v8206 = vadd.f32 %v7900, %v8164
      %v8207 = vadd.f32 %v7901, %v8169
      %v8208 = vadd.f32 %v7902, %v8174
      %v8209 = vld [vmem:[%s4810 + $0x2] sm:$0xff]
      %v8210 = vld [vmem:[%s4810 + $0xa] sm:$0xff]
      %v8211 = vld [vmem:[%s4810 + $0x1a] sm:$0xff]
      %v8212 = vld [vmem:[%s4810 + $0x22] sm:$0xff]
      %v8213 = vld [vmem:[%s4810 + $0x32] sm:$0xff]
      %v8214 = vld [vmem:[%s4810 + $0x3a] sm:$0xff]
      %v8215 = vld [vmem:[%s4810 + $0x4a] sm:$0xff]
      %v8216 = vld [vmem:[%s4810 + $0x52] sm:$0xff]
      %v8217 = vld [vmem:[%s4810 + $0x62] sm:$0xff]
      %v8218 = vld [vmem:[%s4810 + $0x6a] sm:$0xff]
      %v8219 = vld [vmem:[%s4810 + $0x7a] sm:$0xff]
      %v8220 = vld [vmem:[%s4810 + $0x82] sm:$0xff]
      %v8221 = vld [vmem:[%s4810 + $0x92] sm:$0xff]
      %v8222 = vld [vmem:[%s4810 + $0x9a] sm:$0xff]
      %v8223 = vld [vmem:[%s4810 + $0xaa] sm:$0xff]
      %v8224 = vld [vmem:[%s4810 + $0xb2] sm:$0xff]
      %v8225 = vld [vmem:[%s4810 + $0xc2] sm:$0xff]
      %v8226 = vld [vmem:[%s4810 + $0xca] sm:$0xff]
      %v8227 = vld [vmem:[%s4810 + $0xda] sm:$0xff]
      %v8228 = vld [vmem:[%s4810 + $0xe2] sm:$0xff]
      %v8229 = vld [vmem:[%s4810 + $0xf2] sm:$0xff]
      %v8230 = vld [vmem:[%s4810 + $0xfa] sm:$0xff]
      %v8231 = vld [vmem:[%s4810 + $0x10a] sm:$0xff]
      %v8232 = vld [vmem:[%s4810 + $0x112] sm:$0xff]
      %v8233 = vld [vmem:[%s4810 + $0x122] sm:$0xff]
      %v8234 = vld [vmem:[%s4810 + $0x12a] sm:$0xff]
      %v8235 = vld [vmem:[%s4810 + $0x13a] sm:$0xff]
      %v8236 = vld [vmem:[%s4810 + $0x142] sm:$0xff]
      %v8237 = vld [vmem:[%s4810 + $0x152] sm:$0xff]
      %v8238 = vld [vmem:[%s4810 + $0x15a] sm:$0xff]
      %v8239 = vld [vmem:[%s4810 + $0x16a] sm:$0xff]
      %v8240 = vld [vmem:[%s4810 + $0x172] sm:$0xff]
      %s8241 = scalar_lea.vmem %s1, 3328
      %v8242 = vld [vmem:[%s8241] sm:$0xff]
      %v8243 = vld [vmem:[%s8241 + $0x8] sm:$0xff]
      %v8244 = vld [vmem:[%s8241 + $0x10] sm:$0xff]
      %v8245 = vld [vmem:[%s8241 + $0x18] sm:$0xff]
      %v8246 = vld [vmem:[%s8241 + $0x20] sm:$0xff]
      %v8247 = vld [vmem:[%s8241 + $0x28] sm:$0xff]
      %v8248 = vld [vmem:[%s8241 + $0x30] sm:$0xff]
      %v8249 = vld [vmem:[%s8241 + $0x38] sm:$0xff]
      %v8250 = vld [vmem:[%s8241 + $0x40] sm:$0xff]
      %v8251 = vld [vmem:[%s8241 + $0x48] sm:$0xff]
      %v8252 = vld [vmem:[%s8241 + $0x50] sm:$0xff]
      %v8253 = vld [vmem:[%s8241 + $0x58] sm:$0xff]
      %v8254 = vld [vmem:[%s8241 + $0x60] sm:$0xff]
      %v8255 = vld [vmem:[%s8241 + $0x68] sm:$0xff]
      %v8256 = vld [vmem:[%s8241 + $0x70] sm:$0xff]
      %v8257 = vld [vmem:[%s8241 + $0x78] sm:$0xff]
      %8258 = vmatprep.subr.mxu0 0.0
      %8259 = vmatpush1.msra.mxu0 %v8242
      %8260 = vmatprep.subr.mxu0 0.0
      %8261 = vmatpush1.msra.mxu0 %v8243
      %8262 = vmatprep.subr.mxu0 0.0
      %8263 = vmatpush1.msra.mxu0 %v8244
      %8264 = vmatprep.subr.mxu0 0.0
      %8265 = vmatpush1.msra.mxu0 %v8245
      %8266 = vmatprep.subr.mxu0 0.0
      %8267 = vmatpush1.msra.mxu0 %v8246
      %8268 = vmatprep.subr.mxu0 0.0
      %8269 = vmatpush1.msra.mxu0 %v8247
      %8270 = vmatprep.subr.mxu0 0.0
      %8271 = vmatpush1.msra.mxu0 %v8248
      %8272 = vmatprep.subr.mxu0 0.0
      %8273 = vmatpush1.msra.mxu0 %v8249
      %8274 = vmatprep.subr.mxu0 0.0
      %8275 = vmatpush1.msra.mxu0 %v8250
      %8276 = vmatprep.subr.mxu0 0.0
      %8277 = vmatpush1.msra.mxu0 %v8251
      %8278 = vmatprep.subr.mxu0 0.0
      %8279 = vmatpush1.msra.mxu0 %v8252
      %8280 = vmatprep.subr.mxu0 0.0
      %8281 = vmatpush1.msra.mxu0 %v8253
      %8282 = vmatprep.subr.mxu0 0.0
      %8283 = vmatpush1.msra.mxu0 %v8254
      %8284 = vmatprep.subr.mxu0 0.0
      %8285 = vmatpush1.msra.mxu0 %v8255
      %8286 = vmatprep.subr.mxu0 0.0
      %8287 = vmatpush1.msra.mxu0 %v8256
      %8288 = vmatprep.subr.mxu0 0.0
      %8289 = vmatpush1.msra.mxu0 %v8257
      %8290 = vmatprep.subr.mxu0 0.0
      %8291 = vmatpush1.msra.mxu0 0.0
      %8292 = vmatprep.subr.mxu0 0.0
      %8293 = vmatpush1.msra.mxu0 0.0
      %8294 = vmatprep.subr.mxu0 0.0
      %8295 = vmatpush1.msra.mxu0 0.0
      %8296 = vmatprep.subr.mxu0 0.0
      %8297 = vmatpush1.msra.mxu0 0.0
      %8298 = vmatprep.subr.mxu0 0.0
      %8299 = vmatpush1.msra.mxu0 0.0
      %8300 = vmatprep.subr.mxu0 0.0
      %8301 = vmatpush1.msra.mxu0 0.0
      %8302 = vmatprep.subr.mxu0 0.0
      %8303 = vmatpush1.msra.mxu0 0.0
      %8304 = vmatprep.subr.mxu0 0.0
      %8305 = vmatpush1.msra.mxu0 0.0
      %8306 = vmatprep.subr.mxu0 0.0
      %8307 = vmatpush1.msra.mxu0 0.0
      %8308 = vmatprep.subr.mxu0 0.0
      %8309 = vmatpush1.msra.mxu0 0.0
      %8310 = vmatprep.subr.mxu0 0.0
      %8311 = vmatpush1.msra.mxu0 0.0
      %8312 = vmatprep.subr.mxu0 0.0
      %8313 = vmatpush1.msra.mxu0 0.0
      %8314 = vmatprep.subr.mxu0 0.0
      %8315 = vmatpush1.msra.mxu0 0.0
      %8316 = vmatprep.subr.mxu0 0.0
      %8317 = vmatpush1.msra.mxu0 0.0
      %8318 = vmatprep.subr.mxu0 0.0
      %8319 = vmatpush1.msra.mxu0 0.0
      %8320 = vmatprep.subr.mxu0 0.0
      %8321 = vmatpush1.msra.mxu0 0.0
      %8322 = vmatprep.mubr.f32.mxu0 0.0
      %8323 = vmatmul.mubr.f32.gmra.mrb[0].mxu0 %v8209
      %v8324 = vpop.f32.mrb[0].mxu0
      %v8325 = vadd.f32 0.0, %v8324
      %v8326 = vpop.f32.mrb[0].mxu0
      %8327 = vmatprep.mubr.f32.mxu0 0.0
      %8328 = vmatmul.mubr.f32.gmra.mrb[0].mxu0 %v8210
      %v8329 = vpop.f32.mrb[0].mxu0
      %v8330 = vadd.f32 0.0, %v8329
      %v8331 = vpop.f32.mrb[0].mxu0
      %8332 = vmatprep.mubr.f32.mxu0 0.0
      %8333 = vmatmul.mubr.f32.gmra.mrb[0].mxu0 %v8211
      %v8334 = vpop.f32.mrb[0].mxu0
      %v8335 = vadd.f32 0.0, %v8334
      %v8336 = vpop.f32.mrb[0].mxu0
      %8337 = vmatprep.mubr.f32.mxu0 0.0
      %8338 = vmatmul.mubr.f32.gmra.mrb[0].mxu0 %v8212
      %v8339 = vpop.f32.mrb[0].mxu0
      %v8340 = vadd.f32 0.0, %v8339
      %v8341 = vpop.f32.mrb[0].mxu0
      %8342 = vmatprep.mubr.f32.mxu0 0.0
      %8343 = vmatmul.mubr.f32.gmra.mrb[0].mxu0 %v8213
      %v8344 = vpop.f32.mrb[0].mxu0
      %v8345 = vadd.f32 0.0, %v8344
      %v8346 = vpop.f32.mrb[0].mxu0
      %8347 = vmatprep.mubr.f32.mxu0 0.0
      %8348 = vmatmul.mubr.f32.gmra.mrb[0].mxu0 %v8214
      %v8349 = vpop.f32.mrb[0].mxu0
      %v8350 = vadd.f32 0.0, %v8349
      %v8351 = vpop.f32.mrb[0].mxu0
      %8352 = vmatprep.mubr.f32.mxu0 0.0
      %8353 = vmatmul.mubr.f32.gmra.mrb[0].mxu0 %v8215
      %v8354 = vpop.f32.mrb[0].mxu0
      %v8355 = vadd.f32 0.0, %v8354
      %v8356 = vpop.f32.mrb[0].mxu0
      %8357 = vmatprep.mubr.f32.mxu0 0.0
      %8358 = vmatmul.mubr.f32.gmra.mrb[0].mxu0 %v8216
      %v8359 = vpop.f32.mrb[0].mxu0
      %v8360 = vadd.f32 0.0, %v8359
      %v8361 = vpop.f32.mrb[0].mxu0
      %8362 = vmatprep.mubr.f32.mxu0 0.0
      %8363 = vmatmul.mubr.f32.gmra.mrb[0].mxu0 %v8217
      %v8364 = vpop.f32.mrb[0].mxu0
      %v8365 = vadd.f32 0.0, %v8364
      %v8366 = vpop.f32.mrb[0].mxu0
      %8367 = vmatprep.mubr.f32.mxu0 0.0
      %8368 = vmatmul.mubr.f32.gmra.mrb[0].mxu0 %v8218
      %v8369 = vpop.f32.mrb[0].mxu0
      %v8370 = vadd.f32 0.0, %v8369
      %v8371 = vpop.f32.mrb[0].mxu0
      %8372 = vmatprep.mubr.f32.mxu0 0.0
      %8373 = vmatmul.mubr.f32.gmra.mrb[0].mxu0 %v8219
      %v8374 = vpop.f32.mrb[0].mxu0
      %v8375 = vadd.f32 0.0, %v8374
      %v8376 = vpop.f32.mrb[0].mxu0
      %8377 = vmatprep.mubr.f32.mxu0 0.0
      %8378 = vmatmul.mubr.f32.gmra.mrb[0].mxu0 %v8220
      %v8379 = vpop.f32.mrb[0].mxu0
      %v8380 = vadd.f32 0.0, %v8379
      %v8381 = vpop.f32.mrb[0].mxu0
      %8382 = vmatprep.mubr.f32.mxu0 0.0
      %8383 = vmatmul.mubr.f32.gmra.mrb[0].mxu0 %v8221
      %v8384 = vpop.f32.mrb[0].mxu0
      %v8385 = vadd.f32 0.0, %v8384
      %v8386 = vpop.f32.mrb[0].mxu0
      %8387 = vmatprep.mubr.f32.mxu0 0.0
      %8388 = vmatmul.mubr.f32.gmra.mrb[0].mxu0 %v8222
      %v8389 = vpop.f32.mrb[0].mxu0
      %v8390 = vadd.f32 0.0, %v8389
      %v8391 = vpop.f32.mrb[0].mxu0
      %8392 = vmatprep.mubr.f32.mxu0 0.0
      %8393 = vmatmul.mubr.f32.gmra.mrb[0].mxu0 %v8223
      %v8394 = vpop.f32.mrb[0].mxu0
      %v8395 = vadd.f32 0.0, %v8394
      %v8396 = vpop.f32.mrb[0].mxu0
      %8397 = vmatprep.mubr.f32.mxu0 0.0
      %8398 = vmatmul.mubr.f32.gmra.mrb[0].mxu0 %v8224
      %v8399 = vpop.f32.mrb[0].mxu0
      %v8400 = vadd.f32 0.0, %v8399
      %v8401 = vpop.f32.mrb[0].mxu0
      %8402 = vmatprep.mubr.f32.mxu0 0.0
      %8403 = vmatmul.mubr.f32.gmra.mrb[0].mxu0 %v8225
      %v8404 = vpop.f32.mrb[0].mxu0
      %v8405 = vadd.f32 0.0, %v8404
      %v8406 = vpop.f32.mrb[0].mxu0
      %8407 = vmatprep.mubr.f32.mxu0 0.0
      %8408 = vmatmul.mubr.f32.gmra.mrb[0].mxu0 %v8226
      %v8409 = vpop.f32.mrb[0].mxu0
      %v8410 = vadd.f32 0.0, %v8409
      %v8411 = vpop.f32.mrb[0].mxu0
      %8412 = vmatprep.mubr.f32.mxu0 0.0
      %8413 = vmatmul.mubr.f32.gmra.mrb[0].mxu0 %v8227
      %v8414 = vpop.f32.mrb[0].mxu0
      %v8415 = vadd.f32 0.0, %v8414
      %v8416 = vpop.f32.mrb[0].mxu0
      %8417 = vmatprep.mubr.f32.mxu0 0.0
      %8418 = vmatmul.mubr.f32.gmra.mrb[0].mxu0 %v8228
      %v8419 = vpop.f32.mrb[0].mxu0
      %v8420 = vadd.f32 0.0, %v8419
      %v8421 = vpop.f32.mrb[0].mxu0
      %8422 = vmatprep.mubr.f32.mxu0 0.0
      %8423 = vmatmul.mubr.f32.gmra.mrb[0].mxu0 %v8229
      %v8424 = vpop.f32.mrb[0].mxu0
      %v8425 = vadd.f32 0.0, %v8424
      %v8426 = vpop.f32.mrb[0].mxu0
      %8427 = vmatprep.mubr.f32.mxu0 0.0
      %8428 = vmatmul.mubr.f32.gmra.mrb[0].mxu0 %v8230
      %v8429 = vpop.f32.mrb[0].mxu0
      %v8430 = vadd.f32 0.0, %v8429
      %v8431 = vpop.f32.mrb[0].mxu0
      %8432 = vmatprep.mubr.f32.mxu0 0.0
      %8433 = vmatmul.mubr.f32.gmra.mrb[0].mxu0 %v8231
      %v8434 = vpop.f32.mrb[0].mxu0
      %v8435 = vadd.f32 0.0, %v8434
      %v8436 = vpop.f32.mrb[0].mxu0
      %8437 = vmatprep.mubr.f32.mxu0 0.0
      %8438 = vmatmul.mubr.f32.gmra.mrb[0].mxu0 %v8232
      %v8439 = vpop.f32.mrb[0].mxu0
      %v8440 = vadd.f32 0.0, %v8439
      %v8441 = vpop.f32.mrb[0].mxu0
      %8442 = vmatprep.mubr.f32.mxu0 0.0
      %8443 = vmatmul.mubr.f32.gmra.mrb[0].mxu0 %v8233
      %v8444 = vpop.f32.mrb[0].mxu0
      %v8445 = vadd.f32 0.0, %v8444
      %v8446 = vpop.f32.mrb[0].mxu0
      %8447 = vmatprep.mubr.f32.mxu0 0.0
      %8448 = vmatmul.mubr.f32.gmra.mrb[0].mxu0 %v8234
      %v8449 = vpop.f32.mrb[0].mxu0
      %v8450 = vadd.f32 0.0, %v8449
      %v8451 = vpop.f32.mrb[0].mxu0
      %8452 = vmatprep.mubr.f32.mxu0 0.0
      %8453 = vmatmul.mubr.f32.gmra.mrb[0].mxu0 %v8235
      %v8454 = vpop.f32.mrb[0].mxu0
      %v8455 = vadd.f32 0.0, %v8454
      %v8456 = vpop.f32.mrb[0].mxu0
      %8457 = vmatprep.mubr.f32.mxu0 0.0
      %8458 = vmatmul.mubr.f32.gmra.mrb[0].mxu0 %v8236
      %v8459 = vpop.f32.mrb[0].mxu0
      %v8460 = vadd.f32 0.0, %v8459
      %v8461 = vpop.f32.mrb[0].mxu0
      %8462 = vmatprep.mubr.f32.mxu0 0.0
      %8463 = vmatmul.mubr.f32.gmra.mrb[0].mxu0 %v8237
      %v8464 = vpop.f32.mrb[0].mxu0
      %v8465 = vadd.f32 0.0, %v8464
      %v8466 = vpop.f32.mrb[0].mxu0
      %8467 = vmatprep.mubr.f32.mxu0 0.0
      %8468 = vmatmul.mubr.f32.gmra.mrb[0].mxu0 %v8238
      %v8469 = vpop.f32.mrb[0].mxu0
      %v8470 = vadd.f32 0.0, %v8469
      %v8471 = vpop.f32.mrb[0].mxu0
      %8472 = vmatprep.mubr.f32.mxu0 0.0
      %8473 = vmatmul.mubr.f32.gmra.mrb[0].mxu0 %v8239
      %v8474 = vpop.f32.mrb[0].mxu0
      %v8475 = vadd.f32 0.0, %v8474
      %v8476 = vpop.f32.mrb[0].mxu0
      %8477 = vmatprep.mubr.f32.mxu0 0.0
      %8478 = vmatmul.mubr.f32.gmra.mrb[0].mxu0 %v8240
      %v8479 = vpop.f32.mrb[0].mxu0
      %v8480 = vadd.f32 0.0, %v8479
      %v8481 = vpop.f32.mrb[0].mxu0
      %8482 = vdwg.mxu0
      %v8483 = vadd.f32 %v8177, %v8325
      %v8484 = vadd.f32 %v8178, %v8330
      %v8485 = vadd.f32 %v8179, %v8335
      %v8486 = vadd.f32 %v8180, %v8340
      %v8487 = vadd.f32 %v8181, %v8345
      %v8488 = vadd.f32 %v8182, %v8350
      %v8489 = vadd.f32 %v8183, %v8355
      %v8490 = vadd.f32 %v8184, %v8360
      %v8491 = vadd.f32 %v8185, %v8365
      %v8492 = vadd.f32 %v8186, %v8370
      %v8493 = vadd.f32 %v8187, %v8375
      %v8494 = vadd.f32 %v8188, %v8380
      %v8495 = vadd.f32 %v8189, %v8385
      %v8496 = vadd.f32 %v8190, %v8390
      %v8497 = vadd.f32 %v8191, %v8395
      %v8498 = vadd.f32 %v8192, %v8400
      %v8499 = vadd.f32 %v8193, %v8405
      %v8500 = vadd.f32 %v8194, %v8410
      %v8501 = vadd.f32 %v8195, %v8415
      %v8502 = vadd.f32 %v8196, %v8420
      %v8503 = vadd.f32 %v8197, %v8425
      %v8504 = vadd.f32 %v8198, %v8430
      %v8505 = vadd.f32 %v8199, %v8435
      %v8506 = vadd.f32 %v8200, %v8440
      %v8507 = vadd.f32 %v8201, %v8445
      %v8508 = vadd.f32 %v8202, %v8450
      %v8509 = vadd.f32 %v8203, %v8455
      %v8510 = vadd.f32 %v8204, %v8460
      %v8511 = vadd.f32 %v8205, %v8465
      %v8512 = vadd.f32 %v8206, %v8470
      %v8513 = vadd.f32 %v8207, %v8475
      %v8514 = vadd.f32 %v8208, %v8480
      %v8515 = vld [vmem:[%s185] sm:$0xff]
      %v8516 = vld [vmem:[%s185 + $0x8] sm:$0xff]
      %v8517 = vld [vmem:[%s185 + $0x10] sm:$0xff]
      %v8518 = vld [vmem:[%s185 + $0x18] sm:$0xff]
      %v8519 = vld [vmem:[%s185 + $0x20] sm:$0xff]
      %v8520 = vld [vmem:[%s185 + $0x28] sm:$0xff]
      %v8521 = vld [vmem:[%s185 + $0x30] sm:$0xff]
      %v8522 = vld [vmem:[%s185 + $0x38] sm:$0xff]
      %v8523 = vld [vmem:[%s185 + $0x40] sm:$0xff]
      %v8524 = vld [vmem:[%s185 + $0x48] sm:$0xff]
      %v8525 = vld [vmem:[%s185 + $0x50] sm:$0xff]
      %v8526 = vld [vmem:[%s185 + $0x58] sm:$0xff]
      %v8527 = vld [vmem:[%s185 + $0x60] sm:$0xff]
      %v8528 = vld [vmem:[%s185 + $0x68] sm:$0xff]
      %v8529 = vld [vmem:[%s185 + $0x70] sm:$0xff]
      %v8530 = vld [vmem:[%s185 + $0x78] sm:$0xff]
      %v8531 = vld [vmem:[%s185 + $0x80] sm:$0xff]
      %v8532 = vld [vmem:[%s185 + $0x88] sm:$0xff]
      %v8533 = vld [vmem:[%s185 + $0x90] sm:$0xff]
      %v8534 = vld [vmem:[%s185 + $0x98] sm:$0xff]
      %v8535 = vld [vmem:[%s185 + $0xa0] sm:$0xff]
      %v8536 = vld [vmem:[%s185 + $0xa8] sm:$0xff]
      %v8537 = vld [vmem:[%s185 + $0xb0] sm:$0xff]
      %v8538 = vld [vmem:[%s185 + $0xb8] sm:$0xff]
      %v8539 = vld [vmem:[%s185 + $0xc0] sm:$0xff]
      %v8540 = vld [vmem:[%s185 + $0xc8] sm:$0xff]
      %v8541 = vld [vmem:[%s185 + $0xd0] sm:$0xff]
      %v8542 = vld [vmem:[%s185 + $0xd8] sm:$0xff]
      %v8543 = vld [vmem:[%s185 + $0xe0] sm:$0xff]
      %v8544 = vld [vmem:[%s185 + $0xe8] sm:$0xff]
      %v8545 = vld [vmem:[%s185 + $0xf0] sm:$0xff]
      %v8546 = vld [vmem:[%s185 + $0xf8] sm:$0xff]
      %v8547 = vadd.f32 %v8483, %v8515
      %v8548 = vadd.f32 %v8484, %v8516
      %v8549 = vadd.f32 %v8485, %v8517
      %v8550 = vadd.f32 %v8486, %v8518
      %v8551 = vadd.f32 %v8487, %v8519
      %v8552 = vadd.f32 %v8488, %v8520
      %v8553 = vadd.f32 %v8489, %v8521
      %v8554 = vadd.f32 %v8490, %v8522
      %v8555 = vadd.f32 %v8491, %v8523
      %v8556 = vadd.f32 %v8492, %v8524
      %v8557 = vadd.f32 %v8493, %v8525
      %v8558 = vadd.f32 %v8494, %v8526
      %v8559 = vadd.f32 %v8495, %v8527
      %v8560 = vadd.f32 %v8496, %v8528
      %v8561 = vadd.f32 %v8497, %v8529
      %v8562 = vadd.f32 %v8498, %v8530
      %v8563 = vadd.f32 %v8499, %v8531
      %v8564 = vadd.f32 %v8500, %v8532
      %v8565 = vadd.f32 %v8501, %v8533
      %v8566 = vadd.f32 %v8502, %v8534
      %v8567 = vadd.f32 %v8503, %v8535
      %v8568 = vadd.f32 %v8504, %v8536
      %v8569 = vadd.f32 %v8505, %v8537
      %v8570 = vadd.f32 %v8506, %v8538
      %v8571 = vadd.f32 %v8507, %v8539
      %v8572 = vadd.f32 %v8508, %v8540
      %v8573 = vadd.f32 %v8509, %v8541
      %v8574 = vadd.f32 %v8510, %v8542
      %v8575 = vadd.f32 %v8511, %v8543
      %v8576 = vadd.f32 %v8512, %v8544
      %v8577 = vadd.f32 %v8513, %v8545
      %v8578 = vadd.f32 %v8514, %v8546
      %8579 = vst [vmem:[%s190] sm:$0xff] %v8547
      %8580 = vst [vmem:[%s190 + $0x8] sm:$0xff] %v8548
      %8581 = vst [vmem:[%s190 + $0x10] sm:$0xff] %v8549
      %8582 = vst [vmem:[%s190 + $0x18] sm:$0xff] %v8550
      %8583 = vst [vmem:[%s190 + $0x20] sm:$0xff] %v8551
      %8584 = vst [vmem:[%s190 + $0x28] sm:$0xff] %v8552
      %8585 = vst [vmem:[%s190 + $0x30] sm:$0xff] %v8553
      %8586 = vst [vmem:[%s190 + $0x38] sm:$0xff] %v8554
      %8587 = vst [vmem:[%s190 + $0x40] sm:$0xff] %v8555
      %8588 = vst [vmem:[%s190 + $0x48] sm:$0xff] %v8556
      %8589 = vst [vmem:[%s190 + $0x50] sm:$0xff] %v8557
      %8590 = vst [vmem:[%s190 + $0x58] sm:$0xff] %v8558
      %8591 = vst [vmem:[%s190 + $0x60] sm:$0xff] %v8559
      %8592 = vst [vmem:[%s190 + $0x68] sm:$0xff] %v8560
      %8593 = vst [vmem:[%s190 + $0x70] sm:$0xff] %v8561
      %8594 = vst [vmem:[%s190 + $0x78] sm:$0xff] %v8562
      %8595 = vst [vmem:[%s190 + $0x80] sm:$0xff] %v8563
      %8596 = vst [vmem:[%s190 + $0x88] sm:$0xff] %v8564
      %8597 = vst [vmem:[%s190 + $0x90] sm:$0xff] %v8565
      %8598 = vst [vmem:[%s190 + $0x98] sm:$0xff] %v8566
      %8599 = vst [vmem:[%s190 + $0xa0] sm:$0xff] %v8567
      %8600 = vst [vmem:[%s190 + $0xa8] sm:$0xff] %v8568
      %8601 = vst [vmem:[%s190 + $0xb0] sm:$0xff] %v8569
      %8602 = vst [vmem:[%s190 + $0xb8] sm:$0xff] %v8570
      %8603 = vst [vmem:[%s190 + $0xc0] sm:$0xff] %v8571
      %8604 = vst [vmem:[%s190 + $0xc8] sm:$0xff] %v8572
      %8605 = vst [vmem:[%s190 + $0xd0] sm:$0xff] %v8573
      %8606 = vst [vmem:[%s190 + $0xd8] sm:$0xff] %v8574
      %8607 = vst [vmem:[%s190 + $0xe0] sm:$0xff] %v8575
      %8608 = vst [vmem:[%s190 + $0xe8] sm:$0xff] %v8576
      %8609 = vst [vmem:[%s190 + $0xf0] sm:$0xff] %v8577
      %8610 = vst [vmem:[%s190 + $0xf8] sm:$0xff] %v8578
      %p8611 = scmp.lt.s32.totalorder %s14, 1
      %s8612 = scalar_select %p8611, %s14, 1
      %s8613 = smul.addr %s8612, 32
      %s8614 = smul.addr %s8613, 8
      %s8615 = scalar_lea.vmem %s3, %s8614
      // Predicated region
      $region33: #{run.1} parent=31 // pred_check
        %p8616 = pneg %p105
      $region34: #{run.1} parent=31 // pred_check_branch
        %8618 = sbr.rel (%p8616) target = $region36
      $region35: #{run.1} parent=31 // pred_region
        _
      $region36: #{run.1} parent=31 // pred_fallthru
        _
    $region32: #{run.1} parent=5 // pred_fallthru
      _
    %p8619 = scmp.le.s32.totalorder 2, %s9
    // Predicated region
    $region37: #{run.1} parent=5 // pred_check
      %p8620 = pneg %p8619
    $region38: #{run.1} parent=5 // pred_check_branch
      %8622 = sbr.rel (%p8620) target = $region40
    $region39: #{run.1} parent=5 // pred_region
      %s8623 = ssub.s32 %s9, 2
      // Predicated region
      $region41: #{run.1} parent=39 // pred_check
        %p8624 = pneg %p111
      $region42: #{run.1} parent=39 // pred_check_branch
        %8626 = sbr.rel (%p8624) target = $region44
      $region43: #{run.1} parent=39 // pred_region
        %p8627 = scmp.lt.s32.totalorder %s15, 1
        %s8628 = scalar_select %p8627, %s15, 1
        %s8629 = smul.addr %s8628, 32
        %s8630 = smul.addr %s8629, 8
        %s8631 = scalar_lea.vmem %s3, %s8630
      $region44: #{run.1} parent=39 // pred_fallthru
        _
    $region40: #{run.1} parent=5 // pred_fallthru
      _
  $region6: #{run.1} parent=0 // loop_footer
    %s13 = sadd.s32 1, %s9
  $region7: #{run.1} parent=0 // loop_footer_branch
    %8 = sbr.rel target = $region3
  $region8: #{run.1} parent=0 // loop_exit
    _

</llo_original>
